<compile_context>
chip_gen: v6e
topology: v6e:2x2x1
jax: 0.10.0
libtpu: 0.0.40
codegen_flags: <defaults>
</compile_context>

<pallas_src>
import jax
import jax.numpy as jnp
import numpy as np
from jax.experimental import pallas as pl
from jax.experimental.pallas import tpu as pltpu

CROP = 224
RESIZE = 256
NUM_CLASSES = 10
D = 3 * CROP * CROP          # 150528 flattened features (channel-major)


def _default_reduction_steps():
    """3 pipelined reduction steps by default; 1 step on v7x (see header)."""
    try:
        kind = jax.devices()[0].device_kind.lower()
    except Exception:
        kind = ""
    return 1 if "v7" in kind else 3


_REDUCTION_STEPS = _default_reduction_steps()   # both 1 and 3 divide D; TK % 128 == 0


def _predictor_kernel(x_ref, wt_ref, b_ref, o_ref, acc_ref):
    """Streaming classifier matmul (tiled over feature dim) + fused softmax.

    Normalize is folded into W/b in the wrapper, so the kernel is a pure bf16
    matmul with f32 accumulation; the bias seeds the accumulator and the
    softmax (max-subtracted, EUP reciprocal) runs at the last reduction step.
    """
    k = pl.program_id(0)

    @pl.when(k == 0)
    def _init():
        # Seed the accumulator with the folded bias -> no epilogue add.
        acc_ref[...] = jnp.broadcast_to(b_ref[...], acc_ref.shape)

    # x_ref: (B, TK) bf16, wt_ref: (NUM_CLASSES, TK) bf16 -> (B, NUM_CLASSES) f32
    acc_ref[...] += jax.lax.dot_general(
        x_ref[...], wt_ref[...],
        dimension_numbers=(((1,), (1,)), ((), ())),
        preferred_element_type=jnp.float32)

    @pl.when(k == pl.num_programs(0) - 1)
    def _finalize():
        logits = acc_ref[...]
        m = jnp.max(logits, axis=-1, keepdims=True)
        e = jnp.exp(logits - m)
        denom = jnp.sum(e, axis=-1, keepdims=True)
        o_ref[...] = (e * pl.reciprocal(denom, approx=True)).astype(o_ref.dtype)


@jax.jit
def _pallas_classify(x_flat, wt, b):
    B = x_flat.shape[0]
    steps = _REDUCTION_STEPS
    tk = D // steps

    # Advisory cost so XLA schedules this call against the preprocessing ops.
    cost = pl.CostEstimate(
        flops=2 * B * D * NUM_CLASSES,
        transcendentals=B * NUM_CLASSES,
        bytes_accessed=(B * D + NUM_CLASSES * D) * 2 + (B + 1) * NUM_CLASSES * 4,
    )

    return pl.pallas_call(
        _predictor_kernel,
        out_shape=jax.ShapeDtypeStruct((B, NUM_CLASSES), jnp.float32),
        grid_spec=pltpu.PrefetchScalarGridSpec(
            num_scalar_prefetch=0,
            grid=(steps,),
            in_specs=[
                pl.BlockSpec((B, tk), lambda k: (0, k)),              # x (bf16)
                pl.BlockSpec((NUM_CLASSES, tk), lambda k: (0, k)),    # W'^T (bf16)
                pl.BlockSpec((1, NUM_CLASSES), lambda k: (0, 0)),     # folded bias
            ],
            out_specs=pl.BlockSpec((B, NUM_CLASSES), lambda k: (0, 0)),
            scratch_shapes=[pltpu.VMEM((B, NUM_CLASSES), jnp.float32)],
        ),
        compiler_params=pltpu.CompilerParams(
            dimension_semantics=("arbitrary",),
        ),
        cost_estimate=cost,
    )(x_flat, wt, b)


def _preprocess(x_uint8):
    """Resize(256 shorter side) + CenterCrop(224), fused; uint8->float; flatten.

    Returns (B, D) bfloat16.  Normalize is folded into the classifier weights,
    so the kernel input is the plain [0, 1] image.
    """
    B, C, H, W = x_uint8.shape
    # ConvertImageDtype(torch.float): uint8 -> float32 in [0, 1]; resize/crop are
    # linear, so converting first is exact.
    x = x_uint8.astype(jnp.float32) / 255.0

    # Virtual Resize([256]) target size (shorter side -> 256, aspect preserved).
    if H <= W:
        nh, nw = RESIZE, int(round(W * RESIZE / H))
    else:
        nh, nw = int(round(H * RESIZE / W)), RESIZE
    top = (nh - CROP) // 2
    left = (nw - CROP) // 2

    # Fused Resize + CenterCrop: compute only the 224x224 window of the virtual
    # (nh, nw) resized image.  sample_f(o) = (o + 0.5)/s - t/s - 0.5 with
    # t = -top reproduces the resized rows [top, top+224) exactly (all crop
    # samples are interior, so boundary handling is identical).
    scale = jnp.array([nh / H, nw / W], jnp.float32)
    translation = jnp.array([-float(top), -float(left)], jnp.float32)
    x = jax.image.scale_and_translate(
        x, (B, C, CROP, CROP), spatial_dims=(2, 3),
        scale=scale, translation=translation, method="linear")

    # bf16 before the flatten: halves the materialized copy and the kernel's x
    # HBM stream; the MXU accumulates in f32.
    return x.astype(jnp.bfloat16).reshape(B, D)


def predictor_forward(x_uint8, params):
    """Full Predictor.forward: transforms -> model -> softmax(dim=1)."""
    wt, b = params
    x_flat = _preprocess(x_uint8)
    return _pallas_classify(x_flat, wt, b)


def make_params():
    """Deterministic synthetic parameters with Normalize folded into W / b.

    Original model: logits = ((x - mean_bcast) * (1/std_bcast)) @ W + b
    Folded:         logits = x @ W' + b'
                    W' = diag(1/std_bcast) @ W
                    b' = b - (mean_bcast / std_bcast) @ W
    W' is stored transposed (NUM_CLASSES, D) in bf16.
    """
    mean = jnp.array([0.485, 0.456, 0.406], jnp.float32)
    std = jnp.array([0.229, 0.224, 0.225], jnp.float32)
    mean_vec = jnp.repeat(mean, CROP * CROP)       # (D,) channel-major
    sinv_vec = jnp.repeat(1.0 / std, CROP * CROP)  # (D,)

    key = jax.random.PRNGKey(0)
    kw, kb = jax.random.split(key)
    w = jax.random.normal(kw, (D, NUM_CLASSES), jnp.float32) * 0.01
    b = jax.random.normal(kb, (1, NUM_CLASSES), jnp.float32) * 0.1

    w_fold = w * sinv_vec[:, None]                 # (D, NC) f32
    b_fold = b - (mean_vec * sinv_vec) @ w         # (1, NC) f32
    wt = jnp.asarray(w_fold.T, jnp.bfloat16)       # (NC, D) bf16
    return wt, b_fold


if __name__ == "__main__":
    class_names = [f"landmark_{i}" for i in range(NUM_CLASSES)]  # noqa: F841

    key = jax.random.PRNGKey(0)
    # Small batch of synthetic uint8 NCHW images (non-square to exercise the
    # aspect-preserving resize + center crop).  W' is streamed once per call
    # regardless of B, so batching amortizes the dominant HBM cost.
    B = 8
    x = jax.random.randint(key, (B, 3, 200, 240), 0, 256, dtype=jnp.int32).astype(
        jnp.uint8
    )

    params = make_params()
    probs = predictor_forward(x, params)
    probs = jax.block_until_ready(probs)

    # Pure-JAX reference for the in-kernel portion using the same preprocessed
    # bf16 input and folded bf16 weights (f32 accumulation), plus exact softmax.
    wt, b_fold = params
    x_flat = _preprocess(x)
    logits_ref = x_flat.astype(jnp.float32) @ wt.astype(jnp.float32).T + b_fold
    ref = jax.nn.softmax(logits_ref, axis=1)

    # Slightly looser atol than before to cover the EUP approx reciprocal.
    np.testing.assert_allclose(np.asarray(probs), np.asarray(ref),
                               rtol=2e-3, atol=2e-3)
    assert probs.shape == (B, NUM_CLASSES)
    np.testing.assert_allclose(np.asarray(probs).sum(axis=1), 1.0,
                               rtol=0, atol=5e-3)

    print("KERNEL_OK")
</pallas_src>

<mosaic_0001>
module attributes {stable_mosaic.version = 11 : i64} {
  func.func @_predictor_kernel(%arg0: i32, %arg1: memref<8x50176xbf16, #tpu.memory_space<vmem>>, %arg2: memref<10x50176xbf16, #tpu.memory_space<vmem>>, %arg3: memref<1x10xf32, #tpu.memory_space<vmem>>, %arg4: memref<8x10xf32, #tpu.memory_space<vmem>>, %arg5: memref<8x10xf32, #tpu.memory_space<vmem>>) attributes {dimension_semantics = [#tpu.dimension_semantics<arbitrary>], iteration_bounds = array<i64: 3>, scalar_prefetch = 0 : i64, scratch_operands = 1 : i64, tpu.core_type = #tpu.core_type<tc>, window_params = [{transform_indices = @transform_0, window_bounds = array<i64: 8, 50176>}, {transform_indices = @transform_1, window_bounds = array<i64: 10, 50176>}, {pipeline_mode = #tpu.pipeline_mode<synchronous>, transform_indices = @transform_2, window_bounds = array<i64: 1, 10>}, {pipeline_mode = #tpu.pipeline_mode<synchronous>, transform_indices = @transform_3, window_bounds = array<i64: 8, 10>}]} {
    %c0_i32 = arith.constant 0 : i32
    %0 = arith.cmpi eq, %arg0, %c0_i32 : i32
    %1 = arith.extui %0 : i1 to i32
    %c0_i32_0 = arith.constant 0 : i32
    %2 = arith.cmpi ne, %1, %c0_i32_0 : i32
    scf.if %2 {
      %c0_9 = arith.constant 0 : index
      %c0_10 = arith.constant 0 : index
      %12 = vector.load %arg3[%c0_9, %c0_10] : memref<1x10xf32, #tpu.memory_space<vmem>>, vector<1x10xf32>
      %13 = vector.shape_cast %12 : vector<1x10xf32> to vector<1x10xf32>
      %14 = vector.broadcast %13 : vector<1x10xf32> to vector<8x10xf32>
      %c0_11 = arith.constant 0 : index
      %c0_12 = arith.constant 0 : index
      %15 = vector.load %arg5[%c0_11, %c0_12] : memref<8x10xf32, #tpu.memory_space<vmem>>, vector<8x10xf32>
      tpu.vector_store %arg5[%c0_11, %c0_12], %14 {strides = array<i32>} : memref<8x10xf32, #tpu.memory_space<vmem>>, vector<8x10xf32>,
    } else {
    }
    %c0 = arith.constant 0 : index
    %c0_1 = arith.constant 0 : index
    %3 = vector.load %arg5[%c0, %c0_1] : memref<8x10xf32, #tpu.memory_space<vmem>>, vector<8x10xf32>
    %c0_2 = arith.constant 0 : index
    %c0_3 = arith.constant 0 : index
    %4 = vector.load %arg1[%c0_2, %c0_3] : memref<8x50176xbf16, #tpu.memory_space<vmem>>, vector<8x50176xbf16>
    %c0_4 = arith.constant 0 : index
    %c0_5 = arith.constant 0 : index
    %5 = vector.load %arg2[%c0_4, %c0_5] : memref<10x50176xbf16, #tpu.memory_space<vmem>>, vector<10x50176xbf16>
    %cst = arith.constant dense<0.000000e+00> : vector<8x10xf32>
    %6 = tpu.matmul %4, %5, %cst {dimension_numbers = #tpu.dot_dimension_numbers<[1], [1], [0], [0], [0, 0, 1, 0], [], []>} : vector<8x50176xbf16>, vector<10x50176xbf16>, vector<8x10xf32> -> vector<8x10xf32>
    %7 = arith.addf %3, %6 : vector<8x10xf32>
    %c0_6 = arith.constant 0 : index
    %c0_7 = arith.constant 0 : index
    %8 = vector.load %arg5[%c0_6, %c0_7] : memref<8x10xf32, #tpu.memory_space<vmem>>, vector<8x10xf32>
    tpu.vector_store %arg5[%c0_6, %c0_7], %7 {strides = array<i32>} : memref<8x10xf32, #tpu.memory_space<vmem>>, vector<8x10xf32>,
    %c2_i32 = arith.constant 2 : i32
    %9 = arith.cmpi eq, %arg0, %c2_i32 : i32
    %10 = arith.extui %9 : i1 to i32
    %c0_i32_8 = arith.constant 0 : i32
    %11 = arith.cmpi ne, %10, %c0_i32_8 : i32
    scf.if %11 {
      %c0_9 = arith.constant 0 : index
      %c0_10 = arith.constant 0 : index
      %12 = vector.load %arg5[%c0_9, %c0_10] : memref<8x10xf32, #tpu.memory_space<vmem>>, vector<8x10xf32>
      %cst_11 = arith.constant dense<0xFF800000> : vector<8xf32>
      %13 = vector.multi_reduction <maximumf>, %12, %cst_11 [1] : vector<8x10xf32> to vector<8xf32>
      %14 = vector.shape_cast %13 : vector<8xf32> to vector<8x1xf32>
      %15 = vector.broadcast %14 : vector<8x1xf32> to vector<8x10xf32>
      %16 = arith.subf %12, %15 : vector<8x10xf32>
      %17 = math.exp %16 : vector<8x10xf32>
      %cst_12 = arith.constant dense<0.000000e+00> : vector<8xf32>
      %18 = vector.multi_reduction <add>, %17, %cst_12 [1] : vector<8x10xf32> to vector<8xf32>
      %19 = vector.shape_cast %18 : vector<8xf32> to vector<8x1xf32>
      %20 = tpu.reciprocal %19 {approx = true} : vector<8x1xf32> -> vector<8x1xf32>
      %21 = vector.broadcast %20 : vector<8x1xf32> to vector<8x10xf32>
      %22 = arith.mulf %17, %21 : vector<8x10xf32>
      %c0_13 = arith.constant 0 : index
      %c0_14 = arith.constant 0 : index
      %23 = vector.load %arg4[%c0_13, %c0_14] : memref<8x10xf32, #tpu.memory_space<vmem>>, vector<8x10xf32>
      tpu.vector_store %arg4[%c0_13, %c0_14], %22 {strides = array<i32>} : memref<8x10xf32, #tpu.memory_space<vmem>>, vector<8x10xf32>,
    } else {
    }
    return
  }
  func.func @transform_0(%arg0: i32) -> (i32, i32) {
    %c0_i32 = arith.constant 0 : i32
    %c0_i32_0 = arith.constant 0 : i32
    return %c0_i32, %arg0 : i32, i32
  }
  func.func @transform_1(%arg0: i32) -> (i32, i32) {
    %c0_i32 = arith.constant 0 : i32
    %c0_i32_0 = arith.constant 0 : i32
    return %c0_i32, %arg0 : i32, i32
  }
  func.func @transform_2(%arg0: i32) -> (i32, i32) {
    %c0_i32 = arith.constant 0 : i32
    %c0_i32_0 = arith.constant 0 : i32
    %c0_i32_1 = arith.constant 0 : i32
    return %c0_i32, %c0_i32_0 : i32, i32
  }
  func.func @transform_3(%arg0: i32) -> (i32, i32) {
    %c0_i32 = arith.constant 0 : i32
    %c0_i32_0 = arith.constant 0 : i32
    %c0_i32_1 = arith.constant 0 : i32
    return %c0_i32, %c0_i32_0 : i32, i32
  }
}

</mosaic_0001>

<llo_original>
// kernel: _pallas_classify.1
$region0: #{_pallas_classify.1}
  #allocation0 [shape = 'u32[]', space=smem, size = 0x4, offset = 0x4, fixed_abs, tag = 'smem constant byte address 0x4 - core index']
  #allocation1 [shape = 'u32[144,128]{1,0:T(1,128)}', space=vmem, size = 0x12000, scoped, tag = 'internal scratch']
  #allocation2 [shape = 'f32[8,10]{1,0:T(8,128)}', space=vmem, size = 0x1000, scoped, tag = 'scratch operand']
  %s0 = inlined_call_operand.hbm [shape: bf16[8,150528], index: 0, kind: input, shape index: {}]
  %s1 = inlined_call_operand.hbm [shape: bf16[10,150528], index: 1, kind: input, shape index: {}]
  %s2 = inlined_call_operand.hbm [shape: f32[1,10], index: 2, kind: input, shape index: {}]
  %s3 = inlined_call_operand.hbm [shape: f32[8,10], index: 3, kind: output, shape index: {}]
  %s4 = sld [smem:[#allocation0]]
  $region65: #{_pallas_classify.1} parent=0
    _
  %s6 = ssub.s32 1, %s4
  %s7 = scalar_select 0, %s6, %s4
  $region1: #{_pallas_classify.1} parent=0
    #allocation3 [shape = 'u8[1605632]{0}', space=vmem, size = 0x188000, scoped, tag = 'input window, operand 0']
    #allocation4 [shape = 's32[2]{0}', space=sflag, size = 0x8, scoped, tag = 'scoped memory for _pallas_classify.1']
    #allocation5 [shape = 's32[2]{0}', space=sflag, size = 0x8, scoped, tag = 'scoped memory for _pallas_classify.1']
    #allocation6 [shape = 'u8[3211264]{0}', space=vmem, size = 0x310000, scoped, tag = 'input window, operand 1']
    #allocation7 [shape = 's32[2]{0}', space=sflag, size = 0x8, scoped, tag = 'scoped memory for _pallas_classify.1']
    #allocation8 [shape = 'u8[512]{0}', space=vmem, size = 0x400, scoped, tag = 'input window, operand 2, single buffered']
    #allocation9 [shape = 'u8[4096]{0}', space=vmem, size = 0x1000, scoped, tag = 'output window, operand 0, single buffered']
    %8 = vsyncpa [#allocation4], 0
    %s9 = scalar_lea.sflag [#allocation4], 1
    %10 = vsyncpa %s9, 0
    %11 = vsyncpa [#allocation7], 0
    %s12 = scalar_lea.sflag [#allocation7], 1
    %13 = vsyncpa %s12, 0
    %14 = vsyncpa [#allocation5], 0
    loop: start=0, step=1, limit=5
    $region2: #{_pallas_classify.1} parent=1 // loop_pre_header
      _
    $region3: #{_pallas_classify.1} parent=1 // loop_header
      %s16 = sphi 0, %s20
      %p17 = scmp.ge.s32.totalorder %s16, 5
      %s26 = sphi 0, %s28
      %s29 = sphi 0, %s26
      %s30 = sphi 0, %s29
      %s46 = sphi 0, %s30
      %s52 = sphi 0, %s54
      %s55 = sphi 0, %s52
      %s56 = sphi 0, %s55
      %s72 = sphi 0, %s56
      %s76 = sphi 0, %s76
      %s78 = sphi 0, %s76
      %s79 = sphi 0, %s78
      %s93 = sphi 0, %s79
      %s97 = sphi 0, %s97
      %s99 = sphi 0, %s97
      %s100 = sphi 0, %s99
      %s114 = sphi 0, %s100
    $region4: #{_pallas_classify.1} parent=1 // loop_header_branch
      %19 = sbr.rel (%p17) target = $region8
    $region5: #{_pallas_classify.1} parent=1 // loop_body
      %s21 = ssub.s32 %s16, 1
      %s22 = ssub.s32 %s16, 2
      %s23 = sadd.s32 %s16, 1
      %s24 = ssub.s32 %s16, %s23
      %p25 = scmp.eq.s32.totalorder %s24, 0
      %s27 = sadd.s32 %s26, 1
      %s28 = scalar_select %p25, %s26, %s27
      %p31 = pneg %p25
      %p32 = scmp.eq.s32.totalorder %s16, 2
      %p33 = por %p31, %p32
      %p34 = scmp.ne.s32.totalorder %s26, %s29
      %p35 = scmp.eq.s32.totalorder %s16, 0
      %p36 = por %p34, %p35
      %p37 = scmp.ne.s32.totalorder %s26, %s29
      %p38 = scmp.eq.s32.totalorder %s21, 2
      %p39 = por %p37, %p38
      %p40 = scmp.ne.s32.totalorder %s29, %s30
      %p41 = scmp.eq.s32.totalorder %s21, 0
      %p42 = por %p40, %p41
      %p43 = scmp.ne.s32.totalorder %s29, %s30
      %p44 = scmp.eq.s32.totalorder %s22, 2
      %p45 = por %p43, %p44
      %p47 = scmp.ne.s32.totalorder %s30, %s46
      %p48 = scmp.eq.s32.totalorder %s22, 0
      %p49 = por %p47, %p48
      %s50 = ssub.s32 %s16, %s23
      %p51 = scmp.eq.s32.totalorder %s50, 0
      %s53 = sadd.s32 %s52, 1
      %s54 = scalar_select %p51, %s52, %s53
      %p57 = pneg %p51
      %p58 = scmp.eq.s32.totalorder %s16, 2
      %p59 = por %p57, %p58
      %p60 = scmp.ne.s32.totalorder %s52, %s55
      %p61 = scmp.eq.s32.totalorder %s16, 0
      %p62 = por %p60, %p61
      %p63 = scmp.ne.s32.totalorder %s52, %s55
      %p64 = scmp.eq.s32.totalorder %s21, 2
      %p65 = por %p63, %p64
      %p66 = scmp.ne.s32.totalorder %s55, %s56
      %p67 = scmp.eq.s32.totalorder %s21, 0
      %p68 = por %p66, %p67
      %p69 = scmp.ne.s32.totalorder %s55, %s56
      %p70 = scmp.eq.s32.totalorder %s22, 2
      %p71 = por %p69, %p70
      %p73 = scmp.ne.s32.totalorder %s56, %s72
      %p74 = scmp.eq.s32.totalorder %s22, 0
      %p75 = por %p73, %p74
      %s77 = sadd.s32 %s76, 1
      %p80 = scmp.eq.s32.totalorder %s16, 2
      %p81 = scmp.ne.s32.totalorder %s76, %s78
      %p82 = scmp.eq.s32.totalorder %s16, 0
      %p83 = por %p81, %p82
      %p84 = scmp.ne.s32.totalorder %s76, %s78
      %p85 = scmp.eq.s32.totalorder %s21, 2
      %p86 = por %p84, %p85
      %p87 = scmp.ne.s32.totalorder %s78, %s79
      %p88 = scmp.eq.s32.totalorder %s21, 0
      %p89 = por %p87, %p88
      %p90 = scmp.ne.s32.totalorder %s78, %s79
      %p91 = scmp.eq.s32.totalorder %s22, 2
      %p92 = por %p90, %p91
      %p94 = scmp.ne.s32.totalorder %s79, %s93
      %p95 = scmp.eq.s32.totalorder %s22, 0
      %p96 = por %p94, %p95
      %s98 = sadd.s32 %s97, 1
      %p101 = scmp.eq.s32.totalorder %s16, 2
      %p102 = scmp.ne.s32.totalorder %s97, %s99
      %p103 = scmp.eq.s32.totalorder %s16, 0
      %p104 = por %p102, %p103
      %p105 = scmp.ne.s32.totalorder %s97, %s99
      %p106 = scmp.eq.s32.totalorder %s21, 2
      %p107 = por %p105, %p106
      %p108 = scmp.ne.s32.totalorder %s99, %s100
      %p109 = scmp.eq.s32.totalorder %s21, 0
      %p110 = por %p108, %p109
      %p111 = scmp.ne.s32.totalorder %s99, %s100
      %p112 = scmp.eq.s32.totalorder %s22, 2
      %p113 = por %p111, %p112
      %p115 = scmp.ne.s32.totalorder %s100, %s114
      %p116 = scmp.eq.s32.totalorder %s22, 0
      %p117 = por %p115, %p116
      %p118 = scmp.le.s32.totalorder 1, %s16
      %p119 = scmp.lt.s32.totalorder %s16, 4
      %p120 = pnand %p118, %p119
      %p121 = pneg %p120
      // Predicated region
      $region9: #{_pallas_classify.1} parent=5 // pred_check
        _
      $region10: #{_pallas_classify.1} parent=5 // pred_check_branch
        %123 = sbr.rel (%p120) target = $region12
      $region11: #{_pallas_classify.1} parent=5 // pred_region
        %s124 = ssub.s32 %s16, 1
        // Predicated region
        $region13: #{_pallas_classify.1} parent=11 // pred_check
          %p125 = pneg %p89
        $region14: #{_pallas_classify.1} parent=11 // pred_check_branch
          %127 = sbr.rel (%p125) target = $region16
        $region15: #{_pallas_classify.1} parent=11 // pred_region
          %s129 = ssub.s32 16, 16
          %130 = vsyncadd [#allocation7], %s129
          %s132 = sshll.u32 [#allocation8], 4
          %s133 = int_to_ptr.vmem [resolvable:$true] %s132
          %135 = dma.hbm_to_vmem [thread:$0]  %s2, 16, %s133, [#allocation7]
        $region16: #{_pallas_classify.1} parent=11 // pred_fallthru
          _
      $region12: #{_pallas_classify.1} parent=5 // pred_fallthru
        _
      %p136 = scmp.lt.s32.totalorder %s16, 3
      // Predicated region
      $region17: #{_pallas_classify.1} parent=5 // pred_check
        %p137 = pneg %p136
      $region18: #{_pallas_classify.1} parent=5 // pred_check_branch
        %139 = sbr.rel (%p137) target = $region20
      $region19: #{_pallas_classify.1} parent=5 // pred_region
        // Predicated region
        $region21: #{_pallas_classify.1} parent=19 // pred_check
          %p140 = pneg %p36
        $region22: #{_pallas_classify.1} parent=19 // pred_check_branch
          %142 = sbr.rel (%p140) target = $region24
        $region23: #{_pallas_classify.1} parent=19 // pred_region
          %s143 = sand.u32 %s26, 1
          %s144 = scalar_lea.sflag [#allocation4], %s143
          %s145 = sand.u32 %s26, 1
          %s146 = smul.addr %s145, 1568
          %s147 = scalar_lea.vmem [#allocation3], %s146
          %s148 = smul.u32 392, %s16
          %s150 = ssub.s32 25088, 25088
          %151 = vsyncadd %s144, %s150
          %s152 = smul.addr %s148, 64
          %s153 = scalar_lea.hbm %s0, %s152
          %s155 = sshll.u32 %s147, 4
          %s156 = int_to_ptr.vmem [resolvable:$true] %s155
          %158 = dma.hbm_to_vmem [thread:$0]  %s153, 25088, %s156, %s144
        $region24: #{_pallas_classify.1} parent=19 // pred_fallthru
          _
        // Predicated region
        $region25: #{_pallas_classify.1} parent=19 // pred_check
          %p159 = pneg %p62
        $region26: #{_pallas_classify.1} parent=19 // pred_check_branch
          %161 = sbr.rel (%p159) target = $region28
        $region27: #{_pallas_classify.1} parent=19 // pred_region
          %s162 = sand.u32 %s16, 1
          %s163 = scalar_lea.sflag [#allocation7], %s162
          %s164 = sand.u32 %s52, 1
          %s165 = smul.addr %s164, 3136
          %s166 = scalar_lea.vmem [#allocation6], %s165
          %s167 = smul.u32 392, %s16
          %s169 = ssub.s32 50176, 50176
          %170 = vsyncadd %s163, %s169
          %s171 = smul.addr %s167, 64
          %s172 = scalar_lea.hbm %s1, %s171
          %s173 = sshll.u32 %s166, 4
          %s174 = int_to_ptr.vmem [resolvable:$true] %s173
          %179 = dma.hbm_to_vmem [thread:$0]  %s172, 50176, %s174, %s163, 75264, 25088, 1568
        $region28: #{_pallas_classify.1} parent=19 // pred_fallthru
          _
      $region20: #{_pallas_classify.1} parent=5 // pred_fallthru
        _
      %p180 = scmp.le.s32.totalorder 1, %s16
      %p181 = scmp.lt.s32.totalorder %s16, 4
      %p182 = pnand %p180, %p181
      %p183 = pneg %p182
      // Predicated region
      $region29: #{_pallas_classify.1} parent=5 // pred_check
        _
      $region30: #{_pallas_classify.1} parent=5 // pred_check_branch
        %185 = sbr.rel (%p182) target = $region32
      $region31: #{_pallas_classify.1} parent=5 // pred_region
        %s186 = ssub.s32 %s16, 1
        %s187 = sand.u32 %s29, 1
        %s188 = scalar_lea.sflag [#allocation4], %s187
        %s189 = sand.u32 %s29, 1
        %s190 = smul.addr %s189, 1568
        %s191 = scalar_lea.vmem [#allocation3], %s190
        // Predicated region
        $region33: #{_pallas_classify.1} parent=31 // pred_check
          %p192 = pneg %p42
        $region34: #{_pallas_classify.1} parent=31 // pred_check_branch
          %194 = sbr.rel (%p192) target = $region36
        $region35: #{_pallas_classify.1} parent=31 // pred_region
          %195 = dma.done %s188, 25088
        $region36: #{_pallas_classify.1} parent=31 // pred_fallthru
          _
        %s196 = sand.u32 %s21, 1
        %s197 = scalar_lea.sflag [#allocation7], %s196
        %s198 = sand.u32 %s55, 1
        %s199 = smul.addr %s198, 3136
        %s200 = scalar_lea.vmem [#allocation6], %s199
        // Predicated region
        $region37: #{_pallas_classify.1} parent=31 // pred_check
          %p201 = pneg %p68
        $region38: #{_pallas_classify.1} parent=31 // pred_check_branch
          %203 = sbr.rel (%p201) target = $region40
        $region39: #{_pallas_classify.1} parent=31 // pred_region
          %204 = dma.done %s197, 50176
        $region40: #{_pallas_classify.1} parent=31 // pred_fallthru
          _
        // Predicated region
        $region41: #{_pallas_classify.1} parent=31 // pred_check
          %p205 = pneg %p89
        $region42: #{_pallas_classify.1} parent=31 // pred_check_branch
          %207 = sbr.rel (%p205) target = $region44
        $region43: #{_pallas_classify.1} parent=31 // pred_region
          %208 = dma.done [#allocation7], 16
        $region44: #{_pallas_classify.1} parent=31 // pred_fallthru
          _
        %s209 = sand.u32 %s29, 1
        %s210 = scalar_lea.sflag [#allocation4], %s209
        %s211 = sand.u32 %s29, 1
        %s212 = smul.addr %s211, 1568
        %s213 = scalar_lea.vmem [#allocation3], %s212
        %p214 = pneg %p42
        %p215 = pneg %p39
        %s216 = sand.u32 %s21, 1
        %s217 = scalar_lea.sflag [#allocation7], %s216
        %s218 = sand.u32 %s55, 1
        %s219 = smul.addr %s218, 3136
        %s220 = scalar_lea.vmem [#allocation6], %s219
        %p221 = pneg %p68
        %p222 = pneg %p65
        %p223 = pneg %p89
        %p224 = pneg %p86
        %p225 = pneg %p110
        %p226 = pneg %p107
        %s227 = smul.u32 392, %s21
        %s228 = smul.u32 392, %s21
        %p230 = scmp.eq.s32.totalorder %s21, 0
        // Predicated region
        $region45: #{_pallas_classify.1} parent=31 // pred_check
          %p231 = pneg %p230
        $region46: #{_pallas_classify.1} parent=31 // pred_check_branch
          %233 = sbr.rel (%p231) target = $region48
        $region47: #{_pallas_classify.1} parent=31 // pred_region
          %v234 = vld [vmem:[#allocation8] sm:$0x1]
          %v236 = vlaneseq
          %v237 = vshrl.u32 %v236, 7
          %v238 = vsub.s32 0, %v237
          %v239 = vrot.slane %v234, %v238
          %vm241 = vcmask 80896
          %242 = vst.msk [vmem:[#allocation2] sm:$0xff] %vm241, %v239
        $region48: #{_pallas_classify.1} parent=31 // pred_fallthru
          _
        %v243 = vld [vmem:[#allocation2] sm:$0xff]
        %v244 = vld [vmem:[%s191] sm:$0xff]
        %v245 = vld [vmem:[%s191 + $0x8] sm:$0xff]
        %v246 = vld [vmem:[%s191 + $0x10] sm:$0xff]
        %v247 = vld [vmem:[%s191 + $0x18] sm:$0xff]
        %v248 = vld [vmem:[%s191 + $0x20] sm:$0xff]
        %v249 = vld [vmem:[%s191 + $0x28] sm:$0xff]
        %v250 = vld [vmem:[%s191 + $0x30] sm:$0xff]
        %v251 = vld [vmem:[%s191 + $0x38] sm:$0xff]
        %v252 = vld [vmem:[%s191 + $0x40] sm:$0xff]
        %v253 = vld [vmem:[%s191 + $0x48] sm:$0xff]
        %v254 = vld [vmem:[%s191 + $0x50] sm:$0xff]
        %v255 = vld [vmem:[%s191 + $0x58] sm:$0xff]
        %v256 = vld [vmem:[%s191 + $0x60] sm:$0xff]
        %v257 = vld [vmem:[%s191 + $0x68] sm:$0xff]
        %v258 = vld [vmem:[%s191 + $0x70] sm:$0xff]
        %v259 = vld [vmem:[%s191 + $0x78] sm:$0xff]
        %v260 = vld [vmem:[%s191 + $0x80] sm:$0xff]
        %v261 = vld [vmem:[%s191 + $0x88] sm:$0xff]
        %v262 = vld [vmem:[%s191 + $0x90] sm:$0xff]
        %v263 = vld [vmem:[%s191 + $0x98] sm:$0xff]
        %v264 = vld [vmem:[%s191 + $0xa0] sm:$0xff]
        %v265 = vld [vmem:[%s191 + $0xa8] sm:$0xff]
        %v266 = vld [vmem:[%s191 + $0xb0] sm:$0xff]
        %v267 = vld [vmem:[%s191 + $0xb8] sm:$0xff]
        %v268 = vld [vmem:[%s191 + $0xc0] sm:$0xff]
        %v269 = vld [vmem:[%s191 + $0xc8] sm:$0xff]
        %v270 = vld [vmem:[%s191 + $0xd0] sm:$0xff]
        %v271 = vld [vmem:[%s191 + $0xd8] sm:$0xff]
        %v272 = vld [vmem:[%s191 + $0xe0] sm:$0xff]
        %v273 = vld [vmem:[%s191 + $0xe8] sm:$0xff]
        %v274 = vld [vmem:[%s191 + $0xf0] sm:$0xff]
        %v275 = vld [vmem:[%s191 + $0xf8] sm:$0xff]
        %v276 = vld [vmem:[%s191 + $0x100] sm:$0xff]
        %v277 = vld [vmem:[%s191 + $0x108] sm:$0xff]
        %v278 = vld [vmem:[%s191 + $0x110] sm:$0xff]
        %v279 = vld [vmem:[%s191 + $0x118] sm:$0xff]
        %v280 = vld [vmem:[%s191 + $0x120] sm:$0xff]
        %v281 = vld [vmem:[%s191 + $0x128] sm:$0xff]
        %v282 = vld [vmem:[%s191 + $0x130] sm:$0xff]
        %v283 = vld [vmem:[%s191 + $0x138] sm:$0xff]
        %v284 = vld [vmem:[%s191 + $0x140] sm:$0xff]
        %v285 = vld [vmem:[%s191 + $0x148] sm:$0xff]
        %v286 = vld [vmem:[%s191 + $0x150] sm:$0xff]
        %v287 = vld [vmem:[%s191 + $0x158] sm:$0xff]
        %v288 = vld [vmem:[%s191 + $0x160] sm:$0xff]
        %v289 = vld [vmem:[%s191 + $0x168] sm:$0xff]
        %v290 = vld [vmem:[%s191 + $0x170] sm:$0xff]
        %v291 = vld [vmem:[%s191 + $0x178] sm:$0xff]
        %v292 = vld [vmem:[%s191 + $0x180] sm:$0xff]
        %v293 = vld [vmem:[%s191 + $0x188] sm:$0xff]
        %v294 = vld [vmem:[%s191 + $0x190] sm:$0xff]
        %v295 = vld [vmem:[%s191 + $0x198] sm:$0xff]
        %v296 = vld [vmem:[%s191 + $0x1a0] sm:$0xff]
        %v297 = vld [vmem:[%s191 + $0x1a8] sm:$0xff]
        %v298 = vld [vmem:[%s191 + $0x1b0] sm:$0xff]
        %v299 = vld [vmem:[%s191 + $0x1b8] sm:$0xff]
        %v300 = vld [vmem:[%s191 + $0x1c0] sm:$0xff]
        %v301 = vld [vmem:[%s191 + $0x1c8] sm:$0xff]
        %v302 = vld [vmem:[%s191 + $0x1d0] sm:$0xff]
        %v303 = vld [vmem:[%s191 + $0x1d8] sm:$0xff]
        %v304 = vld [vmem:[%s191 + $0x1e0] sm:$0xff]
        %v305 = vld [vmem:[%s191 + $0x1e8] sm:$0xff]
        %v306 = vld [vmem:[%s191 + $0x1f0] sm:$0xff]
        %v307 = vld [vmem:[%s191 + $0x1f8] sm:$0xff]
        %v308 = vld [vmem:[%s191 + $0x200] sm:$0xff]
        %v309 = vld [vmem:[%s191 + $0x208] sm:$0xff]
        %v310 = vld [vmem:[%s191 + $0x210] sm:$0xff]
        %v311 = vld [vmem:[%s191 + $0x218] sm:$0xff]
        %v312 = vld [vmem:[%s191 + $0x220] sm:$0xff]
        %v313 = vld [vmem:[%s191 + $0x228] sm:$0xff]
        %v314 = vld [vmem:[%s191 + $0x230] sm:$0xff]
        %v315 = vld [vmem:[%s191 + $0x238] sm:$0xff]
        %v316 = vld [vmem:[%s191 + $0x240] sm:$0xff]
        %v317 = vld [vmem:[%s191 + $0x248] sm:$0xff]
        %v318 = vld [vmem:[%s191 + $0x250] sm:$0xff]
        %v319 = vld [vmem:[%s191 + $0x258] sm:$0xff]
        %v320 = vld [vmem:[%s191 + $0x260] sm:$0xff]
        %v321 = vld [vmem:[%s191 + $0x268] sm:$0xff]
        %v322 = vld [vmem:[%s191 + $0x270] sm:$0xff]
        %v323 = vld [vmem:[%s191 + $0x278] sm:$0xff]
        %v324 = vld [vmem:[%s191 + $0x280] sm:$0xff]
        %v325 = vld [vmem:[%s191 + $0x288] sm:$0xff]
        %v326 = vld [vmem:[%s191 + $0x290] sm:$0xff]
        %v327 = vld [vmem:[%s191 + $0x298] sm:$0xff]
        %v328 = vld [vmem:[%s191 + $0x2a0] sm:$0xff]
        %v329 = vld [vmem:[%s191 + $0x2a8] sm:$0xff]
        %v330 = vld [vmem:[%s191 + $0x2b0] sm:$0xff]
        %v331 = vld [vmem:[%s191 + $0x2b8] sm:$0xff]
        %v332 = vld [vmem:[%s191 + $0x2c0] sm:$0xff]
        %v333 = vld [vmem:[%s191 + $0x2c8] sm:$0xff]
        %v334 = vld [vmem:[%s191 + $0x2d0] sm:$0xff]
        %v335 = vld [vmem:[%s191 + $0x2d8] sm:$0xff]
        %v336 = vld [vmem:[%s191 + $0x2e0] sm:$0xff]
        %v337 = vld [vmem:[%s191 + $0x2e8] sm:$0xff]
        %v338 = vld [vmem:[%s191 + $0x2f0] sm:$0xff]
        %v339 = vld [vmem:[%s191 + $0x2f8] sm:$0xff]
        %v340 = vld [vmem:[%s191 + $0x300] sm:$0xff]
        %v341 = vld [vmem:[%s191 + $0x308] sm:$0xff]
        %v342 = vld [vmem:[%s191 + $0x310] sm:$0xff]
        %v343 = vld [vmem:[%s191 + $0x318] sm:$0xff]
        %v344 = vld [vmem:[%s191 + $0x320] sm:$0xff]
        %v345 = vld [vmem:[%s191 + $0x328] sm:$0xff]
        %v346 = vld [vmem:[%s191 + $0x330] sm:$0xff]
        %v347 = vld [vmem:[%s191 + $0x338] sm:$0xff]
        %v348 = vld [vmem:[%s191 + $0x340] sm:$0xff]
        %v349 = vld [vmem:[%s191 + $0x348] sm:$0xff]
        %v350 = vld [vmem:[%s191 + $0x350] sm:$0xff]
        %v351 = vld [vmem:[%s191 + $0x358] sm:$0xff]
        %v352 = vld [vmem:[%s191 + $0x360] sm:$0xff]
        %v353 = vld [vmem:[%s191 + $0x368] sm:$0xff]
        %v354 = vld [vmem:[%s191 + $0x370] sm:$0xff]
        %v355 = vld [vmem:[%s191 + $0x378] sm:$0xff]
        %v356 = vld [vmem:[%s191 + $0x380] sm:$0xff]
        %v357 = vld [vmem:[%s191 + $0x388] sm:$0xff]
        %v358 = vld [vmem:[%s191 + $0x390] sm:$0xff]
        %v359 = vld [vmem:[%s191 + $0x398] sm:$0xff]
        %v360 = vld [vmem:[%s191 + $0x3a0] sm:$0xff]
        %v361 = vld [vmem:[%s191 + $0x3a8] sm:$0xff]
        %v362 = vld [vmem:[%s191 + $0x3b0] sm:$0xff]
        %v363 = vld [vmem:[%s191 + $0x3b8] sm:$0xff]
        %v364 = vld [vmem:[%s191 + $0x3c0] sm:$0xff]
        %v365 = vld [vmem:[%s191 + $0x3c8] sm:$0xff]
        %v366 = vld [vmem:[%s191 + $0x3d0] sm:$0xff]
        %v367 = vld [vmem:[%s191 + $0x3d8] sm:$0xff]
        %v368 = vld [vmem:[%s191 + $0x3e0] sm:$0xff]
        %v369 = vld [vmem:[%s191 + $0x3e8] sm:$0xff]
        %v370 = vld [vmem:[%s191 + $0x3f0] sm:$0xff]
        %v371 = vld [vmem:[%s191 + $0x3f8] sm:$0xff]
        %v372 = vld [vmem:[%s191 + $0x400] sm:$0xff]
        %v373 = vld [vmem:[%s191 + $0x408] sm:$0xff]
        %v374 = vld [vmem:[%s191 + $0x410] sm:$0xff]
        %v375 = vld [vmem:[%s191 + $0x418] sm:$0xff]
        %v376 = vld [vmem:[%s191 + $0x420] sm:$0xff]
        %v377 = vld [vmem:[%s191 + $0x428] sm:$0xff]
        %v378 = vld [vmem:[%s191 + $0x430] sm:$0xff]
        %v379 = vld [vmem:[%s191 + $0x438] sm:$0xff]
        %v380 = vld [vmem:[%s191 + $0x440] sm:$0xff]
        %v381 = vld [vmem:[%s191 + $0x448] sm:$0xff]
        %v382 = vld [vmem:[%s191 + $0x450] sm:$0xff]
        %v383 = vld [vmem:[%s191 + $0x458] sm:$0xff]
        %v384 = vld [vmem:[%s191 + $0x460] sm:$0xff]
        %v385 = vld [vmem:[%s191 + $0x468] sm:$0xff]
        %v386 = vld [vmem:[%s191 + $0x470] sm:$0xff]
        %v387 = vld [vmem:[%s191 + $0x478] sm:$0xff]
        %v388 = vld [vmem:[%s191 + $0x480] sm:$0xff]
        %v389 = vld [vmem:[%s191 + $0x488] sm:$0xff]
        %v390 = vld [vmem:[%s191 + $0x490] sm:$0xff]
        %v391 = vld [vmem:[%s191 + $0x498] sm:$0xff]
        %v392 = vld [vmem:[%s191 + $0x4a0] sm:$0xff]
        %v393 = vld [vmem:[%s191 + $0x4a8] sm:$0xff]
        %v394 = vld [vmem:[%s191 + $0x4b0] sm:$0xff]
        %v395 = vld [vmem:[%s191 + $0x4b8] sm:$0xff]
        %v396 = vld [vmem:[%s191 + $0x4c0] sm:$0xff]
        %v397 = vld [vmem:[%s191 + $0x4c8] sm:$0xff]
        %v398 = vld [vmem:[%s191 + $0x4d0] sm:$0xff]
        %v399 = vld [vmem:[%s191 + $0x4d8] sm:$0xff]
        %v400 = vld [vmem:[%s191 + $0x4e0] sm:$0xff]
        %v401 = vld [vmem:[%s191 + $0x4e8] sm:$0xff]
        %v402 = vld [vmem:[%s191 + $0x4f0] sm:$0xff]
        %v403 = vld [vmem:[%s191 + $0x4f8] sm:$0xff]
        %v404 = vld [vmem:[%s191 + $0x500] sm:$0xff]
        %v405 = vld [vmem:[%s191 + $0x508] sm:$0xff]
        %v406 = vld [vmem:[%s191 + $0x510] sm:$0xff]
        %v407 = vld [vmem:[%s191 + $0x518] sm:$0xff]
        %v408 = vld [vmem:[%s191 + $0x520] sm:$0xff]
        %v409 = vld [vmem:[%s191 + $0x528] sm:$0xff]
        %v410 = vld [vmem:[%s191 + $0x530] sm:$0xff]
        %v411 = vld [vmem:[%s191 + $0x538] sm:$0xff]
        %v412 = vld [vmem:[%s191 + $0x540] sm:$0xff]
        %v413 = vld [vmem:[%s191 + $0x548] sm:$0xff]
        %v414 = vld [vmem:[%s191 + $0x550] sm:$0xff]
        %v415 = vld [vmem:[%s191 + $0x558] sm:$0xff]
        %v416 = vld [vmem:[%s191 + $0x560] sm:$0xff]
        %v417 = vld [vmem:[%s191 + $0x568] sm:$0xff]
        %v418 = vld [vmem:[%s191 + $0x570] sm:$0xff]
        %v419 = vld [vmem:[%s191 + $0x578] sm:$0xff]
        %v420 = vld [vmem:[%s191 + $0x580] sm:$0xff]
        %v421 = vld [vmem:[%s191 + $0x588] sm:$0xff]
        %v422 = vld [vmem:[%s191 + $0x590] sm:$0xff]
        %v423 = vld [vmem:[%s191 + $0x598] sm:$0xff]
        %v424 = vld [vmem:[%s191 + $0x5a0] sm:$0xff]
        %v425 = vld [vmem:[%s191 + $0x5a8] sm:$0xff]
        %v426 = vld [vmem:[%s191 + $0x5b0] sm:$0xff]
        %v427 = vld [vmem:[%s191 + $0x5b8] sm:$0xff]
        %v428 = vld [vmem:[%s191 + $0x5c0] sm:$0xff]
        %v429 = vld [vmem:[%s191 + $0x5c8] sm:$0xff]
        %v430 = vld [vmem:[%s191 + $0x5d0] sm:$0xff]
        %v431 = vld [vmem:[%s191 + $0x5d8] sm:$0xff]
        %v432 = vld [vmem:[%s191 + $0x5e0] sm:$0xff]
        %v433 = vld [vmem:[%s191 + $0x5e8] sm:$0xff]
        %v434 = vld [vmem:[%s191 + $0x5f0] sm:$0xff]
        %v435 = vld [vmem:[%s191 + $0x5f8] sm:$0xff]
        %v436 = vld [vmem:[%s191 + $0x600] sm:$0xff]
        %v437 = vld [vmem:[%s191 + $0x608] sm:$0xff]
        %v438 = vld [vmem:[%s191 + $0x610] sm:$0xff]
        %v439 = vld [vmem:[%s191 + $0x618] sm:$0xff]
        %v440 = vld [vmem:[%s200] sm:$0xff]
        %v441 = vld [vmem:[%s200 + $0x8] sm:$0xff]
        %v442 = vld [vmem:[%s200 + $0x10] sm:$0xff]
        %v443 = vld [vmem:[%s200 + $0x18] sm:$0xff]
        %v444 = vld [vmem:[%s200 + $0x20] sm:$0xff]
        %v445 = vld [vmem:[%s200 + $0x28] sm:$0xff]
        %v446 = vld [vmem:[%s200 + $0x30] sm:$0xff]
        %v447 = vld [vmem:[%s200 + $0x38] sm:$0xff]
        %v448 = vld [vmem:[%s200 + $0x40] sm:$0xff]
        %v449 = vld [vmem:[%s200 + $0x48] sm:$0xff]
        %v450 = vld [vmem:[%s200 + $0x50] sm:$0xff]
        %v451 = vld [vmem:[%s200 + $0x58] sm:$0xff]
        %v452 = vld [vmem:[%s200 + $0x60] sm:$0xff]
        %v453 = vld [vmem:[%s200 + $0x68] sm:$0xff]
        %v454 = vld [vmem:[%s200 + $0x70] sm:$0xff]
        %v455 = vld [vmem:[%s200 + $0x78] sm:$0xff]
        %v456 = vld [vmem:[%s200 + $0x80] sm:$0xff]
        %v457 = vld [vmem:[%s200 + $0x88] sm:$0xff]
        %v458 = vld [vmem:[%s200 + $0x90] sm:$0xff]
        %v459 = vld [vmem:[%s200 + $0x98] sm:$0xff]
        %v460 = vld [vmem:[%s200 + $0xa0] sm:$0xff]
        %v461 = vld [vmem:[%s200 + $0xa8] sm:$0xff]
        %v462 = vld [vmem:[%s200 + $0xb0] sm:$0xff]
        %v463 = vld [vmem:[%s200 + $0xb8] sm:$0xff]
        %v464 = vld [vmem:[%s200 + $0xc0] sm:$0xff]
        %v465 = vld [vmem:[%s200 + $0xc8] sm:$0xff]
        %v466 = vld [vmem:[%s200 + $0xd0] sm:$0xff]
        %v467 = vld [vmem:[%s200 + $0xd8] sm:$0xff]
        %v468 = vld [vmem:[%s200 + $0xe0] sm:$0xff]
        %v469 = vld [vmem:[%s200 + $0xe8] sm:$0xff]
        %v470 = vld [vmem:[%s200 + $0xf0] sm:$0xff]
        %v471 = vld [vmem:[%s200 + $0xf8] sm:$0xff]
        %v472 = vld [vmem:[%s200 + $0x100] sm:$0xff]
        %v473 = vld [vmem:[%s200 + $0x108] sm:$0xff]
        %v474 = vld [vmem:[%s200 + $0x110] sm:$0xff]
        %v475 = vld [vmem:[%s200 + $0x118] sm:$0xff]
        %v476 = vld [vmem:[%s200 + $0x120] sm:$0xff]
        %v477 = vld [vmem:[%s200 + $0x128] sm:$0xff]
        %v478 = vld [vmem:[%s200 + $0x130] sm:$0xff]
        %v479 = vld [vmem:[%s200 + $0x138] sm:$0xff]
        %v480 = vld [vmem:[%s200 + $0x140] sm:$0xff]
        %v481 = vld [vmem:[%s200 + $0x148] sm:$0xff]
        %v482 = vld [vmem:[%s200 + $0x150] sm:$0xff]
        %v483 = vld [vmem:[%s200 + $0x158] sm:$0xff]
        %v484 = vld [vmem:[%s200 + $0x160] sm:$0xff]
        %v485 = vld [vmem:[%s200 + $0x168] sm:$0xff]
        %v486 = vld [vmem:[%s200 + $0x170] sm:$0xff]
        %v487 = vld [vmem:[%s200 + $0x178] sm:$0xff]
        %v488 = vld [vmem:[%s200 + $0x180] sm:$0xff]
        %v489 = vld [vmem:[%s200 + $0x188] sm:$0xff]
        %v490 = vld [vmem:[%s200 + $0x190] sm:$0xff]
        %v491 = vld [vmem:[%s200 + $0x198] sm:$0xff]
        %v492 = vld [vmem:[%s200 + $0x1a0] sm:$0xff]
        %v493 = vld [vmem:[%s200 + $0x1a8] sm:$0xff]
        %v494 = vld [vmem:[%s200 + $0x1b0] sm:$0xff]
        %v495 = vld [vmem:[%s200 + $0x1b8] sm:$0xff]
        %v496 = vld [vmem:[%s200 + $0x1c0] sm:$0xff]
        %v497 = vld [vmem:[%s200 + $0x1c8] sm:$0xff]
        %v498 = vld [vmem:[%s200 + $0x1d0] sm:$0xff]
        %v499 = vld [vmem:[%s200 + $0x1d8] sm:$0xff]
        %v500 = vld [vmem:[%s200 + $0x1e0] sm:$0xff]
        %v501 = vld [vmem:[%s200 + $0x1e8] sm:$0xff]
        %v502 = vld [vmem:[%s200 + $0x1f0] sm:$0xff]
        %v503 = vld [vmem:[%s200 + $0x1f8] sm:$0xff]
        %v504 = vld [vmem:[%s200 + $0x200] sm:$0xff]
        %v505 = vld [vmem:[%s200 + $0x208] sm:$0xff]
        %v506 = vld [vmem:[%s200 + $0x210] sm:$0xff]
        %v507 = vld [vmem:[%s200 + $0x218] sm:$0xff]
        %v508 = vld [vmem:[%s200 + $0x220] sm:$0xff]
        %v509 = vld [vmem:[%s200 + $0x228] sm:$0xff]
        %v510 = vld [vmem:[%s200 + $0x230] sm:$0xff]
        %v511 = vld [vmem:[%s200 + $0x238] sm:$0xff]
        %v512 = vld [vmem:[%s200 + $0x240] sm:$0xff]
        %v513 = vld [vmem:[%s200 + $0x248] sm:$0xff]
        %v514 = vld [vmem:[%s200 + $0x250] sm:$0xff]
        %v515 = vld [vmem:[%s200 + $0x258] sm:$0xff]
        %v516 = vld [vmem:[%s200 + $0x260] sm:$0xff]
        %v517 = vld [vmem:[%s200 + $0x268] sm:$0xff]
        %v518 = vld [vmem:[%s200 + $0x270] sm:$0xff]
        %v519 = vld [vmem:[%s200 + $0x278] sm:$0xff]
        %v520 = vld [vmem:[%s200 + $0x280] sm:$0xff]
        %v521 = vld [vmem:[%s200 + $0x288] sm:$0xff]
        %v522 = vld [vmem:[%s200 + $0x290] sm:$0xff]
        %v523 = vld [vmem:[%s200 + $0x298] sm:$0xff]
        %v524 = vld [vmem:[%s200 + $0x2a0] sm:$0xff]
        %v525 = vld [vmem:[%s200 + $0x2a8] sm:$0xff]
        %v526 = vld [vmem:[%s200 + $0x2b0] sm:$0xff]
        %v527 = vld [vmem:[%s200 + $0x2b8] sm:$0xff]
        %v528 = vld [vmem:[%s200 + $0x2c0] sm:$0xff]
        %v529 = vld [vmem:[%s200 + $0x2c8] sm:$0xff]
        %v530 = vld [vmem:[%s200 + $0x2d0] sm:$0xff]
        %v531 = vld [vmem:[%s200 + $0x2d8] sm:$0xff]
        %v532 = vld [vmem:[%s200 + $0x2e0] sm:$0xff]
        %v533 = vld [vmem:[%s200 + $0x2e8] sm:$0xff]
        %v534 = vld [vmem:[%s200 + $0x2f0] sm:$0xff]
        %v535 = vld [vmem:[%s200 + $0x2f8] sm:$0xff]
        %v536 = vld [vmem:[%s200 + $0x300] sm:$0xff]
        %v537 = vld [vmem:[%s200 + $0x308] sm:$0xff]
        %v538 = vld [vmem:[%s200 + $0x310] sm:$0xff]
        %v539 = vld [vmem:[%s200 + $0x318] sm:$0xff]
        %v540 = vld [vmem:[%s200 + $0x320] sm:$0xff]
        %v541 = vld [vmem:[%s200 + $0x328] sm:$0xff]
        %v542 = vld [vmem:[%s200 + $0x330] sm:$0xff]
        %v543 = vld [vmem:[%s200 + $0x338] sm:$0xff]
        %v544 = vld [vmem:[%s200 + $0x340] sm:$0xff]
        %v545 = vld [vmem:[%s200 + $0x348] sm:$0xff]
        %v546 = vld [vmem:[%s200 + $0x350] sm:$0xff]
        %v547 = vld [vmem:[%s200 + $0x358] sm:$0xff]
        %v548 = vld [vmem:[%s200 + $0x360] sm:$0xff]
        %v549 = vld [vmem:[%s200 + $0x368] sm:$0xff]
        %v550 = vld [vmem:[%s200 + $0x370] sm:$0xff]
        %v551 = vld [vmem:[%s200 + $0x378] sm:$0xff]
        %v552 = vld [vmem:[%s200 + $0x380] sm:$0xff]
        %v553 = vld [vmem:[%s200 + $0x388] sm:$0xff]
        %v554 = vld [vmem:[%s200 + $0x390] sm:$0xff]
        %v555 = vld [vmem:[%s200 + $0x398] sm:$0xff]
        %v556 = vld [vmem:[%s200 + $0x3a0] sm:$0xff]
        %v557 = vld [vmem:[%s200 + $0x3a8] sm:$0xff]
        %v558 = vld [vmem:[%s200 + $0x3b0] sm:$0xff]
        %v559 = vld [vmem:[%s200 + $0x3b8] sm:$0xff]
        %v560 = vld [vmem:[%s200 + $0x3c0] sm:$0xff]
        %v561 = vld [vmem:[%s200 + $0x3c8] sm:$0xff]
        %v562 = vld [vmem:[%s200 + $0x3d0] sm:$0xff]
        %v563 = vld [vmem:[%s200 + $0x3d8] sm:$0xff]
        %v564 = vld [vmem:[%s200 + $0x3e0] sm:$0xff]
        %v565 = vld [vmem:[%s200 + $0x3e8] sm:$0xff]
        %v566 = vld [vmem:[%s200 + $0x3f0] sm:$0xff]
        %v567 = vld [vmem:[%s200 + $0x3f8] sm:$0xff]
        %v568 = vld [vmem:[%s200 + $0x400] sm:$0xff]
        %v569 = vld [vmem:[%s200 + $0x408] sm:$0xff]
        %v570 = vld [vmem:[%s200 + $0x410] sm:$0xff]
        %v571 = vld [vmem:[%s200 + $0x418] sm:$0xff]
        %v572 = vld [vmem:[%s200 + $0x420] sm:$0xff]
        %v573 = vld [vmem:[%s200 + $0x428] sm:$0xff]
        %v574 = vld [vmem:[%s200 + $0x430] sm:$0xff]
        %v575 = vld [vmem:[%s200 + $0x438] sm:$0xff]
        %v576 = vld [vmem:[%s200 + $0x440] sm:$0xff]
        %v577 = vld [vmem:[%s200 + $0x448] sm:$0xff]
        %v578 = vld [vmem:[%s200 + $0x450] sm:$0xff]
        %v579 = vld [vmem:[%s200 + $0x458] sm:$0xff]
        %v580 = vld [vmem:[%s200 + $0x460] sm:$0xff]
        %v581 = vld [vmem:[%s200 + $0x468] sm:$0xff]
        %v582 = vld [vmem:[%s200 + $0x470] sm:$0xff]
        %v583 = vld [vmem:[%s200 + $0x478] sm:$0xff]
        %v584 = vld [vmem:[%s200 + $0x480] sm:$0xff]
        %v585 = vld [vmem:[%s200 + $0x488] sm:$0xff]
        %v586 = vld [vmem:[%s200 + $0x490] sm:$0xff]
        %v587 = vld [vmem:[%s200 + $0x498] sm:$0xff]
        %v588 = vld [vmem:[%s200 + $0x4a0] sm:$0xff]
        %v589 = vld [vmem:[%s200 + $0x4a8] sm:$0xff]
        %v590 = vld [vmem:[%s200 + $0x4b0] sm:$0xff]
        %v591 = vld [vmem:[%s200 + $0x4b8] sm:$0xff]
        %v592 = vld [vmem:[%s200 + $0x4c0] sm:$0xff]
        %v593 = vld [vmem:[%s200 + $0x4c8] sm:$0xff]
        %v594 = vld [vmem:[%s200 + $0x4d0] sm:$0xff]
        %v595 = vld [vmem:[%s200 + $0x4d8] sm:$0xff]
        %v596 = vld [vmem:[%s200 + $0x4e0] sm:$0xff]
        %v597 = vld [vmem:[%s200 + $0x4e8] sm:$0xff]
        %v598 = vld [vmem:[%s200 + $0x4f0] sm:$0xff]
        %v599 = vld [vmem:[%s200 + $0x4f8] sm:$0xff]
        %v600 = vld [vmem:[%s200 + $0x500] sm:$0xff]
        %v601 = vld [vmem:[%s200 + $0x508] sm:$0xff]
        %v602 = vld [vmem:[%s200 + $0x510] sm:$0xff]
        %v603 = vld [vmem:[%s200 + $0x518] sm:$0xff]
        %v604 = vld [vmem:[%s200 + $0x520] sm:$0xff]
        %v605 = vld [vmem:[%s200 + $0x528] sm:$0xff]
        %v606 = vld [vmem:[%s200 + $0x530] sm:$0xff]
        %v607 = vld [vmem:[%s200 + $0x538] sm:$0xff]
        %v608 = vld [vmem:[%s200 + $0x540] sm:$0xff]
        %v609 = vld [vmem:[%s200 + $0x548] sm:$0xff]
        %v610 = vld [vmem:[%s200 + $0x550] sm:$0xff]
        %v611 = vld [vmem:[%s200 + $0x558] sm:$0xff]
        %v612 = vld [vmem:[%s200 + $0x560] sm:$0xff]
        %v613 = vld [vmem:[%s200 + $0x568] sm:$0xff]
        %v614 = vld [vmem:[%s200 + $0x570] sm:$0xff]
        %v615 = vld [vmem:[%s200 + $0x578] sm:$0xff]
        %v616 = vld [vmem:[%s200 + $0x580] sm:$0xff]
        %v617 = vld [vmem:[%s200 + $0x588] sm:$0xff]
        %v618 = vld [vmem:[%s200 + $0x590] sm:$0xff]
        %v619 = vld [vmem:[%s200 + $0x598] sm:$0xff]
        %v620 = vld [vmem:[%s200 + $0x5a0] sm:$0xff]
        %v621 = vld [vmem:[%s200 + $0x5a8] sm:$0xff]
        %v622 = vld [vmem:[%s200 + $0x5b0] sm:$0xff]
        %v623 = vld [vmem:[%s200 + $0x5b8] sm:$0xff]
        %v624 = vld [vmem:[%s200 + $0x5c0] sm:$0xff]
        %v625 = vld [vmem:[%s200 + $0x5c8] sm:$0xff]
        %v626 = vld [vmem:[%s200 + $0x5d0] sm:$0xff]
        %v627 = vld [vmem:[%s200 + $0x5d8] sm:$0xff]
        %v628 = vld [vmem:[%s200 + $0x5e0] sm:$0xff]
        %v629 = vld [vmem:[%s200 + $0x5e8] sm:$0xff]
        %v630 = vld [vmem:[%s200 + $0x5f0] sm:$0xff]
        %v631 = vld [vmem:[%s200 + $0x5f8] sm:$0xff]
        %v632 = vld [vmem:[%s200 + $0x600] sm:$0xff]
        %v633 = vld [vmem:[%s200 + $0x608] sm:$0xff]
        %v634 = vld [vmem:[%s200 + $0x610] sm:$0xff]
        %v635 = vld [vmem:[%s200 + $0x618] sm:$0xff]
        %v636 = vld [vmem:[%s200 + $0x620] sm:$0x11]
        %v637 = vld [vmem:[%s200 + $0x628] sm:$0x11]
        %v638 = vld [vmem:[%s200 + $0x630] sm:$0x11]
        %v639 = vld [vmem:[%s200 + $0x638] sm:$0x11]
        %v640 = vld [vmem:[%s200 + $0x640] sm:$0x11]
        %v641 = vld [vmem:[%s200 + $0x648] sm:$0x11]
        %v642 = vld [vmem:[%s200 + $0x650] sm:$0x11]
        %v643 = vld [vmem:[%s200 + $0x658] sm:$0x11]
        %v644 = vld [vmem:[%s200 + $0x660] sm:$0x11]
        %v645 = vld [vmem:[%s200 + $0x668] sm:$0x11]
        %v646 = vld [vmem:[%s200 + $0x670] sm:$0x11]
        %v647 = vld [vmem:[%s200 + $0x678] sm:$0x11]
        %v648 = vld [vmem:[%s200 + $0x680] sm:$0x11]
        %v649 = vld [vmem:[%s200 + $0x688] sm:$0x11]
        %v650 = vld [vmem:[%s200 + $0x690] sm:$0x11]
        %v651 = vld [vmem:[%s200 + $0x698] sm:$0x11]
        %v652 = vld [vmem:[%s200 + $0x6a0] sm:$0x11]
        %v653 = vld [vmem:[%s200 + $0x6a8] sm:$0x11]
        %v654 = vld [vmem:[%s200 + $0x6b0] sm:$0x11]
        %v655 = vld [vmem:[%s200 + $0x6b8] sm:$0x11]
        %v656 = vld [vmem:[%s200 + $0x6c0] sm:$0x11]
        %v657 = vld [vmem:[%s200 + $0x6c8] sm:$0x11]
        %v658 = vld [vmem:[%s200 + $0x6d0] sm:$0x11]
        %v659 = vld [vmem:[%s200 + $0x6d8] sm:$0x11]
        %v660 = vld [vmem:[%s200 + $0x6e0] sm:$0x11]
        %v661 = vld [vmem:[%s200 + $0x6e8] sm:$0x11]
        %v662 = vld [vmem:[%s200 + $0x6f0] sm:$0x11]
        %v663 = vld [vmem:[%s200 + $0x6f8] sm:$0x11]
        %v664 = vld [vmem:[%s200 + $0x700] sm:$0x11]
        %v665 = vld [vmem:[%s200 + $0x708] sm:$0x11]
        %v666 = vld [vmem:[%s200 + $0x710] sm:$0x11]
        %v667 = vld [vmem:[%s200 + $0x718] sm:$0x11]
        %v668 = vld [vmem:[%s200 + $0x720] sm:$0x11]
        %v669 = vld [vmem:[%s200 + $0x728] sm:$0x11]
        %v670 = vld [vmem:[%s200 + $0x730] sm:$0x11]
        %v671 = vld [vmem:[%s200 + $0x738] sm:$0x11]
        %v672 = vld [vmem:[%s200 + $0x740] sm:$0x11]
        %v673 = vld [vmem:[%s200 + $0x748] sm:$0x11]
        %v674 = vld [vmem:[%s200 + $0x750] sm:$0x11]
        %v675 = vld [vmem:[%s200 + $0x758] sm:$0x11]
        %v676 = vld [vmem:[%s200 + $0x760] sm:$0x11]
        %v677 = vld [vmem:[%s200 + $0x768] sm:$0x11]
        %v678 = vld [vmem:[%s200 + $0x770] sm:$0x11]
        %v679 = vld [vmem:[%s200 + $0x778] sm:$0x11]
        %v680 = vld [vmem:[%s200 + $0x780] sm:$0x11]
        %v681 = vld [vmem:[%s200 + $0x788] sm:$0x11]
        %v682 = vld [vmem:[%s200 + $0x790] sm:$0x11]
        %v683 = vld [vmem:[%s200 + $0x798] sm:$0x11]
        %v684 = vld [vmem:[%s200 + $0x7a0] sm:$0x11]
        %v685 = vld [vmem:[%s200 + $0x7a8] sm:$0x11]
        %v686 = vld [vmem:[%s200 + $0x7b0] sm:$0x11]
        %v687 = vld [vmem:[%s200 + $0x7b8] sm:$0x11]
        %v688 = vld [vmem:[%s200 + $0x7c0] sm:$0x11]
        %v689 = vld [vmem:[%s200 + $0x7c8] sm:$0x11]
        %v690 = vld [vmem:[%s200 + $0x7d0] sm:$0x11]
        %v691 = vld [vmem:[%s200 + $0x7d8] sm:$0x11]
        %v692 = vld [vmem:[%s200 + $0x7e0] sm:$0x11]
        %v693 = vld [vmem:[%s200 + $0x7e8] sm:$0x11]
        %v694 = vld [vmem:[%s200 + $0x7f0] sm:$0x11]
        %v695 = vld [vmem:[%s200 + $0x7f8] sm:$0x11]
        %v696 = vld [vmem:[%s200 + $0x800] sm:$0x11]
        %v697 = vld [vmem:[%s200 + $0x808] sm:$0x11]
        %v698 = vld [vmem:[%s200 + $0x810] sm:$0x11]
        %v699 = vld [vmem:[%s200 + $0x818] sm:$0x11]
        %v700 = vld [vmem:[%s200 + $0x820] sm:$0x11]
        %v701 = vld [vmem:[%s200 + $0x828] sm:$0x11]
        %v702 = vld [vmem:[%s200 + $0x830] sm:$0x11]
        %v703 = vld [vmem:[%s200 + $0x838] sm:$0x11]
        %v704 = vld [vmem:[%s200 + $0x840] sm:$0x11]
        %v705 = vld [vmem:[%s200 + $0x848] sm:$0x11]
        %v706 = vld [vmem:[%s200 + $0x850] sm:$0x11]
        %v707 = vld [vmem:[%s200 + $0x858] sm:$0x11]
        %v708 = vld [vmem:[%s200 + $0x860] sm:$0x11]
        %v709 = vld [vmem:[%s200 + $0x868] sm:$0x11]
        %v710 = vld [vmem:[%s200 + $0x870] sm:$0x11]
        %v711 = vld [vmem:[%s200 + $0x878] sm:$0x11]
        %v712 = vld [vmem:[%s200 + $0x880] sm:$0x11]
        %v713 = vld [vmem:[%s200 + $0x888] sm:$0x11]
        %v714 = vld [vmem:[%s200 + $0x890] sm:$0x11]
        %v715 = vld [vmem:[%s200 + $0x898] sm:$0x11]
        %v716 = vld [vmem:[%s200 + $0x8a0] sm:$0x11]
        %v717 = vld [vmem:[%s200 + $0x8a8] sm:$0x11]
        %v718 = vld [vmem:[%s200 + $0x8b0] sm:$0x11]
        %v719 = vld [vmem:[%s200 + $0x8b8] sm:$0x11]
        %v720 = vld [vmem:[%s200 + $0x8c0] sm:$0x11]
        %v721 = vld [vmem:[%s200 + $0x8c8] sm:$0x11]
        %v722 = vld [vmem:[%s200 + $0x8d0] sm:$0x11]
        %v723 = vld [vmem:[%s200 + $0x8d8] sm:$0x11]
        %v724 = vld [vmem:[%s200 + $0x8e0] sm:$0x11]
        %v725 = vld [vmem:[%s200 + $0x8e8] sm:$0x11]
        %v726 = vld [vmem:[%s200 + $0x8f0] sm:$0x11]
        %v727 = vld [vmem:[%s200 + $0x8f8] sm:$0x11]
        %v728 = vld [vmem:[%s200 + $0x900] sm:$0x11]
        %v729 = vld [vmem:[%s200 + $0x908] sm:$0x11]
        %v730 = vld [vmem:[%s200 + $0x910] sm:$0x11]
        %v731 = vld [vmem:[%s200 + $0x918] sm:$0x11]
        %v732 = vld [vmem:[%s200 + $0x920] sm:$0x11]
        %v733 = vld [vmem:[%s200 + $0x928] sm:$0x11]
        %v734 = vld [vmem:[%s200 + $0x930] sm:$0x11]
        %v735 = vld [vmem:[%s200 + $0x938] sm:$0x11]
        %v736 = vld [vmem:[%s200 + $0x940] sm:$0x11]
        %v737 = vld [vmem:[%s200 + $0x948] sm:$0x11]
        %v738 = vld [vmem:[%s200 + $0x950] sm:$0x11]
        %v739 = vld [vmem:[%s200 + $0x958] sm:$0x11]
        %v740 = vld [vmem:[%s200 + $0x960] sm:$0x11]
        %v741 = vld [vmem:[%s200 + $0x968] sm:$0x11]
        %v742 = vld [vmem:[%s200 + $0x970] sm:$0x11]
        %v743 = vld [vmem:[%s200 + $0x978] sm:$0x11]
        %v744 = vld [vmem:[%s200 + $0x980] sm:$0x11]
        %v745 = vld [vmem:[%s200 + $0x988] sm:$0x11]
        %v746 = vld [vmem:[%s200 + $0x990] sm:$0x11]
        %v747 = vld [vmem:[%s200 + $0x998] sm:$0x11]
        %v748 = vld [vmem:[%s200 + $0x9a0] sm:$0x11]
        %v749 = vld [vmem:[%s200 + $0x9a8] sm:$0x11]
        %v750 = vld [vmem:[%s200 + $0x9b0] sm:$0x11]
        %v751 = vld [vmem:[%s200 + $0x9b8] sm:$0x11]
        %v752 = vld [vmem:[%s200 + $0x9c0] sm:$0x11]
        %v753 = vld [vmem:[%s200 + $0x9c8] sm:$0x11]
        %v754 = vld [vmem:[%s200 + $0x9d0] sm:$0x11]
        %v755 = vld [vmem:[%s200 + $0x9d8] sm:$0x11]
        %v756 = vld [vmem:[%s200 + $0x9e0] sm:$0x11]
        %v757 = vld [vmem:[%s200 + $0x9e8] sm:$0x11]
        %v758 = vld [vmem:[%s200 + $0x9f0] sm:$0x11]
        %v759 = vld [vmem:[%s200 + $0x9f8] sm:$0x11]
        %v760 = vld [vmem:[%s200 + $0xa00] sm:$0x11]
        %v761 = vld [vmem:[%s200 + $0xa08] sm:$0x11]
        %v762 = vld [vmem:[%s200 + $0xa10] sm:$0x11]
        %v763 = vld [vmem:[%s200 + $0xa18] sm:$0x11]
        %v764 = vld [vmem:[%s200 + $0xa20] sm:$0x11]
        %v765 = vld [vmem:[%s200 + $0xa28] sm:$0x11]
        %v766 = vld [vmem:[%s200 + $0xa30] sm:$0x11]
        %v767 = vld [vmem:[%s200 + $0xa38] sm:$0x11]
        %v768 = vld [vmem:[%s200 + $0xa40] sm:$0x11]
        %v769 = vld [vmem:[%s200 + $0xa48] sm:$0x11]
        %v770 = vld [vmem:[%s200 + $0xa50] sm:$0x11]
        %v771 = vld [vmem:[%s200 + $0xa58] sm:$0x11]
        %v772 = vld [vmem:[%s200 + $0xa60] sm:$0x11]
        %v773 = vld [vmem:[%s200 + $0xa68] sm:$0x11]
        %v774 = vld [vmem:[%s200 + $0xa70] sm:$0x11]
        %v775 = vld [vmem:[%s200 + $0xa78] sm:$0x11]
        %v776 = vld [vmem:[%s200 + $0xa80] sm:$0x11]
        %v777 = vld [vmem:[%s200 + $0xa88] sm:$0x11]
        %v778 = vld [vmem:[%s200 + $0xa90] sm:$0x11]
        %v779 = vld [vmem:[%s200 + $0xa98] sm:$0x11]
        %v780 = vld [vmem:[%s200 + $0xaa0] sm:$0x11]
        %v781 = vld [vmem:[%s200 + $0xaa8] sm:$0x11]
        %v782 = vld [vmem:[%s200 + $0xab0] sm:$0x11]
        %v783 = vld [vmem:[%s200 + $0xab8] sm:$0x11]
        %v784 = vld [vmem:[%s200 + $0xac0] sm:$0x11]
        %v785 = vld [vmem:[%s200 + $0xac8] sm:$0x11]
        %v786 = vld [vmem:[%s200 + $0xad0] sm:$0x11]
        %v787 = vld [vmem:[%s200 + $0xad8] sm:$0x11]
        %v788 = vld [vmem:[%s200 + $0xae0] sm:$0x11]
        %v789 = vld [vmem:[%s200 + $0xae8] sm:$0x11]
        %v790 = vld [vmem:[%s200 + $0xaf0] sm:$0x11]
        %v791 = vld [vmem:[%s200 + $0xaf8] sm:$0x11]
        %v792 = vld [vmem:[%s200 + $0xb00] sm:$0x11]
        %v793 = vld [vmem:[%s200 + $0xb08] sm:$0x11]
        %v794 = vld [vmem:[%s200 + $0xb10] sm:$0x11]
        %v795 = vld [vmem:[%s200 + $0xb18] sm:$0x11]
        %v796 = vld [vmem:[%s200 + $0xb20] sm:$0x11]
        %v797 = vld [vmem:[%s200 + $0xb28] sm:$0x11]
        %v798 = vld [vmem:[%s200 + $0xb30] sm:$0x11]
        %v799 = vld [vmem:[%s200 + $0xb38] sm:$0x11]
        %v800 = vld [vmem:[%s200 + $0xb40] sm:$0x11]
        %v801 = vld [vmem:[%s200 + $0xb48] sm:$0x11]
        %v802 = vld [vmem:[%s200 + $0xb50] sm:$0x11]
        %v803 = vld [vmem:[%s200 + $0xb58] sm:$0x11]
        %v804 = vld [vmem:[%s200 + $0xb60] sm:$0x11]
        %v805 = vld [vmem:[%s200 + $0xb68] sm:$0x11]
        %v806 = vld [vmem:[%s200 + $0xb70] sm:$0x11]
        %v807 = vld [vmem:[%s200 + $0xb78] sm:$0x11]
        %v808 = vld [vmem:[%s200 + $0xb80] sm:$0x11]
        %v809 = vld [vmem:[%s200 + $0xb88] sm:$0x11]
        %v810 = vld [vmem:[%s200 + $0xb90] sm:$0x11]
        %v811 = vld [vmem:[%s200 + $0xb98] sm:$0x11]
        %v812 = vld [vmem:[%s200 + $0xba0] sm:$0x11]
        %v813 = vld [vmem:[%s200 + $0xba8] sm:$0x11]
        %v814 = vld [vmem:[%s200 + $0xbb0] sm:$0x11]
        %v815 = vld [vmem:[%s200 + $0xbb8] sm:$0x11]
        %v816 = vld [vmem:[%s200 + $0xbc0] sm:$0x11]
        %v817 = vld [vmem:[%s200 + $0xbc8] sm:$0x11]
        %v818 = vld [vmem:[%s200 + $0xbd0] sm:$0x11]
        %v819 = vld [vmem:[%s200 + $0xbd8] sm:$0x11]
        %v820 = vld [vmem:[%s200 + $0xbe0] sm:$0x11]
        %v821 = vld [vmem:[%s200 + $0xbe8] sm:$0x11]
        %v822 = vld [vmem:[%s200 + $0xbf0] sm:$0x11]
        %v823 = vld [vmem:[%s200 + $0xbf8] sm:$0x11]
        %v824 = vld [vmem:[%s200 + $0xc00] sm:$0x11]
        %v825 = vld [vmem:[%s200 + $0xc08] sm:$0x11]
        %v826 = vld [vmem:[%s200 + $0xc10] sm:$0x11]
        %v827 = vld [vmem:[%s200 + $0xc18] sm:$0x11]
        %v828 = vld [vmem:[%s200 + $0xc20] sm:$0x11]
        %v829 = vld [vmem:[%s200 + $0xc28] sm:$0x11]
        %v830 = vld [vmem:[%s200 + $0xc30] sm:$0x11]
        %v831 = vld [vmem:[%s200 + $0xc38] sm:$0x11]
        %v1028 = vunpack.c.l.b16 %v244
        %v1029 = vunpack.c.h.b16 %v244
        %v1030 = vunpack.c.l.b16 %v245
        %v1031 = vunpack.c.h.b16 %v245
        %v1032 = vunpack.c.l.b16 %v246
        %v1033 = vunpack.c.h.b16 %v246
        %v1034 = vunpack.c.l.b16 %v247
        %v1035 = vunpack.c.h.b16 %v247
        %v1036 = vunpack.c.l.b16 %v248
        %v1037 = vunpack.c.h.b16 %v248
        %v1038 = vunpack.c.l.b16 %v249
        %v1039 = vunpack.c.h.b16 %v249
        %v1040 = vunpack.c.l.b16 %v250
        %v1041 = vunpack.c.h.b16 %v250
        %v1042 = vunpack.c.l.b16 %v251
        %v1043 = vunpack.c.h.b16 %v251
        %v1044 = vunpack.c.l.b16 %v252
        %v1045 = vunpack.c.h.b16 %v252
        %v1046 = vunpack.c.l.b16 %v253
        %v1047 = vunpack.c.h.b16 %v253
        %v1048 = vunpack.c.l.b16 %v254
        %v1049 = vunpack.c.h.b16 %v254
        %v1050 = vunpack.c.l.b16 %v255
        %v1051 = vunpack.c.h.b16 %v255
        %v1052 = vunpack.c.l.b16 %v256
        %v1053 = vunpack.c.h.b16 %v256
        %v1054 = vunpack.c.l.b16 %v257
        %v1055 = vunpack.c.h.b16 %v257
        %v1056 = vunpack.c.l.b16 %v258
        %v1057 = vunpack.c.h.b16 %v258
        %v1058 = vunpack.c.l.b16 %v259
        %v1059 = vunpack.c.h.b16 %v259
        %v1060 = vunpack.c.l.b16 %v260
        %v1061 = vunpack.c.h.b16 %v260
        %v1062 = vunpack.c.l.b16 %v261
        %v1063 = vunpack.c.h.b16 %v261
        %v1064 = vunpack.c.l.b16 %v262
        %v1065 = vunpack.c.h.b16 %v262
        %v1066 = vunpack.c.l.b16 %v263
        %v1067 = vunpack.c.h.b16 %v263
        %v1068 = vunpack.c.l.b16 %v264
        %v1069 = vunpack.c.h.b16 %v264
        %v1070 = vunpack.c.l.b16 %v265
        %v1071 = vunpack.c.h.b16 %v265
        %v1072 = vunpack.c.l.b16 %v266
        %v1073 = vunpack.c.h.b16 %v266
        %v1074 = vunpack.c.l.b16 %v267
        %v1075 = vunpack.c.h.b16 %v267
        %v1076 = vunpack.c.l.b16 %v268
        %v1077 = vunpack.c.h.b16 %v268
        %v1078 = vunpack.c.l.b16 %v269
        %v1079 = vunpack.c.h.b16 %v269
        %v1080 = vunpack.c.l.b16 %v270
        %v1081 = vunpack.c.h.b16 %v270
        %v1082 = vunpack.c.l.b16 %v271
        %v1083 = vunpack.c.h.b16 %v271
        %v1084 = vunpack.c.l.b16 %v272
        %v1085 = vunpack.c.h.b16 %v272
        %v1086 = vunpack.c.l.b16 %v273
        %v1087 = vunpack.c.h.b16 %v273
        %v1088 = vunpack.c.l.b16 %v274
        %v1089 = vunpack.c.h.b16 %v274
        %v1090 = vunpack.c.l.b16 %v275
        %v1091 = vunpack.c.h.b16 %v275
        %v1092 = vunpack.c.l.b16 %v276
        %v1093 = vunpack.c.h.b16 %v276
        %v1094 = vunpack.c.l.b16 %v277
        %v1095 = vunpack.c.h.b16 %v277
        %v1096 = vunpack.c.l.b16 %v278
        %v1097 = vunpack.c.h.b16 %v278
        %v1098 = vunpack.c.l.b16 %v279
        %v1099 = vunpack.c.h.b16 %v279
        %v1100 = vunpack.c.l.b16 %v280
        %v1101 = vunpack.c.h.b16 %v280
        %v1102 = vunpack.c.l.b16 %v281
        %v1103 = vunpack.c.h.b16 %v281
        %v1104 = vunpack.c.l.b16 %v282
        %v1105 = vunpack.c.h.b16 %v282
        %v1106 = vunpack.c.l.b16 %v283
        %v1107 = vunpack.c.h.b16 %v283
        %v1108 = vunpack.c.l.b16 %v284
        %v1109 = vunpack.c.h.b16 %v284
        %v1110 = vunpack.c.l.b16 %v285
        %v1111 = vunpack.c.h.b16 %v285
        %v1112 = vunpack.c.l.b16 %v286
        %v1113 = vunpack.c.h.b16 %v286
        %v1114 = vunpack.c.l.b16 %v287
        %v1115 = vunpack.c.h.b16 %v287
        %v1116 = vunpack.c.l.b16 %v288
        %v1117 = vunpack.c.h.b16 %v288
        %v1118 = vunpack.c.l.b16 %v289
        %v1119 = vunpack.c.h.b16 %v289
        %v1120 = vunpack.c.l.b16 %v290
        %v1121 = vunpack.c.h.b16 %v290
        %v1122 = vunpack.c.l.b16 %v291
        %v1123 = vunpack.c.h.b16 %v291
        %v1124 = vunpack.c.l.b16 %v292
        %v1125 = vunpack.c.h.b16 %v292
        %v1126 = vunpack.c.l.b16 %v293
        %v1127 = vunpack.c.h.b16 %v293
        %v1128 = vunpack.c.l.b16 %v294
        %v1129 = vunpack.c.h.b16 %v294
        %v1130 = vunpack.c.l.b16 %v295
        %v1131 = vunpack.c.h.b16 %v295
        %v1132 = vunpack.c.l.b16 %v296
        %v1133 = vunpack.c.h.b16 %v296
        %v1134 = vunpack.c.l.b16 %v297
        %v1135 = vunpack.c.h.b16 %v297
        %v1136 = vunpack.c.l.b16 %v298
        %v1137 = vunpack.c.h.b16 %v298
        %v1138 = vunpack.c.l.b16 %v299
        %v1139 = vunpack.c.h.b16 %v299
        %v1140 = vunpack.c.l.b16 %v300
        %v1141 = vunpack.c.h.b16 %v300
        %v1142 = vunpack.c.l.b16 %v301
        %v1143 = vunpack.c.h.b16 %v301
        %v1144 = vunpack.c.l.b16 %v302
        %v1145 = vunpack.c.h.b16 %v302
        %v1146 = vunpack.c.l.b16 %v303
        %v1147 = vunpack.c.h.b16 %v303
        %v1148 = vunpack.c.l.b16 %v304
        %v1149 = vunpack.c.h.b16 %v304
        %v1150 = vunpack.c.l.b16 %v305
        %v1151 = vunpack.c.h.b16 %v305
        %v1152 = vunpack.c.l.b16 %v306
        %v1153 = vunpack.c.h.b16 %v306
        %v1154 = vunpack.c.l.b16 %v307
        %v1155 = vunpack.c.h.b16 %v307
        %v1156 = vunpack.c.l.b16 %v308
        %v1157 = vunpack.c.h.b16 %v308
        %v1158 = vunpack.c.l.b16 %v309
        %v1159 = vunpack.c.h.b16 %v309
        %v1160 = vunpack.c.l.b16 %v310
        %v1161 = vunpack.c.h.b16 %v310
        %v1162 = vunpack.c.l.b16 %v311
        %v1163 = vunpack.c.h.b16 %v311
        %v1164 = vunpack.c.l.b16 %v312
        %v1165 = vunpack.c.h.b16 %v312
        %v1166 = vunpack.c.l.b16 %v313
        %v1167 = vunpack.c.h.b16 %v313
        %v1168 = vunpack.c.l.b16 %v314
        %v1169 = vunpack.c.h.b16 %v314
        %v1170 = vunpack.c.l.b16 %v315
        %v1171 = vunpack.c.h.b16 %v315
        %v1172 = vunpack.c.l.b16 %v316
        %v1173 = vunpack.c.h.b16 %v316
        %v1174 = vunpack.c.l.b16 %v317
        %v1175 = vunpack.c.h.b16 %v317
        %v1176 = vunpack.c.l.b16 %v318
        %v1177 = vunpack.c.h.b16 %v318
        %v1178 = vunpack.c.l.b16 %v319
        %v1179 = vunpack.c.h.b16 %v319
        %v1180 = vunpack.c.l.b16 %v320
        %v1181 = vunpack.c.h.b16 %v320
        %v1182 = vunpack.c.l.b16 %v321
        %v1183 = vunpack.c.h.b16 %v321
        %v1184 = vunpack.c.l.b16 %v322
        %v1185 = vunpack.c.h.b16 %v322
        %v1186 = vunpack.c.l.b16 %v323
        %v1187 = vunpack.c.h.b16 %v323
        %v1188 = vunpack.c.l.b16 %v324
        %v1189 = vunpack.c.h.b16 %v324
        %v1190 = vunpack.c.l.b16 %v325
        %v1191 = vunpack.c.h.b16 %v325
        %v1192 = vunpack.c.l.b16 %v326
        %v1193 = vunpack.c.h.b16 %v326
        %v1194 = vunpack.c.l.b16 %v327
        %v1195 = vunpack.c.h.b16 %v327
        %v1196 = vunpack.c.l.b16 %v328
        %v1197 = vunpack.c.h.b16 %v328
        %v1198 = vunpack.c.l.b16 %v329
        %v1199 = vunpack.c.h.b16 %v329
        %v1200 = vunpack.c.l.b16 %v330
        %v1201 = vunpack.c.h.b16 %v330
        %v1202 = vunpack.c.l.b16 %v331
        %v1203 = vunpack.c.h.b16 %v331
        %v1204 = vunpack.c.l.b16 %v332
        %v1205 = vunpack.c.h.b16 %v332
        %v1206 = vunpack.c.l.b16 %v333
        %v1207 = vunpack.c.h.b16 %v333
        %v1208 = vunpack.c.l.b16 %v334
        %v1209 = vunpack.c.h.b16 %v334
        %v1210 = vunpack.c.l.b16 %v335
        %v1211 = vunpack.c.h.b16 %v335
        %v1212 = vunpack.c.l.b16 %v336
        %v1213 = vunpack.c.h.b16 %v336
        %v1214 = vunpack.c.l.b16 %v337
        %v1215 = vunpack.c.h.b16 %v337
        %v1216 = vunpack.c.l.b16 %v338
        %v1217 = vunpack.c.h.b16 %v338
        %v1218 = vunpack.c.l.b16 %v339
        %v1219 = vunpack.c.h.b16 %v339
        %v1220 = vunpack.c.l.b16 %v340
        %v1221 = vunpack.c.h.b16 %v340
        %v1222 = vunpack.c.l.b16 %v341
        %v1223 = vunpack.c.h.b16 %v341
        %v1224 = vunpack.c.l.b16 %v342
        %v1225 = vunpack.c.h.b16 %v342
        %v1226 = vunpack.c.l.b16 %v343
        %v1227 = vunpack.c.h.b16 %v343
        %v1228 = vunpack.c.l.b16 %v344
        %v1229 = vunpack.c.h.b16 %v344
        %v1230 = vunpack.c.l.b16 %v345
        %v1231 = vunpack.c.h.b16 %v345
        %v1232 = vunpack.c.l.b16 %v346
        %v1233 = vunpack.c.h.b16 %v346
        %v1234 = vunpack.c.l.b16 %v347
        %v1235 = vunpack.c.h.b16 %v347
        %v1236 = vunpack.c.l.b16 %v348
        %v1237 = vunpack.c.h.b16 %v348
        %v1238 = vunpack.c.l.b16 %v349
        %v1239 = vunpack.c.h.b16 %v349
        %v1240 = vunpack.c.l.b16 %v350
        %v1241 = vunpack.c.h.b16 %v350
        %v1242 = vunpack.c.l.b16 %v351
        %v1243 = vunpack.c.h.b16 %v351
        %v1244 = vunpack.c.l.b16 %v352
        %v1245 = vunpack.c.h.b16 %v352
        %v1246 = vunpack.c.l.b16 %v353
        %v1247 = vunpack.c.h.b16 %v353
        %v1248 = vunpack.c.l.b16 %v354
        %v1249 = vunpack.c.h.b16 %v354
        %v1250 = vunpack.c.l.b16 %v355
        %v1251 = vunpack.c.h.b16 %v355
        %v1252 = vunpack.c.l.b16 %v356
        %v1253 = vunpack.c.h.b16 %v356
        %v1254 = vunpack.c.l.b16 %v357
        %v1255 = vunpack.c.h.b16 %v357
        %v1256 = vunpack.c.l.b16 %v358
        %v1257 = vunpack.c.h.b16 %v358
        %v1258 = vunpack.c.l.b16 %v359
        %v1259 = vunpack.c.h.b16 %v359
        %v1260 = vunpack.c.l.b16 %v360
        %v1261 = vunpack.c.h.b16 %v360
        %v1262 = vunpack.c.l.b16 %v361
        %v1263 = vunpack.c.h.b16 %v361
        %v1264 = vunpack.c.l.b16 %v362
        %v1265 = vunpack.c.h.b16 %v362
        %v1266 = vunpack.c.l.b16 %v363
        %v1267 = vunpack.c.h.b16 %v363
        %v1268 = vunpack.c.l.b16 %v364
        %v1269 = vunpack.c.h.b16 %v364
        %v1270 = vunpack.c.l.b16 %v365
        %v1271 = vunpack.c.h.b16 %v365
        %v1272 = vunpack.c.l.b16 %v366
        %v1273 = vunpack.c.h.b16 %v366
        %v1274 = vunpack.c.l.b16 %v367
        %v1275 = vunpack.c.h.b16 %v367
        %v1276 = vunpack.c.l.b16 %v368
        %v1277 = vunpack.c.h.b16 %v368
        %v1278 = vunpack.c.l.b16 %v369
        %v1279 = vunpack.c.h.b16 %v369
        %v1280 = vunpack.c.l.b16 %v370
        %v1281 = vunpack.c.h.b16 %v370
        %v1282 = vunpack.c.l.b16 %v371
        %v1283 = vunpack.c.h.b16 %v371
        %v1284 = vunpack.c.l.b16 %v372
        %v1285 = vunpack.c.h.b16 %v372
        %v1286 = vunpack.c.l.b16 %v373
        %v1287 = vunpack.c.h.b16 %v373
        %v1288 = vunpack.c.l.b16 %v374
        %v1289 = vunpack.c.h.b16 %v374
        %v1290 = vunpack.c.l.b16 %v375
        %v1291 = vunpack.c.h.b16 %v375
        %v1292 = vunpack.c.l.b16 %v376
        %v1293 = vunpack.c.h.b16 %v376
        %v1294 = vunpack.c.l.b16 %v377
        %v1295 = vunpack.c.h.b16 %v377
        %v1296 = vunpack.c.l.b16 %v378
        %v1297 = vunpack.c.h.b16 %v378
        %v1298 = vunpack.c.l.b16 %v379
        %v1299 = vunpack.c.h.b16 %v379
        %v1300 = vunpack.c.l.b16 %v380
        %v1301 = vunpack.c.h.b16 %v380
        %v1302 = vunpack.c.l.b16 %v381
        %v1303 = vunpack.c.h.b16 %v381
        %v1304 = vunpack.c.l.b16 %v382
        %v1305 = vunpack.c.h.b16 %v382
        %v1306 = vunpack.c.l.b16 %v383
        %v1307 = vunpack.c.h.b16 %v383
        %v1308 = vunpack.c.l.b16 %v384
        %v1309 = vunpack.c.h.b16 %v384
        %v1310 = vunpack.c.l.b16 %v385
        %v1311 = vunpack.c.h.b16 %v385
        %v1312 = vunpack.c.l.b16 %v386
        %v1313 = vunpack.c.h.b16 %v386
        %v1314 = vunpack.c.l.b16 %v387
        %v1315 = vunpack.c.h.b16 %v387
        %v1316 = vunpack.c.l.b16 %v388
        %v1317 = vunpack.c.h.b16 %v388
        %v1318 = vunpack.c.l.b16 %v389
        %v1319 = vunpack.c.h.b16 %v389
        %v1320 = vunpack.c.l.b16 %v390
        %v1321 = vunpack.c.h.b16 %v390
        %v1322 = vunpack.c.l.b16 %v391
        %v1323 = vunpack.c.h.b16 %v391
        %v1324 = vunpack.c.l.b16 %v392
        %v1325 = vunpack.c.h.b16 %v392
        %v1326 = vunpack.c.l.b16 %v393
        %v1327 = vunpack.c.h.b16 %v393
        %v1328 = vunpack.c.l.b16 %v394
        %v1329 = vunpack.c.h.b16 %v394
        %v1330 = vunpack.c.l.b16 %v395
        %v1331 = vunpack.c.h.b16 %v395
        %v1332 = vunpack.c.l.b16 %v396
        %v1333 = vunpack.c.h.b16 %v396
        %v1334 = vunpack.c.l.b16 %v397
        %v1335 = vunpack.c.h.b16 %v397
        %v1336 = vunpack.c.l.b16 %v398
        %v1337 = vunpack.c.h.b16 %v398
        %v1338 = vunpack.c.l.b16 %v399
        %v1339 = vunpack.c.h.b16 %v399
        %v1340 = vunpack.c.l.b16 %v400
        %v1341 = vunpack.c.h.b16 %v400
        %v1342 = vunpack.c.l.b16 %v401
        %v1343 = vunpack.c.h.b16 %v401
        %v1344 = vunpack.c.l.b16 %v402
        %v1345 = vunpack.c.h.b16 %v402
        %v1346 = vunpack.c.l.b16 %v403
        %v1347 = vunpack.c.h.b16 %v403
        %v1348 = vunpack.c.l.b16 %v404
        %v1349 = vunpack.c.h.b16 %v404
        %v1350 = vunpack.c.l.b16 %v405
        %v1351 = vunpack.c.h.b16 %v405
        %v1352 = vunpack.c.l.b16 %v406
        %v1353 = vunpack.c.h.b16 %v406
        %v1354 = vunpack.c.l.b16 %v407
        %v1355 = vunpack.c.h.b16 %v407
        %v1356 = vunpack.c.l.b16 %v408
        %v1357 = vunpack.c.h.b16 %v408
        %v1358 = vunpack.c.l.b16 %v409
        %v1359 = vunpack.c.h.b16 %v409
        %v1360 = vunpack.c.l.b16 %v410
        %v1361 = vunpack.c.h.b16 %v410
        %v1362 = vunpack.c.l.b16 %v411
        %v1363 = vunpack.c.h.b16 %v411
        %v1364 = vunpack.c.l.b16 %v412
        %v1365 = vunpack.c.h.b16 %v412
        %v1366 = vunpack.c.l.b16 %v413
        %v1367 = vunpack.c.h.b16 %v413
        %v1368 = vunpack.c.l.b16 %v414
        %v1369 = vunpack.c.h.b16 %v414
        %v1370 = vunpack.c.l.b16 %v415
        %v1371 = vunpack.c.h.b16 %v415
        %v1372 = vunpack.c.l.b16 %v416
        %v1373 = vunpack.c.h.b16 %v416
        %v1374 = vunpack.c.l.b16 %v417
        %v1375 = vunpack.c.h.b16 %v417
        %v1376 = vunpack.c.l.b16 %v418
        %v1377 = vunpack.c.h.b16 %v418
        %v1378 = vunpack.c.l.b16 %v419
        %v1379 = vunpack.c.h.b16 %v419
        %v1380 = vunpack.c.l.b16 %v420
        %v1381 = vunpack.c.h.b16 %v420
        %v1382 = vunpack.c.l.b16 %v421
        %v1383 = vunpack.c.h.b16 %v421
        %v1384 = vunpack.c.l.b16 %v422
        %v1385 = vunpack.c.h.b16 %v422
        %v1386 = vunpack.c.l.b16 %v423
        %v1387 = vunpack.c.h.b16 %v423
        %v1388 = vunpack.c.l.b16 %v424
        %v1389 = vunpack.c.h.b16 %v424
        %v1390 = vunpack.c.l.b16 %v425
        %v1391 = vunpack.c.h.b16 %v425
        %v1392 = vunpack.c.l.b16 %v426
        %v1393 = vunpack.c.h.b16 %v426
        %v1394 = vunpack.c.l.b16 %v427
        %v1395 = vunpack.c.h.b16 %v427
        %v1396 = vunpack.c.l.b16 %v428
        %v1397 = vunpack.c.h.b16 %v428
        %v1398 = vunpack.c.l.b16 %v429
        %v1399 = vunpack.c.h.b16 %v429
        %v1400 = vunpack.c.l.b16 %v430
        %v1401 = vunpack.c.h.b16 %v430
        %v1402 = vunpack.c.l.b16 %v431
        %v1403 = vunpack.c.h.b16 %v431
        %v1404 = vunpack.c.l.b16 %v432
        %v1405 = vunpack.c.h.b16 %v432
        %v1406 = vunpack.c.l.b16 %v433
        %v1407 = vunpack.c.h.b16 %v433
        %v1408 = vunpack.c.l.b16 %v434
        %v1409 = vunpack.c.h.b16 %v434
        %v1410 = vunpack.c.l.b16 %v435
        %v1411 = vunpack.c.h.b16 %v435
        %v1412 = vunpack.c.l.b16 %v436
        %v1413 = vunpack.c.h.b16 %v436
        %v1414 = vunpack.c.l.b16 %v437
        %v1415 = vunpack.c.h.b16 %v437
        %v1416 = vunpack.c.l.b16 %v438
        %v1417 = vunpack.c.h.b16 %v438
        %v1418 = vunpack.c.l.b16 %v439
        %v1419 = vunpack.c.h.b16 %v439
        %v1420 = vpack.c.b16 %v1028, %v1028
        %v1421 = vpack.c.b16 %v1029, %v1029
        %v1422 = vpack.c.b16 %v1030, %v1030
        %v1423 = vpack.c.b16 %v1031, %v1031
        %v1424 = vpack.c.b16 %v1032, %v1032
        %v1425 = vpack.c.b16 %v1033, %v1033
        %v1426 = vpack.c.b16 %v1034, %v1034
        %v1427 = vpack.c.b16 %v1035, %v1035
        %v1428 = vpack.c.b16 %v1036, %v1036
        %v1429 = vpack.c.b16 %v1037, %v1037
        %v1430 = vpack.c.b16 %v1038, %v1038
        %v1431 = vpack.c.b16 %v1039, %v1039
        %v1432 = vpack.c.b16 %v1040, %v1040
        %v1433 = vpack.c.b16 %v1041, %v1041
        %v1434 = vpack.c.b16 %v1042, %v1042
        %v1435 = vpack.c.b16 %v1043, %v1043
        %v1436 = vpack.c.b16 %v1044, %v1044
        %v1437 = vpack.c.b16 %v1045, %v1045
        %v1438 = vpack.c.b16 %v1046, %v1046
        %v1439 = vpack.c.b16 %v1047, %v1047
        %v1440 = vpack.c.b16 %v1048, %v1048
        %v1441 = vpack.c.b16 %v1049, %v1049
        %v1442 = vpack.c.b16 %v1050, %v1050
        %v1443 = vpack.c.b16 %v1051, %v1051
        %v1444 = vpack.c.b16 %v1052, %v1052
        %v1445 = vpack.c.b16 %v1053, %v1053
        %v1446 = vpack.c.b16 %v1054, %v1054
        %v1447 = vpack.c.b16 %v1055, %v1055
        %v1448 = vpack.c.b16 %v1056, %v1056
        %v1449 = vpack.c.b16 %v1057, %v1057
        %v1450 = vpack.c.b16 %v1058, %v1058
        %v1451 = vpack.c.b16 %v1059, %v1059
        %v1452 = vpack.c.b16 %v1060, %v1060
        %v1453 = vpack.c.b16 %v1061, %v1061
        %v1454 = vpack.c.b16 %v1062, %v1062
        %v1455 = vpack.c.b16 %v1063, %v1063
        %v1456 = vpack.c.b16 %v1064, %v1064
        %v1457 = vpack.c.b16 %v1065, %v1065
        %v1458 = vpack.c.b16 %v1066, %v1066
        %v1459 = vpack.c.b16 %v1067, %v1067
        %v1460 = vpack.c.b16 %v1068, %v1068
        %v1461 = vpack.c.b16 %v1069, %v1069
        %v1462 = vpack.c.b16 %v1070, %v1070
        %v1463 = vpack.c.b16 %v1071, %v1071
        %v1464 = vpack.c.b16 %v1072, %v1072
        %v1465 = vpack.c.b16 %v1073, %v1073
        %v1466 = vpack.c.b16 %v1074, %v1074
        %v1467 = vpack.c.b16 %v1075, %v1075
        %v1468 = vpack.c.b16 %v1076, %v1076
        %v1469 = vpack.c.b16 %v1077, %v1077
        %v1470 = vpack.c.b16 %v1078, %v1078
        %v1471 = vpack.c.b16 %v1079, %v1079
        %v1472 = vpack.c.b16 %v1080, %v1080
        %v1473 = vpack.c.b16 %v1081, %v1081
        %v1474 = vpack.c.b16 %v1082, %v1082
        %v1475 = vpack.c.b16 %v1083, %v1083
        %v1476 = vpack.c.b16 %v1084, %v1084
        %v1477 = vpack.c.b16 %v1085, %v1085
        %v1478 = vpack.c.b16 %v1086, %v1086
        %v1479 = vpack.c.b16 %v1087, %v1087
        %v1480 = vpack.c.b16 %v1088, %v1088
        %v1481 = vpack.c.b16 %v1089, %v1089
        %v1482 = vpack.c.b16 %v1090, %v1090
        %v1483 = vpack.c.b16 %v1091, %v1091
        %v1484 = vpack.c.b16 %v1092, %v1092
        %v1485 = vpack.c.b16 %v1093, %v1093
        %v1486 = vpack.c.b16 %v1094, %v1094
        %v1487 = vpack.c.b16 %v1095, %v1095
        %v1488 = vpack.c.b16 %v1096, %v1096
        %v1489 = vpack.c.b16 %v1097, %v1097
        %v1490 = vpack.c.b16 %v1098, %v1098
        %v1491 = vpack.c.b16 %v1099, %v1099
        %v1492 = vpack.c.b16 %v1100, %v1100
        %v1493 = vpack.c.b16 %v1101, %v1101
        %v1494 = vpack.c.b16 %v1102, %v1102
        %v1495 = vpack.c.b16 %v1103, %v1103
        %v1496 = vpack.c.b16 %v1104, %v1104
        %v1497 = vpack.c.b16 %v1105, %v1105
        %v1498 = vpack.c.b16 %v1106, %v1106
        %v1499 = vpack.c.b16 %v1107, %v1107
        %v1500 = vpack.c.b16 %v1108, %v1108
        %v1501 = vpack.c.b16 %v1109, %v1109
        %v1502 = vpack.c.b16 %v1110, %v1110
        %v1503 = vpack.c.b16 %v1111, %v1111
        %v1504 = vpack.c.b16 %v1112, %v1112
        %v1505 = vpack.c.b16 %v1113, %v1113
        %v1506 = vpack.c.b16 %v1114, %v1114
        %v1507 = vpack.c.b16 %v1115, %v1115
        %v1508 = vpack.c.b16 %v1116, %v1116
        %v1509 = vpack.c.b16 %v1117, %v1117
        %v1510 = vpack.c.b16 %v1118, %v1118
        %v1511 = vpack.c.b16 %v1119, %v1119
        %v1512 = vpack.c.b16 %v1120, %v1120
        %v1513 = vpack.c.b16 %v1121, %v1121
        %v1514 = vpack.c.b16 %v1122, %v1122
        %v1515 = vpack.c.b16 %v1123, %v1123
        %v1516 = vpack.c.b16 %v1124, %v1124
        %v1517 = vpack.c.b16 %v1125, %v1125
        %v1518 = vpack.c.b16 %v1126, %v1126
        %v1519 = vpack.c.b16 %v1127, %v1127
        %v1520 = vpack.c.b16 %v1128, %v1128
        %v1521 = vpack.c.b16 %v1129, %v1129
        %v1522 = vpack.c.b16 %v1130, %v1130
        %v1523 = vpack.c.b16 %v1131, %v1131
        %v1524 = vpack.c.b16 %v1132, %v1132
        %v1525 = vpack.c.b16 %v1133, %v1133
        %v1526 = vpack.c.b16 %v1134, %v1134
        %v1527 = vpack.c.b16 %v1135, %v1135
        %v1528 = vpack.c.b16 %v1136, %v1136
        %v1529 = vpack.c.b16 %v1137, %v1137
        %v1530 = vpack.c.b16 %v1138, %v1138
        %v1531 = vpack.c.b16 %v1139, %v1139
        %v1532 = vpack.c.b16 %v1140, %v1140
        %v1533 = vpack.c.b16 %v1141, %v1141
        %v1534 = vpack.c.b16 %v1142, %v1142
        %v1535 = vpack.c.b16 %v1143, %v1143
        %v1536 = vpack.c.b16 %v1144, %v1144
        %v1537 = vpack.c.b16 %v1145, %v1145
        %v1538 = vpack.c.b16 %v1146, %v1146
        %v1539 = vpack.c.b16 %v1147, %v1147
        %v1540 = vpack.c.b16 %v1148, %v1148
        %v1541 = vpack.c.b16 %v1149, %v1149
        %v1542 = vpack.c.b16 %v1150, %v1150
        %v1543 = vpack.c.b16 %v1151, %v1151
        %v1544 = vpack.c.b16 %v1152, %v1152
        %v1545 = vpack.c.b16 %v1153, %v1153
        %v1546 = vpack.c.b16 %v1154, %v1154
        %v1547 = vpack.c.b16 %v1155, %v1155
        %v1548 = vpack.c.b16 %v1156, %v1156
        %v1549 = vpack.c.b16 %v1157, %v1157
        %v1550 = vpack.c.b16 %v1158, %v1158
        %v1551 = vpack.c.b16 %v1159, %v1159
        %v1552 = vpack.c.b16 %v1160, %v1160
        %v1553 = vpack.c.b16 %v1161, %v1161
        %v1554 = vpack.c.b16 %v1162, %v1162
        %v1555 = vpack.c.b16 %v1163, %v1163
        %v1556 = vpack.c.b16 %v1164, %v1164
        %v1557 = vpack.c.b16 %v1165, %v1165
        %v1558 = vpack.c.b16 %v1166, %v1166
        %v1559 = vpack.c.b16 %v1167, %v1167
        %v1560 = vpack.c.b16 %v1168, %v1168
        %v1561 = vpack.c.b16 %v1169, %v1169
        %v1562 = vpack.c.b16 %v1170, %v1170
        %v1563 = vpack.c.b16 %v1171, %v1171
        %v1564 = vpack.c.b16 %v1172, %v1172
        %v1565 = vpack.c.b16 %v1173, %v1173
        %v1566 = vpack.c.b16 %v1174, %v1174
        %v1567 = vpack.c.b16 %v1175, %v1175
        %v1568 = vpack.c.b16 %v1176, %v1176
        %v1569 = vpack.c.b16 %v1177, %v1177
        %v1570 = vpack.c.b16 %v1178, %v1178
        %v1571 = vpack.c.b16 %v1179, %v1179
        %v1572 = vpack.c.b16 %v1180, %v1180
        %v1573 = vpack.c.b16 %v1181, %v1181
        %v1574 = vpack.c.b16 %v1182, %v1182
        %v1575 = vpack.c.b16 %v1183, %v1183
        %v1576 = vpack.c.b16 %v1184, %v1184
        %v1577 = vpack.c.b16 %v1185, %v1185
        %v1578 = vpack.c.b16 %v1186, %v1186
        %v1579 = vpack.c.b16 %v1187, %v1187
        %v1580 = vpack.c.b16 %v1188, %v1188
        %v1581 = vpack.c.b16 %v1189, %v1189
        %v1582 = vpack.c.b16 %v1190, %v1190
        %v1583 = vpack.c.b16 %v1191, %v1191
        %v1584 = vpack.c.b16 %v1192, %v1192
        %v1585 = vpack.c.b16 %v1193, %v1193
        %v1586 = vpack.c.b16 %v1194, %v1194
        %v1587 = vpack.c.b16 %v1195, %v1195
        %v1588 = vpack.c.b16 %v1196, %v1196
        %v1589 = vpack.c.b16 %v1197, %v1197
        %v1590 = vpack.c.b16 %v1198, %v1198
        %v1591 = vpack.c.b16 %v1199, %v1199
        %v1592 = vpack.c.b16 %v1200, %v1200
        %v1593 = vpack.c.b16 %v1201, %v1201
        %v1594 = vpack.c.b16 %v1202, %v1202
        %v1595 = vpack.c.b16 %v1203, %v1203
        %v1596 = vpack.c.b16 %v1204, %v1204
        %v1597 = vpack.c.b16 %v1205, %v1205
        %v1598 = vpack.c.b16 %v1206, %v1206
        %v1599 = vpack.c.b16 %v1207, %v1207
        %v1600 = vpack.c.b16 %v1208, %v1208
        %v1601 = vpack.c.b16 %v1209, %v1209
        %v1602 = vpack.c.b16 %v1210, %v1210
        %v1603 = vpack.c.b16 %v1211, %v1211
        %v1604 = vpack.c.b16 %v1212, %v1212
        %v1605 = vpack.c.b16 %v1213, %v1213
        %v1606 = vpack.c.b16 %v1214, %v1214
        %v1607 = vpack.c.b16 %v1215, %v1215
        %v1608 = vpack.c.b16 %v1216, %v1216
        %v1609 = vpack.c.b16 %v1217, %v1217
        %v1610 = vpack.c.b16 %v1218, %v1218
        %v1611 = vpack.c.b16 %v1219, %v1219
        %v1612 = vpack.c.b16 %v1220, %v1220
        %v1613 = vpack.c.b16 %v1221, %v1221
        %v1614 = vpack.c.b16 %v1222, %v1222
        %v1615 = vpack.c.b16 %v1223, %v1223
        %v1616 = vpack.c.b16 %v1224, %v1224
        %v1617 = vpack.c.b16 %v1225, %v1225
        %v1618 = vpack.c.b16 %v1226, %v1226
        %v1619 = vpack.c.b16 %v1227, %v1227
        %v1620 = vpack.c.b16 %v1228, %v1228
        %v1621 = vpack.c.b16 %v1229, %v1229
        %v1622 = vpack.c.b16 %v1230, %v1230
        %v1623 = vpack.c.b16 %v1231, %v1231
        %v1624 = vpack.c.b16 %v1232, %v1232
        %v1625 = vpack.c.b16 %v1233, %v1233
        %v1626 = vpack.c.b16 %v1234, %v1234
        %v1627 = vpack.c.b16 %v1235, %v1235
        %v1628 = vpack.c.b16 %v1236, %v1236
        %v1629 = vpack.c.b16 %v1237, %v1237
        %v1630 = vpack.c.b16 %v1238, %v1238
        %v1631 = vpack.c.b16 %v1239, %v1239
        %v1632 = vpack.c.b16 %v1240, %v1240
        %v1633 = vpack.c.b16 %v1241, %v1241
        %v1634 = vpack.c.b16 %v1242, %v1242
        %v1635 = vpack.c.b16 %v1243, %v1243
        %v1636 = vpack.c.b16 %v1244, %v1244
        %v1637 = vpack.c.b16 %v1245, %v1245
        %v1638 = vpack.c.b16 %v1246, %v1246
        %v1639 = vpack.c.b16 %v1247, %v1247
        %v1640 = vpack.c.b16 %v1248, %v1248
        %v1641 = vpack.c.b16 %v1249, %v1249
        %v1642 = vpack.c.b16 %v1250, %v1250
        %v1643 = vpack.c.b16 %v1251, %v1251
        %v1644 = vpack.c.b16 %v1252, %v1252
        %v1645 = vpack.c.b16 %v1253, %v1253
        %v1646 = vpack.c.b16 %v1254, %v1254
        %v1647 = vpack.c.b16 %v1255, %v1255
        %v1648 = vpack.c.b16 %v1256, %v1256
        %v1649 = vpack.c.b16 %v1257, %v1257
        %v1650 = vpack.c.b16 %v1258, %v1258
        %v1651 = vpack.c.b16 %v1259, %v1259
        %v1652 = vpack.c.b16 %v1260, %v1260
        %v1653 = vpack.c.b16 %v1261, %v1261
        %v1654 = vpack.c.b16 %v1262, %v1262
        %v1655 = vpack.c.b16 %v1263, %v1263
        %v1656 = vpack.c.b16 %v1264, %v1264
        %v1657 = vpack.c.b16 %v1265, %v1265
        %v1658 = vpack.c.b16 %v1266, %v1266
        %v1659 = vpack.c.b16 %v1267, %v1267
        %v1660 = vpack.c.b16 %v1268, %v1268
        %v1661 = vpack.c.b16 %v1269, %v1269
        %v1662 = vpack.c.b16 %v1270, %v1270
        %v1663 = vpack.c.b16 %v1271, %v1271
        %v1664 = vpack.c.b16 %v1272, %v1272
        %v1665 = vpack.c.b16 %v1273, %v1273
        %v1666 = vpack.c.b16 %v1274, %v1274
        %v1667 = vpack.c.b16 %v1275, %v1275
        %v1668 = vpack.c.b16 %v1276, %v1276
        %v1669 = vpack.c.b16 %v1277, %v1277
        %v1670 = vpack.c.b16 %v1278, %v1278
        %v1671 = vpack.c.b16 %v1279, %v1279
        %v1672 = vpack.c.b16 %v1280, %v1280
        %v1673 = vpack.c.b16 %v1281, %v1281
        %v1674 = vpack.c.b16 %v1282, %v1282
        %v1675 = vpack.c.b16 %v1283, %v1283
        %v1676 = vpack.c.b16 %v1284, %v1284
        %v1677 = vpack.c.b16 %v1285, %v1285
        %v1678 = vpack.c.b16 %v1286, %v1286
        %v1679 = vpack.c.b16 %v1287, %v1287
        %v1680 = vpack.c.b16 %v1288, %v1288
        %v1681 = vpack.c.b16 %v1289, %v1289
        %v1682 = vpack.c.b16 %v1290, %v1290
        %v1683 = vpack.c.b16 %v1291, %v1291
        %v1684 = vpack.c.b16 %v1292, %v1292
        %v1685 = vpack.c.b16 %v1293, %v1293
        %v1686 = vpack.c.b16 %v1294, %v1294
        %v1687 = vpack.c.b16 %v1295, %v1295
        %v1688 = vpack.c.b16 %v1296, %v1296
        %v1689 = vpack.c.b16 %v1297, %v1297
        %v1690 = vpack.c.b16 %v1298, %v1298
        %v1691 = vpack.c.b16 %v1299, %v1299
        %v1692 = vpack.c.b16 %v1300, %v1300
        %v1693 = vpack.c.b16 %v1301, %v1301
        %v1694 = vpack.c.b16 %v1302, %v1302
        %v1695 = vpack.c.b16 %v1303, %v1303
        %v1696 = vpack.c.b16 %v1304, %v1304
        %v1697 = vpack.c.b16 %v1305, %v1305
        %v1698 = vpack.c.b16 %v1306, %v1306
        %v1699 = vpack.c.b16 %v1307, %v1307
        %v1700 = vpack.c.b16 %v1308, %v1308
        %v1701 = vpack.c.b16 %v1309, %v1309
        %v1702 = vpack.c.b16 %v1310, %v1310
        %v1703 = vpack.c.b16 %v1311, %v1311
        %v1704 = vpack.c.b16 %v1312, %v1312
        %v1705 = vpack.c.b16 %v1313, %v1313
        %v1706 = vpack.c.b16 %v1314, %v1314
        %v1707 = vpack.c.b16 %v1315, %v1315
        %v1708 = vpack.c.b16 %v1316, %v1316
        %v1709 = vpack.c.b16 %v1317, %v1317
        %v1710 = vpack.c.b16 %v1318, %v1318
        %v1711 = vpack.c.b16 %v1319, %v1319
        %v1712 = vpack.c.b16 %v1320, %v1320
        %v1713 = vpack.c.b16 %v1321, %v1321
        %v1714 = vpack.c.b16 %v1322, %v1322
        %v1715 = vpack.c.b16 %v1323, %v1323
        %v1716 = vpack.c.b16 %v1324, %v1324
        %v1717 = vpack.c.b16 %v1325, %v1325
        %v1718 = vpack.c.b16 %v1326, %v1326
        %v1719 = vpack.c.b16 %v1327, %v1327
        %v1720 = vpack.c.b16 %v1328, %v1328
        %v1721 = vpack.c.b16 %v1329, %v1329
        %v1722 = vpack.c.b16 %v1330, %v1330
        %v1723 = vpack.c.b16 %v1331, %v1331
        %v1724 = vpack.c.b16 %v1332, %v1332
        %v1725 = vpack.c.b16 %v1333, %v1333
        %v1726 = vpack.c.b16 %v1334, %v1334
        %v1727 = vpack.c.b16 %v1335, %v1335
        %v1728 = vpack.c.b16 %v1336, %v1336
        %v1729 = vpack.c.b16 %v1337, %v1337
        %v1730 = vpack.c.b16 %v1338, %v1338
        %v1731 = vpack.c.b16 %v1339, %v1339
        %v1732 = vpack.c.b16 %v1340, %v1340
        %v1733 = vpack.c.b16 %v1341, %v1341
        %v1734 = vpack.c.b16 %v1342, %v1342
        %v1735 = vpack.c.b16 %v1343, %v1343
        %v1736 = vpack.c.b16 %v1344, %v1344
        %v1737 = vpack.c.b16 %v1345, %v1345
        %v1738 = vpack.c.b16 %v1346, %v1346
        %v1739 = vpack.c.b16 %v1347, %v1347
        %v1740 = vpack.c.b16 %v1348, %v1348
        %v1741 = vpack.c.b16 %v1349, %v1349
        %v1742 = vpack.c.b16 %v1350, %v1350
        %v1743 = vpack.c.b16 %v1351, %v1351
        %v1744 = vpack.c.b16 %v1352, %v1352
        %v1745 = vpack.c.b16 %v1353, %v1353
        %v1746 = vpack.c.b16 %v1354, %v1354
        %v1747 = vpack.c.b16 %v1355, %v1355
        %v1748 = vpack.c.b16 %v1356, %v1356
        %v1749 = vpack.c.b16 %v1357, %v1357
        %v1750 = vpack.c.b16 %v1358, %v1358
        %v1751 = vpack.c.b16 %v1359, %v1359
        %v1752 = vpack.c.b16 %v1360, %v1360
        %v1753 = vpack.c.b16 %v1361, %v1361
        %v1754 = vpack.c.b16 %v1362, %v1362
        %v1755 = vpack.c.b16 %v1363, %v1363
        %v1756 = vpack.c.b16 %v1364, %v1364
        %v1757 = vpack.c.b16 %v1365, %v1365
        %v1758 = vpack.c.b16 %v1366, %v1366
        %v1759 = vpack.c.b16 %v1367, %v1367
        %v1760 = vpack.c.b16 %v1368, %v1368
        %v1761 = vpack.c.b16 %v1369, %v1369
        %v1762 = vpack.c.b16 %v1370, %v1370
        %v1763 = vpack.c.b16 %v1371, %v1371
        %v1764 = vpack.c.b16 %v1372, %v1372
        %v1765 = vpack.c.b16 %v1373, %v1373
        %v1766 = vpack.c.b16 %v1374, %v1374
        %v1767 = vpack.c.b16 %v1375, %v1375
        %v1768 = vpack.c.b16 %v1376, %v1376
        %v1769 = vpack.c.b16 %v1377, %v1377
        %v1770 = vpack.c.b16 %v1378, %v1378
        %v1771 = vpack.c.b16 %v1379, %v1379
        %v1772 = vpack.c.b16 %v1380, %v1380
        %v1773 = vpack.c.b16 %v1381, %v1381
        %v1774 = vpack.c.b16 %v1382, %v1382
        %v1775 = vpack.c.b16 %v1383, %v1383
        %v1776 = vpack.c.b16 %v1384, %v1384
        %v1777 = vpack.c.b16 %v1385, %v1385
        %v1778 = vpack.c.b16 %v1386, %v1386
        %v1779 = vpack.c.b16 %v1387, %v1387
        %v1780 = vpack.c.b16 %v1388, %v1388
        %v1781 = vpack.c.b16 %v1389, %v1389
        %v1782 = vpack.c.b16 %v1390, %v1390
        %v1783 = vpack.c.b16 %v1391, %v1391
        %v1784 = vpack.c.b16 %v1392, %v1392
        %v1785 = vpack.c.b16 %v1393, %v1393
        %v1786 = vpack.c.b16 %v1394, %v1394
        %v1787 = vpack.c.b16 %v1395, %v1395
        %v1788 = vpack.c.b16 %v1396, %v1396
        %v1789 = vpack.c.b16 %v1397, %v1397
        %v1790 = vpack.c.b16 %v1398, %v1398
        %v1791 = vpack.c.b16 %v1399, %v1399
        %v1792 = vpack.c.b16 %v1400, %v1400
        %v1793 = vpack.c.b16 %v1401, %v1401
        %v1794 = vpack.c.b16 %v1402, %v1402
        %v1795 = vpack.c.b16 %v1403, %v1403
        %v1796 = vpack.c.b16 %v1404, %v1404
        %v1797 = vpack.c.b16 %v1405, %v1405
        %v1798 = vpack.c.b16 %v1406, %v1406
        %v1799 = vpack.c.b16 %v1407, %v1407
        %v1800 = vpack.c.b16 %v1408, %v1408
        %v1801 = vpack.c.b16 %v1409, %v1409
        %v1802 = vpack.c.b16 %v1410, %v1410
        %v1803 = vpack.c.b16 %v1411, %v1411
        %v1804 = vpack.c.b16 %v1412, %v1412
        %v1805 = vpack.c.b16 %v1413, %v1413
        %v1806 = vpack.c.b16 %v1414, %v1414
        %v1807 = vpack.c.b16 %v1415, %v1415
        %v1808 = vpack.c.b16 %v1416, %v1416
        %v1809 = vpack.c.b16 %v1417, %v1417
        %v1810 = vpack.c.b16 %v1418, %v1418
        %v1811 = vpack.c.b16 %v1419, %v1419
        %v2596 = vunpack.c.l.b16 %v440
        %v2597 = vunpack.c.h.b16 %v440
        %v2598 = vunpack.c.l.b16 %v441
        %v2599 = vunpack.c.h.b16 %v441
        %v2600 = vunpack.c.l.b16 %v442
        %v2601 = vunpack.c.h.b16 %v442
        %v2602 = vunpack.c.l.b16 %v443
        %v2603 = vunpack.c.h.b16 %v443
        %v2604 = vunpack.c.l.b16 %v444
        %v2605 = vunpack.c.h.b16 %v444
        %v2606 = vunpack.c.l.b16 %v445
        %v2607 = vunpack.c.h.b16 %v445
        %v2608 = vunpack.c.l.b16 %v446
        %v2609 = vunpack.c.h.b16 %v446
        %v2610 = vunpack.c.l.b16 %v447
        %v2611 = vunpack.c.h.b16 %v447
        %v2612 = vunpack.c.l.b16 %v448
        %v2613 = vunpack.c.h.b16 %v448
        %v2614 = vunpack.c.l.b16 %v449
        %v2615 = vunpack.c.h.b16 %v449
        %v2616 = vunpack.c.l.b16 %v450
        %v2617 = vunpack.c.h.b16 %v450
        %v2618 = vunpack.c.l.b16 %v451
        %v2619 = vunpack.c.h.b16 %v451
        %v2620 = vunpack.c.l.b16 %v452
        %v2621 = vunpack.c.h.b16 %v452
        %v2622 = vunpack.c.l.b16 %v453
        %v2623 = vunpack.c.h.b16 %v453
        %v2624 = vunpack.c.l.b16 %v454
        %v2625 = vunpack.c.h.b16 %v454
        %v2626 = vunpack.c.l.b16 %v455
        %v2627 = vunpack.c.h.b16 %v455
        %v2628 = vunpack.c.l.b16 %v456
        %v2629 = vunpack.c.h.b16 %v456
        %v2630 = vunpack.c.l.b16 %v457
        %v2631 = vunpack.c.h.b16 %v457
        %v2632 = vunpack.c.l.b16 %v458
        %v2633 = vunpack.c.h.b16 %v458
        %v2634 = vunpack.c.l.b16 %v459
        %v2635 = vunpack.c.h.b16 %v459
        %v2636 = vunpack.c.l.b16 %v460
        %v2637 = vunpack.c.h.b16 %v460
        %v2638 = vunpack.c.l.b16 %v461
        %v2639 = vunpack.c.h.b16 %v461
        %v2640 = vunpack.c.l.b16 %v462
        %v2641 = vunpack.c.h.b16 %v462
        %v2642 = vunpack.c.l.b16 %v463
        %v2643 = vunpack.c.h.b16 %v463
        %v2644 = vunpack.c.l.b16 %v464
        %v2645 = vunpack.c.h.b16 %v464
        %v2646 = vunpack.c.l.b16 %v465
        %v2647 = vunpack.c.h.b16 %v465
        %v2648 = vunpack.c.l.b16 %v466
        %v2649 = vunpack.c.h.b16 %v466
        %v2650 = vunpack.c.l.b16 %v467
        %v2651 = vunpack.c.h.b16 %v467
        %v2652 = vunpack.c.l.b16 %v468
        %v2653 = vunpack.c.h.b16 %v468
        %v2654 = vunpack.c.l.b16 %v469
        %v2655 = vunpack.c.h.b16 %v469
        %v2656 = vunpack.c.l.b16 %v470
        %v2657 = vunpack.c.h.b16 %v470
        %v2658 = vunpack.c.l.b16 %v471
        %v2659 = vunpack.c.h.b16 %v471
        %v2660 = vunpack.c.l.b16 %v472
        %v2661 = vunpack.c.h.b16 %v472
        %v2662 = vunpack.c.l.b16 %v473
        %v2663 = vunpack.c.h.b16 %v473
        %v2664 = vunpack.c.l.b16 %v474
        %v2665 = vunpack.c.h.b16 %v474
        %v2666 = vunpack.c.l.b16 %v475
        %v2667 = vunpack.c.h.b16 %v475
        %v2668 = vunpack.c.l.b16 %v476
        %v2669 = vunpack.c.h.b16 %v476
        %v2670 = vunpack.c.l.b16 %v477
        %v2671 = vunpack.c.h.b16 %v477
        %v2672 = vunpack.c.l.b16 %v478
        %v2673 = vunpack.c.h.b16 %v478
        %v2674 = vunpack.c.l.b16 %v479
        %v2675 = vunpack.c.h.b16 %v479
        %v2676 = vunpack.c.l.b16 %v480
        %v2677 = vunpack.c.h.b16 %v480
        %v2678 = vunpack.c.l.b16 %v481
        %v2679 = vunpack.c.h.b16 %v481
        %v2680 = vunpack.c.l.b16 %v482
        %v2681 = vunpack.c.h.b16 %v482
        %v2682 = vunpack.c.l.b16 %v483
        %v2683 = vunpack.c.h.b16 %v483
        %v2684 = vunpack.c.l.b16 %v484
        %v2685 = vunpack.c.h.b16 %v484
        %v2686 = vunpack.c.l.b16 %v485
        %v2687 = vunpack.c.h.b16 %v485
        %v2688 = vunpack.c.l.b16 %v486
        %v2689 = vunpack.c.h.b16 %v486
        %v2690 = vunpack.c.l.b16 %v487
        %v2691 = vunpack.c.h.b16 %v487
        %v2692 = vunpack.c.l.b16 %v488
        %v2693 = vunpack.c.h.b16 %v488
        %v2694 = vunpack.c.l.b16 %v489
        %v2695 = vunpack.c.h.b16 %v489
        %v2696 = vunpack.c.l.b16 %v490
        %v2697 = vunpack.c.h.b16 %v490
        %v2698 = vunpack.c.l.b16 %v491
        %v2699 = vunpack.c.h.b16 %v491
        %v2700 = vunpack.c.l.b16 %v492
        %v2701 = vunpack.c.h.b16 %v492
        %v2702 = vunpack.c.l.b16 %v493
        %v2703 = vunpack.c.h.b16 %v493
        %v2704 = vunpack.c.l.b16 %v494
        %v2705 = vunpack.c.h.b16 %v494
        %v2706 = vunpack.c.l.b16 %v495
        %v2707 = vunpack.c.h.b16 %v495
        %v2708 = vunpack.c.l.b16 %v496
        %v2709 = vunpack.c.h.b16 %v496
        %v2710 = vunpack.c.l.b16 %v497
        %v2711 = vunpack.c.h.b16 %v497
        %v2712 = vunpack.c.l.b16 %v498
        %v2713 = vunpack.c.h.b16 %v498
        %v2714 = vunpack.c.l.b16 %v499
        %v2715 = vunpack.c.h.b16 %v499
        %v2716 = vunpack.c.l.b16 %v500
        %v2717 = vunpack.c.h.b16 %v500
        %v2718 = vunpack.c.l.b16 %v501
        %v2719 = vunpack.c.h.b16 %v501
        %v2720 = vunpack.c.l.b16 %v502
        %v2721 = vunpack.c.h.b16 %v502
        %v2722 = vunpack.c.l.b16 %v503
        %v2723 = vunpack.c.h.b16 %v503
        %v2724 = vunpack.c.l.b16 %v504
        %v2725 = vunpack.c.h.b16 %v504
        %v2726 = vunpack.c.l.b16 %v505
        %v2727 = vunpack.c.h.b16 %v505
        %v2728 = vunpack.c.l.b16 %v506
        %v2729 = vunpack.c.h.b16 %v506
        %v2730 = vunpack.c.l.b16 %v507
        %v2731 = vunpack.c.h.b16 %v507
        %v2732 = vunpack.c.l.b16 %v508
        %v2733 = vunpack.c.h.b16 %v508
        %v2734 = vunpack.c.l.b16 %v509
        %v2735 = vunpack.c.h.b16 %v509
        %v2736 = vunpack.c.l.b16 %v510
        %v2737 = vunpack.c.h.b16 %v510
        %v2738 = vunpack.c.l.b16 %v511
        %v2739 = vunpack.c.h.b16 %v511
        %v2740 = vunpack.c.l.b16 %v512
        %v2741 = vunpack.c.h.b16 %v512
        %v2742 = vunpack.c.l.b16 %v513
        %v2743 = vunpack.c.h.b16 %v513
        %v2744 = vunpack.c.l.b16 %v514
        %v2745 = vunpack.c.h.b16 %v514
        %v2746 = vunpack.c.l.b16 %v515
        %v2747 = vunpack.c.h.b16 %v515
        %v2748 = vunpack.c.l.b16 %v516
        %v2749 = vunpack.c.h.b16 %v516
        %v2750 = vunpack.c.l.b16 %v517
        %v2751 = vunpack.c.h.b16 %v517
        %v2752 = vunpack.c.l.b16 %v518
        %v2753 = vunpack.c.h.b16 %v518
        %v2754 = vunpack.c.l.b16 %v519
        %v2755 = vunpack.c.h.b16 %v519
        %v2756 = vunpack.c.l.b16 %v520
        %v2757 = vunpack.c.h.b16 %v520
        %v2758 = vunpack.c.l.b16 %v521
        %v2759 = vunpack.c.h.b16 %v521
        %v2760 = vunpack.c.l.b16 %v522
        %v2761 = vunpack.c.h.b16 %v522
        %v2762 = vunpack.c.l.b16 %v523
        %v2763 = vunpack.c.h.b16 %v523
        %v2764 = vunpack.c.l.b16 %v524
        %v2765 = vunpack.c.h.b16 %v524
        %v2766 = vunpack.c.l.b16 %v525
        %v2767 = vunpack.c.h.b16 %v525
        %v2768 = vunpack.c.l.b16 %v526
        %v2769 = vunpack.c.h.b16 %v526
        %v2770 = vunpack.c.l.b16 %v527
        %v2771 = vunpack.c.h.b16 %v527
        %v2772 = vunpack.c.l.b16 %v528
        %v2773 = vunpack.c.h.b16 %v528
        %v2774 = vunpack.c.l.b16 %v529
        %v2775 = vunpack.c.h.b16 %v529
        %v2776 = vunpack.c.l.b16 %v530
        %v2777 = vunpack.c.h.b16 %v530
        %v2778 = vunpack.c.l.b16 %v531
        %v2779 = vunpack.c.h.b16 %v531
        %v2780 = vunpack.c.l.b16 %v532
        %v2781 = vunpack.c.h.b16 %v532
        %v2782 = vunpack.c.l.b16 %v533
        %v2783 = vunpack.c.h.b16 %v533
        %v2784 = vunpack.c.l.b16 %v534
        %v2785 = vunpack.c.h.b16 %v534
        %v2786 = vunpack.c.l.b16 %v535
        %v2787 = vunpack.c.h.b16 %v535
        %v2788 = vunpack.c.l.b16 %v536
        %v2789 = vunpack.c.h.b16 %v536
        %v2790 = vunpack.c.l.b16 %v537
        %v2791 = vunpack.c.h.b16 %v537
        %v2792 = vunpack.c.l.b16 %v538
        %v2793 = vunpack.c.h.b16 %v538
        %v2794 = vunpack.c.l.b16 %v539
        %v2795 = vunpack.c.h.b16 %v539
        %v2796 = vunpack.c.l.b16 %v540
        %v2797 = vunpack.c.h.b16 %v540
        %v2798 = vunpack.c.l.b16 %v541
        %v2799 = vunpack.c.h.b16 %v541
        %v2800 = vunpack.c.l.b16 %v542
        %v2801 = vunpack.c.h.b16 %v542
        %v2802 = vunpack.c.l.b16 %v543
        %v2803 = vunpack.c.h.b16 %v543
        %v2804 = vunpack.c.l.b16 %v544
        %v2805 = vunpack.c.h.b16 %v544
        %v2806 = vunpack.c.l.b16 %v545
        %v2807 = vunpack.c.h.b16 %v545
        %v2808 = vunpack.c.l.b16 %v546
        %v2809 = vunpack.c.h.b16 %v546
        %v2810 = vunpack.c.l.b16 %v547
        %v2811 = vunpack.c.h.b16 %v547
        %v2812 = vunpack.c.l.b16 %v548
        %v2813 = vunpack.c.h.b16 %v548
        %v2814 = vunpack.c.l.b16 %v549
        %v2815 = vunpack.c.h.b16 %v549
        %v2816 = vunpack.c.l.b16 %v550
        %v2817 = vunpack.c.h.b16 %v550
        %v2818 = vunpack.c.l.b16 %v551
        %v2819 = vunpack.c.h.b16 %v551
        %v2820 = vunpack.c.l.b16 %v552
        %v2821 = vunpack.c.h.b16 %v552
        %v2822 = vunpack.c.l.b16 %v553
        %v2823 = vunpack.c.h.b16 %v553
        %v2824 = vunpack.c.l.b16 %v554
        %v2825 = vunpack.c.h.b16 %v554
        %v2826 = vunpack.c.l.b16 %v555
        %v2827 = vunpack.c.h.b16 %v555
        %v2828 = vunpack.c.l.b16 %v556
        %v2829 = vunpack.c.h.b16 %v556
        %v2830 = vunpack.c.l.b16 %v557
        %v2831 = vunpack.c.h.b16 %v557
        %v2832 = vunpack.c.l.b16 %v558
        %v2833 = vunpack.c.h.b16 %v558
        %v2834 = vunpack.c.l.b16 %v559
        %v2835 = vunpack.c.h.b16 %v559
        %v2836 = vunpack.c.l.b16 %v560
        %v2837 = vunpack.c.h.b16 %v560
        %v2838 = vunpack.c.l.b16 %v561
        %v2839 = vunpack.c.h.b16 %v561
        %v2840 = vunpack.c.l.b16 %v562
        %v2841 = vunpack.c.h.b16 %v562
        %v2842 = vunpack.c.l.b16 %v563
        %v2843 = vunpack.c.h.b16 %v563
        %v2844 = vunpack.c.l.b16 %v564
        %v2845 = vunpack.c.h.b16 %v564
        %v2846 = vunpack.c.l.b16 %v565
        %v2847 = vunpack.c.h.b16 %v565
        %v2848 = vunpack.c.l.b16 %v566
        %v2849 = vunpack.c.h.b16 %v566
        %v2850 = vunpack.c.l.b16 %v567
        %v2851 = vunpack.c.h.b16 %v567
        %v2852 = vunpack.c.l.b16 %v568
        %v2853 = vunpack.c.h.b16 %v568
        %v2854 = vunpack.c.l.b16 %v569
        %v2855 = vunpack.c.h.b16 %v569
        %v2856 = vunpack.c.l.b16 %v570
        %v2857 = vunpack.c.h.b16 %v570
        %v2858 = vunpack.c.l.b16 %v571
        %v2859 = vunpack.c.h.b16 %v571
        %v2860 = vunpack.c.l.b16 %v572
        %v2861 = vunpack.c.h.b16 %v572
        %v2862 = vunpack.c.l.b16 %v573
        %v2863 = vunpack.c.h.b16 %v573
        %v2864 = vunpack.c.l.b16 %v574
        %v2865 = vunpack.c.h.b16 %v574
        %v2866 = vunpack.c.l.b16 %v575
        %v2867 = vunpack.c.h.b16 %v575
        %v2868 = vunpack.c.l.b16 %v576
        %v2869 = vunpack.c.h.b16 %v576
        %v2870 = vunpack.c.l.b16 %v577
        %v2871 = vunpack.c.h.b16 %v577
        %v2872 = vunpack.c.l.b16 %v578
        %v2873 = vunpack.c.h.b16 %v578
        %v2874 = vunpack.c.l.b16 %v579
        %v2875 = vunpack.c.h.b16 %v579
        %v2876 = vunpack.c.l.b16 %v580
        %v2877 = vunpack.c.h.b16 %v580
        %v2878 = vunpack.c.l.b16 %v581
        %v2879 = vunpack.c.h.b16 %v581
        %v2880 = vunpack.c.l.b16 %v582
        %v2881 = vunpack.c.h.b16 %v582
        %v2882 = vunpack.c.l.b16 %v583
        %v2883 = vunpack.c.h.b16 %v583
        %v2884 = vunpack.c.l.b16 %v584
        %v2885 = vunpack.c.h.b16 %v584
        %v2886 = vunpack.c.l.b16 %v585
        %v2887 = vunpack.c.h.b16 %v585
        %v2888 = vunpack.c.l.b16 %v586
        %v2889 = vunpack.c.h.b16 %v586
        %v2890 = vunpack.c.l.b16 %v587
        %v2891 = vunpack.c.h.b16 %v587
        %v2892 = vunpack.c.l.b16 %v588
        %v2893 = vunpack.c.h.b16 %v588
        %v2894 = vunpack.c.l.b16 %v589
        %v2895 = vunpack.c.h.b16 %v589
        %v2896 = vunpack.c.l.b16 %v590
        %v2897 = vunpack.c.h.b16 %v590
        %v2898 = vunpack.c.l.b16 %v591
        %v2899 = vunpack.c.h.b16 %v591
        %v2900 = vunpack.c.l.b16 %v592
        %v2901 = vunpack.c.h.b16 %v592
        %v2902 = vunpack.c.l.b16 %v593
        %v2903 = vunpack.c.h.b16 %v593
        %v2904 = vunpack.c.l.b16 %v594
        %v2905 = vunpack.c.h.b16 %v594
        %v2906 = vunpack.c.l.b16 %v595
        %v2907 = vunpack.c.h.b16 %v595
        %v2908 = vunpack.c.l.b16 %v596
        %v2909 = vunpack.c.h.b16 %v596
        %v2910 = vunpack.c.l.b16 %v597
        %v2911 = vunpack.c.h.b16 %v597
        %v2912 = vunpack.c.l.b16 %v598
        %v2913 = vunpack.c.h.b16 %v598
        %v2914 = vunpack.c.l.b16 %v599
        %v2915 = vunpack.c.h.b16 %v599
        %v2916 = vunpack.c.l.b16 %v600
        %v2917 = vunpack.c.h.b16 %v600
        %v2918 = vunpack.c.l.b16 %v601
        %v2919 = vunpack.c.h.b16 %v601
        %v2920 = vunpack.c.l.b16 %v602
        %v2921 = vunpack.c.h.b16 %v602
        %v2922 = vunpack.c.l.b16 %v603
        %v2923 = vunpack.c.h.b16 %v603
        %v2924 = vunpack.c.l.b16 %v604
        %v2925 = vunpack.c.h.b16 %v604
        %v2926 = vunpack.c.l.b16 %v605
        %v2927 = vunpack.c.h.b16 %v605
        %v2928 = vunpack.c.l.b16 %v606
        %v2929 = vunpack.c.h.b16 %v606
        %v2930 = vunpack.c.l.b16 %v607
        %v2931 = vunpack.c.h.b16 %v607
        %v2932 = vunpack.c.l.b16 %v608
        %v2933 = vunpack.c.h.b16 %v608
        %v2934 = vunpack.c.l.b16 %v609
        %v2935 = vunpack.c.h.b16 %v609
        %v2936 = vunpack.c.l.b16 %v610
        %v2937 = vunpack.c.h.b16 %v610
        %v2938 = vunpack.c.l.b16 %v611
        %v2939 = vunpack.c.h.b16 %v611
        %v2940 = vunpack.c.l.b16 %v612
        %v2941 = vunpack.c.h.b16 %v612
        %v2942 = vunpack.c.l.b16 %v613
        %v2943 = vunpack.c.h.b16 %v613
        %v2944 = vunpack.c.l.b16 %v614
        %v2945 = vunpack.c.h.b16 %v614
        %v2946 = vunpack.c.l.b16 %v615
        %v2947 = vunpack.c.h.b16 %v615
        %v2948 = vunpack.c.l.b16 %v616
        %v2949 = vunpack.c.h.b16 %v616
        %v2950 = vunpack.c.l.b16 %v617
        %v2951 = vunpack.c.h.b16 %v617
        %v2952 = vunpack.c.l.b16 %v618
        %v2953 = vunpack.c.h.b16 %v618
        %v2954 = vunpack.c.l.b16 %v619
        %v2955 = vunpack.c.h.b16 %v619
        %v2956 = vunpack.c.l.b16 %v620
        %v2957 = vunpack.c.h.b16 %v620
        %v2958 = vunpack.c.l.b16 %v621
        %v2959 = vunpack.c.h.b16 %v621
        %v2960 = vunpack.c.l.b16 %v622
        %v2961 = vunpack.c.h.b16 %v622
        %v2962 = vunpack.c.l.b16 %v623
        %v2963 = vunpack.c.h.b16 %v623
        %v2964 = vunpack.c.l.b16 %v624
        %v2965 = vunpack.c.h.b16 %v624
        %v2966 = vunpack.c.l.b16 %v625
        %v2967 = vunpack.c.h.b16 %v625
        %v2968 = vunpack.c.l.b16 %v626
        %v2969 = vunpack.c.h.b16 %v626
        %v2970 = vunpack.c.l.b16 %v627
        %v2971 = vunpack.c.h.b16 %v627
        %v2972 = vunpack.c.l.b16 %v628
        %v2973 = vunpack.c.h.b16 %v628
        %v2974 = vunpack.c.l.b16 %v629
        %v2975 = vunpack.c.h.b16 %v629
        %v2976 = vunpack.c.l.b16 %v630
        %v2977 = vunpack.c.h.b16 %v630
        %v2978 = vunpack.c.l.b16 %v631
        %v2979 = vunpack.c.h.b16 %v631
        %v2980 = vunpack.c.l.b16 %v632
        %v2981 = vunpack.c.h.b16 %v632
        %v2982 = vunpack.c.l.b16 %v633
        %v2983 = vunpack.c.h.b16 %v633
        %v2984 = vunpack.c.l.b16 %v634
        %v2985 = vunpack.c.h.b16 %v634
        %v2986 = vunpack.c.l.b16 %v635
        %v2987 = vunpack.c.h.b16 %v635
        %v2988 = vunpack.c.l.b16 %v636
        %v2989 = vunpack.c.h.b16 %v636
        %v2990 = vunpack.c.l.b16 %v637
        %v2991 = vunpack.c.h.b16 %v637
        %v2992 = vunpack.c.l.b16 %v638
        %v2993 = vunpack.c.h.b16 %v638
        %v2994 = vunpack.c.l.b16 %v639
        %v2995 = vunpack.c.h.b16 %v639
        %v2996 = vunpack.c.l.b16 %v640
        %v2997 = vunpack.c.h.b16 %v640
        %v2998 = vunpack.c.l.b16 %v641
        %v2999 = vunpack.c.h.b16 %v641
        %v3000 = vunpack.c.l.b16 %v642
        %v3001 = vunpack.c.h.b16 %v642
        %v3002 = vunpack.c.l.b16 %v643
        %v3003 = vunpack.c.h.b16 %v643
        %v3004 = vunpack.c.l.b16 %v644
        %v3005 = vunpack.c.h.b16 %v644
        %v3006 = vunpack.c.l.b16 %v645
        %v3007 = vunpack.c.h.b16 %v645
        %v3008 = vunpack.c.l.b16 %v646
        %v3009 = vunpack.c.h.b16 %v646
        %v3010 = vunpack.c.l.b16 %v647
        %v3011 = vunpack.c.h.b16 %v647
        %v3012 = vunpack.c.l.b16 %v648
        %v3013 = vunpack.c.h.b16 %v648
        %v3014 = vunpack.c.l.b16 %v649
        %v3015 = vunpack.c.h.b16 %v649
        %v3016 = vunpack.c.l.b16 %v650
        %v3017 = vunpack.c.h.b16 %v650
        %v3018 = vunpack.c.l.b16 %v651
        %v3019 = vunpack.c.h.b16 %v651
        %v3020 = vunpack.c.l.b16 %v652
        %v3021 = vunpack.c.h.b16 %v652
        %v3022 = vunpack.c.l.b16 %v653
        %v3023 = vunpack.c.h.b16 %v653
        %v3024 = vunpack.c.l.b16 %v654
        %v3025 = vunpack.c.h.b16 %v654
        %v3026 = vunpack.c.l.b16 %v655
        %v3027 = vunpack.c.h.b16 %v655
        %v3028 = vunpack.c.l.b16 %v656
        %v3029 = vunpack.c.h.b16 %v656
        %v3030 = vunpack.c.l.b16 %v657
        %v3031 = vunpack.c.h.b16 %v657
        %v3032 = vunpack.c.l.b16 %v658
        %v3033 = vunpack.c.h.b16 %v658
        %v3034 = vunpack.c.l.b16 %v659
        %v3035 = vunpack.c.h.b16 %v659
        %v3036 = vunpack.c.l.b16 %v660
        %v3037 = vunpack.c.h.b16 %v660
        %v3038 = vunpack.c.l.b16 %v661
        %v3039 = vunpack.c.h.b16 %v661
        %v3040 = vunpack.c.l.b16 %v662
        %v3041 = vunpack.c.h.b16 %v662
        %v3042 = vunpack.c.l.b16 %v663
        %v3043 = vunpack.c.h.b16 %v663
        %v3044 = vunpack.c.l.b16 %v664
        %v3045 = vunpack.c.h.b16 %v664
        %v3046 = vunpack.c.l.b16 %v665
        %v3047 = vunpack.c.h.b16 %v665
        %v3048 = vunpack.c.l.b16 %v666
        %v3049 = vunpack.c.h.b16 %v666
        %v3050 = vunpack.c.l.b16 %v667
        %v3051 = vunpack.c.h.b16 %v667
        %v3052 = vunpack.c.l.b16 %v668
        %v3053 = vunpack.c.h.b16 %v668
        %v3054 = vunpack.c.l.b16 %v669
        %v3055 = vunpack.c.h.b16 %v669
        %v3056 = vunpack.c.l.b16 %v670
        %v3057 = vunpack.c.h.b16 %v670
        %v3058 = vunpack.c.l.b16 %v671
        %v3059 = vunpack.c.h.b16 %v671
        %v3060 = vunpack.c.l.b16 %v672
        %v3061 = vunpack.c.h.b16 %v672
        %v3062 = vunpack.c.l.b16 %v673
        %v3063 = vunpack.c.h.b16 %v673
        %v3064 = vunpack.c.l.b16 %v674
        %v3065 = vunpack.c.h.b16 %v674
        %v3066 = vunpack.c.l.b16 %v675
        %v3067 = vunpack.c.h.b16 %v675
        %v3068 = vunpack.c.l.b16 %v676
        %v3069 = vunpack.c.h.b16 %v676
        %v3070 = vunpack.c.l.b16 %v677
        %v3071 = vunpack.c.h.b16 %v677
        %v3072 = vunpack.c.l.b16 %v678
        %v3073 = vunpack.c.h.b16 %v678
        %v3074 = vunpack.c.l.b16 %v679
        %v3075 = vunpack.c.h.b16 %v679
        %v3076 = vunpack.c.l.b16 %v680
        %v3077 = vunpack.c.h.b16 %v680
        %v3078 = vunpack.c.l.b16 %v681
        %v3079 = vunpack.c.h.b16 %v681
        %v3080 = vunpack.c.l.b16 %v682
        %v3081 = vunpack.c.h.b16 %v682
        %v3082 = vunpack.c.l.b16 %v683
        %v3083 = vunpack.c.h.b16 %v683
        %v3084 = vunpack.c.l.b16 %v684
        %v3085 = vunpack.c.h.b16 %v684
        %v3086 = vunpack.c.l.b16 %v685
        %v3087 = vunpack.c.h.b16 %v685
        %v3088 = vunpack.c.l.b16 %v686
        %v3089 = vunpack.c.h.b16 %v686
        %v3090 = vunpack.c.l.b16 %v687
        %v3091 = vunpack.c.h.b16 %v687
        %v3092 = vunpack.c.l.b16 %v688
        %v3093 = vunpack.c.h.b16 %v688
        %v3094 = vunpack.c.l.b16 %v689
        %v3095 = vunpack.c.h.b16 %v689
        %v3096 = vunpack.c.l.b16 %v690
        %v3097 = vunpack.c.h.b16 %v690
        %v3098 = vunpack.c.l.b16 %v691
        %v3099 = vunpack.c.h.b16 %v691
        %v3100 = vunpack.c.l.b16 %v692
        %v3101 = vunpack.c.h.b16 %v692
        %v3102 = vunpack.c.l.b16 %v693
        %v3103 = vunpack.c.h.b16 %v693
        %v3104 = vunpack.c.l.b16 %v694
        %v3105 = vunpack.c.h.b16 %v694
        %v3106 = vunpack.c.l.b16 %v695
        %v3107 = vunpack.c.h.b16 %v695
        %v3108 = vunpack.c.l.b16 %v696
        %v3109 = vunpack.c.h.b16 %v696
        %v3110 = vunpack.c.l.b16 %v697
        %v3111 = vunpack.c.h.b16 %v697
        %v3112 = vunpack.c.l.b16 %v698
        %v3113 = vunpack.c.h.b16 %v698
        %v3114 = vunpack.c.l.b16 %v699
        %v3115 = vunpack.c.h.b16 %v699
        %v3116 = vunpack.c.l.b16 %v700
        %v3117 = vunpack.c.h.b16 %v700
        %v3118 = vunpack.c.l.b16 %v701
        %v3119 = vunpack.c.h.b16 %v701
        %v3120 = vunpack.c.l.b16 %v702
        %v3121 = vunpack.c.h.b16 %v702
        %v3122 = vunpack.c.l.b16 %v703
        %v3123 = vunpack.c.h.b16 %v703
        %v3124 = vunpack.c.l.b16 %v704
        %v3125 = vunpack.c.h.b16 %v704
        %v3126 = vunpack.c.l.b16 %v705
        %v3127 = vunpack.c.h.b16 %v705
        %v3128 = vunpack.c.l.b16 %v706
        %v3129 = vunpack.c.h.b16 %v706
        %v3130 = vunpack.c.l.b16 %v707
        %v3131 = vunpack.c.h.b16 %v707
        %v3132 = vunpack.c.l.b16 %v708
        %v3133 = vunpack.c.h.b16 %v708
        %v3134 = vunpack.c.l.b16 %v709
        %v3135 = vunpack.c.h.b16 %v709
        %v3136 = vunpack.c.l.b16 %v710
        %v3137 = vunpack.c.h.b16 %v710
        %v3138 = vunpack.c.l.b16 %v711
        %v3139 = vunpack.c.h.b16 %v711
        %v3140 = vunpack.c.l.b16 %v712
        %v3141 = vunpack.c.h.b16 %v712
        %v3142 = vunpack.c.l.b16 %v713
        %v3143 = vunpack.c.h.b16 %v713
        %v3144 = vunpack.c.l.b16 %v714
        %v3145 = vunpack.c.h.b16 %v714
        %v3146 = vunpack.c.l.b16 %v715
        %v3147 = vunpack.c.h.b16 %v715
        %v3148 = vunpack.c.l.b16 %v716
        %v3149 = vunpack.c.h.b16 %v716
        %v3150 = vunpack.c.l.b16 %v717
        %v3151 = vunpack.c.h.b16 %v717
        %v3152 = vunpack.c.l.b16 %v718
        %v3153 = vunpack.c.h.b16 %v718
        %v3154 = vunpack.c.l.b16 %v719
        %v3155 = vunpack.c.h.b16 %v719
        %v3156 = vunpack.c.l.b16 %v720
        %v3157 = vunpack.c.h.b16 %v720
        %v3158 = vunpack.c.l.b16 %v721
        %v3159 = vunpack.c.h.b16 %v721
        %v3160 = vunpack.c.l.b16 %v722
        %v3161 = vunpack.c.h.b16 %v722
        %v3162 = vunpack.c.l.b16 %v723
        %v3163 = vunpack.c.h.b16 %v723
        %v3164 = vunpack.c.l.b16 %v724
        %v3165 = vunpack.c.h.b16 %v724
        %v3166 = vunpack.c.l.b16 %v725
        %v3167 = vunpack.c.h.b16 %v725
        %v3168 = vunpack.c.l.b16 %v726
        %v3169 = vunpack.c.h.b16 %v726
        %v3170 = vunpack.c.l.b16 %v727
        %v3171 = vunpack.c.h.b16 %v727
        %v3172 = vunpack.c.l.b16 %v728
        %v3173 = vunpack.c.h.b16 %v728
        %v3174 = vunpack.c.l.b16 %v729
        %v3175 = vunpack.c.h.b16 %v729
        %v3176 = vunpack.c.l.b16 %v730
        %v3177 = vunpack.c.h.b16 %v730
        %v3178 = vunpack.c.l.b16 %v731
        %v3179 = vunpack.c.h.b16 %v731
        %v3180 = vunpack.c.l.b16 %v732
        %v3181 = vunpack.c.h.b16 %v732
        %v3182 = vunpack.c.l.b16 %v733
        %v3183 = vunpack.c.h.b16 %v733
        %v3184 = vunpack.c.l.b16 %v734
        %v3185 = vunpack.c.h.b16 %v734
        %v3186 = vunpack.c.l.b16 %v735
        %v3187 = vunpack.c.h.b16 %v735
        %v3188 = vunpack.c.l.b16 %v736
        %v3189 = vunpack.c.h.b16 %v736
        %v3190 = vunpack.c.l.b16 %v737
        %v3191 = vunpack.c.h.b16 %v737
        %v3192 = vunpack.c.l.b16 %v738
        %v3193 = vunpack.c.h.b16 %v738
        %v3194 = vunpack.c.l.b16 %v739
        %v3195 = vunpack.c.h.b16 %v739
        %v3196 = vunpack.c.l.b16 %v740
        %v3197 = vunpack.c.h.b16 %v740
        %v3198 = vunpack.c.l.b16 %v741
        %v3199 = vunpack.c.h.b16 %v741
        %v3200 = vunpack.c.l.b16 %v742
        %v3201 = vunpack.c.h.b16 %v742
        %v3202 = vunpack.c.l.b16 %v743
        %v3203 = vunpack.c.h.b16 %v743
        %v3204 = vunpack.c.l.b16 %v744
        %v3205 = vunpack.c.h.b16 %v744
        %v3206 = vunpack.c.l.b16 %v745
        %v3207 = vunpack.c.h.b16 %v745
        %v3208 = vunpack.c.l.b16 %v746
        %v3209 = vunpack.c.h.b16 %v746
        %v3210 = vunpack.c.l.b16 %v747
        %v3211 = vunpack.c.h.b16 %v747
        %v3212 = vunpack.c.l.b16 %v748
        %v3213 = vunpack.c.h.b16 %v748
        %v3214 = vunpack.c.l.b16 %v749
        %v3215 = vunpack.c.h.b16 %v749
        %v3216 = vunpack.c.l.b16 %v750
        %v3217 = vunpack.c.h.b16 %v750
        %v3218 = vunpack.c.l.b16 %v751
        %v3219 = vunpack.c.h.b16 %v751
        %v3220 = vunpack.c.l.b16 %v752
        %v3221 = vunpack.c.h.b16 %v752
        %v3222 = vunpack.c.l.b16 %v753
        %v3223 = vunpack.c.h.b16 %v753
        %v3224 = vunpack.c.l.b16 %v754
        %v3225 = vunpack.c.h.b16 %v754
        %v3226 = vunpack.c.l.b16 %v755
        %v3227 = vunpack.c.h.b16 %v755
        %v3228 = vunpack.c.l.b16 %v756
        %v3229 = vunpack.c.h.b16 %v756
        %v3230 = vunpack.c.l.b16 %v757
        %v3231 = vunpack.c.h.b16 %v757
        %v3232 = vunpack.c.l.b16 %v758
        %v3233 = vunpack.c.h.b16 %v758
        %v3234 = vunpack.c.l.b16 %v759
        %v3235 = vunpack.c.h.b16 %v759
        %v3236 = vunpack.c.l.b16 %v760
        %v3237 = vunpack.c.h.b16 %v760
        %v3238 = vunpack.c.l.b16 %v761
        %v3239 = vunpack.c.h.b16 %v761
        %v3240 = vunpack.c.l.b16 %v762
        %v3241 = vunpack.c.h.b16 %v762
        %v3242 = vunpack.c.l.b16 %v763
        %v3243 = vunpack.c.h.b16 %v763
        %v3244 = vunpack.c.l.b16 %v764
        %v3245 = vunpack.c.h.b16 %v764
        %v3246 = vunpack.c.l.b16 %v765
        %v3247 = vunpack.c.h.b16 %v765
        %v3248 = vunpack.c.l.b16 %v766
        %v3249 = vunpack.c.h.b16 %v766
        %v3250 = vunpack.c.l.b16 %v767
        %v3251 = vunpack.c.h.b16 %v767
        %v3252 = vunpack.c.l.b16 %v768
        %v3253 = vunpack.c.h.b16 %v768
        %v3254 = vunpack.c.l.b16 %v769
        %v3255 = vunpack.c.h.b16 %v769
        %v3256 = vunpack.c.l.b16 %v770
        %v3257 = vunpack.c.h.b16 %v770
        %v3258 = vunpack.c.l.b16 %v771
        %v3259 = vunpack.c.h.b16 %v771
        %v3260 = vunpack.c.l.b16 %v772
        %v3261 = vunpack.c.h.b16 %v772
        %v3262 = vunpack.c.l.b16 %v773
        %v3263 = vunpack.c.h.b16 %v773
        %v3264 = vunpack.c.l.b16 %v774
        %v3265 = vunpack.c.h.b16 %v774
        %v3266 = vunpack.c.l.b16 %v775
        %v3267 = vunpack.c.h.b16 %v775
        %v3268 = vunpack.c.l.b16 %v776
        %v3269 = vunpack.c.h.b16 %v776
        %v3270 = vunpack.c.l.b16 %v777
        %v3271 = vunpack.c.h.b16 %v777
        %v3272 = vunpack.c.l.b16 %v778
        %v3273 = vunpack.c.h.b16 %v778
        %v3274 = vunpack.c.l.b16 %v779
        %v3275 = vunpack.c.h.b16 %v779
        %v3276 = vunpack.c.l.b16 %v780
        %v3277 = vunpack.c.h.b16 %v780
        %v3278 = vunpack.c.l.b16 %v781
        %v3279 = vunpack.c.h.b16 %v781
        %v3280 = vunpack.c.l.b16 %v782
        %v3281 = vunpack.c.h.b16 %v782
        %v3282 = vunpack.c.l.b16 %v783
        %v3283 = vunpack.c.h.b16 %v783
        %v3284 = vunpack.c.l.b16 %v784
        %v3285 = vunpack.c.h.b16 %v784
        %v3286 = vunpack.c.l.b16 %v785
        %v3287 = vunpack.c.h.b16 %v785
        %v3288 = vunpack.c.l.b16 %v786
        %v3289 = vunpack.c.h.b16 %v786
        %v3290 = vunpack.c.l.b16 %v787
        %v3291 = vunpack.c.h.b16 %v787
        %v3292 = vunpack.c.l.b16 %v788
        %v3293 = vunpack.c.h.b16 %v788
        %v3294 = vunpack.c.l.b16 %v789
        %v3295 = vunpack.c.h.b16 %v789
        %v3296 = vunpack.c.l.b16 %v790
        %v3297 = vunpack.c.h.b16 %v790
        %v3298 = vunpack.c.l.b16 %v791
        %v3299 = vunpack.c.h.b16 %v791
        %v3300 = vunpack.c.l.b16 %v792
        %v3301 = vunpack.c.h.b16 %v792
        %v3302 = vunpack.c.l.b16 %v793
        %v3303 = vunpack.c.h.b16 %v793
        %v3304 = vunpack.c.l.b16 %v794
        %v3305 = vunpack.c.h.b16 %v794
        %v3306 = vunpack.c.l.b16 %v795
        %v3307 = vunpack.c.h.b16 %v795
        %v3308 = vunpack.c.l.b16 %v796
        %v3309 = vunpack.c.h.b16 %v796
        %v3310 = vunpack.c.l.b16 %v797
        %v3311 = vunpack.c.h.b16 %v797
        %v3312 = vunpack.c.l.b16 %v798
        %v3313 = vunpack.c.h.b16 %v798
        %v3314 = vunpack.c.l.b16 %v799
        %v3315 = vunpack.c.h.b16 %v799
        %v3316 = vunpack.c.l.b16 %v800
        %v3317 = vunpack.c.h.b16 %v800
        %v3318 = vunpack.c.l.b16 %v801
        %v3319 = vunpack.c.h.b16 %v801
        %v3320 = vunpack.c.l.b16 %v802
        %v3321 = vunpack.c.h.b16 %v802
        %v3322 = vunpack.c.l.b16 %v803
        %v3323 = vunpack.c.h.b16 %v803
        %v3324 = vunpack.c.l.b16 %v804
        %v3325 = vunpack.c.h.b16 %v804
        %v3326 = vunpack.c.l.b16 %v805
        %v3327 = vunpack.c.h.b16 %v805
        %v3328 = vunpack.c.l.b16 %v806
        %v3329 = vunpack.c.h.b16 %v806
        %v3330 = vunpack.c.l.b16 %v807
        %v3331 = vunpack.c.h.b16 %v807
        %v3332 = vunpack.c.l.b16 %v808
        %v3333 = vunpack.c.h.b16 %v808
        %v3334 = vunpack.c.l.b16 %v809
        %v3335 = vunpack.c.h.b16 %v809
        %v3336 = vunpack.c.l.b16 %v810
        %v3337 = vunpack.c.h.b16 %v810
        %v3338 = vunpack.c.l.b16 %v811
        %v3339 = vunpack.c.h.b16 %v811
        %v3340 = vunpack.c.l.b16 %v812
        %v3341 = vunpack.c.h.b16 %v812
        %v3342 = vunpack.c.l.b16 %v813
        %v3343 = vunpack.c.h.b16 %v813
        %v3344 = vunpack.c.l.b16 %v814
        %v3345 = vunpack.c.h.b16 %v814
        %v3346 = vunpack.c.l.b16 %v815
        %v3347 = vunpack.c.h.b16 %v815
        %v3348 = vunpack.c.l.b16 %v816
        %v3349 = vunpack.c.h.b16 %v816
        %v3350 = vunpack.c.l.b16 %v817
        %v3351 = vunpack.c.h.b16 %v817
        %v3352 = vunpack.c.l.b16 %v818
        %v3353 = vunpack.c.h.b16 %v818
        %v3354 = vunpack.c.l.b16 %v819
        %v3355 = vunpack.c.h.b16 %v819
        %v3356 = vunpack.c.l.b16 %v820
        %v3357 = vunpack.c.h.b16 %v820
        %v3358 = vunpack.c.l.b16 %v821
        %v3359 = vunpack.c.h.b16 %v821
        %v3360 = vunpack.c.l.b16 %v822
        %v3361 = vunpack.c.h.b16 %v822
        %v3362 = vunpack.c.l.b16 %v823
        %v3363 = vunpack.c.h.b16 %v823
        %v3364 = vunpack.c.l.b16 %v824
        %v3365 = vunpack.c.h.b16 %v824
        %v3366 = vunpack.c.l.b16 %v825
        %v3367 = vunpack.c.h.b16 %v825
        %v3368 = vunpack.c.l.b16 %v826
        %v3369 = vunpack.c.h.b16 %v826
        %v3370 = vunpack.c.l.b16 %v827
        %v3371 = vunpack.c.h.b16 %v827
        %v3372 = vunpack.c.l.b16 %v828
        %v3373 = vunpack.c.h.b16 %v828
        %v3374 = vunpack.c.l.b16 %v829
        %v3375 = vunpack.c.h.b16 %v829
        %v3376 = vunpack.c.l.b16 %v830
        %v3377 = vunpack.c.h.b16 %v830
        %v3378 = vunpack.c.l.b16 %v831
        %v3379 = vunpack.c.h.b16 %v831
        %v3380 = vpack.c.b16 %v2988, %v2596
        %v3381 = vpack.c.b16 %v2989, %v2597
        %v3382 = vpack.c.b16 %v2990, %v2598
        %v3383 = vpack.c.b16 %v2991, %v2599
        %v3384 = vpack.c.b16 %v2992, %v2600
        %v3385 = vpack.c.b16 %v2993, %v2601
        %v3386 = vpack.c.b16 %v2994, %v2602
        %v3387 = vpack.c.b16 %v2995, %v2603
        %v3388 = vpack.c.b16 %v2996, %v2604
        %v3389 = vpack.c.b16 %v2997, %v2605
        %v3390 = vpack.c.b16 %v2998, %v2606
        %v3391 = vpack.c.b16 %v2999, %v2607
        %v3392 = vpack.c.b16 %v3000, %v2608
        %v3393 = vpack.c.b16 %v3001, %v2609
        %v3394 = vpack.c.b16 %v3002, %v2610
        %v3395 = vpack.c.b16 %v3003, %v2611
        %v3396 = vpack.c.b16 %v3004, %v2612
        %v3397 = vpack.c.b16 %v3005, %v2613
        %v3398 = vpack.c.b16 %v3006, %v2614
        %v3399 = vpack.c.b16 %v3007, %v2615
        %v3400 = vpack.c.b16 %v3008, %v2616
        %v3401 = vpack.c.b16 %v3009, %v2617
        %v3402 = vpack.c.b16 %v3010, %v2618
        %v3403 = vpack.c.b16 %v3011, %v2619
        %v3404 = vpack.c.b16 %v3012, %v2620
        %v3405 = vpack.c.b16 %v3013, %v2621
        %v3406 = vpack.c.b16 %v3014, %v2622
        %v3407 = vpack.c.b16 %v3015, %v2623
        %v3408 = vpack.c.b16 %v3016, %v2624
        %v3409 = vpack.c.b16 %v3017, %v2625
        %v3410 = vpack.c.b16 %v3018, %v2626
        %v3411 = vpack.c.b16 %v3019, %v2627
        %v3412 = vpack.c.b16 %v3020, %v2628
        %v3413 = vpack.c.b16 %v3021, %v2629
        %v3414 = vpack.c.b16 %v3022, %v2630
        %v3415 = vpack.c.b16 %v3023, %v2631
        %v3416 = vpack.c.b16 %v3024, %v2632
        %v3417 = vpack.c.b16 %v3025, %v2633
        %v3418 = vpack.c.b16 %v3026, %v2634
        %v3419 = vpack.c.b16 %v3027, %v2635
        %v3420 = vpack.c.b16 %v3028, %v2636
        %v3421 = vpack.c.b16 %v3029, %v2637
        %v3422 = vpack.c.b16 %v3030, %v2638
        %v3423 = vpack.c.b16 %v3031, %v2639
        %v3424 = vpack.c.b16 %v3032, %v2640
        %v3425 = vpack.c.b16 %v3033, %v2641
        %v3426 = vpack.c.b16 %v3034, %v2642
        %v3427 = vpack.c.b16 %v3035, %v2643
        %v3428 = vpack.c.b16 %v3036, %v2644
        %v3429 = vpack.c.b16 %v3037, %v2645
        %v3430 = vpack.c.b16 %v3038, %v2646
        %v3431 = vpack.c.b16 %v3039, %v2647
        %v3432 = vpack.c.b16 %v3040, %v2648
        %v3433 = vpack.c.b16 %v3041, %v2649
        %v3434 = vpack.c.b16 %v3042, %v2650
        %v3435 = vpack.c.b16 %v3043, %v2651
        %v3436 = vpack.c.b16 %v3044, %v2652
        %v3437 = vpack.c.b16 %v3045, %v2653
        %v3438 = vpack.c.b16 %v3046, %v2654
        %v3439 = vpack.c.b16 %v3047, %v2655
        %v3440 = vpack.c.b16 %v3048, %v2656
        %v3441 = vpack.c.b16 %v3049, %v2657
        %v3442 = vpack.c.b16 %v3050, %v2658
        %v3443 = vpack.c.b16 %v3051, %v2659
        %v3444 = vpack.c.b16 %v3052, %v2660
        %v3445 = vpack.c.b16 %v3053, %v2661
        %v3446 = vpack.c.b16 %v3054, %v2662
        %v3447 = vpack.c.b16 %v3055, %v2663
        %v3448 = vpack.c.b16 %v3056, %v2664
        %v3449 = vpack.c.b16 %v3057, %v2665
        %v3450 = vpack.c.b16 %v3058, %v2666
        %v3451 = vpack.c.b16 %v3059, %v2667
        %v3452 = vpack.c.b16 %v3060, %v2668
        %v3453 = vpack.c.b16 %v3061, %v2669
        %v3454 = vpack.c.b16 %v3062, %v2670
        %v3455 = vpack.c.b16 %v3063, %v2671
        %v3456 = vpack.c.b16 %v3064, %v2672
        %v3457 = vpack.c.b16 %v3065, %v2673
        %v3458 = vpack.c.b16 %v3066, %v2674
        %v3459 = vpack.c.b16 %v3067, %v2675
        %v3460 = vpack.c.b16 %v3068, %v2676
        %v3461 = vpack.c.b16 %v3069, %v2677
        %v3462 = vpack.c.b16 %v3070, %v2678
        %v3463 = vpack.c.b16 %v3071, %v2679
        %v3464 = vpack.c.b16 %v3072, %v2680
        %v3465 = vpack.c.b16 %v3073, %v2681
        %v3466 = vpack.c.b16 %v3074, %v2682
        %v3467 = vpack.c.b16 %v3075, %v2683
        %v3468 = vpack.c.b16 %v3076, %v2684
        %v3469 = vpack.c.b16 %v3077, %v2685
        %v3470 = vpack.c.b16 %v3078, %v2686
        %v3471 = vpack.c.b16 %v3079, %v2687
        %v3472 = vpack.c.b16 %v3080, %v2688
        %v3473 = vpack.c.b16 %v3081, %v2689
        %v3474 = vpack.c.b16 %v3082, %v2690
        %v3475 = vpack.c.b16 %v3083, %v2691
        %v3476 = vpack.c.b16 %v3084, %v2692
        %v3477 = vpack.c.b16 %v3085, %v2693
        %v3478 = vpack.c.b16 %v3086, %v2694
        %v3479 = vpack.c.b16 %v3087, %v2695
        %v3480 = vpack.c.b16 %v3088, %v2696
        %v3481 = vpack.c.b16 %v3089, %v2697
        %v3482 = vpack.c.b16 %v3090, %v2698
        %v3483 = vpack.c.b16 %v3091, %v2699
        %v3484 = vpack.c.b16 %v3092, %v2700
        %v3485 = vpack.c.b16 %v3093, %v2701
        %v3486 = vpack.c.b16 %v3094, %v2702
        %v3487 = vpack.c.b16 %v3095, %v2703
        %v3488 = vpack.c.b16 %v3096, %v2704
        %v3489 = vpack.c.b16 %v3097, %v2705
        %v3490 = vpack.c.b16 %v3098, %v2706
        %v3491 = vpack.c.b16 %v3099, %v2707
        %v3492 = vpack.c.b16 %v3100, %v2708
        %v3493 = vpack.c.b16 %v3101, %v2709
        %v3494 = vpack.c.b16 %v3102, %v2710
        %v3495 = vpack.c.b16 %v3103, %v2711
        %v3496 = vpack.c.b16 %v3104, %v2712
        %v3497 = vpack.c.b16 %v3105, %v2713
        %v3498 = vpack.c.b16 %v3106, %v2714
        %v3499 = vpack.c.b16 %v3107, %v2715
        %v3500 = vpack.c.b16 %v3108, %v2716
        %v3501 = vpack.c.b16 %v3109, %v2717
        %v3502 = vpack.c.b16 %v3110, %v2718
        %v3503 = vpack.c.b16 %v3111, %v2719
        %v3504 = vpack.c.b16 %v3112, %v2720
        %v3505 = vpack.c.b16 %v3113, %v2721
        %v3506 = vpack.c.b16 %v3114, %v2722
        %v3507 = vpack.c.b16 %v3115, %v2723
        %v3508 = vpack.c.b16 %v3116, %v2724
        %v3509 = vpack.c.b16 %v3117, %v2725
        %v3510 = vpack.c.b16 %v3118, %v2726
        %v3511 = vpack.c.b16 %v3119, %v2727
        %v3512 = vpack.c.b16 %v3120, %v2728
        %v3513 = vpack.c.b16 %v3121, %v2729
        %v3514 = vpack.c.b16 %v3122, %v2730
        %v3515 = vpack.c.b16 %v3123, %v2731
        %v3516 = vpack.c.b16 %v3124, %v2732
        %v3517 = vpack.c.b16 %v3125, %v2733
        %v3518 = vpack.c.b16 %v3126, %v2734
        %v3519 = vpack.c.b16 %v3127, %v2735
        %v3520 = vpack.c.b16 %v3128, %v2736
        %v3521 = vpack.c.b16 %v3129, %v2737
        %v3522 = vpack.c.b16 %v3130, %v2738
        %v3523 = vpack.c.b16 %v3131, %v2739
        %v3524 = vpack.c.b16 %v3132, %v2740
        %v3525 = vpack.c.b16 %v3133, %v2741
        %v3526 = vpack.c.b16 %v3134, %v2742
        %v3527 = vpack.c.b16 %v3135, %v2743
        %v3528 = vpack.c.b16 %v3136, %v2744
        %v3529 = vpack.c.b16 %v3137, %v2745
        %v3530 = vpack.c.b16 %v3138, %v2746
        %v3531 = vpack.c.b16 %v3139, %v2747
        %v3532 = vpack.c.b16 %v3140, %v2748
        %v3533 = vpack.c.b16 %v3141, %v2749
        %v3534 = vpack.c.b16 %v3142, %v2750
        %v3535 = vpack.c.b16 %v3143, %v2751
        %v3536 = vpack.c.b16 %v3144, %v2752
        %v3537 = vpack.c.b16 %v3145, %v2753
        %v3538 = vpack.c.b16 %v3146, %v2754
        %v3539 = vpack.c.b16 %v3147, %v2755
        %v3540 = vpack.c.b16 %v3148, %v2756
        %v3541 = vpack.c.b16 %v3149, %v2757
        %v3542 = vpack.c.b16 %v3150, %v2758
        %v3543 = vpack.c.b16 %v3151, %v2759
        %v3544 = vpack.c.b16 %v3152, %v2760
        %v3545 = vpack.c.b16 %v3153, %v2761
        %v3546 = vpack.c.b16 %v3154, %v2762
        %v3547 = vpack.c.b16 %v3155, %v2763
        %v3548 = vpack.c.b16 %v3156, %v2764
        %v3549 = vpack.c.b16 %v3157, %v2765
        %v3550 = vpack.c.b16 %v3158, %v2766
        %v3551 = vpack.c.b16 %v3159, %v2767
        %v3552 = vpack.c.b16 %v3160, %v2768
        %v3553 = vpack.c.b16 %v3161, %v2769
        %v3554 = vpack.c.b16 %v3162, %v2770
        %v3555 = vpack.c.b16 %v3163, %v2771
        %v3556 = vpack.c.b16 %v3164, %v2772
        %v3557 = vpack.c.b16 %v3165, %v2773
        %v3558 = vpack.c.b16 %v3166, %v2774
        %v3559 = vpack.c.b16 %v3167, %v2775
        %v3560 = vpack.c.b16 %v3168, %v2776
        %v3561 = vpack.c.b16 %v3169, %v2777
        %v3562 = vpack.c.b16 %v3170, %v2778
        %v3563 = vpack.c.b16 %v3171, %v2779
        %v3564 = vpack.c.b16 %v3172, %v2780
        %v3565 = vpack.c.b16 %v3173, %v2781
        %v3566 = vpack.c.b16 %v3174, %v2782
        %v3567 = vpack.c.b16 %v3175, %v2783
        %v3568 = vpack.c.b16 %v3176, %v2784
        %v3569 = vpack.c.b16 %v3177, %v2785
        %v3570 = vpack.c.b16 %v3178, %v2786
        %v3571 = vpack.c.b16 %v3179, %v2787
        %v3572 = vpack.c.b16 %v3180, %v2788
        %v3573 = vpack.c.b16 %v3181, %v2789
        %v3574 = vpack.c.b16 %v3182, %v2790
        %v3575 = vpack.c.b16 %v3183, %v2791
        %v3576 = vpack.c.b16 %v3184, %v2792
        %v3577 = vpack.c.b16 %v3185, %v2793
        %v3578 = vpack.c.b16 %v3186, %v2794
        %v3579 = vpack.c.b16 %v3187, %v2795
        %v3580 = vpack.c.b16 %v3188, %v2796
        %v3581 = vpack.c.b16 %v3189, %v2797
        %v3582 = vpack.c.b16 %v3190, %v2798
        %v3583 = vpack.c.b16 %v3191, %v2799
        %v3584 = vpack.c.b16 %v3192, %v2800
        %v3585 = vpack.c.b16 %v3193, %v2801
        %v3586 = vpack.c.b16 %v3194, %v2802
        %v3587 = vpack.c.b16 %v3195, %v2803
        %v3588 = vpack.c.b16 %v3196, %v2804
        %v3589 = vpack.c.b16 %v3197, %v2805
        %v3590 = vpack.c.b16 %v3198, %v2806
        %v3591 = vpack.c.b16 %v3199, %v2807
        %v3592 = vpack.c.b16 %v3200, %v2808
        %v3593 = vpack.c.b16 %v3201, %v2809
        %v3594 = vpack.c.b16 %v3202, %v2810
        %v3595 = vpack.c.b16 %v3203, %v2811
        %v3596 = vpack.c.b16 %v3204, %v2812
        %v3597 = vpack.c.b16 %v3205, %v2813
        %v3598 = vpack.c.b16 %v3206, %v2814
        %v3599 = vpack.c.b16 %v3207, %v2815
        %v3600 = vpack.c.b16 %v3208, %v2816
        %v3601 = vpack.c.b16 %v3209, %v2817
        %v3602 = vpack.c.b16 %v3210, %v2818
        %v3603 = vpack.c.b16 %v3211, %v2819
        %v3604 = vpack.c.b16 %v3212, %v2820
        %v3605 = vpack.c.b16 %v3213, %v2821
        %v3606 = vpack.c.b16 %v3214, %v2822
        %v3607 = vpack.c.b16 %v3215, %v2823
        %v3608 = vpack.c.b16 %v3216, %v2824
        %v3609 = vpack.c.b16 %v3217, %v2825
        %v3610 = vpack.c.b16 %v3218, %v2826
        %v3611 = vpack.c.b16 %v3219, %v2827
        %v3612 = vpack.c.b16 %v3220, %v2828
        %v3613 = vpack.c.b16 %v3221, %v2829
        %v3614 = vpack.c.b16 %v3222, %v2830
        %v3615 = vpack.c.b16 %v3223, %v2831
        %v3616 = vpack.c.b16 %v3224, %v2832
        %v3617 = vpack.c.b16 %v3225, %v2833
        %v3618 = vpack.c.b16 %v3226, %v2834
        %v3619 = vpack.c.b16 %v3227, %v2835
        %v3620 = vpack.c.b16 %v3228, %v2836
        %v3621 = vpack.c.b16 %v3229, %v2837
        %v3622 = vpack.c.b16 %v3230, %v2838
        %v3623 = vpack.c.b16 %v3231, %v2839
        %v3624 = vpack.c.b16 %v3232, %v2840
        %v3625 = vpack.c.b16 %v3233, %v2841
        %v3626 = vpack.c.b16 %v3234, %v2842
        %v3627 = vpack.c.b16 %v3235, %v2843
        %v3628 = vpack.c.b16 %v3236, %v2844
        %v3629 = vpack.c.b16 %v3237, %v2845
        %v3630 = vpack.c.b16 %v3238, %v2846
        %v3631 = vpack.c.b16 %v3239, %v2847
        %v3632 = vpack.c.b16 %v3240, %v2848
        %v3633 = vpack.c.b16 %v3241, %v2849
        %v3634 = vpack.c.b16 %v3242, %v2850
        %v3635 = vpack.c.b16 %v3243, %v2851
        %v3636 = vpack.c.b16 %v3244, %v2852
        %v3637 = vpack.c.b16 %v3245, %v2853
        %v3638 = vpack.c.b16 %v3246, %v2854
        %v3639 = vpack.c.b16 %v3247, %v2855
        %v3640 = vpack.c.b16 %v3248, %v2856
        %v3641 = vpack.c.b16 %v3249, %v2857
        %v3642 = vpack.c.b16 %v3250, %v2858
        %v3643 = vpack.c.b16 %v3251, %v2859
        %v3644 = vpack.c.b16 %v3252, %v2860
        %v3645 = vpack.c.b16 %v3253, %v2861
        %v3646 = vpack.c.b16 %v3254, %v2862
        %v3647 = vpack.c.b16 %v3255, %v2863
        %v3648 = vpack.c.b16 %v3256, %v2864
        %v3649 = vpack.c.b16 %v3257, %v2865
        %v3650 = vpack.c.b16 %v3258, %v2866
        %v3651 = vpack.c.b16 %v3259, %v2867
        %v3652 = vpack.c.b16 %v3260, %v2868
        %v3653 = vpack.c.b16 %v3261, %v2869
        %v3654 = vpack.c.b16 %v3262, %v2870
        %v3655 = vpack.c.b16 %v3263, %v2871
        %v3656 = vpack.c.b16 %v3264, %v2872
        %v3657 = vpack.c.b16 %v3265, %v2873
        %v3658 = vpack.c.b16 %v3266, %v2874
        %v3659 = vpack.c.b16 %v3267, %v2875
        %v3660 = vpack.c.b16 %v3268, %v2876
        %v3661 = vpack.c.b16 %v3269, %v2877
        %v3662 = vpack.c.b16 %v3270, %v2878
        %v3663 = vpack.c.b16 %v3271, %v2879
        %v3664 = vpack.c.b16 %v3272, %v2880
        %v3665 = vpack.c.b16 %v3273, %v2881
        %v3666 = vpack.c.b16 %v3274, %v2882
        %v3667 = vpack.c.b16 %v3275, %v2883
        %v3668 = vpack.c.b16 %v3276, %v2884
        %v3669 = vpack.c.b16 %v3277, %v2885
        %v3670 = vpack.c.b16 %v3278, %v2886
        %v3671 = vpack.c.b16 %v3279, %v2887
        %v3672 = vpack.c.b16 %v3280, %v2888
        %v3673 = vpack.c.b16 %v3281, %v2889
        %v3674 = vpack.c.b16 %v3282, %v2890
        %v3675 = vpack.c.b16 %v3283, %v2891
        %v3676 = vpack.c.b16 %v3284, %v2892
        %v3677 = vpack.c.b16 %v3285, %v2893
        %v3678 = vpack.c.b16 %v3286, %v2894
        %v3679 = vpack.c.b16 %v3287, %v2895
        %v3680 = vpack.c.b16 %v3288, %v2896
        %v3681 = vpack.c.b16 %v3289, %v2897
        %v3682 = vpack.c.b16 %v3290, %v2898
        %v3683 = vpack.c.b16 %v3291, %v2899
        %v3684 = vpack.c.b16 %v3292, %v2900
        %v3685 = vpack.c.b16 %v3293, %v2901
        %v3686 = vpack.c.b16 %v3294, %v2902
        %v3687 = vpack.c.b16 %v3295, %v2903
        %v3688 = vpack.c.b16 %v3296, %v2904
        %v3689 = vpack.c.b16 %v3297, %v2905
        %v3690 = vpack.c.b16 %v3298, %v2906
        %v3691 = vpack.c.b16 %v3299, %v2907
        %v3692 = vpack.c.b16 %v3300, %v2908
        %v3693 = vpack.c.b16 %v3301, %v2909
        %v3694 = vpack.c.b16 %v3302, %v2910
        %v3695 = vpack.c.b16 %v3303, %v2911
        %v3696 = vpack.c.b16 %v3304, %v2912
        %v3697 = vpack.c.b16 %v3305, %v2913
        %v3698 = vpack.c.b16 %v3306, %v2914
        %v3699 = vpack.c.b16 %v3307, %v2915
        %v3700 = vpack.c.b16 %v3308, %v2916
        %v3701 = vpack.c.b16 %v3309, %v2917
        %v3702 = vpack.c.b16 %v3310, %v2918
        %v3703 = vpack.c.b16 %v3311, %v2919
        %v3704 = vpack.c.b16 %v3312, %v2920
        %v3705 = vpack.c.b16 %v3313, %v2921
        %v3706 = vpack.c.b16 %v3314, %v2922
        %v3707 = vpack.c.b16 %v3315, %v2923
        %v3708 = vpack.c.b16 %v3316, %v2924
        %v3709 = vpack.c.b16 %v3317, %v2925
        %v3710 = vpack.c.b16 %v3318, %v2926
        %v3711 = vpack.c.b16 %v3319, %v2927
        %v3712 = vpack.c.b16 %v3320, %v2928
        %v3713 = vpack.c.b16 %v3321, %v2929
        %v3714 = vpack.c.b16 %v3322, %v2930
        %v3715 = vpack.c.b16 %v3323, %v2931
        %v3716 = vpack.c.b16 %v3324, %v2932
        %v3717 = vpack.c.b16 %v3325, %v2933
        %v3718 = vpack.c.b16 %v3326, %v2934
        %v3719 = vpack.c.b16 %v3327, %v2935
        %v3720 = vpack.c.b16 %v3328, %v2936
        %v3721 = vpack.c.b16 %v3329, %v2937
        %v3722 = vpack.c.b16 %v3330, %v2938
        %v3723 = vpack.c.b16 %v3331, %v2939
        %v3724 = vpack.c.b16 %v3332, %v2940
        %v3725 = vpack.c.b16 %v3333, %v2941
        %v3726 = vpack.c.b16 %v3334, %v2942
        %v3727 = vpack.c.b16 %v3335, %v2943
        %v3728 = vpack.c.b16 %v3336, %v2944
        %v3729 = vpack.c.b16 %v3337, %v2945
        %v3730 = vpack.c.b16 %v3338, %v2946
        %v3731 = vpack.c.b16 %v3339, %v2947
        %v3732 = vpack.c.b16 %v3340, %v2948
        %v3733 = vpack.c.b16 %v3341, %v2949
        %v3734 = vpack.c.b16 %v3342, %v2950
        %v3735 = vpack.c.b16 %v3343, %v2951
        %v3736 = vpack.c.b16 %v3344, %v2952
        %v3737 = vpack.c.b16 %v3345, %v2953
        %v3738 = vpack.c.b16 %v3346, %v2954
        %v3739 = vpack.c.b16 %v3347, %v2955
        %v3740 = vpack.c.b16 %v3348, %v2956
        %v3741 = vpack.c.b16 %v3349, %v2957
        %v3742 = vpack.c.b16 %v3350, %v2958
        %v3743 = vpack.c.b16 %v3351, %v2959
        %v3744 = vpack.c.b16 %v3352, %v2960
        %v3745 = vpack.c.b16 %v3353, %v2961
        %v3746 = vpack.c.b16 %v3354, %v2962
        %v3747 = vpack.c.b16 %v3355, %v2963
        %v3748 = vpack.c.b16 %v3356, %v2964
        %v3749 = vpack.c.b16 %v3357, %v2965
        %v3750 = vpack.c.b16 %v3358, %v2966
        %v3751 = vpack.c.b16 %v3359, %v2967
        %v3752 = vpack.c.b16 %v3360, %v2968
        %v3753 = vpack.c.b16 %v3361, %v2969
        %v3754 = vpack.c.b16 %v3362, %v2970
        %v3755 = vpack.c.b16 %v3363, %v2971
        %v3756 = vpack.c.b16 %v3364, %v2972
        %v3757 = vpack.c.b16 %v3365, %v2973
        %v3758 = vpack.c.b16 %v3366, %v2974
        %v3759 = vpack.c.b16 %v3367, %v2975
        %v3760 = vpack.c.b16 %v3368, %v2976
        %v3761 = vpack.c.b16 %v3369, %v2977
        %v3762 = vpack.c.b16 %v3370, %v2978
        %v3763 = vpack.c.b16 %v3371, %v2979
        %v3764 = vpack.c.b16 %v3372, %v2980
        %v3765 = vpack.c.b16 %v3373, %v2981
        %v3766 = vpack.c.b16 %v3374, %v2982
        %v3767 = vpack.c.b16 %v3375, %v2983
        %v3768 = vpack.c.b16 %v3376, %v2984
        %v3769 = vpack.c.b16 %v3377, %v2985
        %v3770 = vpack.c.b16 %v3378, %v2986
        %v3771 = vpack.c.b16 %v3379, %v2987
        %4164 = vmatprep.subr.bf16.mxu0 0
        %4165 = vmatpush1.bf16.xpose.msra.mxu0 0
        %4166 = vmatprep.subr.bf16.mxu0 0
        %4167 = vmatpush1.bf16.xpose.msra.mxu0 0
        %4168 = vmatprep.subr.bf16.mxu0 0
        %4169 = vmatpush1.bf16.xpose.msra.mxu0 0
        %4170 = vmatprep.subr.bf16.mxu0 0
        %4171 = vmatpush1.bf16.xpose.msra.mxu0 0
        %4172 = vmatprep.subr.bf16.mxu0 0
        %4173 = vmatpush1.bf16.xpose.msra.mxu0 0
        %4174 = vmatprep.subr.bf16.mxu0 0
        %4175 = vmatpush1.bf16.xpose.msra.mxu0 0
        %4176 = vmatprep.subr.bf16.mxu0 0
        %4177 = vmatpush1.bf16.xpose.msra.mxu0 0
        %4178 = vmatprep.subr.bf16.mxu0 %v3381
        %4179 = vmatpush1.bf16.xpose.msra.mxu0 %v3380
        %4180 = vmatprep.subr.bf16.mxu0 0
        %4181 = vmatpush2.bf16.xpose.msra.mxu0 0
        %4182 = vmatprep.subr.bf16.mxu0 0
        %4183 = vmatpush2.bf16.xpose.msra.mxu0 0
        %4184 = vmatprep.subr.bf16.mxu0 0
        %4185 = vmatpush2.bf16.xpose.msra.mxu0 0
        %4186 = vmatprep.subr.bf16.mxu0 0
        %4187 = vmatpush2.bf16.xpose.msra.mxu0 0
        %4188 = vmatprep.subr.bf16.mxu0 0
        %4189 = vmatpush2.bf16.xpose.msra.mxu0 0
        %4190 = vmatprep.subr.bf16.mxu0 0
        %4191 = vmatpush2.bf16.xpose.msra.mxu0 0
        %4192 = vmatprep.subr.bf16.mxu0 0
        %4193 = vmatpush2.bf16.xpose.msra.mxu0 0
        %4194 = vmatprep.subr.bf16.mxu0 0
        %4195 = vmatpush2.bf16.xpose.msra.mxu0 0
        %4196 = vmatprep.mubr.bf16.mxu0 %v1421
        %4197 = vmatmul.mubr.bf16.gmra.mxu0 %v1420
        %v4198 = vpop.f32.mrf.mxu0
        %v4199 = vadd.f32 0.0, %v4198
        %v4200 = vpop.f32.mrf.mxu0
        %v4201 = vpop.f32.mrf.mxu0
        %v4202 = vpop.f32.mrf.mxu0
        %4203 = vdwg.mxu0
        %4204 = vmatprep.subr.bf16.mxu0 0
        %4205 = vmatpush1.bf16.xpose.msra.mxu0 0
        %4206 = vmatprep.subr.bf16.mxu0 0
        %4207 = vmatpush1.bf16.xpose.msra.mxu0 0
        %4208 = vmatprep.subr.bf16.mxu0 0
        %4209 = vmatpush1.bf16.xpose.msra.mxu0 0
        %4210 = vmatprep.subr.bf16.mxu0 0
        %4211 = vmatpush1.bf16.xpose.msra.mxu0 0
        %4212 = vmatprep.subr.bf16.mxu0 0
        %4213 = vmatpush1.bf16.xpose.msra.mxu0 0
        %4214 = vmatprep.subr.bf16.mxu0 0
        %4215 = vmatpush1.bf16.xpose.msra.mxu0 0
        %4216 = vmatprep.subr.bf16.mxu0 0
        %4217 = vmatpush1.bf16.xpose.msra.mxu0 0
        %4218 = vmatprep.subr.bf16.mxu0 %v3383
        %4219 = vmatpush1.bf16.xpose.msra.mxu0 %v3382
        %4220 = vmatprep.subr.bf16.mxu0 0
        %4221 = vmatpush2.bf16.xpose.msra.mxu0 0
        %4222 = vmatprep.subr.bf16.mxu0 0
        %4223 = vmatpush2.bf16.xpose.msra.mxu0 0
        %4224 = vmatprep.subr.bf16.mxu0 0
        %4225 = vmatpush2.bf16.xpose.msra.mxu0 0
        %4226 = vmatprep.subr.bf16.mxu0 0
        %4227 = vmatpush2.bf16.xpose.msra.mxu0 0
        %4228 = vmatprep.subr.bf16.mxu0 0
        %4229 = vmatpush2.bf16.xpose.msra.mxu0 0
        %4230 = vmatprep.subr.bf16.mxu0 0
        %4231 = vmatpush2.bf16.xpose.msra.mxu0 0
        %4232 = vmatprep.subr.bf16.mxu0 0
        %4233 = vmatpush2.bf16.xpose.msra.mxu0 0
        %4234 = vmatprep.subr.bf16.mxu0 0
        %4235 = vmatpush2.bf16.xpose.msra.mxu0 0
        %4236 = vmatprep.mubr.bf16.mxu0 %v1423
        %4237 = vmatmul.mubr.bf16.gmra.mxu0 %v1422
        %v4238 = vpop.f32.mrf.mxu0
        %v4239 = vadd.f32 %v4199, %v4238
        %v4240 = vpop.f32.mrf.mxu0
        %v4241 = vpop.f32.mrf.mxu0
        %v4242 = vpop.f32.mrf.mxu0
        %4243 = vdwg.mxu0
        %4244 = vmatprep.subr.bf16.mxu0 0
        %4245 = vmatpush1.bf16.xpose.msra.mxu0 0
        %4246 = vmatprep.subr.bf16.mxu0 0
        %4247 = vmatpush1.bf16.xpose.msra.mxu0 0
        %4248 = vmatprep.subr.bf16.mxu0 0
        %4249 = vmatpush1.bf16.xpose.msra.mxu0 0
        %4250 = vmatprep.subr.bf16.mxu0 0
        %4251 = vmatpush1.bf16.xpose.msra.mxu0 0
        %4252 = vmatprep.subr.bf16.mxu0 0
        %4253 = vmatpush1.bf16.xpose.msra.mxu0 0
        %4254 = vmatprep.subr.bf16.mxu0 0
        %4255 = vmatpush1.bf16.xpose.msra.mxu0 0
        %4256 = vmatprep.subr.bf16.mxu0 0
        %4257 = vmatpush1.bf16.xpose.msra.mxu0 0
        %4258 = vmatprep.subr.bf16.mxu0 %v3385
        %4259 = vmatpush1.bf16.xpose.msra.mxu0 %v3384
        %4260 = vmatprep.subr.bf16.mxu0 0
        %4261 = vmatpush2.bf16.xpose.msra.mxu0 0
        %4262 = vmatprep.subr.bf16.mxu0 0
        %4263 = vmatpush2.bf16.xpose.msra.mxu0 0
        %4264 = vmatprep.subr.bf16.mxu0 0
        %4265 = vmatpush2.bf16.xpose.msra.mxu0 0
        %4266 = vmatprep.subr.bf16.mxu0 0
        %4267 = vmatpush2.bf16.xpose.msra.mxu0 0
        %4268 = vmatprep.subr.bf16.mxu0 0
        %4269 = vmatpush2.bf16.xpose.msra.mxu0 0
        %4270 = vmatprep.subr.bf16.mxu0 0
        %4271 = vmatpush2.bf16.xpose.msra.mxu0 0
        %4272 = vmatprep.subr.bf16.mxu0 0
        %4273 = vmatpush2.bf16.xpose.msra.mxu0 0
        %4274 = vmatprep.subr.bf16.mxu0 0
        %4275 = vmatpush2.bf16.xpose.msra.mxu0 0
        %4276 = vmatprep.mubr.bf16.mxu0 %v1425
        %4277 = vmatmul.mubr.bf16.gmra.mxu0 %v1424
        %v4278 = vpop.f32.mrf.mxu0
        %v4279 = vadd.f32 %v4239, %v4278
        %v4280 = vpop.f32.mrf.mxu0
        %v4281 = vpop.f32.mrf.mxu0
        %v4282 = vpop.f32.mrf.mxu0
        %4283 = vdwg.mxu0
        %4284 = vmatprep.subr.bf16.mxu0 0
        %4285 = vmatpush1.bf16.xpose.msra.mxu0 0
        %4286 = vmatprep.subr.bf16.mxu0 0
        %4287 = vmatpush1.bf16.xpose.msra.mxu0 0
        %4288 = vmatprep.subr.bf16.mxu0 0
        %4289 = vmatpush1.bf16.xpose.msra.mxu0 0
        %4290 = vmatprep.subr.bf16.mxu0 0
        %4291 = vmatpush1.bf16.xpose.msra.mxu0 0
        %4292 = vmatprep.subr.bf16.mxu0 0
        %4293 = vmatpush1.bf16.xpose.msra.mxu0 0
        %4294 = vmatprep.subr.bf16.mxu0 0
        %4295 = vmatpush1.bf16.xpose.msra.mxu0 0
        %4296 = vmatprep.subr.bf16.mxu0 0
        %4297 = vmatpush1.bf16.xpose.msra.mxu0 0
        %4298 = vmatprep.subr.bf16.mxu0 %v3387
        %4299 = vmatpush1.bf16.xpose.msra.mxu0 %v3386
        %4300 = vmatprep.subr.bf16.mxu0 0
        %4301 = vmatpush2.bf16.xpose.msra.mxu0 0
        %4302 = vmatprep.subr.bf16.mxu0 0
        %4303 = vmatpush2.bf16.xpose.msra.mxu0 0
        %4304 = vmatprep.subr.bf16.mxu0 0
        %4305 = vmatpush2.bf16.xpose.msra.mxu0 0
        %4306 = vmatprep.subr.bf16.mxu0 0
        %4307 = vmatpush2.bf16.xpose.msra.mxu0 0
        %4308 = vmatprep.subr.bf16.mxu0 0
        %4309 = vmatpush2.bf16.xpose.msra.mxu0 0
        %4310 = vmatprep.subr.bf16.mxu0 0
        %4311 = vmatpush2.bf16.xpose.msra.mxu0 0
        %4312 = vmatprep.subr.bf16.mxu0 0
        %4313 = vmatpush2.bf16.xpose.msra.mxu0 0
        %4314 = vmatprep.subr.bf16.mxu0 0
        %4315 = vmatpush2.bf16.xpose.msra.mxu0 0
        %4316 = vmatprep.mubr.bf16.mxu0 %v1427
        %4317 = vmatmul.mubr.bf16.gmra.mxu0 %v1426
        %v4318 = vpop.f32.mrf.mxu0
        %v4319 = vadd.f32 %v4279, %v4318
        %v4320 = vpop.f32.mrf.mxu0
        %v4321 = vpop.f32.mrf.mxu0
        %v4322 = vpop.f32.mrf.mxu0
        %4323 = vdwg.mxu0
        %4324 = vmatprep.subr.bf16.mxu0 0
        %4325 = vmatpush1.bf16.xpose.msra.mxu0 0
        %4326 = vmatprep.subr.bf16.mxu0 0
        %4327 = vmatpush1.bf16.xpose.msra.mxu0 0
        %4328 = vmatprep.subr.bf16.mxu0 0
        %4329 = vmatpush1.bf16.xpose.msra.mxu0 0
        %4330 = vmatprep.subr.bf16.mxu0 0
        %4331 = vmatpush1.bf16.xpose.msra.mxu0 0
        %4332 = vmatprep.subr.bf16.mxu0 0
        %4333 = vmatpush1.bf16.xpose.msra.mxu0 0
        %4334 = vmatprep.subr.bf16.mxu0 0
        %4335 = vmatpush1.bf16.xpose.msra.mxu0 0
        %4336 = vmatprep.subr.bf16.mxu0 0
        %4337 = vmatpush1.bf16.xpose.msra.mxu0 0
        %4338 = vmatprep.subr.bf16.mxu0 %v3389
        %4339 = vmatpush1.bf16.xpose.msra.mxu0 %v3388
        %4340 = vmatprep.subr.bf16.mxu0 0
        %4341 = vmatpush2.bf16.xpose.msra.mxu0 0
        %4342 = vmatprep.subr.bf16.mxu0 0
        %4343 = vmatpush2.bf16.xpose.msra.mxu0 0
        %4344 = vmatprep.subr.bf16.mxu0 0
        %4345 = vmatpush2.bf16.xpose.msra.mxu0 0
        %4346 = vmatprep.subr.bf16.mxu0 0
        %4347 = vmatpush2.bf16.xpose.msra.mxu0 0
        %4348 = vmatprep.subr.bf16.mxu0 0
        %4349 = vmatpush2.bf16.xpose.msra.mxu0 0
        %4350 = vmatprep.subr.bf16.mxu0 0
        %4351 = vmatpush2.bf16.xpose.msra.mxu0 0
        %4352 = vmatprep.subr.bf16.mxu0 0
        %4353 = vmatpush2.bf16.xpose.msra.mxu0 0
        %4354 = vmatprep.subr.bf16.mxu0 0
        %4355 = vmatpush2.bf16.xpose.msra.mxu0 0
        %4356 = vmatprep.mubr.bf16.mxu0 %v1429
        %4357 = vmatmul.mubr.bf16.gmra.mxu0 %v1428
        %v4358 = vpop.f32.mrf.mxu0
        %v4359 = vadd.f32 %v4319, %v4358
        %v4360 = vpop.f32.mrf.mxu0
        %v4361 = vpop.f32.mrf.mxu0
        %v4362 = vpop.f32.mrf.mxu0
        %4363 = vdwg.mxu0
        %4364 = vmatprep.subr.bf16.mxu0 0
        %4365 = vmatpush1.bf16.xpose.msra.mxu0 0
        %4366 = vmatprep.subr.bf16.mxu0 0
        %4367 = vmatpush1.bf16.xpose.msra.mxu0 0
        %4368 = vmatprep.subr.bf16.mxu0 0
        %4369 = vmatpush1.bf16.xpose.msra.mxu0 0
        %4370 = vmatprep.subr.bf16.mxu0 0
        %4371 = vmatpush1.bf16.xpose.msra.mxu0 0
        %4372 = vmatprep.subr.bf16.mxu0 0
        %4373 = vmatpush1.bf16.xpose.msra.mxu0 0
        %4374 = vmatprep.subr.bf16.mxu0 0
        %4375 = vmatpush1.bf16.xpose.msra.mxu0 0
        %4376 = vmatprep.subr.bf16.mxu0 0
        %4377 = vmatpush1.bf16.xpose.msra.mxu0 0
        %4378 = vmatprep.subr.bf16.mxu0 %v3391
        %4379 = vmatpush1.bf16.xpose.msra.mxu0 %v3390
        %4380 = vmatprep.subr.bf16.mxu0 0
        %4381 = vmatpush2.bf16.xpose.msra.mxu0 0
        %4382 = vmatprep.subr.bf16.mxu0 0
        %4383 = vmatpush2.bf16.xpose.msra.mxu0 0
        %4384 = vmatprep.subr.bf16.mxu0 0
        %4385 = vmatpush2.bf16.xpose.msra.mxu0 0
        %4386 = vmatprep.subr.bf16.mxu0 0
        %4387 = vmatpush2.bf16.xpose.msra.mxu0 0
        %4388 = vmatprep.subr.bf16.mxu0 0
        %4389 = vmatpush2.bf16.xpose.msra.mxu0 0
        %4390 = vmatprep.subr.bf16.mxu0 0
        %4391 = vmatpush2.bf16.xpose.msra.mxu0 0
        %4392 = vmatprep.subr.bf16.mxu0 0
        %4393 = vmatpush2.bf16.xpose.msra.mxu0 0
        %4394 = vmatprep.subr.bf16.mxu0 0
        %4395 = vmatpush2.bf16.xpose.msra.mxu0 0
        %4396 = vmatprep.mubr.bf16.mxu0 %v1431
        %4397 = vmatmul.mubr.bf16.gmra.mxu0 %v1430
        %v4398 = vpop.f32.mrf.mxu0
        %v4399 = vadd.f32 %v4359, %v4398
        %v4400 = vpop.f32.mrf.mxu0
        %v4401 = vpop.f32.mrf.mxu0
        %v4402 = vpop.f32.mrf.mxu0
        %4403 = vdwg.mxu0
        %4404 = vmatprep.subr.bf16.mxu0 0
        %4405 = vmatpush1.bf16.xpose.msra.mxu0 0
        %4406 = vmatprep.subr.bf16.mxu0 0
        %4407 = vmatpush1.bf16.xpose.msra.mxu0 0
        %4408 = vmatprep.subr.bf16.mxu0 0
        %4409 = vmatpush1.bf16.xpose.msra.mxu0 0
        %4410 = vmatprep.subr.bf16.mxu0 0
        %4411 = vmatpush1.bf16.xpose.msra.mxu0 0
        %4412 = vmatprep.subr.bf16.mxu0 0
        %4413 = vmatpush1.bf16.xpose.msra.mxu0 0
        %4414 = vmatprep.subr.bf16.mxu0 0
        %4415 = vmatpush1.bf16.xpose.msra.mxu0 0
        %4416 = vmatprep.subr.bf16.mxu0 0
        %4417 = vmatpush1.bf16.xpose.msra.mxu0 0
        %4418 = vmatprep.subr.bf16.mxu0 %v3393
        %4419 = vmatpush1.bf16.xpose.msra.mxu0 %v3392
        %4420 = vmatprep.subr.bf16.mxu0 0
        %4421 = vmatpush2.bf16.xpose.msra.mxu0 0
        %4422 = vmatprep.subr.bf16.mxu0 0
        %4423 = vmatpush2.bf16.xpose.msra.mxu0 0
        %4424 = vmatprep.subr.bf16.mxu0 0
        %4425 = vmatpush2.bf16.xpose.msra.mxu0 0
        %4426 = vmatprep.subr.bf16.mxu0 0
        %4427 = vmatpush2.bf16.xpose.msra.mxu0 0
        %4428 = vmatprep.subr.bf16.mxu0 0
        %4429 = vmatpush2.bf16.xpose.msra.mxu0 0
        %4430 = vmatprep.subr.bf16.mxu0 0
        %4431 = vmatpush2.bf16.xpose.msra.mxu0 0
        %4432 = vmatprep.subr.bf16.mxu0 0
        %4433 = vmatpush2.bf16.xpose.msra.mxu0 0
        %4434 = vmatprep.subr.bf16.mxu0 0
        %4435 = vmatpush2.bf16.xpose.msra.mxu0 0
        %4436 = vmatprep.mubr.bf16.mxu0 %v1433
        %4437 = vmatmul.mubr.bf16.gmra.mxu0 %v1432
        %v4438 = vpop.f32.mrf.mxu0
        %v4439 = vadd.f32 %v4399, %v4438
        %v4440 = vpop.f32.mrf.mxu0
        %v4441 = vpop.f32.mrf.mxu0
        %v4442 = vpop.f32.mrf.mxu0
        %4443 = vdwg.mxu0
        %4444 = vmatprep.subr.bf16.mxu0 0
        %4445 = vmatpush1.bf16.xpose.msra.mxu0 0
        %4446 = vmatprep.subr.bf16.mxu0 0
        %4447 = vmatpush1.bf16.xpose.msra.mxu0 0
        %4448 = vmatprep.subr.bf16.mxu0 0
        %4449 = vmatpush1.bf16.xpose.msra.mxu0 0
        %4450 = vmatprep.subr.bf16.mxu0 0
        %4451 = vmatpush1.bf16.xpose.msra.mxu0 0
        %4452 = vmatprep.subr.bf16.mxu0 0
        %4453 = vmatpush1.bf16.xpose.msra.mxu0 0
        %4454 = vmatprep.subr.bf16.mxu0 0
        %4455 = vmatpush1.bf16.xpose.msra.mxu0 0
        %4456 = vmatprep.subr.bf16.mxu0 0
        %4457 = vmatpush1.bf16.xpose.msra.mxu0 0
        %4458 = vmatprep.subr.bf16.mxu0 %v3395
        %4459 = vmatpush1.bf16.xpose.msra.mxu0 %v3394
        %4460 = vmatprep.subr.bf16.mxu0 0
        %4461 = vmatpush2.bf16.xpose.msra.mxu0 0
        %4462 = vmatprep.subr.bf16.mxu0 0
        %4463 = vmatpush2.bf16.xpose.msra.mxu0 0
        %4464 = vmatprep.subr.bf16.mxu0 0
        %4465 = vmatpush2.bf16.xpose.msra.mxu0 0
        %4466 = vmatprep.subr.bf16.mxu0 0
        %4467 = vmatpush2.bf16.xpose.msra.mxu0 0
        %4468 = vmatprep.subr.bf16.mxu0 0
        %4469 = vmatpush2.bf16.xpose.msra.mxu0 0
        %4470 = vmatprep.subr.bf16.mxu0 0
        %4471 = vmatpush2.bf16.xpose.msra.mxu0 0
        %4472 = vmatprep.subr.bf16.mxu0 0
        %4473 = vmatpush2.bf16.xpose.msra.mxu0 0
        %4474 = vmatprep.subr.bf16.mxu0 0
        %4475 = vmatpush2.bf16.xpose.msra.mxu0 0
        %4476 = vmatprep.mubr.bf16.mxu0 %v1435
        %4477 = vmatmul.mubr.bf16.gmra.mxu0 %v1434
        %v4478 = vpop.f32.mrf.mxu0
        %v4479 = vadd.f32 %v4439, %v4478
        %v4480 = vpop.f32.mrf.mxu0
        %v4481 = vpop.f32.mrf.mxu0
        %v4482 = vpop.f32.mrf.mxu0
        %4483 = vdwg.mxu0
        %4484 = vmatprep.subr.bf16.mxu0 0
        %4485 = vmatpush1.bf16.xpose.msra.mxu0 0
        %4486 = vmatprep.subr.bf16.mxu0 0
        %4487 = vmatpush1.bf16.xpose.msra.mxu0 0
        %4488 = vmatprep.subr.bf16.mxu0 0
        %4489 = vmatpush1.bf16.xpose.msra.mxu0 0
        %4490 = vmatprep.subr.bf16.mxu0 0
        %4491 = vmatpush1.bf16.xpose.msra.mxu0 0
        %4492 = vmatprep.subr.bf16.mxu0 0
        %4493 = vmatpush1.bf16.xpose.msra.mxu0 0
        %4494 = vmatprep.subr.bf16.mxu0 0
        %4495 = vmatpush1.bf16.xpose.msra.mxu0 0
        %4496 = vmatprep.subr.bf16.mxu0 0
        %4497 = vmatpush1.bf16.xpose.msra.mxu0 0
        %4498 = vmatprep.subr.bf16.mxu0 %v3397
        %4499 = vmatpush1.bf16.xpose.msra.mxu0 %v3396
        %4500 = vmatprep.subr.bf16.mxu0 0
        %4501 = vmatpush2.bf16.xpose.msra.mxu0 0
        %4502 = vmatprep.subr.bf16.mxu0 0
        %4503 = vmatpush2.bf16.xpose.msra.mxu0 0
        %4504 = vmatprep.subr.bf16.mxu0 0
        %4505 = vmatpush2.bf16.xpose.msra.mxu0 0
        %4506 = vmatprep.subr.bf16.mxu0 0
        %4507 = vmatpush2.bf16.xpose.msra.mxu0 0
        %4508 = vmatprep.subr.bf16.mxu0 0
        %4509 = vmatpush2.bf16.xpose.msra.mxu0 0
        %4510 = vmatprep.subr.bf16.mxu0 0
        %4511 = vmatpush2.bf16.xpose.msra.mxu0 0
        %4512 = vmatprep.subr.bf16.mxu0 0
        %4513 = vmatpush2.bf16.xpose.msra.mxu0 0
        %4514 = vmatprep.subr.bf16.mxu0 0
        %4515 = vmatpush2.bf16.xpose.msra.mxu0 0
        %4516 = vmatprep.mubr.bf16.mxu0 %v1437
        %4517 = vmatmul.mubr.bf16.gmra.mxu0 %v1436
        %v4518 = vpop.f32.mrf.mxu0
        %v4519 = vadd.f32 %v4479, %v4518
        %v4520 = vpop.f32.mrf.mxu0
        %v4521 = vpop.f32.mrf.mxu0
        %v4522 = vpop.f32.mrf.mxu0
        %4523 = vdwg.mxu0
        %4524 = vmatprep.subr.bf16.mxu0 0
        %4525 = vmatpush1.bf16.xpose.msra.mxu0 0
        %4526 = vmatprep.subr.bf16.mxu0 0
        %4527 = vmatpush1.bf16.xpose.msra.mxu0 0
        %4528 = vmatprep.subr.bf16.mxu0 0
        %4529 = vmatpush1.bf16.xpose.msra.mxu0 0
        %4530 = vmatprep.subr.bf16.mxu0 0
        %4531 = vmatpush1.bf16.xpose.msra.mxu0 0
        %4532 = vmatprep.subr.bf16.mxu0 0
        %4533 = vmatpush1.bf16.xpose.msra.mxu0 0
        %4534 = vmatprep.subr.bf16.mxu0 0
        %4535 = vmatpush1.bf16.xpose.msra.mxu0 0
        %4536 = vmatprep.subr.bf16.mxu0 0
        %4537 = vmatpush1.bf16.xpose.msra.mxu0 0
        %4538 = vmatprep.subr.bf16.mxu0 %v3399
        %4539 = vmatpush1.bf16.xpose.msra.mxu0 %v3398
        %4540 = vmatprep.subr.bf16.mxu0 0
        %4541 = vmatpush2.bf16.xpose.msra.mxu0 0
        %4542 = vmatprep.subr.bf16.mxu0 0
        %4543 = vmatpush2.bf16.xpose.msra.mxu0 0
        %4544 = vmatprep.subr.bf16.mxu0 0
        %4545 = vmatpush2.bf16.xpose.msra.mxu0 0
        %4546 = vmatprep.subr.bf16.mxu0 0
        %4547 = vmatpush2.bf16.xpose.msra.mxu0 0
        %4548 = vmatprep.subr.bf16.mxu0 0
        %4549 = vmatpush2.bf16.xpose.msra.mxu0 0
        %4550 = vmatprep.subr.bf16.mxu0 0
        %4551 = vmatpush2.bf16.xpose.msra.mxu0 0
        %4552 = vmatprep.subr.bf16.mxu0 0
        %4553 = vmatpush2.bf16.xpose.msra.mxu0 0
        %4554 = vmatprep.subr.bf16.mxu0 0
        %4555 = vmatpush2.bf16.xpose.msra.mxu0 0
        %4556 = vmatprep.mubr.bf16.mxu0 %v1439
        %4557 = vmatmul.mubr.bf16.gmra.mxu0 %v1438
        %v4558 = vpop.f32.mrf.mxu0
        %v4559 = vadd.f32 %v4519, %v4558
        %v4560 = vpop.f32.mrf.mxu0
        %v4561 = vpop.f32.mrf.mxu0
        %v4562 = vpop.f32.mrf.mxu0
        %4563 = vdwg.mxu0
        %4564 = vmatprep.subr.bf16.mxu0 0
        %4565 = vmatpush1.bf16.xpose.msra.mxu0 0
        %4566 = vmatprep.subr.bf16.mxu0 0
        %4567 = vmatpush1.bf16.xpose.msra.mxu0 0
        %4568 = vmatprep.subr.bf16.mxu0 0
        %4569 = vmatpush1.bf16.xpose.msra.mxu0 0
        %4570 = vmatprep.subr.bf16.mxu0 0
        %4571 = vmatpush1.bf16.xpose.msra.mxu0 0
        %4572 = vmatprep.subr.bf16.mxu0 0
        %4573 = vmatpush1.bf16.xpose.msra.mxu0 0
        %4574 = vmatprep.subr.bf16.mxu0 0
        %4575 = vmatpush1.bf16.xpose.msra.mxu0 0
        %4576 = vmatprep.subr.bf16.mxu0 0
        %4577 = vmatpush1.bf16.xpose.msra.mxu0 0
        %4578 = vmatprep.subr.bf16.mxu0 %v3401
        %4579 = vmatpush1.bf16.xpose.msra.mxu0 %v3400
        %4580 = vmatprep.subr.bf16.mxu0 0
        %4581 = vmatpush2.bf16.xpose.msra.mxu0 0
        %4582 = vmatprep.subr.bf16.mxu0 0
        %4583 = vmatpush2.bf16.xpose.msra.mxu0 0
        %4584 = vmatprep.subr.bf16.mxu0 0
        %4585 = vmatpush2.bf16.xpose.msra.mxu0 0
        %4586 = vmatprep.subr.bf16.mxu0 0
        %4587 = vmatpush2.bf16.xpose.msra.mxu0 0
        %4588 = vmatprep.subr.bf16.mxu0 0
        %4589 = vmatpush2.bf16.xpose.msra.mxu0 0
        %4590 = vmatprep.subr.bf16.mxu0 0
        %4591 = vmatpush2.bf16.xpose.msra.mxu0 0
        %4592 = vmatprep.subr.bf16.mxu0 0
        %4593 = vmatpush2.bf16.xpose.msra.mxu0 0
        %4594 = vmatprep.subr.bf16.mxu0 0
        %4595 = vmatpush2.bf16.xpose.msra.mxu0 0
        %4596 = vmatprep.mubr.bf16.mxu0 %v1441
        %4597 = vmatmul.mubr.bf16.gmra.mxu0 %v1440
        %v4598 = vpop.f32.mrf.mxu0
        %v4599 = vadd.f32 %v4559, %v4598
        %v4600 = vpop.f32.mrf.mxu0
        %v4601 = vpop.f32.mrf.mxu0
        %v4602 = vpop.f32.mrf.mxu0
        %4603 = vdwg.mxu0
        %4604 = vmatprep.subr.bf16.mxu0 0
        %4605 = vmatpush1.bf16.xpose.msra.mxu0 0
        %4606 = vmatprep.subr.bf16.mxu0 0
        %4607 = vmatpush1.bf16.xpose.msra.mxu0 0
        %4608 = vmatprep.subr.bf16.mxu0 0
        %4609 = vmatpush1.bf16.xpose.msra.mxu0 0
        %4610 = vmatprep.subr.bf16.mxu0 0
        %4611 = vmatpush1.bf16.xpose.msra.mxu0 0
        %4612 = vmatprep.subr.bf16.mxu0 0
        %4613 = vmatpush1.bf16.xpose.msra.mxu0 0
        %4614 = vmatprep.subr.bf16.mxu0 0
        %4615 = vmatpush1.bf16.xpose.msra.mxu0 0
        %4616 = vmatprep.subr.bf16.mxu0 0
        %4617 = vmatpush1.bf16.xpose.msra.mxu0 0
        %4618 = vmatprep.subr.bf16.mxu0 %v3403
        %4619 = vmatpush1.bf16.xpose.msra.mxu0 %v3402
        %4620 = vmatprep.subr.bf16.mxu0 0
        %4621 = vmatpush2.bf16.xpose.msra.mxu0 0
        %4622 = vmatprep.subr.bf16.mxu0 0
        %4623 = vmatpush2.bf16.xpose.msra.mxu0 0
        %4624 = vmatprep.subr.bf16.mxu0 0
        %4625 = vmatpush2.bf16.xpose.msra.mxu0 0
        %4626 = vmatprep.subr.bf16.mxu0 0
        %4627 = vmatpush2.bf16.xpose.msra.mxu0 0
        %4628 = vmatprep.subr.bf16.mxu0 0
        %4629 = vmatpush2.bf16.xpose.msra.mxu0 0
        %4630 = vmatprep.subr.bf16.mxu0 0
        %4631 = vmatpush2.bf16.xpose.msra.mxu0 0
        %4632 = vmatprep.subr.bf16.mxu0 0
        %4633 = vmatpush2.bf16.xpose.msra.mxu0 0
        %4634 = vmatprep.subr.bf16.mxu0 0
        %4635 = vmatpush2.bf16.xpose.msra.mxu0 0
        %4636 = vmatprep.mubr.bf16.mxu0 %v1443
        %4637 = vmatmul.mubr.bf16.gmra.mxu0 %v1442
        %v4638 = vpop.f32.mrf.mxu0
        %v4639 = vadd.f32 %v4599, %v4638
        %v4640 = vpop.f32.mrf.mxu0
        %v4641 = vpop.f32.mrf.mxu0
        %v4642 = vpop.f32.mrf.mxu0
        %4643 = vdwg.mxu0
        %4644 = vmatprep.subr.bf16.mxu0 0
        %4645 = vmatpush1.bf16.xpose.msra.mxu0 0
        %4646 = vmatprep.subr.bf16.mxu0 0
        %4647 = vmatpush1.bf16.xpose.msra.mxu0 0
        %4648 = vmatprep.subr.bf16.mxu0 0
        %4649 = vmatpush1.bf16.xpose.msra.mxu0 0
        %4650 = vmatprep.subr.bf16.mxu0 0
        %4651 = vmatpush1.bf16.xpose.msra.mxu0 0
        %4652 = vmatprep.subr.bf16.mxu0 0
        %4653 = vmatpush1.bf16.xpose.msra.mxu0 0
        %4654 = vmatprep.subr.bf16.mxu0 0
        %4655 = vmatpush1.bf16.xpose.msra.mxu0 0
        %4656 = vmatprep.subr.bf16.mxu0 0
        %4657 = vmatpush1.bf16.xpose.msra.mxu0 0
        %4658 = vmatprep.subr.bf16.mxu0 %v3405
        %4659 = vmatpush1.bf16.xpose.msra.mxu0 %v3404
        %4660 = vmatprep.subr.bf16.mxu0 0
        %4661 = vmatpush2.bf16.xpose.msra.mxu0 0
        %4662 = vmatprep.subr.bf16.mxu0 0
        %4663 = vmatpush2.bf16.xpose.msra.mxu0 0
        %4664 = vmatprep.subr.bf16.mxu0 0
        %4665 = vmatpush2.bf16.xpose.msra.mxu0 0
        %4666 = vmatprep.subr.bf16.mxu0 0
        %4667 = vmatpush2.bf16.xpose.msra.mxu0 0
        %4668 = vmatprep.subr.bf16.mxu0 0
        %4669 = vmatpush2.bf16.xpose.msra.mxu0 0
        %4670 = vmatprep.subr.bf16.mxu0 0
        %4671 = vmatpush2.bf16.xpose.msra.mxu0 0
        %4672 = vmatprep.subr.bf16.mxu0 0
        %4673 = vmatpush2.bf16.xpose.msra.mxu0 0
        %4674 = vmatprep.subr.bf16.mxu0 0
        %4675 = vmatpush2.bf16.xpose.msra.mxu0 0
        %4676 = vmatprep.mubr.bf16.mxu0 %v1445
        %4677 = vmatmul.mubr.bf16.gmra.mxu0 %v1444
        %v4678 = vpop.f32.mrf.mxu0
        %v4679 = vadd.f32 %v4639, %v4678
        %v4680 = vpop.f32.mrf.mxu0
        %v4681 = vpop.f32.mrf.mxu0
        %v4682 = vpop.f32.mrf.mxu0
        %4683 = vdwg.mxu0
        %4684 = vmatprep.subr.bf16.mxu0 0
        %4685 = vmatpush1.bf16.xpose.msra.mxu0 0
        %4686 = vmatprep.subr.bf16.mxu0 0
        %4687 = vmatpush1.bf16.xpose.msra.mxu0 0
        %4688 = vmatprep.subr.bf16.mxu0 0
        %4689 = vmatpush1.bf16.xpose.msra.mxu0 0
        %4690 = vmatprep.subr.bf16.mxu0 0
        %4691 = vmatpush1.bf16.xpose.msra.mxu0 0
        %4692 = vmatprep.subr.bf16.mxu0 0
        %4693 = vmatpush1.bf16.xpose.msra.mxu0 0
        %4694 = vmatprep.subr.bf16.mxu0 0
        %4695 = vmatpush1.bf16.xpose.msra.mxu0 0
        %4696 = vmatprep.subr.bf16.mxu0 0
        %4697 = vmatpush1.bf16.xpose.msra.mxu0 0
        %4698 = vmatprep.subr.bf16.mxu0 %v3407
        %4699 = vmatpush1.bf16.xpose.msra.mxu0 %v3406
        %4700 = vmatprep.subr.bf16.mxu0 0
        %4701 = vmatpush2.bf16.xpose.msra.mxu0 0
        %4702 = vmatprep.subr.bf16.mxu0 0
        %4703 = vmatpush2.bf16.xpose.msra.mxu0 0
        %4704 = vmatprep.subr.bf16.mxu0 0
        %4705 = vmatpush2.bf16.xpose.msra.mxu0 0
        %4706 = vmatprep.subr.bf16.mxu0 0
        %4707 = vmatpush2.bf16.xpose.msra.mxu0 0
        %4708 = vmatprep.subr.bf16.mxu0 0
        %4709 = vmatpush2.bf16.xpose.msra.mxu0 0
        %4710 = vmatprep.subr.bf16.mxu0 0
        %4711 = vmatpush2.bf16.xpose.msra.mxu0 0
        %4712 = vmatprep.subr.bf16.mxu0 0
        %4713 = vmatpush2.bf16.xpose.msra.mxu0 0
        %4714 = vmatprep.subr.bf16.mxu0 0
        %4715 = vmatpush2.bf16.xpose.msra.mxu0 0
        %4716 = vmatprep.mubr.bf16.mxu0 %v1447
        %4717 = vmatmul.mubr.bf16.gmra.mxu0 %v1446
        %v4718 = vpop.f32.mrf.mxu0
        %v4719 = vadd.f32 %v4679, %v4718
        %v4720 = vpop.f32.mrf.mxu0
        %v4721 = vpop.f32.mrf.mxu0
        %v4722 = vpop.f32.mrf.mxu0
        %4723 = vdwg.mxu0
        %4724 = vmatprep.subr.bf16.mxu0 0
        %4725 = vmatpush1.bf16.xpose.msra.mxu0 0
        %4726 = vmatprep.subr.bf16.mxu0 0
        %4727 = vmatpush1.bf16.xpose.msra.mxu0 0
        %4728 = vmatprep.subr.bf16.mxu0 0
        %4729 = vmatpush1.bf16.xpose.msra.mxu0 0
        %4730 = vmatprep.subr.bf16.mxu0 0
        %4731 = vmatpush1.bf16.xpose.msra.mxu0 0
        %4732 = vmatprep.subr.bf16.mxu0 0
        %4733 = vmatpush1.bf16.xpose.msra.mxu0 0
        %4734 = vmatprep.subr.bf16.mxu0 0
        %4735 = vmatpush1.bf16.xpose.msra.mxu0 0
        %4736 = vmatprep.subr.bf16.mxu0 0
        %4737 = vmatpush1.bf16.xpose.msra.mxu0 0
        %4738 = vmatprep.subr.bf16.mxu0 %v3409
        %4739 = vmatpush1.bf16.xpose.msra.mxu0 %v3408
        %4740 = vmatprep.subr.bf16.mxu0 0
        %4741 = vmatpush2.bf16.xpose.msra.mxu0 0
        %4742 = vmatprep.subr.bf16.mxu0 0
        %4743 = vmatpush2.bf16.xpose.msra.mxu0 0
        %4744 = vmatprep.subr.bf16.mxu0 0
        %4745 = vmatpush2.bf16.xpose.msra.mxu0 0
        %4746 = vmatprep.subr.bf16.mxu0 0
        %4747 = vmatpush2.bf16.xpose.msra.mxu0 0
        %4748 = vmatprep.subr.bf16.mxu0 0
        %4749 = vmatpush2.bf16.xpose.msra.mxu0 0
        %4750 = vmatprep.subr.bf16.mxu0 0
        %4751 = vmatpush2.bf16.xpose.msra.mxu0 0
        %4752 = vmatprep.subr.bf16.mxu0 0
        %4753 = vmatpush2.bf16.xpose.msra.mxu0 0
        %4754 = vmatprep.subr.bf16.mxu0 0
        %4755 = vmatpush2.bf16.xpose.msra.mxu0 0
        %4756 = vmatprep.mubr.bf16.mxu0 %v1449
        %4757 = vmatmul.mubr.bf16.gmra.mxu0 %v1448
        %v4758 = vpop.f32.mrf.mxu0
        %v4759 = vadd.f32 %v4719, %v4758
        %v4760 = vpop.f32.mrf.mxu0
        %v4761 = vpop.f32.mrf.mxu0
        %v4762 = vpop.f32.mrf.mxu0
        %4763 = vdwg.mxu0
        %4764 = vmatprep.subr.bf16.mxu0 0
        %4765 = vmatpush1.bf16.xpose.msra.mxu0 0
        %4766 = vmatprep.subr.bf16.mxu0 0
        %4767 = vmatpush1.bf16.xpose.msra.mxu0 0
        %4768 = vmatprep.subr.bf16.mxu0 0
        %4769 = vmatpush1.bf16.xpose.msra.mxu0 0
        %4770 = vmatprep.subr.bf16.mxu0 0
        %4771 = vmatpush1.bf16.xpose.msra.mxu0 0
        %4772 = vmatprep.subr.bf16.mxu0 0
        %4773 = vmatpush1.bf16.xpose.msra.mxu0 0
        %4774 = vmatprep.subr.bf16.mxu0 0
        %4775 = vmatpush1.bf16.xpose.msra.mxu0 0
        %4776 = vmatprep.subr.bf16.mxu0 0
        %4777 = vmatpush1.bf16.xpose.msra.mxu0 0
        %4778 = vmatprep.subr.bf16.mxu0 %v3411
        %4779 = vmatpush1.bf16.xpose.msra.mxu0 %v3410
        %4780 = vmatprep.subr.bf16.mxu0 0
        %4781 = vmatpush2.bf16.xpose.msra.mxu0 0
        %4782 = vmatprep.subr.bf16.mxu0 0
        %4783 = vmatpush2.bf16.xpose.msra.mxu0 0
        %4784 = vmatprep.subr.bf16.mxu0 0
        %4785 = vmatpush2.bf16.xpose.msra.mxu0 0
        %4786 = vmatprep.subr.bf16.mxu0 0
        %4787 = vmatpush2.bf16.xpose.msra.mxu0 0
        %4788 = vmatprep.subr.bf16.mxu0 0
        %4789 = vmatpush2.bf16.xpose.msra.mxu0 0
        %4790 = vmatprep.subr.bf16.mxu0 0
        %4791 = vmatpush2.bf16.xpose.msra.mxu0 0
        %4792 = vmatprep.subr.bf16.mxu0 0
        %4793 = vmatpush2.bf16.xpose.msra.mxu0 0
        %4794 = vmatprep.subr.bf16.mxu0 0
        %4795 = vmatpush2.bf16.xpose.msra.mxu0 0
        %4796 = vmatprep.mubr.bf16.mxu0 %v1451
        %4797 = vmatmul.mubr.bf16.gmra.mxu0 %v1450
        %v4798 = vpop.f32.mrf.mxu0
        %v4799 = vadd.f32 %v4759, %v4798
        %v4800 = vpop.f32.mrf.mxu0
        %v4801 = vpop.f32.mrf.mxu0
        %v4802 = vpop.f32.mrf.mxu0
        %4803 = vdwg.mxu0
        %4804 = vmatprep.subr.bf16.mxu0 0
        %4805 = vmatpush1.bf16.xpose.msra.mxu0 0
        %4806 = vmatprep.subr.bf16.mxu0 0
        %4807 = vmatpush1.bf16.xpose.msra.mxu0 0
        %4808 = vmatprep.subr.bf16.mxu0 0
        %4809 = vmatpush1.bf16.xpose.msra.mxu0 0
        %4810 = vmatprep.subr.bf16.mxu0 0
        %4811 = vmatpush1.bf16.xpose.msra.mxu0 0
        %4812 = vmatprep.subr.bf16.mxu0 0
        %4813 = vmatpush1.bf16.xpose.msra.mxu0 0
        %4814 = vmatprep.subr.bf16.mxu0 0
        %4815 = vmatpush1.bf16.xpose.msra.mxu0 0
        %4816 = vmatprep.subr.bf16.mxu0 0
        %4817 = vmatpush1.bf16.xpose.msra.mxu0 0
        %4818 = vmatprep.subr.bf16.mxu0 %v3413
        %4819 = vmatpush1.bf16.xpose.msra.mxu0 %v3412
        %4820 = vmatprep.subr.bf16.mxu0 0
        %4821 = vmatpush2.bf16.xpose.msra.mxu0 0
        %4822 = vmatprep.subr.bf16.mxu0 0
        %4823 = vmatpush2.bf16.xpose.msra.mxu0 0
        %4824 = vmatprep.subr.bf16.mxu0 0
        %4825 = vmatpush2.bf16.xpose.msra.mxu0 0
        %4826 = vmatprep.subr.bf16.mxu0 0
        %4827 = vmatpush2.bf16.xpose.msra.mxu0 0
        %4828 = vmatprep.subr.bf16.mxu0 0
        %4829 = vmatpush2.bf16.xpose.msra.mxu0 0
        %4830 = vmatprep.subr.bf16.mxu0 0
        %4831 = vmatpush2.bf16.xpose.msra.mxu0 0
        %4832 = vmatprep.subr.bf16.mxu0 0
        %4833 = vmatpush2.bf16.xpose.msra.mxu0 0
        %4834 = vmatprep.subr.bf16.mxu0 0
        %4835 = vmatpush2.bf16.xpose.msra.mxu0 0
        %4836 = vmatprep.mubr.bf16.mxu0 %v1453
        %4837 = vmatmul.mubr.bf16.gmra.mxu0 %v1452
        %v4838 = vpop.f32.mrf.mxu0
        %v4839 = vadd.f32 %v4799, %v4838
        %v4840 = vpop.f32.mrf.mxu0
        %v4841 = vpop.f32.mrf.mxu0
        %v4842 = vpop.f32.mrf.mxu0
        %4843 = vdwg.mxu0
        %4844 = vmatprep.subr.bf16.mxu0 0
        %4845 = vmatpush1.bf16.xpose.msra.mxu0 0
        %4846 = vmatprep.subr.bf16.mxu0 0
        %4847 = vmatpush1.bf16.xpose.msra.mxu0 0
        %4848 = vmatprep.subr.bf16.mxu0 0
        %4849 = vmatpush1.bf16.xpose.msra.mxu0 0
        %4850 = vmatprep.subr.bf16.mxu0 0
        %4851 = vmatpush1.bf16.xpose.msra.mxu0 0
        %4852 = vmatprep.subr.bf16.mxu0 0
        %4853 = vmatpush1.bf16.xpose.msra.mxu0 0
        %4854 = vmatprep.subr.bf16.mxu0 0
        %4855 = vmatpush1.bf16.xpose.msra.mxu0 0
        %4856 = vmatprep.subr.bf16.mxu0 0
        %4857 = vmatpush1.bf16.xpose.msra.mxu0 0
        %4858 = vmatprep.subr.bf16.mxu0 %v3415
        %4859 = vmatpush1.bf16.xpose.msra.mxu0 %v3414
        %4860 = vmatprep.subr.bf16.mxu0 0
        %4861 = vmatpush2.bf16.xpose.msra.mxu0 0
        %4862 = vmatprep.subr.bf16.mxu0 0
        %4863 = vmatpush2.bf16.xpose.msra.mxu0 0
        %4864 = vmatprep.subr.bf16.mxu0 0
        %4865 = vmatpush2.bf16.xpose.msra.mxu0 0
        %4866 = vmatprep.subr.bf16.mxu0 0
        %4867 = vmatpush2.bf16.xpose.msra.mxu0 0
        %4868 = vmatprep.subr.bf16.mxu0 0
        %4869 = vmatpush2.bf16.xpose.msra.mxu0 0
        %4870 = vmatprep.subr.bf16.mxu0 0
        %4871 = vmatpush2.bf16.xpose.msra.mxu0 0
        %4872 = vmatprep.subr.bf16.mxu0 0
        %4873 = vmatpush2.bf16.xpose.msra.mxu0 0
        %4874 = vmatprep.subr.bf16.mxu0 0
        %4875 = vmatpush2.bf16.xpose.msra.mxu0 0
        %4876 = vmatprep.mubr.bf16.mxu0 %v1455
        %4877 = vmatmul.mubr.bf16.gmra.mxu0 %v1454
        %v4878 = vpop.f32.mrf.mxu0
        %v4879 = vadd.f32 %v4839, %v4878
        %v4880 = vpop.f32.mrf.mxu0
        %v4881 = vpop.f32.mrf.mxu0
        %v4882 = vpop.f32.mrf.mxu0
        %4883 = vdwg.mxu0
        %4884 = vmatprep.subr.bf16.mxu0 0
        %4885 = vmatpush1.bf16.xpose.msra.mxu0 0
        %4886 = vmatprep.subr.bf16.mxu0 0
        %4887 = vmatpush1.bf16.xpose.msra.mxu0 0
        %4888 = vmatprep.subr.bf16.mxu0 0
        %4889 = vmatpush1.bf16.xpose.msra.mxu0 0
        %4890 = vmatprep.subr.bf16.mxu0 0
        %4891 = vmatpush1.bf16.xpose.msra.mxu0 0
        %4892 = vmatprep.subr.bf16.mxu0 0
        %4893 = vmatpush1.bf16.xpose.msra.mxu0 0
        %4894 = vmatprep.subr.bf16.mxu0 0
        %4895 = vmatpush1.bf16.xpose.msra.mxu0 0
        %4896 = vmatprep.subr.bf16.mxu0 0
        %4897 = vmatpush1.bf16.xpose.msra.mxu0 0
        %4898 = vmatprep.subr.bf16.mxu0 %v3417
        %4899 = vmatpush1.bf16.xpose.msra.mxu0 %v3416
        %4900 = vmatprep.subr.bf16.mxu0 0
        %4901 = vmatpush2.bf16.xpose.msra.mxu0 0
        %4902 = vmatprep.subr.bf16.mxu0 0
        %4903 = vmatpush2.bf16.xpose.msra.mxu0 0
        %4904 = vmatprep.subr.bf16.mxu0 0
        %4905 = vmatpush2.bf16.xpose.msra.mxu0 0
        %4906 = vmatprep.subr.bf16.mxu0 0
        %4907 = vmatpush2.bf16.xpose.msra.mxu0 0
        %4908 = vmatprep.subr.bf16.mxu0 0
        %4909 = vmatpush2.bf16.xpose.msra.mxu0 0
        %4910 = vmatprep.subr.bf16.mxu0 0
        %4911 = vmatpush2.bf16.xpose.msra.mxu0 0
        %4912 = vmatprep.subr.bf16.mxu0 0
        %4913 = vmatpush2.bf16.xpose.msra.mxu0 0
        %4914 = vmatprep.subr.bf16.mxu0 0
        %4915 = vmatpush2.bf16.xpose.msra.mxu0 0
        %4916 = vmatprep.mubr.bf16.mxu0 %v1457
        %4917 = vmatmul.mubr.bf16.gmra.mxu0 %v1456
        %v4918 = vpop.f32.mrf.mxu0
        %v4919 = vadd.f32 %v4879, %v4918
        %v4920 = vpop.f32.mrf.mxu0
        %v4921 = vpop.f32.mrf.mxu0
        %v4922 = vpop.f32.mrf.mxu0
        %4923 = vdwg.mxu0
        %4924 = vmatprep.subr.bf16.mxu0 0
        %4925 = vmatpush1.bf16.xpose.msra.mxu0 0
        %4926 = vmatprep.subr.bf16.mxu0 0
        %4927 = vmatpush1.bf16.xpose.msra.mxu0 0
        %4928 = vmatprep.subr.bf16.mxu0 0
        %4929 = vmatpush1.bf16.xpose.msra.mxu0 0
        %4930 = vmatprep.subr.bf16.mxu0 0
        %4931 = vmatpush1.bf16.xpose.msra.mxu0 0
        %4932 = vmatprep.subr.bf16.mxu0 0
        %4933 = vmatpush1.bf16.xpose.msra.mxu0 0
        %4934 = vmatprep.subr.bf16.mxu0 0
        %4935 = vmatpush1.bf16.xpose.msra.mxu0 0
        %4936 = vmatprep.subr.bf16.mxu0 0
        %4937 = vmatpush1.bf16.xpose.msra.mxu0 0
        %4938 = vmatprep.subr.bf16.mxu0 %v3419
        %4939 = vmatpush1.bf16.xpose.msra.mxu0 %v3418
        %4940 = vmatprep.subr.bf16.mxu0 0
        %4941 = vmatpush2.bf16.xpose.msra.mxu0 0
        %4942 = vmatprep.subr.bf16.mxu0 0
        %4943 = vmatpush2.bf16.xpose.msra.mxu0 0
        %4944 = vmatprep.subr.bf16.mxu0 0
        %4945 = vmatpush2.bf16.xpose.msra.mxu0 0
        %4946 = vmatprep.subr.bf16.mxu0 0
        %4947 = vmatpush2.bf16.xpose.msra.mxu0 0
        %4948 = vmatprep.subr.bf16.mxu0 0
        %4949 = vmatpush2.bf16.xpose.msra.mxu0 0
        %4950 = vmatprep.subr.bf16.mxu0 0
        %4951 = vmatpush2.bf16.xpose.msra.mxu0 0
        %4952 = vmatprep.subr.bf16.mxu0 0
        %4953 = vmatpush2.bf16.xpose.msra.mxu0 0
        %4954 = vmatprep.subr.bf16.mxu0 0
        %4955 = vmatpush2.bf16.xpose.msra.mxu0 0
        %4956 = vmatprep.mubr.bf16.mxu0 %v1459
        %4957 = vmatmul.mubr.bf16.gmra.mxu0 %v1458
        %v4958 = vpop.f32.mrf.mxu0
        %v4959 = vadd.f32 %v4919, %v4958
        %v4960 = vpop.f32.mrf.mxu0
        %v4961 = vpop.f32.mrf.mxu0
        %v4962 = vpop.f32.mrf.mxu0
        %4963 = vdwg.mxu0
        %4964 = vmatprep.subr.bf16.mxu0 0
        %4965 = vmatpush1.bf16.xpose.msra.mxu0 0
        %4966 = vmatprep.subr.bf16.mxu0 0
        %4967 = vmatpush1.bf16.xpose.msra.mxu0 0
        %4968 = vmatprep.subr.bf16.mxu0 0
        %4969 = vmatpush1.bf16.xpose.msra.mxu0 0
        %4970 = vmatprep.subr.bf16.mxu0 0
        %4971 = vmatpush1.bf16.xpose.msra.mxu0 0
        %4972 = vmatprep.subr.bf16.mxu0 0
        %4973 = vmatpush1.bf16.xpose.msra.mxu0 0
        %4974 = vmatprep.subr.bf16.mxu0 0
        %4975 = vmatpush1.bf16.xpose.msra.mxu0 0
        %4976 = vmatprep.subr.bf16.mxu0 0
        %4977 = vmatpush1.bf16.xpose.msra.mxu0 0
        %4978 = vmatprep.subr.bf16.mxu0 %v3421
        %4979 = vmatpush1.bf16.xpose.msra.mxu0 %v3420
        %4980 = vmatprep.subr.bf16.mxu0 0
        %4981 = vmatpush2.bf16.xpose.msra.mxu0 0
        %4982 = vmatprep.subr.bf16.mxu0 0
        %4983 = vmatpush2.bf16.xpose.msra.mxu0 0
        %4984 = vmatprep.subr.bf16.mxu0 0
        %4985 = vmatpush2.bf16.xpose.msra.mxu0 0
        %4986 = vmatprep.subr.bf16.mxu0 0
        %4987 = vmatpush2.bf16.xpose.msra.mxu0 0
        %4988 = vmatprep.subr.bf16.mxu0 0
        %4989 = vmatpush2.bf16.xpose.msra.mxu0 0
        %4990 = vmatprep.subr.bf16.mxu0 0
        %4991 = vmatpush2.bf16.xpose.msra.mxu0 0
        %4992 = vmatprep.subr.bf16.mxu0 0
        %4993 = vmatpush2.bf16.xpose.msra.mxu0 0
        %4994 = vmatprep.subr.bf16.mxu0 0
        %4995 = vmatpush2.bf16.xpose.msra.mxu0 0
        %4996 = vmatprep.mubr.bf16.mxu0 %v1461
        %4997 = vmatmul.mubr.bf16.gmra.mxu0 %v1460
        %v4998 = vpop.f32.mrf.mxu0
        %v4999 = vadd.f32 %v4959, %v4998
        %v5000 = vpop.f32.mrf.mxu0
        %v5001 = vpop.f32.mrf.mxu0
        %v5002 = vpop.f32.mrf.mxu0
        %5003 = vdwg.mxu0
        %5004 = vmatprep.subr.bf16.mxu0 0
        %5005 = vmatpush1.bf16.xpose.msra.mxu0 0
        %5006 = vmatprep.subr.bf16.mxu0 0
        %5007 = vmatpush1.bf16.xpose.msra.mxu0 0
        %5008 = vmatprep.subr.bf16.mxu0 0
        %5009 = vmatpush1.bf16.xpose.msra.mxu0 0
        %5010 = vmatprep.subr.bf16.mxu0 0
        %5011 = vmatpush1.bf16.xpose.msra.mxu0 0
        %5012 = vmatprep.subr.bf16.mxu0 0
        %5013 = vmatpush1.bf16.xpose.msra.mxu0 0
        %5014 = vmatprep.subr.bf16.mxu0 0
        %5015 = vmatpush1.bf16.xpose.msra.mxu0 0
        %5016 = vmatprep.subr.bf16.mxu0 0
        %5017 = vmatpush1.bf16.xpose.msra.mxu0 0
        %5018 = vmatprep.subr.bf16.mxu0 %v3423
        %5019 = vmatpush1.bf16.xpose.msra.mxu0 %v3422
        %5020 = vmatprep.subr.bf16.mxu0 0
        %5021 = vmatpush2.bf16.xpose.msra.mxu0 0
        %5022 = vmatprep.subr.bf16.mxu0 0
        %5023 = vmatpush2.bf16.xpose.msra.mxu0 0
        %5024 = vmatprep.subr.bf16.mxu0 0
        %5025 = vmatpush2.bf16.xpose.msra.mxu0 0
        %5026 = vmatprep.subr.bf16.mxu0 0
        %5027 = vmatpush2.bf16.xpose.msra.mxu0 0
        %5028 = vmatprep.subr.bf16.mxu0 0
        %5029 = vmatpush2.bf16.xpose.msra.mxu0 0
        %5030 = vmatprep.subr.bf16.mxu0 0
        %5031 = vmatpush2.bf16.xpose.msra.mxu0 0
        %5032 = vmatprep.subr.bf16.mxu0 0
        %5033 = vmatpush2.bf16.xpose.msra.mxu0 0
        %5034 = vmatprep.subr.bf16.mxu0 0
        %5035 = vmatpush2.bf16.xpose.msra.mxu0 0
        %5036 = vmatprep.mubr.bf16.mxu0 %v1463
        %5037 = vmatmul.mubr.bf16.gmra.mxu0 %v1462
        %v5038 = vpop.f32.mrf.mxu0
        %v5039 = vadd.f32 %v4999, %v5038
        %v5040 = vpop.f32.mrf.mxu0
        %v5041 = vpop.f32.mrf.mxu0
        %v5042 = vpop.f32.mrf.mxu0
        %5043 = vdwg.mxu0
        %5044 = vmatprep.subr.bf16.mxu0 0
        %5045 = vmatpush1.bf16.xpose.msra.mxu0 0
        %5046 = vmatprep.subr.bf16.mxu0 0
        %5047 = vmatpush1.bf16.xpose.msra.mxu0 0
        %5048 = vmatprep.subr.bf16.mxu0 0
        %5049 = vmatpush1.bf16.xpose.msra.mxu0 0
        %5050 = vmatprep.subr.bf16.mxu0 0
        %5051 = vmatpush1.bf16.xpose.msra.mxu0 0
        %5052 = vmatprep.subr.bf16.mxu0 0
        %5053 = vmatpush1.bf16.xpose.msra.mxu0 0
        %5054 = vmatprep.subr.bf16.mxu0 0
        %5055 = vmatpush1.bf16.xpose.msra.mxu0 0
        %5056 = vmatprep.subr.bf16.mxu0 0
        %5057 = vmatpush1.bf16.xpose.msra.mxu0 0
        %5058 = vmatprep.subr.bf16.mxu0 %v3425
        %5059 = vmatpush1.bf16.xpose.msra.mxu0 %v3424
        %5060 = vmatprep.subr.bf16.mxu0 0
        %5061 = vmatpush2.bf16.xpose.msra.mxu0 0
        %5062 = vmatprep.subr.bf16.mxu0 0
        %5063 = vmatpush2.bf16.xpose.msra.mxu0 0
        %5064 = vmatprep.subr.bf16.mxu0 0
        %5065 = vmatpush2.bf16.xpose.msra.mxu0 0
        %5066 = vmatprep.subr.bf16.mxu0 0
        %5067 = vmatpush2.bf16.xpose.msra.mxu0 0
        %5068 = vmatprep.subr.bf16.mxu0 0
        %5069 = vmatpush2.bf16.xpose.msra.mxu0 0
        %5070 = vmatprep.subr.bf16.mxu0 0
        %5071 = vmatpush2.bf16.xpose.msra.mxu0 0
        %5072 = vmatprep.subr.bf16.mxu0 0
        %5073 = vmatpush2.bf16.xpose.msra.mxu0 0
        %5074 = vmatprep.subr.bf16.mxu0 0
        %5075 = vmatpush2.bf16.xpose.msra.mxu0 0
        %5076 = vmatprep.mubr.bf16.mxu0 %v1465
        %5077 = vmatmul.mubr.bf16.gmra.mxu0 %v1464
        %v5078 = vpop.f32.mrf.mxu0
        %v5079 = vadd.f32 %v5039, %v5078
        %v5080 = vpop.f32.mrf.mxu0
        %v5081 = vpop.f32.mrf.mxu0
        %v5082 = vpop.f32.mrf.mxu0
        %5083 = vdwg.mxu0
        %5084 = vmatprep.subr.bf16.mxu0 0
        %5085 = vmatpush1.bf16.xpose.msra.mxu0 0
        %5086 = vmatprep.subr.bf16.mxu0 0
        %5087 = vmatpush1.bf16.xpose.msra.mxu0 0
        %5088 = vmatprep.subr.bf16.mxu0 0
        %5089 = vmatpush1.bf16.xpose.msra.mxu0 0
        %5090 = vmatprep.subr.bf16.mxu0 0
        %5091 = vmatpush1.bf16.xpose.msra.mxu0 0
        %5092 = vmatprep.subr.bf16.mxu0 0
        %5093 = vmatpush1.bf16.xpose.msra.mxu0 0
        %5094 = vmatprep.subr.bf16.mxu0 0
        %5095 = vmatpush1.bf16.xpose.msra.mxu0 0
        %5096 = vmatprep.subr.bf16.mxu0 0
        %5097 = vmatpush1.bf16.xpose.msra.mxu0 0
        %5098 = vmatprep.subr.bf16.mxu0 %v3427
        %5099 = vmatpush1.bf16.xpose.msra.mxu0 %v3426
        %5100 = vmatprep.subr.bf16.mxu0 0
        %5101 = vmatpush2.bf16.xpose.msra.mxu0 0
        %5102 = vmatprep.subr.bf16.mxu0 0
        %5103 = vmatpush2.bf16.xpose.msra.mxu0 0
        %5104 = vmatprep.subr.bf16.mxu0 0
        %5105 = vmatpush2.bf16.xpose.msra.mxu0 0
        %5106 = vmatprep.subr.bf16.mxu0 0
        %5107 = vmatpush2.bf16.xpose.msra.mxu0 0
        %5108 = vmatprep.subr.bf16.mxu0 0
        %5109 = vmatpush2.bf16.xpose.msra.mxu0 0
        %5110 = vmatprep.subr.bf16.mxu0 0
        %5111 = vmatpush2.bf16.xpose.msra.mxu0 0
        %5112 = vmatprep.subr.bf16.mxu0 0
        %5113 = vmatpush2.bf16.xpose.msra.mxu0 0
        %5114 = vmatprep.subr.bf16.mxu0 0
        %5115 = vmatpush2.bf16.xpose.msra.mxu0 0
        %5116 = vmatprep.mubr.bf16.mxu0 %v1467
        %5117 = vmatmul.mubr.bf16.gmra.mxu0 %v1466
        %v5118 = vpop.f32.mrf.mxu0
        %v5119 = vadd.f32 %v5079, %v5118
        %v5120 = vpop.f32.mrf.mxu0
        %v5121 = vpop.f32.mrf.mxu0
        %v5122 = vpop.f32.mrf.mxu0
        %5123 = vdwg.mxu0
        %5124 = vmatprep.subr.bf16.mxu0 0
        %5125 = vmatpush1.bf16.xpose.msra.mxu0 0
        %5126 = vmatprep.subr.bf16.mxu0 0
        %5127 = vmatpush1.bf16.xpose.msra.mxu0 0
        %5128 = vmatprep.subr.bf16.mxu0 0
        %5129 = vmatpush1.bf16.xpose.msra.mxu0 0
        %5130 = vmatprep.subr.bf16.mxu0 0
        %5131 = vmatpush1.bf16.xpose.msra.mxu0 0
        %5132 = vmatprep.subr.bf16.mxu0 0
        %5133 = vmatpush1.bf16.xpose.msra.mxu0 0
        %5134 = vmatprep.subr.bf16.mxu0 0
        %5135 = vmatpush1.bf16.xpose.msra.mxu0 0
        %5136 = vmatprep.subr.bf16.mxu0 0
        %5137 = vmatpush1.bf16.xpose.msra.mxu0 0
        %5138 = vmatprep.subr.bf16.mxu0 %v3429
        %5139 = vmatpush1.bf16.xpose.msra.mxu0 %v3428
        %5140 = vmatprep.subr.bf16.mxu0 0
        %5141 = vmatpush2.bf16.xpose.msra.mxu0 0
        %5142 = vmatprep.subr.bf16.mxu0 0
        %5143 = vmatpush2.bf16.xpose.msra.mxu0 0
        %5144 = vmatprep.subr.bf16.mxu0 0
        %5145 = vmatpush2.bf16.xpose.msra.mxu0 0
        %5146 = vmatprep.subr.bf16.mxu0 0
        %5147 = vmatpush2.bf16.xpose.msra.mxu0 0
        %5148 = vmatprep.subr.bf16.mxu0 0
        %5149 = vmatpush2.bf16.xpose.msra.mxu0 0
        %5150 = vmatprep.subr.bf16.mxu0 0
        %5151 = vmatpush2.bf16.xpose.msra.mxu0 0
        %5152 = vmatprep.subr.bf16.mxu0 0
        %5153 = vmatpush2.bf16.xpose.msra.mxu0 0
        %5154 = vmatprep.subr.bf16.mxu0 0
        %5155 = vmatpush2.bf16.xpose.msra.mxu0 0
        %5156 = vmatprep.mubr.bf16.mxu0 %v1469
        %5157 = vmatmul.mubr.bf16.gmra.mxu0 %v1468
        %v5158 = vpop.f32.mrf.mxu0
        %v5159 = vadd.f32 %v5119, %v5158
        %v5160 = vpop.f32.mrf.mxu0
        %v5161 = vpop.f32.mrf.mxu0
        %v5162 = vpop.f32.mrf.mxu0
        %5163 = vdwg.mxu0
        %5164 = vmatprep.subr.bf16.mxu0 0
        %5165 = vmatpush1.bf16.xpose.msra.mxu0 0
        %5166 = vmatprep.subr.bf16.mxu0 0
        %5167 = vmatpush1.bf16.xpose.msra.mxu0 0
        %5168 = vmatprep.subr.bf16.mxu0 0
        %5169 = vmatpush1.bf16.xpose.msra.mxu0 0
        %5170 = vmatprep.subr.bf16.mxu0 0
        %5171 = vmatpush1.bf16.xpose.msra.mxu0 0
        %5172 = vmatprep.subr.bf16.mxu0 0
        %5173 = vmatpush1.bf16.xpose.msra.mxu0 0
        %5174 = vmatprep.subr.bf16.mxu0 0
        %5175 = vmatpush1.bf16.xpose.msra.mxu0 0
        %5176 = vmatprep.subr.bf16.mxu0 0
        %5177 = vmatpush1.bf16.xpose.msra.mxu0 0
        %5178 = vmatprep.subr.bf16.mxu0 %v3431
        %5179 = vmatpush1.bf16.xpose.msra.mxu0 %v3430
        %5180 = vmatprep.subr.bf16.mxu0 0
        %5181 = vmatpush2.bf16.xpose.msra.mxu0 0
        %5182 = vmatprep.subr.bf16.mxu0 0
        %5183 = vmatpush2.bf16.xpose.msra.mxu0 0
        %5184 = vmatprep.subr.bf16.mxu0 0
        %5185 = vmatpush2.bf16.xpose.msra.mxu0 0
        %5186 = vmatprep.subr.bf16.mxu0 0
        %5187 = vmatpush2.bf16.xpose.msra.mxu0 0
        %5188 = vmatprep.subr.bf16.mxu0 0
        %5189 = vmatpush2.bf16.xpose.msra.mxu0 0
        %5190 = vmatprep.subr.bf16.mxu0 0
        %5191 = vmatpush2.bf16.xpose.msra.mxu0 0
        %5192 = vmatprep.subr.bf16.mxu0 0
        %5193 = vmatpush2.bf16.xpose.msra.mxu0 0
        %5194 = vmatprep.subr.bf16.mxu0 0
        %5195 = vmatpush2.bf16.xpose.msra.mxu0 0
        %5196 = vmatprep.mubr.bf16.mxu0 %v1471
        %5197 = vmatmul.mubr.bf16.gmra.mxu0 %v1470
        %v5198 = vpop.f32.mrf.mxu0
        %v5199 = vadd.f32 %v5159, %v5198
        %v5200 = vpop.f32.mrf.mxu0
        %v5201 = vpop.f32.mrf.mxu0
        %v5202 = vpop.f32.mrf.mxu0
        %5203 = vdwg.mxu0
        %5204 = vmatprep.subr.bf16.mxu0 0
        %5205 = vmatpush1.bf16.xpose.msra.mxu0 0
        %5206 = vmatprep.subr.bf16.mxu0 0
        %5207 = vmatpush1.bf16.xpose.msra.mxu0 0
        %5208 = vmatprep.subr.bf16.mxu0 0
        %5209 = vmatpush1.bf16.xpose.msra.mxu0 0
        %5210 = vmatprep.subr.bf16.mxu0 0
        %5211 = vmatpush1.bf16.xpose.msra.mxu0 0
        %5212 = vmatprep.subr.bf16.mxu0 0
        %5213 = vmatpush1.bf16.xpose.msra.mxu0 0
        %5214 = vmatprep.subr.bf16.mxu0 0
        %5215 = vmatpush1.bf16.xpose.msra.mxu0 0
        %5216 = vmatprep.subr.bf16.mxu0 0
        %5217 = vmatpush1.bf16.xpose.msra.mxu0 0
        %5218 = vmatprep.subr.bf16.mxu0 %v3433
        %5219 = vmatpush1.bf16.xpose.msra.mxu0 %v3432
        %5220 = vmatprep.subr.bf16.mxu0 0
        %5221 = vmatpush2.bf16.xpose.msra.mxu0 0
        %5222 = vmatprep.subr.bf16.mxu0 0
        %5223 = vmatpush2.bf16.xpose.msra.mxu0 0
        %5224 = vmatprep.subr.bf16.mxu0 0
        %5225 = vmatpush2.bf16.xpose.msra.mxu0 0
        %5226 = vmatprep.subr.bf16.mxu0 0
        %5227 = vmatpush2.bf16.xpose.msra.mxu0 0
        %5228 = vmatprep.subr.bf16.mxu0 0
        %5229 = vmatpush2.bf16.xpose.msra.mxu0 0
        %5230 = vmatprep.subr.bf16.mxu0 0
        %5231 = vmatpush2.bf16.xpose.msra.mxu0 0
        %5232 = vmatprep.subr.bf16.mxu0 0
        %5233 = vmatpush2.bf16.xpose.msra.mxu0 0
        %5234 = vmatprep.subr.bf16.mxu0 0
        %5235 = vmatpush2.bf16.xpose.msra.mxu0 0
        %5236 = vmatprep.mubr.bf16.mxu0 %v1473
        %5237 = vmatmul.mubr.bf16.gmra.mxu0 %v1472
        %v5238 = vpop.f32.mrf.mxu0
        %v5239 = vadd.f32 %v5199, %v5238
        %v5240 = vpop.f32.mrf.mxu0
        %v5241 = vpop.f32.mrf.mxu0
        %v5242 = vpop.f32.mrf.mxu0
        %5243 = vdwg.mxu0
        %5244 = vmatprep.subr.bf16.mxu0 0
        %5245 = vmatpush1.bf16.xpose.msra.mxu0 0
        %5246 = vmatprep.subr.bf16.mxu0 0
        %5247 = vmatpush1.bf16.xpose.msra.mxu0 0
        %5248 = vmatprep.subr.bf16.mxu0 0
        %5249 = vmatpush1.bf16.xpose.msra.mxu0 0
        %5250 = vmatprep.subr.bf16.mxu0 0
        %5251 = vmatpush1.bf16.xpose.msra.mxu0 0
        %5252 = vmatprep.subr.bf16.mxu0 0
        %5253 = vmatpush1.bf16.xpose.msra.mxu0 0
        %5254 = vmatprep.subr.bf16.mxu0 0
        %5255 = vmatpush1.bf16.xpose.msra.mxu0 0
        %5256 = vmatprep.subr.bf16.mxu0 0
        %5257 = vmatpush1.bf16.xpose.msra.mxu0 0
        %5258 = vmatprep.subr.bf16.mxu0 %v3435
        %5259 = vmatpush1.bf16.xpose.msra.mxu0 %v3434
        %5260 = vmatprep.subr.bf16.mxu0 0
        %5261 = vmatpush2.bf16.xpose.msra.mxu0 0
        %5262 = vmatprep.subr.bf16.mxu0 0
        %5263 = vmatpush2.bf16.xpose.msra.mxu0 0
        %5264 = vmatprep.subr.bf16.mxu0 0
        %5265 = vmatpush2.bf16.xpose.msra.mxu0 0
        %5266 = vmatprep.subr.bf16.mxu0 0
        %5267 = vmatpush2.bf16.xpose.msra.mxu0 0
        %5268 = vmatprep.subr.bf16.mxu0 0
        %5269 = vmatpush2.bf16.xpose.msra.mxu0 0
        %5270 = vmatprep.subr.bf16.mxu0 0
        %5271 = vmatpush2.bf16.xpose.msra.mxu0 0
        %5272 = vmatprep.subr.bf16.mxu0 0
        %5273 = vmatpush2.bf16.xpose.msra.mxu0 0
        %5274 = vmatprep.subr.bf16.mxu0 0
        %5275 = vmatpush2.bf16.xpose.msra.mxu0 0
        %5276 = vmatprep.mubr.bf16.mxu0 %v1475
        %5277 = vmatmul.mubr.bf16.gmra.mxu0 %v1474
        %v5278 = vpop.f32.mrf.mxu0
        %v5279 = vadd.f32 %v5239, %v5278
        %v5280 = vpop.f32.mrf.mxu0
        %v5281 = vpop.f32.mrf.mxu0
        %v5282 = vpop.f32.mrf.mxu0
        %5283 = vdwg.mxu0
        %5284 = vmatprep.subr.bf16.mxu0 0
        %5285 = vmatpush1.bf16.xpose.msra.mxu0 0
        %5286 = vmatprep.subr.bf16.mxu0 0
        %5287 = vmatpush1.bf16.xpose.msra.mxu0 0
        %5288 = vmatprep.subr.bf16.mxu0 0
        %5289 = vmatpush1.bf16.xpose.msra.mxu0 0
        %5290 = vmatprep.subr.bf16.mxu0 0
        %5291 = vmatpush1.bf16.xpose.msra.mxu0 0
        %5292 = vmatprep.subr.bf16.mxu0 0
        %5293 = vmatpush1.bf16.xpose.msra.mxu0 0
        %5294 = vmatprep.subr.bf16.mxu0 0
        %5295 = vmatpush1.bf16.xpose.msra.mxu0 0
        %5296 = vmatprep.subr.bf16.mxu0 0
        %5297 = vmatpush1.bf16.xpose.msra.mxu0 0
        %5298 = vmatprep.subr.bf16.mxu0 %v3437
        %5299 = vmatpush1.bf16.xpose.msra.mxu0 %v3436
        %5300 = vmatprep.subr.bf16.mxu0 0
        %5301 = vmatpush2.bf16.xpose.msra.mxu0 0
        %5302 = vmatprep.subr.bf16.mxu0 0
        %5303 = vmatpush2.bf16.xpose.msra.mxu0 0
        %5304 = vmatprep.subr.bf16.mxu0 0
        %5305 = vmatpush2.bf16.xpose.msra.mxu0 0
        %5306 = vmatprep.subr.bf16.mxu0 0
        %5307 = vmatpush2.bf16.xpose.msra.mxu0 0
        %5308 = vmatprep.subr.bf16.mxu0 0
        %5309 = vmatpush2.bf16.xpose.msra.mxu0 0
        %5310 = vmatprep.subr.bf16.mxu0 0
        %5311 = vmatpush2.bf16.xpose.msra.mxu0 0
        %5312 = vmatprep.subr.bf16.mxu0 0
        %5313 = vmatpush2.bf16.xpose.msra.mxu0 0
        %5314 = vmatprep.subr.bf16.mxu0 0
        %5315 = vmatpush2.bf16.xpose.msra.mxu0 0
        %5316 = vmatprep.mubr.bf16.mxu0 %v1477
        %5317 = vmatmul.mubr.bf16.gmra.mxu0 %v1476
        %v5318 = vpop.f32.mrf.mxu0
        %v5319 = vadd.f32 %v5279, %v5318
        %v5320 = vpop.f32.mrf.mxu0
        %v5321 = vpop.f32.mrf.mxu0
        %v5322 = vpop.f32.mrf.mxu0
        %5323 = vdwg.mxu0
        %5324 = vmatprep.subr.bf16.mxu0 0
        %5325 = vmatpush1.bf16.xpose.msra.mxu0 0
        %5326 = vmatprep.subr.bf16.mxu0 0
        %5327 = vmatpush1.bf16.xpose.msra.mxu0 0
        %5328 = vmatprep.subr.bf16.mxu0 0
        %5329 = vmatpush1.bf16.xpose.msra.mxu0 0
        %5330 = vmatprep.subr.bf16.mxu0 0
        %5331 = vmatpush1.bf16.xpose.msra.mxu0 0
        %5332 = vmatprep.subr.bf16.mxu0 0
        %5333 = vmatpush1.bf16.xpose.msra.mxu0 0
        %5334 = vmatprep.subr.bf16.mxu0 0
        %5335 = vmatpush1.bf16.xpose.msra.mxu0 0
        %5336 = vmatprep.subr.bf16.mxu0 0
        %5337 = vmatpush1.bf16.xpose.msra.mxu0 0
        %5338 = vmatprep.subr.bf16.mxu0 %v3439
        %5339 = vmatpush1.bf16.xpose.msra.mxu0 %v3438
        %5340 = vmatprep.subr.bf16.mxu0 0
        %5341 = vmatpush2.bf16.xpose.msra.mxu0 0
        %5342 = vmatprep.subr.bf16.mxu0 0
        %5343 = vmatpush2.bf16.xpose.msra.mxu0 0
        %5344 = vmatprep.subr.bf16.mxu0 0
        %5345 = vmatpush2.bf16.xpose.msra.mxu0 0
        %5346 = vmatprep.subr.bf16.mxu0 0
        %5347 = vmatpush2.bf16.xpose.msra.mxu0 0
        %5348 = vmatprep.subr.bf16.mxu0 0
        %5349 = vmatpush2.bf16.xpose.msra.mxu0 0
        %5350 = vmatprep.subr.bf16.mxu0 0
        %5351 = vmatpush2.bf16.xpose.msra.mxu0 0
        %5352 = vmatprep.subr.bf16.mxu0 0
        %5353 = vmatpush2.bf16.xpose.msra.mxu0 0
        %5354 = vmatprep.subr.bf16.mxu0 0
        %5355 = vmatpush2.bf16.xpose.msra.mxu0 0
        %5356 = vmatprep.mubr.bf16.mxu0 %v1479
        %5357 = vmatmul.mubr.bf16.gmra.mxu0 %v1478
        %v5358 = vpop.f32.mrf.mxu0
        %v5359 = vadd.f32 %v5319, %v5358
        %v5360 = vpop.f32.mrf.mxu0
        %v5361 = vpop.f32.mrf.mxu0
        %v5362 = vpop.f32.mrf.mxu0
        %5363 = vdwg.mxu0
        %5364 = vmatprep.subr.bf16.mxu0 0
        %5365 = vmatpush1.bf16.xpose.msra.mxu0 0
        %5366 = vmatprep.subr.bf16.mxu0 0
        %5367 = vmatpush1.bf16.xpose.msra.mxu0 0
        %5368 = vmatprep.subr.bf16.mxu0 0
        %5369 = vmatpush1.bf16.xpose.msra.mxu0 0
        %5370 = vmatprep.subr.bf16.mxu0 0
        %5371 = vmatpush1.bf16.xpose.msra.mxu0 0
        %5372 = vmatprep.subr.bf16.mxu0 0
        %5373 = vmatpush1.bf16.xpose.msra.mxu0 0
        %5374 = vmatprep.subr.bf16.mxu0 0
        %5375 = vmatpush1.bf16.xpose.msra.mxu0 0
        %5376 = vmatprep.subr.bf16.mxu0 0
        %5377 = vmatpush1.bf16.xpose.msra.mxu0 0
        %5378 = vmatprep.subr.bf16.mxu0 %v3441
        %5379 = vmatpush1.bf16.xpose.msra.mxu0 %v3440
        %5380 = vmatprep.subr.bf16.mxu0 0
        %5381 = vmatpush2.bf16.xpose.msra.mxu0 0
        %5382 = vmatprep.subr.bf16.mxu0 0
        %5383 = vmatpush2.bf16.xpose.msra.mxu0 0
        %5384 = vmatprep.subr.bf16.mxu0 0
        %5385 = vmatpush2.bf16.xpose.msra.mxu0 0
        %5386 = vmatprep.subr.bf16.mxu0 0
        %5387 = vmatpush2.bf16.xpose.msra.mxu0 0
        %5388 = vmatprep.subr.bf16.mxu0 0
        %5389 = vmatpush2.bf16.xpose.msra.mxu0 0
        %5390 = vmatprep.subr.bf16.mxu0 0
        %5391 = vmatpush2.bf16.xpose.msra.mxu0 0
        %5392 = vmatprep.subr.bf16.mxu0 0
        %5393 = vmatpush2.bf16.xpose.msra.mxu0 0
        %5394 = vmatprep.subr.bf16.mxu0 0
        %5395 = vmatpush2.bf16.xpose.msra.mxu0 0
        %5396 = vmatprep.mubr.bf16.mxu0 %v1481
        %5397 = vmatmul.mubr.bf16.gmra.mxu0 %v1480
        %v5398 = vpop.f32.mrf.mxu0
        %v5399 = vadd.f32 %v5359, %v5398
        %v5400 = vpop.f32.mrf.mxu0
        %v5401 = vpop.f32.mrf.mxu0
        %v5402 = vpop.f32.mrf.mxu0
        %5403 = vdwg.mxu0
        %5404 = vmatprep.subr.bf16.mxu0 0
        %5405 = vmatpush1.bf16.xpose.msra.mxu0 0
        %5406 = vmatprep.subr.bf16.mxu0 0
        %5407 = vmatpush1.bf16.xpose.msra.mxu0 0
        %5408 = vmatprep.subr.bf16.mxu0 0
        %5409 = vmatpush1.bf16.xpose.msra.mxu0 0
        %5410 = vmatprep.subr.bf16.mxu0 0
        %5411 = vmatpush1.bf16.xpose.msra.mxu0 0
        %5412 = vmatprep.subr.bf16.mxu0 0
        %5413 = vmatpush1.bf16.xpose.msra.mxu0 0
        %5414 = vmatprep.subr.bf16.mxu0 0
        %5415 = vmatpush1.bf16.xpose.msra.mxu0 0
        %5416 = vmatprep.subr.bf16.mxu0 0
        %5417 = vmatpush1.bf16.xpose.msra.mxu0 0
        %5418 = vmatprep.subr.bf16.mxu0 %v3443
        %5419 = vmatpush1.bf16.xpose.msra.mxu0 %v3442
        %5420 = vmatprep.subr.bf16.mxu0 0
        %5421 = vmatpush2.bf16.xpose.msra.mxu0 0
        %5422 = vmatprep.subr.bf16.mxu0 0
        %5423 = vmatpush2.bf16.xpose.msra.mxu0 0
        %5424 = vmatprep.subr.bf16.mxu0 0
        %5425 = vmatpush2.bf16.xpose.msra.mxu0 0
        %5426 = vmatprep.subr.bf16.mxu0 0
        %5427 = vmatpush2.bf16.xpose.msra.mxu0 0
        %5428 = vmatprep.subr.bf16.mxu0 0
        %5429 = vmatpush2.bf16.xpose.msra.mxu0 0
        %5430 = vmatprep.subr.bf16.mxu0 0
        %5431 = vmatpush2.bf16.xpose.msra.mxu0 0
        %5432 = vmatprep.subr.bf16.mxu0 0
        %5433 = vmatpush2.bf16.xpose.msra.mxu0 0
        %5434 = vmatprep.subr.bf16.mxu0 0
        %5435 = vmatpush2.bf16.xpose.msra.mxu0 0
        %5436 = vmatprep.mubr.bf16.mxu0 %v1483
        %5437 = vmatmul.mubr.bf16.gmra.mxu0 %v1482
        %v5438 = vpop.f32.mrf.mxu0
        %v5439 = vadd.f32 %v5399, %v5438
        %v5440 = vpop.f32.mrf.mxu0
        %v5441 = vpop.f32.mrf.mxu0
        %v5442 = vpop.f32.mrf.mxu0
        %5443 = vdwg.mxu0
        %5444 = vmatprep.subr.bf16.mxu0 0
        %5445 = vmatpush1.bf16.xpose.msra.mxu0 0
        %5446 = vmatprep.subr.bf16.mxu0 0
        %5447 = vmatpush1.bf16.xpose.msra.mxu0 0
        %5448 = vmatprep.subr.bf16.mxu0 0
        %5449 = vmatpush1.bf16.xpose.msra.mxu0 0
        %5450 = vmatprep.subr.bf16.mxu0 0
        %5451 = vmatpush1.bf16.xpose.msra.mxu0 0
        %5452 = vmatprep.subr.bf16.mxu0 0
        %5453 = vmatpush1.bf16.xpose.msra.mxu0 0
        %5454 = vmatprep.subr.bf16.mxu0 0
        %5455 = vmatpush1.bf16.xpose.msra.mxu0 0
        %5456 = vmatprep.subr.bf16.mxu0 0
        %5457 = vmatpush1.bf16.xpose.msra.mxu0 0
        %5458 = vmatprep.subr.bf16.mxu0 %v3445
        %5459 = vmatpush1.bf16.xpose.msra.mxu0 %v3444
        %5460 = vmatprep.subr.bf16.mxu0 0
        %5461 = vmatpush2.bf16.xpose.msra.mxu0 0
        %5462 = vmatprep.subr.bf16.mxu0 0
        %5463 = vmatpush2.bf16.xpose.msra.mxu0 0
        %5464 = vmatprep.subr.bf16.mxu0 0
        %5465 = vmatpush2.bf16.xpose.msra.mxu0 0
        %5466 = vmatprep.subr.bf16.mxu0 0
        %5467 = vmatpush2.bf16.xpose.msra.mxu0 0
        %5468 = vmatprep.subr.bf16.mxu0 0
        %5469 = vmatpush2.bf16.xpose.msra.mxu0 0
        %5470 = vmatprep.subr.bf16.mxu0 0
        %5471 = vmatpush2.bf16.xpose.msra.mxu0 0
        %5472 = vmatprep.subr.bf16.mxu0 0
        %5473 = vmatpush2.bf16.xpose.msra.mxu0 0
        %5474 = vmatprep.subr.bf16.mxu0 0
        %5475 = vmatpush2.bf16.xpose.msra.mxu0 0
        %5476 = vmatprep.mubr.bf16.mxu0 %v1485
        %5477 = vmatmul.mubr.bf16.gmra.mxu0 %v1484
        %v5478 = vpop.f32.mrf.mxu0
        %v5479 = vadd.f32 %v5439, %v5478
        %v5480 = vpop.f32.mrf.mxu0
        %v5481 = vpop.f32.mrf.mxu0
        %v5482 = vpop.f32.mrf.mxu0
        %5483 = vdwg.mxu0
        %5484 = vmatprep.subr.bf16.mxu0 0
        %5485 = vmatpush1.bf16.xpose.msra.mxu0 0
        %5486 = vmatprep.subr.bf16.mxu0 0
        %5487 = vmatpush1.bf16.xpose.msra.mxu0 0
        %5488 = vmatprep.subr.bf16.mxu0 0
        %5489 = vmatpush1.bf16.xpose.msra.mxu0 0
        %5490 = vmatprep.subr.bf16.mxu0 0
        %5491 = vmatpush1.bf16.xpose.msra.mxu0 0
        %5492 = vmatprep.subr.bf16.mxu0 0
        %5493 = vmatpush1.bf16.xpose.msra.mxu0 0
        %5494 = vmatprep.subr.bf16.mxu0 0
        %5495 = vmatpush1.bf16.xpose.msra.mxu0 0
        %5496 = vmatprep.subr.bf16.mxu0 0
        %5497 = vmatpush1.bf16.xpose.msra.mxu0 0
        %5498 = vmatprep.subr.bf16.mxu0 %v3447
        %5499 = vmatpush1.bf16.xpose.msra.mxu0 %v3446
        %5500 = vmatprep.subr.bf16.mxu0 0
        %5501 = vmatpush2.bf16.xpose.msra.mxu0 0
        %5502 = vmatprep.subr.bf16.mxu0 0
        %5503 = vmatpush2.bf16.xpose.msra.mxu0 0
        %5504 = vmatprep.subr.bf16.mxu0 0
        %5505 = vmatpush2.bf16.xpose.msra.mxu0 0
        %5506 = vmatprep.subr.bf16.mxu0 0
        %5507 = vmatpush2.bf16.xpose.msra.mxu0 0
        %5508 = vmatprep.subr.bf16.mxu0 0
        %5509 = vmatpush2.bf16.xpose.msra.mxu0 0
        %5510 = vmatprep.subr.bf16.mxu0 0
        %5511 = vmatpush2.bf16.xpose.msra.mxu0 0
        %5512 = vmatprep.subr.bf16.mxu0 0
        %5513 = vmatpush2.bf16.xpose.msra.mxu0 0
        %5514 = vmatprep.subr.bf16.mxu0 0
        %5515 = vmatpush2.bf16.xpose.msra.mxu0 0
        %5516 = vmatprep.mubr.bf16.mxu0 %v1487
        %5517 = vmatmul.mubr.bf16.gmra.mxu0 %v1486
        %v5518 = vpop.f32.mrf.mxu0
        %v5519 = vadd.f32 %v5479, %v5518
        %v5520 = vpop.f32.mrf.mxu0
        %v5521 = vpop.f32.mrf.mxu0
        %v5522 = vpop.f32.mrf.mxu0
        %5523 = vdwg.mxu0
        %5524 = vmatprep.subr.bf16.mxu0 0
        %5525 = vmatpush1.bf16.xpose.msra.mxu0 0
        %5526 = vmatprep.subr.bf16.mxu0 0
        %5527 = vmatpush1.bf16.xpose.msra.mxu0 0
        %5528 = vmatprep.subr.bf16.mxu0 0
        %5529 = vmatpush1.bf16.xpose.msra.mxu0 0
        %5530 = vmatprep.subr.bf16.mxu0 0
        %5531 = vmatpush1.bf16.xpose.msra.mxu0 0
        %5532 = vmatprep.subr.bf16.mxu0 0
        %5533 = vmatpush1.bf16.xpose.msra.mxu0 0
        %5534 = vmatprep.subr.bf16.mxu0 0
        %5535 = vmatpush1.bf16.xpose.msra.mxu0 0
        %5536 = vmatprep.subr.bf16.mxu0 0
        %5537 = vmatpush1.bf16.xpose.msra.mxu0 0
        %5538 = vmatprep.subr.bf16.mxu0 %v3449
        %5539 = vmatpush1.bf16.xpose.msra.mxu0 %v3448
        %5540 = vmatprep.subr.bf16.mxu0 0
        %5541 = vmatpush2.bf16.xpose.msra.mxu0 0
        %5542 = vmatprep.subr.bf16.mxu0 0
        %5543 = vmatpush2.bf16.xpose.msra.mxu0 0
        %5544 = vmatprep.subr.bf16.mxu0 0
        %5545 = vmatpush2.bf16.xpose.msra.mxu0 0
        %5546 = vmatprep.subr.bf16.mxu0 0
        %5547 = vmatpush2.bf16.xpose.msra.mxu0 0
        %5548 = vmatprep.subr.bf16.mxu0 0
        %5549 = vmatpush2.bf16.xpose.msra.mxu0 0
        %5550 = vmatprep.subr.bf16.mxu0 0
        %5551 = vmatpush2.bf16.xpose.msra.mxu0 0
        %5552 = vmatprep.subr.bf16.mxu0 0
        %5553 = vmatpush2.bf16.xpose.msra.mxu0 0
        %5554 = vmatprep.subr.bf16.mxu0 0
        %5555 = vmatpush2.bf16.xpose.msra.mxu0 0
        %5556 = vmatprep.mubr.bf16.mxu0 %v1489
        %5557 = vmatmul.mubr.bf16.gmra.mxu0 %v1488
        %v5558 = vpop.f32.mrf.mxu0
        %v5559 = vadd.f32 %v5519, %v5558
        %v5560 = vpop.f32.mrf.mxu0
        %v5561 = vpop.f32.mrf.mxu0
        %v5562 = vpop.f32.mrf.mxu0
        %5563 = vdwg.mxu0
        %5564 = vmatprep.subr.bf16.mxu0 0
        %5565 = vmatpush1.bf16.xpose.msra.mxu0 0
        %5566 = vmatprep.subr.bf16.mxu0 0
        %5567 = vmatpush1.bf16.xpose.msra.mxu0 0
        %5568 = vmatprep.subr.bf16.mxu0 0
        %5569 = vmatpush1.bf16.xpose.msra.mxu0 0
        %5570 = vmatprep.subr.bf16.mxu0 0
        %5571 = vmatpush1.bf16.xpose.msra.mxu0 0
        %5572 = vmatprep.subr.bf16.mxu0 0
        %5573 = vmatpush1.bf16.xpose.msra.mxu0 0
        %5574 = vmatprep.subr.bf16.mxu0 0
        %5575 = vmatpush1.bf16.xpose.msra.mxu0 0
        %5576 = vmatprep.subr.bf16.mxu0 0
        %5577 = vmatpush1.bf16.xpose.msra.mxu0 0
        %5578 = vmatprep.subr.bf16.mxu0 %v3451
        %5579 = vmatpush1.bf16.xpose.msra.mxu0 %v3450
        %5580 = vmatprep.subr.bf16.mxu0 0
        %5581 = vmatpush2.bf16.xpose.msra.mxu0 0
        %5582 = vmatprep.subr.bf16.mxu0 0
        %5583 = vmatpush2.bf16.xpose.msra.mxu0 0
        %5584 = vmatprep.subr.bf16.mxu0 0
        %5585 = vmatpush2.bf16.xpose.msra.mxu0 0
        %5586 = vmatprep.subr.bf16.mxu0 0
        %5587 = vmatpush2.bf16.xpose.msra.mxu0 0
        %5588 = vmatprep.subr.bf16.mxu0 0
        %5589 = vmatpush2.bf16.xpose.msra.mxu0 0
        %5590 = vmatprep.subr.bf16.mxu0 0
        %5591 = vmatpush2.bf16.xpose.msra.mxu0 0
        %5592 = vmatprep.subr.bf16.mxu0 0
        %5593 = vmatpush2.bf16.xpose.msra.mxu0 0
        %5594 = vmatprep.subr.bf16.mxu0 0
        %5595 = vmatpush2.bf16.xpose.msra.mxu0 0
        %5596 = vmatprep.mubr.bf16.mxu0 %v1491
        %5597 = vmatmul.mubr.bf16.gmra.mxu0 %v1490
        %v5598 = vpop.f32.mrf.mxu0
        %v5599 = vadd.f32 %v5559, %v5598
        %v5600 = vpop.f32.mrf.mxu0
        %v5601 = vpop.f32.mrf.mxu0
        %v5602 = vpop.f32.mrf.mxu0
        %5603 = vdwg.mxu0
        %5604 = vmatprep.subr.bf16.mxu0 0
        %5605 = vmatpush1.bf16.xpose.msra.mxu0 0
        %5606 = vmatprep.subr.bf16.mxu0 0
        %5607 = vmatpush1.bf16.xpose.msra.mxu0 0
        %5608 = vmatprep.subr.bf16.mxu0 0
        %5609 = vmatpush1.bf16.xpose.msra.mxu0 0
        %5610 = vmatprep.subr.bf16.mxu0 0
        %5611 = vmatpush1.bf16.xpose.msra.mxu0 0
        %5612 = vmatprep.subr.bf16.mxu0 0
        %5613 = vmatpush1.bf16.xpose.msra.mxu0 0
        %5614 = vmatprep.subr.bf16.mxu0 0
        %5615 = vmatpush1.bf16.xpose.msra.mxu0 0
        %5616 = vmatprep.subr.bf16.mxu0 0
        %5617 = vmatpush1.bf16.xpose.msra.mxu0 0
        %5618 = vmatprep.subr.bf16.mxu0 %v3453
        %5619 = vmatpush1.bf16.xpose.msra.mxu0 %v3452
        %5620 = vmatprep.subr.bf16.mxu0 0
        %5621 = vmatpush2.bf16.xpose.msra.mxu0 0
        %5622 = vmatprep.subr.bf16.mxu0 0
        %5623 = vmatpush2.bf16.xpose.msra.mxu0 0
        %5624 = vmatprep.subr.bf16.mxu0 0
        %5625 = vmatpush2.bf16.xpose.msra.mxu0 0
        %5626 = vmatprep.subr.bf16.mxu0 0
        %5627 = vmatpush2.bf16.xpose.msra.mxu0 0
        %5628 = vmatprep.subr.bf16.mxu0 0
        %5629 = vmatpush2.bf16.xpose.msra.mxu0 0
        %5630 = vmatprep.subr.bf16.mxu0 0
        %5631 = vmatpush2.bf16.xpose.msra.mxu0 0
        %5632 = vmatprep.subr.bf16.mxu0 0
        %5633 = vmatpush2.bf16.xpose.msra.mxu0 0
        %5634 = vmatprep.subr.bf16.mxu0 0
        %5635 = vmatpush2.bf16.xpose.msra.mxu0 0
        %5636 = vmatprep.mubr.bf16.mxu0 %v1493
        %5637 = vmatmul.mubr.bf16.gmra.mxu0 %v1492
        %v5638 = vpop.f32.mrf.mxu0
        %v5639 = vadd.f32 %v5599, %v5638
        %v5640 = vpop.f32.mrf.mxu0
        %v5641 = vpop.f32.mrf.mxu0
        %v5642 = vpop.f32.mrf.mxu0
        %5643 = vdwg.mxu0
        %5644 = vmatprep.subr.bf16.mxu0 0
        %5645 = vmatpush1.bf16.xpose.msra.mxu0 0
        %5646 = vmatprep.subr.bf16.mxu0 0
        %5647 = vmatpush1.bf16.xpose.msra.mxu0 0
        %5648 = vmatprep.subr.bf16.mxu0 0
        %5649 = vmatpush1.bf16.xpose.msra.mxu0 0
        %5650 = vmatprep.subr.bf16.mxu0 0
        %5651 = vmatpush1.bf16.xpose.msra.mxu0 0
        %5652 = vmatprep.subr.bf16.mxu0 0
        %5653 = vmatpush1.bf16.xpose.msra.mxu0 0
        %5654 = vmatprep.subr.bf16.mxu0 0
        %5655 = vmatpush1.bf16.xpose.msra.mxu0 0
        %5656 = vmatprep.subr.bf16.mxu0 0
        %5657 = vmatpush1.bf16.xpose.msra.mxu0 0
        %5658 = vmatprep.subr.bf16.mxu0 %v3455
        %5659 = vmatpush1.bf16.xpose.msra.mxu0 %v3454
        %5660 = vmatprep.subr.bf16.mxu0 0
        %5661 = vmatpush2.bf16.xpose.msra.mxu0 0
        %5662 = vmatprep.subr.bf16.mxu0 0
        %5663 = vmatpush2.bf16.xpose.msra.mxu0 0
        %5664 = vmatprep.subr.bf16.mxu0 0
        %5665 = vmatpush2.bf16.xpose.msra.mxu0 0
        %5666 = vmatprep.subr.bf16.mxu0 0
        %5667 = vmatpush2.bf16.xpose.msra.mxu0 0
        %5668 = vmatprep.subr.bf16.mxu0 0
        %5669 = vmatpush2.bf16.xpose.msra.mxu0 0
        %5670 = vmatprep.subr.bf16.mxu0 0
        %5671 = vmatpush2.bf16.xpose.msra.mxu0 0
        %5672 = vmatprep.subr.bf16.mxu0 0
        %5673 = vmatpush2.bf16.xpose.msra.mxu0 0
        %5674 = vmatprep.subr.bf16.mxu0 0
        %5675 = vmatpush2.bf16.xpose.msra.mxu0 0
        %5676 = vmatprep.mubr.bf16.mxu0 %v1495
        %5677 = vmatmul.mubr.bf16.gmra.mxu0 %v1494
        %v5678 = vpop.f32.mrf.mxu0
        %v5679 = vadd.f32 %v5639, %v5678
        %v5680 = vpop.f32.mrf.mxu0
        %v5681 = vpop.f32.mrf.mxu0
        %v5682 = vpop.f32.mrf.mxu0
        %5683 = vdwg.mxu0
        %5684 = vmatprep.subr.bf16.mxu0 0
        %5685 = vmatpush1.bf16.xpose.msra.mxu0 0
        %5686 = vmatprep.subr.bf16.mxu0 0
        %5687 = vmatpush1.bf16.xpose.msra.mxu0 0
        %5688 = vmatprep.subr.bf16.mxu0 0
        %5689 = vmatpush1.bf16.xpose.msra.mxu0 0
        %5690 = vmatprep.subr.bf16.mxu0 0
        %5691 = vmatpush1.bf16.xpose.msra.mxu0 0
        %5692 = vmatprep.subr.bf16.mxu0 0
        %5693 = vmatpush1.bf16.xpose.msra.mxu0 0
        %5694 = vmatprep.subr.bf16.mxu0 0
        %5695 = vmatpush1.bf16.xpose.msra.mxu0 0
        %5696 = vmatprep.subr.bf16.mxu0 0
        %5697 = vmatpush1.bf16.xpose.msra.mxu0 0
        %5698 = vmatprep.subr.bf16.mxu0 %v3457
        %5699 = vmatpush1.bf16.xpose.msra.mxu0 %v3456
        %5700 = vmatprep.subr.bf16.mxu0 0
        %5701 = vmatpush2.bf16.xpose.msra.mxu0 0
        %5702 = vmatprep.subr.bf16.mxu0 0
        %5703 = vmatpush2.bf16.xpose.msra.mxu0 0
        %5704 = vmatprep.subr.bf16.mxu0 0
        %5705 = vmatpush2.bf16.xpose.msra.mxu0 0
        %5706 = vmatprep.subr.bf16.mxu0 0
        %5707 = vmatpush2.bf16.xpose.msra.mxu0 0
        %5708 = vmatprep.subr.bf16.mxu0 0
        %5709 = vmatpush2.bf16.xpose.msra.mxu0 0
        %5710 = vmatprep.subr.bf16.mxu0 0
        %5711 = vmatpush2.bf16.xpose.msra.mxu0 0
        %5712 = vmatprep.subr.bf16.mxu0 0
        %5713 = vmatpush2.bf16.xpose.msra.mxu0 0
        %5714 = vmatprep.subr.bf16.mxu0 0
        %5715 = vmatpush2.bf16.xpose.msra.mxu0 0
        %5716 = vmatprep.mubr.bf16.mxu0 %v1497
        %5717 = vmatmul.mubr.bf16.gmra.mxu0 %v1496
        %v5718 = vpop.f32.mrf.mxu0
        %v5719 = vadd.f32 %v5679, %v5718
        %v5720 = vpop.f32.mrf.mxu0
        %v5721 = vpop.f32.mrf.mxu0
        %v5722 = vpop.f32.mrf.mxu0
        %5723 = vdwg.mxu0
        %5724 = vmatprep.subr.bf16.mxu0 0
        %5725 = vmatpush1.bf16.xpose.msra.mxu0 0
        %5726 = vmatprep.subr.bf16.mxu0 0
        %5727 = vmatpush1.bf16.xpose.msra.mxu0 0
        %5728 = vmatprep.subr.bf16.mxu0 0
        %5729 = vmatpush1.bf16.xpose.msra.mxu0 0
        %5730 = vmatprep.subr.bf16.mxu0 0
        %5731 = vmatpush1.bf16.xpose.msra.mxu0 0
        %5732 = vmatprep.subr.bf16.mxu0 0
        %5733 = vmatpush1.bf16.xpose.msra.mxu0 0
        %5734 = vmatprep.subr.bf16.mxu0 0
        %5735 = vmatpush1.bf16.xpose.msra.mxu0 0
        %5736 = vmatprep.subr.bf16.mxu0 0
        %5737 = vmatpush1.bf16.xpose.msra.mxu0 0
        %5738 = vmatprep.subr.bf16.mxu0 %v3459
        %5739 = vmatpush1.bf16.xpose.msra.mxu0 %v3458
        %5740 = vmatprep.subr.bf16.mxu0 0
        %5741 = vmatpush2.bf16.xpose.msra.mxu0 0
        %5742 = vmatprep.subr.bf16.mxu0 0
        %5743 = vmatpush2.bf16.xpose.msra.mxu0 0
        %5744 = vmatprep.subr.bf16.mxu0 0
        %5745 = vmatpush2.bf16.xpose.msra.mxu0 0
        %5746 = vmatprep.subr.bf16.mxu0 0
        %5747 = vmatpush2.bf16.xpose.msra.mxu0 0
        %5748 = vmatprep.subr.bf16.mxu0 0
        %5749 = vmatpush2.bf16.xpose.msra.mxu0 0
        %5750 = vmatprep.subr.bf16.mxu0 0
        %5751 = vmatpush2.bf16.xpose.msra.mxu0 0
        %5752 = vmatprep.subr.bf16.mxu0 0
        %5753 = vmatpush2.bf16.xpose.msra.mxu0 0
        %5754 = vmatprep.subr.bf16.mxu0 0
        %5755 = vmatpush2.bf16.xpose.msra.mxu0 0
        %5756 = vmatprep.mubr.bf16.mxu0 %v1499
        %5757 = vmatmul.mubr.bf16.gmra.mxu0 %v1498
        %v5758 = vpop.f32.mrf.mxu0
        %v5759 = vadd.f32 %v5719, %v5758
        %v5760 = vpop.f32.mrf.mxu0
        %v5761 = vpop.f32.mrf.mxu0
        %v5762 = vpop.f32.mrf.mxu0
        %5763 = vdwg.mxu0
        %5764 = vmatprep.subr.bf16.mxu0 0
        %5765 = vmatpush1.bf16.xpose.msra.mxu0 0
        %5766 = vmatprep.subr.bf16.mxu0 0
        %5767 = vmatpush1.bf16.xpose.msra.mxu0 0
        %5768 = vmatprep.subr.bf16.mxu0 0
        %5769 = vmatpush1.bf16.xpose.msra.mxu0 0
        %5770 = vmatprep.subr.bf16.mxu0 0
        %5771 = vmatpush1.bf16.xpose.msra.mxu0 0
        %5772 = vmatprep.subr.bf16.mxu0 0
        %5773 = vmatpush1.bf16.xpose.msra.mxu0 0
        %5774 = vmatprep.subr.bf16.mxu0 0
        %5775 = vmatpush1.bf16.xpose.msra.mxu0 0
        %5776 = vmatprep.subr.bf16.mxu0 0
        %5777 = vmatpush1.bf16.xpose.msra.mxu0 0
        %5778 = vmatprep.subr.bf16.mxu0 %v3461
        %5779 = vmatpush1.bf16.xpose.msra.mxu0 %v3460
        %5780 = vmatprep.subr.bf16.mxu0 0
        %5781 = vmatpush2.bf16.xpose.msra.mxu0 0
        %5782 = vmatprep.subr.bf16.mxu0 0
        %5783 = vmatpush2.bf16.xpose.msra.mxu0 0
        %5784 = vmatprep.subr.bf16.mxu0 0
        %5785 = vmatpush2.bf16.xpose.msra.mxu0 0
        %5786 = vmatprep.subr.bf16.mxu0 0
        %5787 = vmatpush2.bf16.xpose.msra.mxu0 0
        %5788 = vmatprep.subr.bf16.mxu0 0
        %5789 = vmatpush2.bf16.xpose.msra.mxu0 0
        %5790 = vmatprep.subr.bf16.mxu0 0
        %5791 = vmatpush2.bf16.xpose.msra.mxu0 0
        %5792 = vmatprep.subr.bf16.mxu0 0
        %5793 = vmatpush2.bf16.xpose.msra.mxu0 0
        %5794 = vmatprep.subr.bf16.mxu0 0
        %5795 = vmatpush2.bf16.xpose.msra.mxu0 0
        %5796 = vmatprep.mubr.bf16.mxu0 %v1501
        %5797 = vmatmul.mubr.bf16.gmra.mxu0 %v1500
        %v5798 = vpop.f32.mrf.mxu0
        %v5799 = vadd.f32 %v5759, %v5798
        %v5800 = vpop.f32.mrf.mxu0
        %v5801 = vpop.f32.mrf.mxu0
        %v5802 = vpop.f32.mrf.mxu0
        %5803 = vdwg.mxu0
        %5804 = vmatprep.subr.bf16.mxu0 0
        %5805 = vmatpush1.bf16.xpose.msra.mxu0 0
        %5806 = vmatprep.subr.bf16.mxu0 0
        %5807 = vmatpush1.bf16.xpose.msra.mxu0 0
        %5808 = vmatprep.subr.bf16.mxu0 0
        %5809 = vmatpush1.bf16.xpose.msra.mxu0 0
        %5810 = vmatprep.subr.bf16.mxu0 0
        %5811 = vmatpush1.bf16.xpose.msra.mxu0 0
        %5812 = vmatprep.subr.bf16.mxu0 0
        %5813 = vmatpush1.bf16.xpose.msra.mxu0 0
        %5814 = vmatprep.subr.bf16.mxu0 0
        %5815 = vmatpush1.bf16.xpose.msra.mxu0 0
        %5816 = vmatprep.subr.bf16.mxu0 0
        %5817 = vmatpush1.bf16.xpose.msra.mxu0 0
        %5818 = vmatprep.subr.bf16.mxu0 %v3463
        %5819 = vmatpush1.bf16.xpose.msra.mxu0 %v3462
        %5820 = vmatprep.subr.bf16.mxu0 0
        %5821 = vmatpush2.bf16.xpose.msra.mxu0 0
        %5822 = vmatprep.subr.bf16.mxu0 0
        %5823 = vmatpush2.bf16.xpose.msra.mxu0 0
        %5824 = vmatprep.subr.bf16.mxu0 0
        %5825 = vmatpush2.bf16.xpose.msra.mxu0 0
        %5826 = vmatprep.subr.bf16.mxu0 0
        %5827 = vmatpush2.bf16.xpose.msra.mxu0 0
        %5828 = vmatprep.subr.bf16.mxu0 0
        %5829 = vmatpush2.bf16.xpose.msra.mxu0 0
        %5830 = vmatprep.subr.bf16.mxu0 0
        %5831 = vmatpush2.bf16.xpose.msra.mxu0 0
        %5832 = vmatprep.subr.bf16.mxu0 0
        %5833 = vmatpush2.bf16.xpose.msra.mxu0 0
        %5834 = vmatprep.subr.bf16.mxu0 0
        %5835 = vmatpush2.bf16.xpose.msra.mxu0 0
        %5836 = vmatprep.mubr.bf16.mxu0 %v1503
        %5837 = vmatmul.mubr.bf16.gmra.mxu0 %v1502
        %v5838 = vpop.f32.mrf.mxu0
        %v5839 = vadd.f32 %v5799, %v5838
        %v5840 = vpop.f32.mrf.mxu0
        %v5841 = vpop.f32.mrf.mxu0
        %v5842 = vpop.f32.mrf.mxu0
        %5843 = vdwg.mxu0
        %5844 = vmatprep.subr.bf16.mxu0 0
        %5845 = vmatpush1.bf16.xpose.msra.mxu0 0
        %5846 = vmatprep.subr.bf16.mxu0 0
        %5847 = vmatpush1.bf16.xpose.msra.mxu0 0
        %5848 = vmatprep.subr.bf16.mxu0 0
        %5849 = vmatpush1.bf16.xpose.msra.mxu0 0
        %5850 = vmatprep.subr.bf16.mxu0 0
        %5851 = vmatpush1.bf16.xpose.msra.mxu0 0
        %5852 = vmatprep.subr.bf16.mxu0 0
        %5853 = vmatpush1.bf16.xpose.msra.mxu0 0
        %5854 = vmatprep.subr.bf16.mxu0 0
        %5855 = vmatpush1.bf16.xpose.msra.mxu0 0
        %5856 = vmatprep.subr.bf16.mxu0 0
        %5857 = vmatpush1.bf16.xpose.msra.mxu0 0
        %5858 = vmatprep.subr.bf16.mxu0 %v3465
        %5859 = vmatpush1.bf16.xpose.msra.mxu0 %v3464
        %5860 = vmatprep.subr.bf16.mxu0 0
        %5861 = vmatpush2.bf16.xpose.msra.mxu0 0
        %5862 = vmatprep.subr.bf16.mxu0 0
        %5863 = vmatpush2.bf16.xpose.msra.mxu0 0
        %5864 = vmatprep.subr.bf16.mxu0 0
        %5865 = vmatpush2.bf16.xpose.msra.mxu0 0
        %5866 = vmatprep.subr.bf16.mxu0 0
        %5867 = vmatpush2.bf16.xpose.msra.mxu0 0
        %5868 = vmatprep.subr.bf16.mxu0 0
        %5869 = vmatpush2.bf16.xpose.msra.mxu0 0
        %5870 = vmatprep.subr.bf16.mxu0 0
        %5871 = vmatpush2.bf16.xpose.msra.mxu0 0
        %5872 = vmatprep.subr.bf16.mxu0 0
        %5873 = vmatpush2.bf16.xpose.msra.mxu0 0
        %5874 = vmatprep.subr.bf16.mxu0 0
        %5875 = vmatpush2.bf16.xpose.msra.mxu0 0
        %5876 = vmatprep.mubr.bf16.mxu0 %v1505
        %5877 = vmatmul.mubr.bf16.gmra.mxu0 %v1504
        %v5878 = vpop.f32.mrf.mxu0
        %v5879 = vadd.f32 %v5839, %v5878
        %v5880 = vpop.f32.mrf.mxu0
        %v5881 = vpop.f32.mrf.mxu0
        %v5882 = vpop.f32.mrf.mxu0
        %5883 = vdwg.mxu0
        %5884 = vmatprep.subr.bf16.mxu0 0
        %5885 = vmatpush1.bf16.xpose.msra.mxu0 0
        %5886 = vmatprep.subr.bf16.mxu0 0
        %5887 = vmatpush1.bf16.xpose.msra.mxu0 0
        %5888 = vmatprep.subr.bf16.mxu0 0
        %5889 = vmatpush1.bf16.xpose.msra.mxu0 0
        %5890 = vmatprep.subr.bf16.mxu0 0
        %5891 = vmatpush1.bf16.xpose.msra.mxu0 0
        %5892 = vmatprep.subr.bf16.mxu0 0
        %5893 = vmatpush1.bf16.xpose.msra.mxu0 0
        %5894 = vmatprep.subr.bf16.mxu0 0
        %5895 = vmatpush1.bf16.xpose.msra.mxu0 0
        %5896 = vmatprep.subr.bf16.mxu0 0
        %5897 = vmatpush1.bf16.xpose.msra.mxu0 0
        %5898 = vmatprep.subr.bf16.mxu0 %v3467
        %5899 = vmatpush1.bf16.xpose.msra.mxu0 %v3466
        %5900 = vmatprep.subr.bf16.mxu0 0
        %5901 = vmatpush2.bf16.xpose.msra.mxu0 0
        %5902 = vmatprep.subr.bf16.mxu0 0
        %5903 = vmatpush2.bf16.xpose.msra.mxu0 0
        %5904 = vmatprep.subr.bf16.mxu0 0
        %5905 = vmatpush2.bf16.xpose.msra.mxu0 0
        %5906 = vmatprep.subr.bf16.mxu0 0
        %5907 = vmatpush2.bf16.xpose.msra.mxu0 0
        %5908 = vmatprep.subr.bf16.mxu0 0
        %5909 = vmatpush2.bf16.xpose.msra.mxu0 0
        %5910 = vmatprep.subr.bf16.mxu0 0
        %5911 = vmatpush2.bf16.xpose.msra.mxu0 0
        %5912 = vmatprep.subr.bf16.mxu0 0
        %5913 = vmatpush2.bf16.xpose.msra.mxu0 0
        %5914 = vmatprep.subr.bf16.mxu0 0
        %5915 = vmatpush2.bf16.xpose.msra.mxu0 0
        %5916 = vmatprep.mubr.bf16.mxu0 %v1507
        %5917 = vmatmul.mubr.bf16.gmra.mxu0 %v1506
        %v5918 = vpop.f32.mrf.mxu0
        %v5919 = vadd.f32 %v5879, %v5918
        %v5920 = vpop.f32.mrf.mxu0
        %v5921 = vpop.f32.mrf.mxu0
        %v5922 = vpop.f32.mrf.mxu0
        %5923 = vdwg.mxu0
        %5924 = vmatprep.subr.bf16.mxu0 0
        %5925 = vmatpush1.bf16.xpose.msra.mxu0 0
        %5926 = vmatprep.subr.bf16.mxu0 0
        %5927 = vmatpush1.bf16.xpose.msra.mxu0 0
        %5928 = vmatprep.subr.bf16.mxu0 0
        %5929 = vmatpush1.bf16.xpose.msra.mxu0 0
        %5930 = vmatprep.subr.bf16.mxu0 0
        %5931 = vmatpush1.bf16.xpose.msra.mxu0 0
        %5932 = vmatprep.subr.bf16.mxu0 0
        %5933 = vmatpush1.bf16.xpose.msra.mxu0 0
        %5934 = vmatprep.subr.bf16.mxu0 0
        %5935 = vmatpush1.bf16.xpose.msra.mxu0 0
        %5936 = vmatprep.subr.bf16.mxu0 0
        %5937 = vmatpush1.bf16.xpose.msra.mxu0 0
        %5938 = vmatprep.subr.bf16.mxu0 %v3469
        %5939 = vmatpush1.bf16.xpose.msra.mxu0 %v3468
        %5940 = vmatprep.subr.bf16.mxu0 0
        %5941 = vmatpush2.bf16.xpose.msra.mxu0 0
        %5942 = vmatprep.subr.bf16.mxu0 0
        %5943 = vmatpush2.bf16.xpose.msra.mxu0 0
        %5944 = vmatprep.subr.bf16.mxu0 0
        %5945 = vmatpush2.bf16.xpose.msra.mxu0 0
        %5946 = vmatprep.subr.bf16.mxu0 0
        %5947 = vmatpush2.bf16.xpose.msra.mxu0 0
        %5948 = vmatprep.subr.bf16.mxu0 0
        %5949 = vmatpush2.bf16.xpose.msra.mxu0 0
        %5950 = vmatprep.subr.bf16.mxu0 0
        %5951 = vmatpush2.bf16.xpose.msra.mxu0 0
        %5952 = vmatprep.subr.bf16.mxu0 0
        %5953 = vmatpush2.bf16.xpose.msra.mxu0 0
        %5954 = vmatprep.subr.bf16.mxu0 0
        %5955 = vmatpush2.bf16.xpose.msra.mxu0 0
        %5956 = vmatprep.mubr.bf16.mxu0 %v1509
        %5957 = vmatmul.mubr.bf16.gmra.mxu0 %v1508
        %v5958 = vpop.f32.mrf.mxu0
        %v5959 = vadd.f32 %v5919, %v5958
        %v5960 = vpop.f32.mrf.mxu0
        %v5961 = vpop.f32.mrf.mxu0
        %v5962 = vpop.f32.mrf.mxu0
        %5963 = vdwg.mxu0
        %5964 = vmatprep.subr.bf16.mxu0 0
        %5965 = vmatpush1.bf16.xpose.msra.mxu0 0
        %5966 = vmatprep.subr.bf16.mxu0 0
        %5967 = vmatpush1.bf16.xpose.msra.mxu0 0
        %5968 = vmatprep.subr.bf16.mxu0 0
        %5969 = vmatpush1.bf16.xpose.msra.mxu0 0
        %5970 = vmatprep.subr.bf16.mxu0 0
        %5971 = vmatpush1.bf16.xpose.msra.mxu0 0
        %5972 = vmatprep.subr.bf16.mxu0 0
        %5973 = vmatpush1.bf16.xpose.msra.mxu0 0
        %5974 = vmatprep.subr.bf16.mxu0 0
        %5975 = vmatpush1.bf16.xpose.msra.mxu0 0
        %5976 = vmatprep.subr.bf16.mxu0 0
        %5977 = vmatpush1.bf16.xpose.msra.mxu0 0
        %5978 = vmatprep.subr.bf16.mxu0 %v3471
        %5979 = vmatpush1.bf16.xpose.msra.mxu0 %v3470
        %5980 = vmatprep.subr.bf16.mxu0 0
        %5981 = vmatpush2.bf16.xpose.msra.mxu0 0
        %5982 = vmatprep.subr.bf16.mxu0 0
        %5983 = vmatpush2.bf16.xpose.msra.mxu0 0
        %5984 = vmatprep.subr.bf16.mxu0 0
        %5985 = vmatpush2.bf16.xpose.msra.mxu0 0
        %5986 = vmatprep.subr.bf16.mxu0 0
        %5987 = vmatpush2.bf16.xpose.msra.mxu0 0
        %5988 = vmatprep.subr.bf16.mxu0 0
        %5989 = vmatpush2.bf16.xpose.msra.mxu0 0
        %5990 = vmatprep.subr.bf16.mxu0 0
        %5991 = vmatpush2.bf16.xpose.msra.mxu0 0
        %5992 = vmatprep.subr.bf16.mxu0 0
        %5993 = vmatpush2.bf16.xpose.msra.mxu0 0
        %5994 = vmatprep.subr.bf16.mxu0 0
        %5995 = vmatpush2.bf16.xpose.msra.mxu0 0
        %5996 = vmatprep.mubr.bf16.mxu0 %v1511
        %5997 = vmatmul.mubr.bf16.gmra.mxu0 %v1510
        %v5998 = vpop.f32.mrf.mxu0
        %v5999 = vadd.f32 %v5959, %v5998
        %v6000 = vpop.f32.mrf.mxu0
        %v6001 = vpop.f32.mrf.mxu0
        %v6002 = vpop.f32.mrf.mxu0
        %6003 = vdwg.mxu0
        %6004 = vmatprep.subr.bf16.mxu0 0
        %6005 = vmatpush1.bf16.xpose.msra.mxu0 0
        %6006 = vmatprep.subr.bf16.mxu0 0
        %6007 = vmatpush1.bf16.xpose.msra.mxu0 0
        %6008 = vmatprep.subr.bf16.mxu0 0
        %6009 = vmatpush1.bf16.xpose.msra.mxu0 0
        %6010 = vmatprep.subr.bf16.mxu0 0
        %6011 = vmatpush1.bf16.xpose.msra.mxu0 0
        %6012 = vmatprep.subr.bf16.mxu0 0
        %6013 = vmatpush1.bf16.xpose.msra.mxu0 0
        %6014 = vmatprep.subr.bf16.mxu0 0
        %6015 = vmatpush1.bf16.xpose.msra.mxu0 0
        %6016 = vmatprep.subr.bf16.mxu0 0
        %6017 = vmatpush1.bf16.xpose.msra.mxu0 0
        %6018 = vmatprep.subr.bf16.mxu0 %v3473
        %6019 = vmatpush1.bf16.xpose.msra.mxu0 %v3472
        %6020 = vmatprep.subr.bf16.mxu0 0
        %6021 = vmatpush2.bf16.xpose.msra.mxu0 0
        %6022 = vmatprep.subr.bf16.mxu0 0
        %6023 = vmatpush2.bf16.xpose.msra.mxu0 0
        %6024 = vmatprep.subr.bf16.mxu0 0
        %6025 = vmatpush2.bf16.xpose.msra.mxu0 0
        %6026 = vmatprep.subr.bf16.mxu0 0
        %6027 = vmatpush2.bf16.xpose.msra.mxu0 0
        %6028 = vmatprep.subr.bf16.mxu0 0
        %6029 = vmatpush2.bf16.xpose.msra.mxu0 0
        %6030 = vmatprep.subr.bf16.mxu0 0
        %6031 = vmatpush2.bf16.xpose.msra.mxu0 0
        %6032 = vmatprep.subr.bf16.mxu0 0
        %6033 = vmatpush2.bf16.xpose.msra.mxu0 0
        %6034 = vmatprep.subr.bf16.mxu0 0
        %6035 = vmatpush2.bf16.xpose.msra.mxu0 0
        %6036 = vmatprep.mubr.bf16.mxu0 %v1513
        %6037 = vmatmul.mubr.bf16.gmra.mxu0 %v1512
        %v6038 = vpop.f32.mrf.mxu0
        %v6039 = vadd.f32 %v5999, %v6038
        %v6040 = vpop.f32.mrf.mxu0
        %v6041 = vpop.f32.mrf.mxu0
        %v6042 = vpop.f32.mrf.mxu0
        %6043 = vdwg.mxu0
        %6044 = vmatprep.subr.bf16.mxu0 0
        %6045 = vmatpush1.bf16.xpose.msra.mxu0 0
        %6046 = vmatprep.subr.bf16.mxu0 0
        %6047 = vmatpush1.bf16.xpose.msra.mxu0 0
        %6048 = vmatprep.subr.bf16.mxu0 0
        %6049 = vmatpush1.bf16.xpose.msra.mxu0 0
        %6050 = vmatprep.subr.bf16.mxu0 0
        %6051 = vmatpush1.bf16.xpose.msra.mxu0 0
        %6052 = vmatprep.subr.bf16.mxu0 0
        %6053 = vmatpush1.bf16.xpose.msra.mxu0 0
        %6054 = vmatprep.subr.bf16.mxu0 0
        %6055 = vmatpush1.bf16.xpose.msra.mxu0 0
        %6056 = vmatprep.subr.bf16.mxu0 0
        %6057 = vmatpush1.bf16.xpose.msra.mxu0 0
        %6058 = vmatprep.subr.bf16.mxu0 %v3475
        %6059 = vmatpush1.bf16.xpose.msra.mxu0 %v3474
        %6060 = vmatprep.subr.bf16.mxu0 0
        %6061 = vmatpush2.bf16.xpose.msra.mxu0 0
        %6062 = vmatprep.subr.bf16.mxu0 0
        %6063 = vmatpush2.bf16.xpose.msra.mxu0 0
        %6064 = vmatprep.subr.bf16.mxu0 0
        %6065 = vmatpush2.bf16.xpose.msra.mxu0 0
        %6066 = vmatprep.subr.bf16.mxu0 0
        %6067 = vmatpush2.bf16.xpose.msra.mxu0 0
        %6068 = vmatprep.subr.bf16.mxu0 0
        %6069 = vmatpush2.bf16.xpose.msra.mxu0 0
        %6070 = vmatprep.subr.bf16.mxu0 0
        %6071 = vmatpush2.bf16.xpose.msra.mxu0 0
        %6072 = vmatprep.subr.bf16.mxu0 0
        %6073 = vmatpush2.bf16.xpose.msra.mxu0 0
        %6074 = vmatprep.subr.bf16.mxu0 0
        %6075 = vmatpush2.bf16.xpose.msra.mxu0 0
        %6076 = vmatprep.mubr.bf16.mxu0 %v1515
        %6077 = vmatmul.mubr.bf16.gmra.mxu0 %v1514
        %v6078 = vpop.f32.mrf.mxu0
        %v6079 = vadd.f32 %v6039, %v6078
        %v6080 = vpop.f32.mrf.mxu0
        %v6081 = vpop.f32.mrf.mxu0
        %v6082 = vpop.f32.mrf.mxu0
        %6083 = vdwg.mxu0
        %6084 = vmatprep.subr.bf16.mxu0 0
        %6085 = vmatpush1.bf16.xpose.msra.mxu0 0
        %6086 = vmatprep.subr.bf16.mxu0 0
        %6087 = vmatpush1.bf16.xpose.msra.mxu0 0
        %6088 = vmatprep.subr.bf16.mxu0 0
        %6089 = vmatpush1.bf16.xpose.msra.mxu0 0
        %6090 = vmatprep.subr.bf16.mxu0 0
        %6091 = vmatpush1.bf16.xpose.msra.mxu0 0
        %6092 = vmatprep.subr.bf16.mxu0 0
        %6093 = vmatpush1.bf16.xpose.msra.mxu0 0
        %6094 = vmatprep.subr.bf16.mxu0 0
        %6095 = vmatpush1.bf16.xpose.msra.mxu0 0
        %6096 = vmatprep.subr.bf16.mxu0 0
        %6097 = vmatpush1.bf16.xpose.msra.mxu0 0
        %6098 = vmatprep.subr.bf16.mxu0 %v3477
        %6099 = vmatpush1.bf16.xpose.msra.mxu0 %v3476
        %6100 = vmatprep.subr.bf16.mxu0 0
        %6101 = vmatpush2.bf16.xpose.msra.mxu0 0
        %6102 = vmatprep.subr.bf16.mxu0 0
        %6103 = vmatpush2.bf16.xpose.msra.mxu0 0
        %6104 = vmatprep.subr.bf16.mxu0 0
        %6105 = vmatpush2.bf16.xpose.msra.mxu0 0
        %6106 = vmatprep.subr.bf16.mxu0 0
        %6107 = vmatpush2.bf16.xpose.msra.mxu0 0
        %6108 = vmatprep.subr.bf16.mxu0 0
        %6109 = vmatpush2.bf16.xpose.msra.mxu0 0
        %6110 = vmatprep.subr.bf16.mxu0 0
        %6111 = vmatpush2.bf16.xpose.msra.mxu0 0
        %6112 = vmatprep.subr.bf16.mxu0 0
        %6113 = vmatpush2.bf16.xpose.msra.mxu0 0
        %6114 = vmatprep.subr.bf16.mxu0 0
        %6115 = vmatpush2.bf16.xpose.msra.mxu0 0
        %6116 = vmatprep.mubr.bf16.mxu0 %v1517
        %6117 = vmatmul.mubr.bf16.gmra.mxu0 %v1516
        %v6118 = vpop.f32.mrf.mxu0
        %v6119 = vadd.f32 %v6079, %v6118
        %v6120 = vpop.f32.mrf.mxu0
        %v6121 = vpop.f32.mrf.mxu0
        %v6122 = vpop.f32.mrf.mxu0
        %6123 = vdwg.mxu0
        %6124 = vmatprep.subr.bf16.mxu0 0
        %6125 = vmatpush1.bf16.xpose.msra.mxu0 0
        %6126 = vmatprep.subr.bf16.mxu0 0
        %6127 = vmatpush1.bf16.xpose.msra.mxu0 0
        %6128 = vmatprep.subr.bf16.mxu0 0
        %6129 = vmatpush1.bf16.xpose.msra.mxu0 0
        %6130 = vmatprep.subr.bf16.mxu0 0
        %6131 = vmatpush1.bf16.xpose.msra.mxu0 0
        %6132 = vmatprep.subr.bf16.mxu0 0
        %6133 = vmatpush1.bf16.xpose.msra.mxu0 0
        %6134 = vmatprep.subr.bf16.mxu0 0
        %6135 = vmatpush1.bf16.xpose.msra.mxu0 0
        %6136 = vmatprep.subr.bf16.mxu0 0
        %6137 = vmatpush1.bf16.xpose.msra.mxu0 0
        %6138 = vmatprep.subr.bf16.mxu0 %v3479
        %6139 = vmatpush1.bf16.xpose.msra.mxu0 %v3478
        %6140 = vmatprep.subr.bf16.mxu0 0
        %6141 = vmatpush2.bf16.xpose.msra.mxu0 0
        %6142 = vmatprep.subr.bf16.mxu0 0
        %6143 = vmatpush2.bf16.xpose.msra.mxu0 0
        %6144 = vmatprep.subr.bf16.mxu0 0
        %6145 = vmatpush2.bf16.xpose.msra.mxu0 0
        %6146 = vmatprep.subr.bf16.mxu0 0
        %6147 = vmatpush2.bf16.xpose.msra.mxu0 0
        %6148 = vmatprep.subr.bf16.mxu0 0
        %6149 = vmatpush2.bf16.xpose.msra.mxu0 0
        %6150 = vmatprep.subr.bf16.mxu0 0
        %6151 = vmatpush2.bf16.xpose.msra.mxu0 0
        %6152 = vmatprep.subr.bf16.mxu0 0
        %6153 = vmatpush2.bf16.xpose.msra.mxu0 0
        %6154 = vmatprep.subr.bf16.mxu0 0
        %6155 = vmatpush2.bf16.xpose.msra.mxu0 0
        %6156 = vmatprep.mubr.bf16.mxu0 %v1519
        %6157 = vmatmul.mubr.bf16.gmra.mxu0 %v1518
        %v6158 = vpop.f32.mrf.mxu0
        %v6159 = vadd.f32 %v6119, %v6158
        %v6160 = vpop.f32.mrf.mxu0
        %v6161 = vpop.f32.mrf.mxu0
        %v6162 = vpop.f32.mrf.mxu0
        %6163 = vdwg.mxu0
        %6164 = vmatprep.subr.bf16.mxu0 0
        %6165 = vmatpush1.bf16.xpose.msra.mxu0 0
        %6166 = vmatprep.subr.bf16.mxu0 0
        %6167 = vmatpush1.bf16.xpose.msra.mxu0 0
        %6168 = vmatprep.subr.bf16.mxu0 0
        %6169 = vmatpush1.bf16.xpose.msra.mxu0 0
        %6170 = vmatprep.subr.bf16.mxu0 0
        %6171 = vmatpush1.bf16.xpose.msra.mxu0 0
        %6172 = vmatprep.subr.bf16.mxu0 0
        %6173 = vmatpush1.bf16.xpose.msra.mxu0 0
        %6174 = vmatprep.subr.bf16.mxu0 0
        %6175 = vmatpush1.bf16.xpose.msra.mxu0 0
        %6176 = vmatprep.subr.bf16.mxu0 0
        %6177 = vmatpush1.bf16.xpose.msra.mxu0 0
        %6178 = vmatprep.subr.bf16.mxu0 %v3481
        %6179 = vmatpush1.bf16.xpose.msra.mxu0 %v3480
        %6180 = vmatprep.subr.bf16.mxu0 0
        %6181 = vmatpush2.bf16.xpose.msra.mxu0 0
        %6182 = vmatprep.subr.bf16.mxu0 0
        %6183 = vmatpush2.bf16.xpose.msra.mxu0 0
        %6184 = vmatprep.subr.bf16.mxu0 0
        %6185 = vmatpush2.bf16.xpose.msra.mxu0 0
        %6186 = vmatprep.subr.bf16.mxu0 0
        %6187 = vmatpush2.bf16.xpose.msra.mxu0 0
        %6188 = vmatprep.subr.bf16.mxu0 0
        %6189 = vmatpush2.bf16.xpose.msra.mxu0 0
        %6190 = vmatprep.subr.bf16.mxu0 0
        %6191 = vmatpush2.bf16.xpose.msra.mxu0 0
        %6192 = vmatprep.subr.bf16.mxu0 0
        %6193 = vmatpush2.bf16.xpose.msra.mxu0 0
        %6194 = vmatprep.subr.bf16.mxu0 0
        %6195 = vmatpush2.bf16.xpose.msra.mxu0 0
        %6196 = vmatprep.mubr.bf16.mxu0 %v1521
        %6197 = vmatmul.mubr.bf16.gmra.mxu0 %v1520
        %v6198 = vpop.f32.mrf.mxu0
        %v6199 = vadd.f32 %v6159, %v6198
        %v6200 = vpop.f32.mrf.mxu0
        %v6201 = vpop.f32.mrf.mxu0
        %v6202 = vpop.f32.mrf.mxu0
        %6203 = vdwg.mxu0
        %6204 = vmatprep.subr.bf16.mxu0 0
        %6205 = vmatpush1.bf16.xpose.msra.mxu0 0
        %6206 = vmatprep.subr.bf16.mxu0 0
        %6207 = vmatpush1.bf16.xpose.msra.mxu0 0
        %6208 = vmatprep.subr.bf16.mxu0 0
        %6209 = vmatpush1.bf16.xpose.msra.mxu0 0
        %6210 = vmatprep.subr.bf16.mxu0 0
        %6211 = vmatpush1.bf16.xpose.msra.mxu0 0
        %6212 = vmatprep.subr.bf16.mxu0 0
        %6213 = vmatpush1.bf16.xpose.msra.mxu0 0
        %6214 = vmatprep.subr.bf16.mxu0 0
        %6215 = vmatpush1.bf16.xpose.msra.mxu0 0
        %6216 = vmatprep.subr.bf16.mxu0 0
        %6217 = vmatpush1.bf16.xpose.msra.mxu0 0
        %6218 = vmatprep.subr.bf16.mxu0 %v3483
        %6219 = vmatpush1.bf16.xpose.msra.mxu0 %v3482
        %6220 = vmatprep.subr.bf16.mxu0 0
        %6221 = vmatpush2.bf16.xpose.msra.mxu0 0
        %6222 = vmatprep.subr.bf16.mxu0 0
        %6223 = vmatpush2.bf16.xpose.msra.mxu0 0
        %6224 = vmatprep.subr.bf16.mxu0 0
        %6225 = vmatpush2.bf16.xpose.msra.mxu0 0
        %6226 = vmatprep.subr.bf16.mxu0 0
        %6227 = vmatpush2.bf16.xpose.msra.mxu0 0
        %6228 = vmatprep.subr.bf16.mxu0 0
        %6229 = vmatpush2.bf16.xpose.msra.mxu0 0
        %6230 = vmatprep.subr.bf16.mxu0 0
        %6231 = vmatpush2.bf16.xpose.msra.mxu0 0
        %6232 = vmatprep.subr.bf16.mxu0 0
        %6233 = vmatpush2.bf16.xpose.msra.mxu0 0
        %6234 = vmatprep.subr.bf16.mxu0 0
        %6235 = vmatpush2.bf16.xpose.msra.mxu0 0
        %6236 = vmatprep.mubr.bf16.mxu0 %v1523
        %6237 = vmatmul.mubr.bf16.gmra.mxu0 %v1522
        %v6238 = vpop.f32.mrf.mxu0
        %v6239 = vadd.f32 %v6199, %v6238
        %v6240 = vpop.f32.mrf.mxu0
        %v6241 = vpop.f32.mrf.mxu0
        %v6242 = vpop.f32.mrf.mxu0
        %6243 = vdwg.mxu0
        %6244 = vmatprep.subr.bf16.mxu0 0
        %6245 = vmatpush1.bf16.xpose.msra.mxu0 0
        %6246 = vmatprep.subr.bf16.mxu0 0
        %6247 = vmatpush1.bf16.xpose.msra.mxu0 0
        %6248 = vmatprep.subr.bf16.mxu0 0
        %6249 = vmatpush1.bf16.xpose.msra.mxu0 0
        %6250 = vmatprep.subr.bf16.mxu0 0
        %6251 = vmatpush1.bf16.xpose.msra.mxu0 0
        %6252 = vmatprep.subr.bf16.mxu0 0
        %6253 = vmatpush1.bf16.xpose.msra.mxu0 0
        %6254 = vmatprep.subr.bf16.mxu0 0
        %6255 = vmatpush1.bf16.xpose.msra.mxu0 0
        %6256 = vmatprep.subr.bf16.mxu0 0
        %6257 = vmatpush1.bf16.xpose.msra.mxu0 0
        %6258 = vmatprep.subr.bf16.mxu0 %v3485
        %6259 = vmatpush1.bf16.xpose.msra.mxu0 %v3484
        %6260 = vmatprep.subr.bf16.mxu0 0
        %6261 = vmatpush2.bf16.xpose.msra.mxu0 0
        %6262 = vmatprep.subr.bf16.mxu0 0
        %6263 = vmatpush2.bf16.xpose.msra.mxu0 0
        %6264 = vmatprep.subr.bf16.mxu0 0
        %6265 = vmatpush2.bf16.xpose.msra.mxu0 0
        %6266 = vmatprep.subr.bf16.mxu0 0
        %6267 = vmatpush2.bf16.xpose.msra.mxu0 0
        %6268 = vmatprep.subr.bf16.mxu0 0
        %6269 = vmatpush2.bf16.xpose.msra.mxu0 0
        %6270 = vmatprep.subr.bf16.mxu0 0
        %6271 = vmatpush2.bf16.xpose.msra.mxu0 0
        %6272 = vmatprep.subr.bf16.mxu0 0
        %6273 = vmatpush2.bf16.xpose.msra.mxu0 0
        %6274 = vmatprep.subr.bf16.mxu0 0
        %6275 = vmatpush2.bf16.xpose.msra.mxu0 0
        %6276 = vmatprep.mubr.bf16.mxu0 %v1525
        %6277 = vmatmul.mubr.bf16.gmra.mxu0 %v1524
        %v6278 = vpop.f32.mrf.mxu0
        %v6279 = vadd.f32 %v6239, %v6278
        %v6280 = vpop.f32.mrf.mxu0
        %v6281 = vpop.f32.mrf.mxu0
        %v6282 = vpop.f32.mrf.mxu0
        %6283 = vdwg.mxu0
        %6284 = vmatprep.subr.bf16.mxu0 0
        %6285 = vmatpush1.bf16.xpose.msra.mxu0 0
        %6286 = vmatprep.subr.bf16.mxu0 0
        %6287 = vmatpush1.bf16.xpose.msra.mxu0 0
        %6288 = vmatprep.subr.bf16.mxu0 0
        %6289 = vmatpush1.bf16.xpose.msra.mxu0 0
        %6290 = vmatprep.subr.bf16.mxu0 0
        %6291 = vmatpush1.bf16.xpose.msra.mxu0 0
        %6292 = vmatprep.subr.bf16.mxu0 0
        %6293 = vmatpush1.bf16.xpose.msra.mxu0 0
        %6294 = vmatprep.subr.bf16.mxu0 0
        %6295 = vmatpush1.bf16.xpose.msra.mxu0 0
        %6296 = vmatprep.subr.bf16.mxu0 0
        %6297 = vmatpush1.bf16.xpose.msra.mxu0 0
        %6298 = vmatprep.subr.bf16.mxu0 %v3487
        %6299 = vmatpush1.bf16.xpose.msra.mxu0 %v3486
        %6300 = vmatprep.subr.bf16.mxu0 0
        %6301 = vmatpush2.bf16.xpose.msra.mxu0 0
        %6302 = vmatprep.subr.bf16.mxu0 0
        %6303 = vmatpush2.bf16.xpose.msra.mxu0 0
        %6304 = vmatprep.subr.bf16.mxu0 0
        %6305 = vmatpush2.bf16.xpose.msra.mxu0 0
        %6306 = vmatprep.subr.bf16.mxu0 0
        %6307 = vmatpush2.bf16.xpose.msra.mxu0 0
        %6308 = vmatprep.subr.bf16.mxu0 0
        %6309 = vmatpush2.bf16.xpose.msra.mxu0 0
        %6310 = vmatprep.subr.bf16.mxu0 0
        %6311 = vmatpush2.bf16.xpose.msra.mxu0 0
        %6312 = vmatprep.subr.bf16.mxu0 0
        %6313 = vmatpush2.bf16.xpose.msra.mxu0 0
        %6314 = vmatprep.subr.bf16.mxu0 0
        %6315 = vmatpush2.bf16.xpose.msra.mxu0 0
        %6316 = vmatprep.mubr.bf16.mxu0 %v1527
        %6317 = vmatmul.mubr.bf16.gmra.mxu0 %v1526
        %v6318 = vpop.f32.mrf.mxu0
        %v6319 = vadd.f32 %v6279, %v6318
        %v6320 = vpop.f32.mrf.mxu0
        %v6321 = vpop.f32.mrf.mxu0
        %v6322 = vpop.f32.mrf.mxu0
        %6323 = vdwg.mxu0
        %6324 = vmatprep.subr.bf16.mxu0 0
        %6325 = vmatpush1.bf16.xpose.msra.mxu0 0
        %6326 = vmatprep.subr.bf16.mxu0 0
        %6327 = vmatpush1.bf16.xpose.msra.mxu0 0
        %6328 = vmatprep.subr.bf16.mxu0 0
        %6329 = vmatpush1.bf16.xpose.msra.mxu0 0
        %6330 = vmatprep.subr.bf16.mxu0 0
        %6331 = vmatpush1.bf16.xpose.msra.mxu0 0
        %6332 = vmatprep.subr.bf16.mxu0 0
        %6333 = vmatpush1.bf16.xpose.msra.mxu0 0
        %6334 = vmatprep.subr.bf16.mxu0 0
        %6335 = vmatpush1.bf16.xpose.msra.mxu0 0
        %6336 = vmatprep.subr.bf16.mxu0 0
        %6337 = vmatpush1.bf16.xpose.msra.mxu0 0
        %6338 = vmatprep.subr.bf16.mxu0 %v3489
        %6339 = vmatpush1.bf16.xpose.msra.mxu0 %v3488
        %6340 = vmatprep.subr.bf16.mxu0 0
        %6341 = vmatpush2.bf16.xpose.msra.mxu0 0
        %6342 = vmatprep.subr.bf16.mxu0 0
        %6343 = vmatpush2.bf16.xpose.msra.mxu0 0
        %6344 = vmatprep.subr.bf16.mxu0 0
        %6345 = vmatpush2.bf16.xpose.msra.mxu0 0
        %6346 = vmatprep.subr.bf16.mxu0 0
        %6347 = vmatpush2.bf16.xpose.msra.mxu0 0
        %6348 = vmatprep.subr.bf16.mxu0 0
        %6349 = vmatpush2.bf16.xpose.msra.mxu0 0
        %6350 = vmatprep.subr.bf16.mxu0 0
        %6351 = vmatpush2.bf16.xpose.msra.mxu0 0
        %6352 = vmatprep.subr.bf16.mxu0 0
        %6353 = vmatpush2.bf16.xpose.msra.mxu0 0
        %6354 = vmatprep.subr.bf16.mxu0 0
        %6355 = vmatpush2.bf16.xpose.msra.mxu0 0
        %6356 = vmatprep.mubr.bf16.mxu0 %v1529
        %6357 = vmatmul.mubr.bf16.gmra.mxu0 %v1528
        %v6358 = vpop.f32.mrf.mxu0
        %v6359 = vadd.f32 %v6319, %v6358
        %v6360 = vpop.f32.mrf.mxu0
        %v6361 = vpop.f32.mrf.mxu0
        %v6362 = vpop.f32.mrf.mxu0
        %6363 = vdwg.mxu0
        %6364 = vmatprep.subr.bf16.mxu0 0
        %6365 = vmatpush1.bf16.xpose.msra.mxu0 0
        %6366 = vmatprep.subr.bf16.mxu0 0
        %6367 = vmatpush1.bf16.xpose.msra.mxu0 0
        %6368 = vmatprep.subr.bf16.mxu0 0
        %6369 = vmatpush1.bf16.xpose.msra.mxu0 0
        %6370 = vmatprep.subr.bf16.mxu0 0
        %6371 = vmatpush1.bf16.xpose.msra.mxu0 0
        %6372 = vmatprep.subr.bf16.mxu0 0
        %6373 = vmatpush1.bf16.xpose.msra.mxu0 0
        %6374 = vmatprep.subr.bf16.mxu0 0
        %6375 = vmatpush1.bf16.xpose.msra.mxu0 0
        %6376 = vmatprep.subr.bf16.mxu0 0
        %6377 = vmatpush1.bf16.xpose.msra.mxu0 0
        %6378 = vmatprep.subr.bf16.mxu0 %v3491
        %6379 = vmatpush1.bf16.xpose.msra.mxu0 %v3490
        %6380 = vmatprep.subr.bf16.mxu0 0
        %6381 = vmatpush2.bf16.xpose.msra.mxu0 0
        %6382 = vmatprep.subr.bf16.mxu0 0
        %6383 = vmatpush2.bf16.xpose.msra.mxu0 0
        %6384 = vmatprep.subr.bf16.mxu0 0
        %6385 = vmatpush2.bf16.xpose.msra.mxu0 0
        %6386 = vmatprep.subr.bf16.mxu0 0
        %6387 = vmatpush2.bf16.xpose.msra.mxu0 0
        %6388 = vmatprep.subr.bf16.mxu0 0
        %6389 = vmatpush2.bf16.xpose.msra.mxu0 0
        %6390 = vmatprep.subr.bf16.mxu0 0
        %6391 = vmatpush2.bf16.xpose.msra.mxu0 0
        %6392 = vmatprep.subr.bf16.mxu0 0
        %6393 = vmatpush2.bf16.xpose.msra.mxu0 0
        %6394 = vmatprep.subr.bf16.mxu0 0
        %6395 = vmatpush2.bf16.xpose.msra.mxu0 0
        %6396 = vmatprep.mubr.bf16.mxu0 %v1531
        %6397 = vmatmul.mubr.bf16.gmra.mxu0 %v1530
        %v6398 = vpop.f32.mrf.mxu0
        %v6399 = vadd.f32 %v6359, %v6398
        %v6400 = vpop.f32.mrf.mxu0
        %v6401 = vpop.f32.mrf.mxu0
        %v6402 = vpop.f32.mrf.mxu0
        %6403 = vdwg.mxu0
        %6404 = vmatprep.subr.bf16.mxu0 0
        %6405 = vmatpush1.bf16.xpose.msra.mxu0 0
        %6406 = vmatprep.subr.bf16.mxu0 0
        %6407 = vmatpush1.bf16.xpose.msra.mxu0 0
        %6408 = vmatprep.subr.bf16.mxu0 0
        %6409 = vmatpush1.bf16.xpose.msra.mxu0 0
        %6410 = vmatprep.subr.bf16.mxu0 0
        %6411 = vmatpush1.bf16.xpose.msra.mxu0 0
        %6412 = vmatprep.subr.bf16.mxu0 0
        %6413 = vmatpush1.bf16.xpose.msra.mxu0 0
        %6414 = vmatprep.subr.bf16.mxu0 0
        %6415 = vmatpush1.bf16.xpose.msra.mxu0 0
        %6416 = vmatprep.subr.bf16.mxu0 0
        %6417 = vmatpush1.bf16.xpose.msra.mxu0 0
        %6418 = vmatprep.subr.bf16.mxu0 %v3493
        %6419 = vmatpush1.bf16.xpose.msra.mxu0 %v3492
        %6420 = vmatprep.subr.bf16.mxu0 0
        %6421 = vmatpush2.bf16.xpose.msra.mxu0 0
        %6422 = vmatprep.subr.bf16.mxu0 0
        %6423 = vmatpush2.bf16.xpose.msra.mxu0 0
        %6424 = vmatprep.subr.bf16.mxu0 0
        %6425 = vmatpush2.bf16.xpose.msra.mxu0 0
        %6426 = vmatprep.subr.bf16.mxu0 0
        %6427 = vmatpush2.bf16.xpose.msra.mxu0 0
        %6428 = vmatprep.subr.bf16.mxu0 0
        %6429 = vmatpush2.bf16.xpose.msra.mxu0 0
        %6430 = vmatprep.subr.bf16.mxu0 0
        %6431 = vmatpush2.bf16.xpose.msra.mxu0 0
        %6432 = vmatprep.subr.bf16.mxu0 0
        %6433 = vmatpush2.bf16.xpose.msra.mxu0 0
        %6434 = vmatprep.subr.bf16.mxu0 0
        %6435 = vmatpush2.bf16.xpose.msra.mxu0 0
        %6436 = vmatprep.mubr.bf16.mxu0 %v1533
        %6437 = vmatmul.mubr.bf16.gmra.mxu0 %v1532
        %v6438 = vpop.f32.mrf.mxu0
        %v6439 = vadd.f32 %v6399, %v6438
        %v6440 = vpop.f32.mrf.mxu0
        %v6441 = vpop.f32.mrf.mxu0
        %v6442 = vpop.f32.mrf.mxu0
        %6443 = vdwg.mxu0
        %6444 = vmatprep.subr.bf16.mxu0 0
        %6445 = vmatpush1.bf16.xpose.msra.mxu0 0
        %6446 = vmatprep.subr.bf16.mxu0 0
        %6447 = vmatpush1.bf16.xpose.msra.mxu0 0
        %6448 = vmatprep.subr.bf16.mxu0 0
        %6449 = vmatpush1.bf16.xpose.msra.mxu0 0
        %6450 = vmatprep.subr.bf16.mxu0 0
        %6451 = vmatpush1.bf16.xpose.msra.mxu0 0
        %6452 = vmatprep.subr.bf16.mxu0 0
        %6453 = vmatpush1.bf16.xpose.msra.mxu0 0
        %6454 = vmatprep.subr.bf16.mxu0 0
        %6455 = vmatpush1.bf16.xpose.msra.mxu0 0
        %6456 = vmatprep.subr.bf16.mxu0 0
        %6457 = vmatpush1.bf16.xpose.msra.mxu0 0
        %6458 = vmatprep.subr.bf16.mxu0 %v3495
        %6459 = vmatpush1.bf16.xpose.msra.mxu0 %v3494
        %6460 = vmatprep.subr.bf16.mxu0 0
        %6461 = vmatpush2.bf16.xpose.msra.mxu0 0
        %6462 = vmatprep.subr.bf16.mxu0 0
        %6463 = vmatpush2.bf16.xpose.msra.mxu0 0
        %6464 = vmatprep.subr.bf16.mxu0 0
        %6465 = vmatpush2.bf16.xpose.msra.mxu0 0
        %6466 = vmatprep.subr.bf16.mxu0 0
        %6467 = vmatpush2.bf16.xpose.msra.mxu0 0
        %6468 = vmatprep.subr.bf16.mxu0 0
        %6469 = vmatpush2.bf16.xpose.msra.mxu0 0
        %6470 = vmatprep.subr.bf16.mxu0 0
        %6471 = vmatpush2.bf16.xpose.msra.mxu0 0
        %6472 = vmatprep.subr.bf16.mxu0 0
        %6473 = vmatpush2.bf16.xpose.msra.mxu0 0
        %6474 = vmatprep.subr.bf16.mxu0 0
        %6475 = vmatpush2.bf16.xpose.msra.mxu0 0
        %6476 = vmatprep.mubr.bf16.mxu0 %v1535
        %6477 = vmatmul.mubr.bf16.gmra.mxu0 %v1534
        %v6478 = vpop.f32.mrf.mxu0
        %v6479 = vadd.f32 %v6439, %v6478
        %v6480 = vpop.f32.mrf.mxu0
        %v6481 = vpop.f32.mrf.mxu0
        %v6482 = vpop.f32.mrf.mxu0
        %6483 = vdwg.mxu0
        %6484 = vmatprep.subr.bf16.mxu0 0
        %6485 = vmatpush1.bf16.xpose.msra.mxu0 0
        %6486 = vmatprep.subr.bf16.mxu0 0
        %6487 = vmatpush1.bf16.xpose.msra.mxu0 0
        %6488 = vmatprep.subr.bf16.mxu0 0
        %6489 = vmatpush1.bf16.xpose.msra.mxu0 0
        %6490 = vmatprep.subr.bf16.mxu0 0
        %6491 = vmatpush1.bf16.xpose.msra.mxu0 0
        %6492 = vmatprep.subr.bf16.mxu0 0
        %6493 = vmatpush1.bf16.xpose.msra.mxu0 0
        %6494 = vmatprep.subr.bf16.mxu0 0
        %6495 = vmatpush1.bf16.xpose.msra.mxu0 0
        %6496 = vmatprep.subr.bf16.mxu0 0
        %6497 = vmatpush1.bf16.xpose.msra.mxu0 0
        %6498 = vmatprep.subr.bf16.mxu0 %v3497
        %6499 = vmatpush1.bf16.xpose.msra.mxu0 %v3496
        %6500 = vmatprep.subr.bf16.mxu0 0
        %6501 = vmatpush2.bf16.xpose.msra.mxu0 0
        %6502 = vmatprep.subr.bf16.mxu0 0
        %6503 = vmatpush2.bf16.xpose.msra.mxu0 0
        %6504 = vmatprep.subr.bf16.mxu0 0
        %6505 = vmatpush2.bf16.xpose.msra.mxu0 0
        %6506 = vmatprep.subr.bf16.mxu0 0
        %6507 = vmatpush2.bf16.xpose.msra.mxu0 0
        %6508 = vmatprep.subr.bf16.mxu0 0
        %6509 = vmatpush2.bf16.xpose.msra.mxu0 0
        %6510 = vmatprep.subr.bf16.mxu0 0
        %6511 = vmatpush2.bf16.xpose.msra.mxu0 0
        %6512 = vmatprep.subr.bf16.mxu0 0
        %6513 = vmatpush2.bf16.xpose.msra.mxu0 0
        %6514 = vmatprep.subr.bf16.mxu0 0
        %6515 = vmatpush2.bf16.xpose.msra.mxu0 0
        %6516 = vmatprep.mubr.bf16.mxu0 %v1537
        %6517 = vmatmul.mubr.bf16.gmra.mxu0 %v1536
        %v6518 = vpop.f32.mrf.mxu0
        %v6519 = vadd.f32 %v6479, %v6518
        %v6520 = vpop.f32.mrf.mxu0
        %v6521 = vpop.f32.mrf.mxu0
        %v6522 = vpop.f32.mrf.mxu0
        %6523 = vdwg.mxu0
        %6524 = vmatprep.subr.bf16.mxu0 0
        %6525 = vmatpush1.bf16.xpose.msra.mxu0 0
        %6526 = vmatprep.subr.bf16.mxu0 0
        %6527 = vmatpush1.bf16.xpose.msra.mxu0 0
        %6528 = vmatprep.subr.bf16.mxu0 0
        %6529 = vmatpush1.bf16.xpose.msra.mxu0 0
        %6530 = vmatprep.subr.bf16.mxu0 0
        %6531 = vmatpush1.bf16.xpose.msra.mxu0 0
        %6532 = vmatprep.subr.bf16.mxu0 0
        %6533 = vmatpush1.bf16.xpose.msra.mxu0 0
        %6534 = vmatprep.subr.bf16.mxu0 0
        %6535 = vmatpush1.bf16.xpose.msra.mxu0 0
        %6536 = vmatprep.subr.bf16.mxu0 0
        %6537 = vmatpush1.bf16.xpose.msra.mxu0 0
        %6538 = vmatprep.subr.bf16.mxu0 %v3499
        %6539 = vmatpush1.bf16.xpose.msra.mxu0 %v3498
        %6540 = vmatprep.subr.bf16.mxu0 0
        %6541 = vmatpush2.bf16.xpose.msra.mxu0 0
        %6542 = vmatprep.subr.bf16.mxu0 0
        %6543 = vmatpush2.bf16.xpose.msra.mxu0 0
        %6544 = vmatprep.subr.bf16.mxu0 0
        %6545 = vmatpush2.bf16.xpose.msra.mxu0 0
        %6546 = vmatprep.subr.bf16.mxu0 0
        %6547 = vmatpush2.bf16.xpose.msra.mxu0 0
        %6548 = vmatprep.subr.bf16.mxu0 0
        %6549 = vmatpush2.bf16.xpose.msra.mxu0 0
        %6550 = vmatprep.subr.bf16.mxu0 0
        %6551 = vmatpush2.bf16.xpose.msra.mxu0 0
        %6552 = vmatprep.subr.bf16.mxu0 0
        %6553 = vmatpush2.bf16.xpose.msra.mxu0 0
        %6554 = vmatprep.subr.bf16.mxu0 0
        %6555 = vmatpush2.bf16.xpose.msra.mxu0 0
        %6556 = vmatprep.mubr.bf16.mxu0 %v1539
        %6557 = vmatmul.mubr.bf16.gmra.mxu0 %v1538
        %v6558 = vpop.f32.mrf.mxu0
        %v6559 = vadd.f32 %v6519, %v6558
        %v6560 = vpop.f32.mrf.mxu0
        %v6561 = vpop.f32.mrf.mxu0
        %v6562 = vpop.f32.mrf.mxu0
        %6563 = vdwg.mxu0
        %6564 = vmatprep.subr.bf16.mxu0 0
        %6565 = vmatpush1.bf16.xpose.msra.mxu0 0
        %6566 = vmatprep.subr.bf16.mxu0 0
        %6567 = vmatpush1.bf16.xpose.msra.mxu0 0
        %6568 = vmatprep.subr.bf16.mxu0 0
        %6569 = vmatpush1.bf16.xpose.msra.mxu0 0
        %6570 = vmatprep.subr.bf16.mxu0 0
        %6571 = vmatpush1.bf16.xpose.msra.mxu0 0
        %6572 = vmatprep.subr.bf16.mxu0 0
        %6573 = vmatpush1.bf16.xpose.msra.mxu0 0
        %6574 = vmatprep.subr.bf16.mxu0 0
        %6575 = vmatpush1.bf16.xpose.msra.mxu0 0
        %6576 = vmatprep.subr.bf16.mxu0 0
        %6577 = vmatpush1.bf16.xpose.msra.mxu0 0
        %6578 = vmatprep.subr.bf16.mxu0 %v3501
        %6579 = vmatpush1.bf16.xpose.msra.mxu0 %v3500
        %6580 = vmatprep.subr.bf16.mxu0 0
        %6581 = vmatpush2.bf16.xpose.msra.mxu0 0
        %6582 = vmatprep.subr.bf16.mxu0 0
        %6583 = vmatpush2.bf16.xpose.msra.mxu0 0
        %6584 = vmatprep.subr.bf16.mxu0 0
        %6585 = vmatpush2.bf16.xpose.msra.mxu0 0
        %6586 = vmatprep.subr.bf16.mxu0 0
        %6587 = vmatpush2.bf16.xpose.msra.mxu0 0
        %6588 = vmatprep.subr.bf16.mxu0 0
        %6589 = vmatpush2.bf16.xpose.msra.mxu0 0
        %6590 = vmatprep.subr.bf16.mxu0 0
        %6591 = vmatpush2.bf16.xpose.msra.mxu0 0
        %6592 = vmatprep.subr.bf16.mxu0 0
        %6593 = vmatpush2.bf16.xpose.msra.mxu0 0
        %6594 = vmatprep.subr.bf16.mxu0 0
        %6595 = vmatpush2.bf16.xpose.msra.mxu0 0
        %6596 = vmatprep.mubr.bf16.mxu0 %v1541
        %6597 = vmatmul.mubr.bf16.gmra.mxu0 %v1540
        %v6598 = vpop.f32.mrf.mxu0
        %v6599 = vadd.f32 %v6559, %v6598
        %v6600 = vpop.f32.mrf.mxu0
        %v6601 = vpop.f32.mrf.mxu0
        %v6602 = vpop.f32.mrf.mxu0
        %6603 = vdwg.mxu0
        %6604 = vmatprep.subr.bf16.mxu0 0
        %6605 = vmatpush1.bf16.xpose.msra.mxu0 0
        %6606 = vmatprep.subr.bf16.mxu0 0
        %6607 = vmatpush1.bf16.xpose.msra.mxu0 0
        %6608 = vmatprep.subr.bf16.mxu0 0
        %6609 = vmatpush1.bf16.xpose.msra.mxu0 0
        %6610 = vmatprep.subr.bf16.mxu0 0
        %6611 = vmatpush1.bf16.xpose.msra.mxu0 0
        %6612 = vmatprep.subr.bf16.mxu0 0
        %6613 = vmatpush1.bf16.xpose.msra.mxu0 0
        %6614 = vmatprep.subr.bf16.mxu0 0
        %6615 = vmatpush1.bf16.xpose.msra.mxu0 0
        %6616 = vmatprep.subr.bf16.mxu0 0
        %6617 = vmatpush1.bf16.xpose.msra.mxu0 0
        %6618 = vmatprep.subr.bf16.mxu0 %v3503
        %6619 = vmatpush1.bf16.xpose.msra.mxu0 %v3502
        %6620 = vmatprep.subr.bf16.mxu0 0
        %6621 = vmatpush2.bf16.xpose.msra.mxu0 0
        %6622 = vmatprep.subr.bf16.mxu0 0
        %6623 = vmatpush2.bf16.xpose.msra.mxu0 0
        %6624 = vmatprep.subr.bf16.mxu0 0
        %6625 = vmatpush2.bf16.xpose.msra.mxu0 0
        %6626 = vmatprep.subr.bf16.mxu0 0
        %6627 = vmatpush2.bf16.xpose.msra.mxu0 0
        %6628 = vmatprep.subr.bf16.mxu0 0
        %6629 = vmatpush2.bf16.xpose.msra.mxu0 0
        %6630 = vmatprep.subr.bf16.mxu0 0
        %6631 = vmatpush2.bf16.xpose.msra.mxu0 0
        %6632 = vmatprep.subr.bf16.mxu0 0
        %6633 = vmatpush2.bf16.xpose.msra.mxu0 0
        %6634 = vmatprep.subr.bf16.mxu0 0
        %6635 = vmatpush2.bf16.xpose.msra.mxu0 0
        %6636 = vmatprep.mubr.bf16.mxu0 %v1543
        %6637 = vmatmul.mubr.bf16.gmra.mxu0 %v1542
        %v6638 = vpop.f32.mrf.mxu0
        %v6639 = vadd.f32 %v6599, %v6638
        %v6640 = vpop.f32.mrf.mxu0
        %v6641 = vpop.f32.mrf.mxu0
        %v6642 = vpop.f32.mrf.mxu0
        %6643 = vdwg.mxu0
        %6644 = vmatprep.subr.bf16.mxu0 0
        %6645 = vmatpush1.bf16.xpose.msra.mxu0 0
        %6646 = vmatprep.subr.bf16.mxu0 0
        %6647 = vmatpush1.bf16.xpose.msra.mxu0 0
        %6648 = vmatprep.subr.bf16.mxu0 0
        %6649 = vmatpush1.bf16.xpose.msra.mxu0 0
        %6650 = vmatprep.subr.bf16.mxu0 0
        %6651 = vmatpush1.bf16.xpose.msra.mxu0 0
        %6652 = vmatprep.subr.bf16.mxu0 0
        %6653 = vmatpush1.bf16.xpose.msra.mxu0 0
        %6654 = vmatprep.subr.bf16.mxu0 0
        %6655 = vmatpush1.bf16.xpose.msra.mxu0 0
        %6656 = vmatprep.subr.bf16.mxu0 0
        %6657 = vmatpush1.bf16.xpose.msra.mxu0 0
        %6658 = vmatprep.subr.bf16.mxu0 %v3505
        %6659 = vmatpush1.bf16.xpose.msra.mxu0 %v3504
        %6660 = vmatprep.subr.bf16.mxu0 0
        %6661 = vmatpush2.bf16.xpose.msra.mxu0 0
        %6662 = vmatprep.subr.bf16.mxu0 0
        %6663 = vmatpush2.bf16.xpose.msra.mxu0 0
        %6664 = vmatprep.subr.bf16.mxu0 0
        %6665 = vmatpush2.bf16.xpose.msra.mxu0 0
        %6666 = vmatprep.subr.bf16.mxu0 0
        %6667 = vmatpush2.bf16.xpose.msra.mxu0 0
        %6668 = vmatprep.subr.bf16.mxu0 0
        %6669 = vmatpush2.bf16.xpose.msra.mxu0 0
        %6670 = vmatprep.subr.bf16.mxu0 0
        %6671 = vmatpush2.bf16.xpose.msra.mxu0 0
        %6672 = vmatprep.subr.bf16.mxu0 0
        %6673 = vmatpush2.bf16.xpose.msra.mxu0 0
        %6674 = vmatprep.subr.bf16.mxu0 0
        %6675 = vmatpush2.bf16.xpose.msra.mxu0 0
        %6676 = vmatprep.mubr.bf16.mxu0 %v1545
        %6677 = vmatmul.mubr.bf16.gmra.mxu0 %v1544
        %v6678 = vpop.f32.mrf.mxu0
        %v6679 = vadd.f32 %v6639, %v6678
        %v6680 = vpop.f32.mrf.mxu0
        %v6681 = vpop.f32.mrf.mxu0
        %v6682 = vpop.f32.mrf.mxu0
        %6683 = vdwg.mxu0
        %6684 = vmatprep.subr.bf16.mxu0 0
        %6685 = vmatpush1.bf16.xpose.msra.mxu0 0
        %6686 = vmatprep.subr.bf16.mxu0 0
        %6687 = vmatpush1.bf16.xpose.msra.mxu0 0
        %6688 = vmatprep.subr.bf16.mxu0 0
        %6689 = vmatpush1.bf16.xpose.msra.mxu0 0
        %6690 = vmatprep.subr.bf16.mxu0 0
        %6691 = vmatpush1.bf16.xpose.msra.mxu0 0
        %6692 = vmatprep.subr.bf16.mxu0 0
        %6693 = vmatpush1.bf16.xpose.msra.mxu0 0
        %6694 = vmatprep.subr.bf16.mxu0 0
        %6695 = vmatpush1.bf16.xpose.msra.mxu0 0
        %6696 = vmatprep.subr.bf16.mxu0 0
        %6697 = vmatpush1.bf16.xpose.msra.mxu0 0
        %6698 = vmatprep.subr.bf16.mxu0 %v3507
        %6699 = vmatpush1.bf16.xpose.msra.mxu0 %v3506
        %6700 = vmatprep.subr.bf16.mxu0 0
        %6701 = vmatpush2.bf16.xpose.msra.mxu0 0
        %6702 = vmatprep.subr.bf16.mxu0 0
        %6703 = vmatpush2.bf16.xpose.msra.mxu0 0
        %6704 = vmatprep.subr.bf16.mxu0 0
        %6705 = vmatpush2.bf16.xpose.msra.mxu0 0
        %6706 = vmatprep.subr.bf16.mxu0 0
        %6707 = vmatpush2.bf16.xpose.msra.mxu0 0
        %6708 = vmatprep.subr.bf16.mxu0 0
        %6709 = vmatpush2.bf16.xpose.msra.mxu0 0
        %6710 = vmatprep.subr.bf16.mxu0 0
        %6711 = vmatpush2.bf16.xpose.msra.mxu0 0
        %6712 = vmatprep.subr.bf16.mxu0 0
        %6713 = vmatpush2.bf16.xpose.msra.mxu0 0
        %6714 = vmatprep.subr.bf16.mxu0 0
        %6715 = vmatpush2.bf16.xpose.msra.mxu0 0
        %6716 = vmatprep.mubr.bf16.mxu0 %v1547
        %6717 = vmatmul.mubr.bf16.gmra.mxu0 %v1546
        %v6718 = vpop.f32.mrf.mxu0
        %v6719 = vadd.f32 %v6679, %v6718
        %v6720 = vpop.f32.mrf.mxu0
        %v6721 = vpop.f32.mrf.mxu0
        %v6722 = vpop.f32.mrf.mxu0
        %6723 = vdwg.mxu0
        %6724 = vmatprep.subr.bf16.mxu0 0
        %6725 = vmatpush1.bf16.xpose.msra.mxu0 0
        %6726 = vmatprep.subr.bf16.mxu0 0
        %6727 = vmatpush1.bf16.xpose.msra.mxu0 0
        %6728 = vmatprep.subr.bf16.mxu0 0
        %6729 = vmatpush1.bf16.xpose.msra.mxu0 0
        %6730 = vmatprep.subr.bf16.mxu0 0
        %6731 = vmatpush1.bf16.xpose.msra.mxu0 0
        %6732 = vmatprep.subr.bf16.mxu0 0
        %6733 = vmatpush1.bf16.xpose.msra.mxu0 0
        %6734 = vmatprep.subr.bf16.mxu0 0
        %6735 = vmatpush1.bf16.xpose.msra.mxu0 0
        %6736 = vmatprep.subr.bf16.mxu0 0
        %6737 = vmatpush1.bf16.xpose.msra.mxu0 0
        %6738 = vmatprep.subr.bf16.mxu0 %v3509
        %6739 = vmatpush1.bf16.xpose.msra.mxu0 %v3508
        %6740 = vmatprep.subr.bf16.mxu0 0
        %6741 = vmatpush2.bf16.xpose.msra.mxu0 0
        %6742 = vmatprep.subr.bf16.mxu0 0
        %6743 = vmatpush2.bf16.xpose.msra.mxu0 0
        %6744 = vmatprep.subr.bf16.mxu0 0
        %6745 = vmatpush2.bf16.xpose.msra.mxu0 0
        %6746 = vmatprep.subr.bf16.mxu0 0
        %6747 = vmatpush2.bf16.xpose.msra.mxu0 0
        %6748 = vmatprep.subr.bf16.mxu0 0
        %6749 = vmatpush2.bf16.xpose.msra.mxu0 0
        %6750 = vmatprep.subr.bf16.mxu0 0
        %6751 = vmatpush2.bf16.xpose.msra.mxu0 0
        %6752 = vmatprep.subr.bf16.mxu0 0
        %6753 = vmatpush2.bf16.xpose.msra.mxu0 0
        %6754 = vmatprep.subr.bf16.mxu0 0
        %6755 = vmatpush2.bf16.xpose.msra.mxu0 0
        %6756 = vmatprep.mubr.bf16.mxu0 %v1549
        %6757 = vmatmul.mubr.bf16.gmra.mxu0 %v1548
        %v6758 = vpop.f32.mrf.mxu0
        %v6759 = vadd.f32 %v6719, %v6758
        %v6760 = vpop.f32.mrf.mxu0
        %v6761 = vpop.f32.mrf.mxu0
        %v6762 = vpop.f32.mrf.mxu0
        %6763 = vdwg.mxu0
        %6764 = vmatprep.subr.bf16.mxu0 0
        %6765 = vmatpush1.bf16.xpose.msra.mxu0 0
        %6766 = vmatprep.subr.bf16.mxu0 0
        %6767 = vmatpush1.bf16.xpose.msra.mxu0 0
        %6768 = vmatprep.subr.bf16.mxu0 0
        %6769 = vmatpush1.bf16.xpose.msra.mxu0 0
        %6770 = vmatprep.subr.bf16.mxu0 0
        %6771 = vmatpush1.bf16.xpose.msra.mxu0 0
        %6772 = vmatprep.subr.bf16.mxu0 0
        %6773 = vmatpush1.bf16.xpose.msra.mxu0 0
        %6774 = vmatprep.subr.bf16.mxu0 0
        %6775 = vmatpush1.bf16.xpose.msra.mxu0 0
        %6776 = vmatprep.subr.bf16.mxu0 0
        %6777 = vmatpush1.bf16.xpose.msra.mxu0 0
        %6778 = vmatprep.subr.bf16.mxu0 %v3511
        %6779 = vmatpush1.bf16.xpose.msra.mxu0 %v3510
        %6780 = vmatprep.subr.bf16.mxu0 0
        %6781 = vmatpush2.bf16.xpose.msra.mxu0 0
        %6782 = vmatprep.subr.bf16.mxu0 0
        %6783 = vmatpush2.bf16.xpose.msra.mxu0 0
        %6784 = vmatprep.subr.bf16.mxu0 0
        %6785 = vmatpush2.bf16.xpose.msra.mxu0 0
        %6786 = vmatprep.subr.bf16.mxu0 0
        %6787 = vmatpush2.bf16.xpose.msra.mxu0 0
        %6788 = vmatprep.subr.bf16.mxu0 0
        %6789 = vmatpush2.bf16.xpose.msra.mxu0 0
        %6790 = vmatprep.subr.bf16.mxu0 0
        %6791 = vmatpush2.bf16.xpose.msra.mxu0 0
        %6792 = vmatprep.subr.bf16.mxu0 0
        %6793 = vmatpush2.bf16.xpose.msra.mxu0 0
        %6794 = vmatprep.subr.bf16.mxu0 0
        %6795 = vmatpush2.bf16.xpose.msra.mxu0 0
        %6796 = vmatprep.mubr.bf16.mxu0 %v1551
        %6797 = vmatmul.mubr.bf16.gmra.mxu0 %v1550
        %v6798 = vpop.f32.mrf.mxu0
        %v6799 = vadd.f32 %v6759, %v6798
        %v6800 = vpop.f32.mrf.mxu0
        %v6801 = vpop.f32.mrf.mxu0
        %v6802 = vpop.f32.mrf.mxu0
        %6803 = vdwg.mxu0
        %6804 = vmatprep.subr.bf16.mxu0 0
        %6805 = vmatpush1.bf16.xpose.msra.mxu0 0
        %6806 = vmatprep.subr.bf16.mxu0 0
        %6807 = vmatpush1.bf16.xpose.msra.mxu0 0
        %6808 = vmatprep.subr.bf16.mxu0 0
        %6809 = vmatpush1.bf16.xpose.msra.mxu0 0
        %6810 = vmatprep.subr.bf16.mxu0 0
        %6811 = vmatpush1.bf16.xpose.msra.mxu0 0
        %6812 = vmatprep.subr.bf16.mxu0 0
        %6813 = vmatpush1.bf16.xpose.msra.mxu0 0
        %6814 = vmatprep.subr.bf16.mxu0 0
        %6815 = vmatpush1.bf16.xpose.msra.mxu0 0
        %6816 = vmatprep.subr.bf16.mxu0 0
        %6817 = vmatpush1.bf16.xpose.msra.mxu0 0
        %6818 = vmatprep.subr.bf16.mxu0 %v3513
        %6819 = vmatpush1.bf16.xpose.msra.mxu0 %v3512
        %6820 = vmatprep.subr.bf16.mxu0 0
        %6821 = vmatpush2.bf16.xpose.msra.mxu0 0
        %6822 = vmatprep.subr.bf16.mxu0 0
        %6823 = vmatpush2.bf16.xpose.msra.mxu0 0
        %6824 = vmatprep.subr.bf16.mxu0 0
        %6825 = vmatpush2.bf16.xpose.msra.mxu0 0
        %6826 = vmatprep.subr.bf16.mxu0 0
        %6827 = vmatpush2.bf16.xpose.msra.mxu0 0
        %6828 = vmatprep.subr.bf16.mxu0 0
        %6829 = vmatpush2.bf16.xpose.msra.mxu0 0
        %6830 = vmatprep.subr.bf16.mxu0 0
        %6831 = vmatpush2.bf16.xpose.msra.mxu0 0
        %6832 = vmatprep.subr.bf16.mxu0 0
        %6833 = vmatpush2.bf16.xpose.msra.mxu0 0
        %6834 = vmatprep.subr.bf16.mxu0 0
        %6835 = vmatpush2.bf16.xpose.msra.mxu0 0
        %6836 = vmatprep.mubr.bf16.mxu0 %v1553
        %6837 = vmatmul.mubr.bf16.gmra.mxu0 %v1552
        %v6838 = vpop.f32.mrf.mxu0
        %v6839 = vadd.f32 %v6799, %v6838
        %v6840 = vpop.f32.mrf.mxu0
        %v6841 = vpop.f32.mrf.mxu0
        %v6842 = vpop.f32.mrf.mxu0
        %6843 = vdwg.mxu0
        %6844 = vmatprep.subr.bf16.mxu0 0
        %6845 = vmatpush1.bf16.xpose.msra.mxu0 0
        %6846 = vmatprep.subr.bf16.mxu0 0
        %6847 = vmatpush1.bf16.xpose.msra.mxu0 0
        %6848 = vmatprep.subr.bf16.mxu0 0
        %6849 = vmatpush1.bf16.xpose.msra.mxu0 0
        %6850 = vmatprep.subr.bf16.mxu0 0
        %6851 = vmatpush1.bf16.xpose.msra.mxu0 0
        %6852 = vmatprep.subr.bf16.mxu0 0
        %6853 = vmatpush1.bf16.xpose.msra.mxu0 0
        %6854 = vmatprep.subr.bf16.mxu0 0
        %6855 = vmatpush1.bf16.xpose.msra.mxu0 0
        %6856 = vmatprep.subr.bf16.mxu0 0
        %6857 = vmatpush1.bf16.xpose.msra.mxu0 0
        %6858 = vmatprep.subr.bf16.mxu0 %v3515
        %6859 = vmatpush1.bf16.xpose.msra.mxu0 %v3514
        %6860 = vmatprep.subr.bf16.mxu0 0
        %6861 = vmatpush2.bf16.xpose.msra.mxu0 0
        %6862 = vmatprep.subr.bf16.mxu0 0
        %6863 = vmatpush2.bf16.xpose.msra.mxu0 0
        %6864 = vmatprep.subr.bf16.mxu0 0
        %6865 = vmatpush2.bf16.xpose.msra.mxu0 0
        %6866 = vmatprep.subr.bf16.mxu0 0
        %6867 = vmatpush2.bf16.xpose.msra.mxu0 0
        %6868 = vmatprep.subr.bf16.mxu0 0
        %6869 = vmatpush2.bf16.xpose.msra.mxu0 0
        %6870 = vmatprep.subr.bf16.mxu0 0
        %6871 = vmatpush2.bf16.xpose.msra.mxu0 0
        %6872 = vmatprep.subr.bf16.mxu0 0
        %6873 = vmatpush2.bf16.xpose.msra.mxu0 0
        %6874 = vmatprep.subr.bf16.mxu0 0
        %6875 = vmatpush2.bf16.xpose.msra.mxu0 0
        %6876 = vmatprep.mubr.bf16.mxu0 %v1555
        %6877 = vmatmul.mubr.bf16.gmra.mxu0 %v1554
        %v6878 = vpop.f32.mrf.mxu0
        %v6879 = vadd.f32 %v6839, %v6878
        %v6880 = vpop.f32.mrf.mxu0
        %v6881 = vpop.f32.mrf.mxu0
        %v6882 = vpop.f32.mrf.mxu0
        %6883 = vdwg.mxu0
        %6884 = vmatprep.subr.bf16.mxu0 0
        %6885 = vmatpush1.bf16.xpose.msra.mxu0 0
        %6886 = vmatprep.subr.bf16.mxu0 0
        %6887 = vmatpush1.bf16.xpose.msra.mxu0 0
        %6888 = vmatprep.subr.bf16.mxu0 0
        %6889 = vmatpush1.bf16.xpose.msra.mxu0 0
        %6890 = vmatprep.subr.bf16.mxu0 0
        %6891 = vmatpush1.bf16.xpose.msra.mxu0 0
        %6892 = vmatprep.subr.bf16.mxu0 0
        %6893 = vmatpush1.bf16.xpose.msra.mxu0 0
        %6894 = vmatprep.subr.bf16.mxu0 0
        %6895 = vmatpush1.bf16.xpose.msra.mxu0 0
        %6896 = vmatprep.subr.bf16.mxu0 0
        %6897 = vmatpush1.bf16.xpose.msra.mxu0 0
        %6898 = vmatprep.subr.bf16.mxu0 %v3517
        %6899 = vmatpush1.bf16.xpose.msra.mxu0 %v3516
        %6900 = vmatprep.subr.bf16.mxu0 0
        %6901 = vmatpush2.bf16.xpose.msra.mxu0 0
        %6902 = vmatprep.subr.bf16.mxu0 0
        %6903 = vmatpush2.bf16.xpose.msra.mxu0 0
        %6904 = vmatprep.subr.bf16.mxu0 0
        %6905 = vmatpush2.bf16.xpose.msra.mxu0 0
        %6906 = vmatprep.subr.bf16.mxu0 0
        %6907 = vmatpush2.bf16.xpose.msra.mxu0 0
        %6908 = vmatprep.subr.bf16.mxu0 0
        %6909 = vmatpush2.bf16.xpose.msra.mxu0 0
        %6910 = vmatprep.subr.bf16.mxu0 0
        %6911 = vmatpush2.bf16.xpose.msra.mxu0 0
        %6912 = vmatprep.subr.bf16.mxu0 0
        %6913 = vmatpush2.bf16.xpose.msra.mxu0 0
        %6914 = vmatprep.subr.bf16.mxu0 0
        %6915 = vmatpush2.bf16.xpose.msra.mxu0 0
        %6916 = vmatprep.mubr.bf16.mxu0 %v1557
        %6917 = vmatmul.mubr.bf16.gmra.mxu0 %v1556
        %v6918 = vpop.f32.mrf.mxu0
        %v6919 = vadd.f32 %v6879, %v6918
        %v6920 = vpop.f32.mrf.mxu0
        %v6921 = vpop.f32.mrf.mxu0
        %v6922 = vpop.f32.mrf.mxu0
        %6923 = vdwg.mxu0
        %6924 = vmatprep.subr.bf16.mxu0 0
        %6925 = vmatpush1.bf16.xpose.msra.mxu0 0
        %6926 = vmatprep.subr.bf16.mxu0 0
        %6927 = vmatpush1.bf16.xpose.msra.mxu0 0
        %6928 = vmatprep.subr.bf16.mxu0 0
        %6929 = vmatpush1.bf16.xpose.msra.mxu0 0
        %6930 = vmatprep.subr.bf16.mxu0 0
        %6931 = vmatpush1.bf16.xpose.msra.mxu0 0
        %6932 = vmatprep.subr.bf16.mxu0 0
        %6933 = vmatpush1.bf16.xpose.msra.mxu0 0
        %6934 = vmatprep.subr.bf16.mxu0 0
        %6935 = vmatpush1.bf16.xpose.msra.mxu0 0
        %6936 = vmatprep.subr.bf16.mxu0 0
        %6937 = vmatpush1.bf16.xpose.msra.mxu0 0
        %6938 = vmatprep.subr.bf16.mxu0 %v3519
        %6939 = vmatpush1.bf16.xpose.msra.mxu0 %v3518
        %6940 = vmatprep.subr.bf16.mxu0 0
        %6941 = vmatpush2.bf16.xpose.msra.mxu0 0
        %6942 = vmatprep.subr.bf16.mxu0 0
        %6943 = vmatpush2.bf16.xpose.msra.mxu0 0
        %6944 = vmatprep.subr.bf16.mxu0 0
        %6945 = vmatpush2.bf16.xpose.msra.mxu0 0
        %6946 = vmatprep.subr.bf16.mxu0 0
        %6947 = vmatpush2.bf16.xpose.msra.mxu0 0
        %6948 = vmatprep.subr.bf16.mxu0 0
        %6949 = vmatpush2.bf16.xpose.msra.mxu0 0
        %6950 = vmatprep.subr.bf16.mxu0 0
        %6951 = vmatpush2.bf16.xpose.msra.mxu0 0
        %6952 = vmatprep.subr.bf16.mxu0 0
        %6953 = vmatpush2.bf16.xpose.msra.mxu0 0
        %6954 = vmatprep.subr.bf16.mxu0 0
        %6955 = vmatpush2.bf16.xpose.msra.mxu0 0
        %6956 = vmatprep.mubr.bf16.mxu0 %v1559
        %6957 = vmatmul.mubr.bf16.gmra.mxu0 %v1558
        %v6958 = vpop.f32.mrf.mxu0
        %v6959 = vadd.f32 %v6919, %v6958
        %v6960 = vpop.f32.mrf.mxu0
        %v6961 = vpop.f32.mrf.mxu0
        %v6962 = vpop.f32.mrf.mxu0
        %6963 = vdwg.mxu0
        %6964 = vmatprep.subr.bf16.mxu0 0
        %6965 = vmatpush1.bf16.xpose.msra.mxu0 0
        %6966 = vmatprep.subr.bf16.mxu0 0
        %6967 = vmatpush1.bf16.xpose.msra.mxu0 0
        %6968 = vmatprep.subr.bf16.mxu0 0
        %6969 = vmatpush1.bf16.xpose.msra.mxu0 0
        %6970 = vmatprep.subr.bf16.mxu0 0
        %6971 = vmatpush1.bf16.xpose.msra.mxu0 0
        %6972 = vmatprep.subr.bf16.mxu0 0
        %6973 = vmatpush1.bf16.xpose.msra.mxu0 0
        %6974 = vmatprep.subr.bf16.mxu0 0
        %6975 = vmatpush1.bf16.xpose.msra.mxu0 0
        %6976 = vmatprep.subr.bf16.mxu0 0
        %6977 = vmatpush1.bf16.xpose.msra.mxu0 0
        %6978 = vmatprep.subr.bf16.mxu0 %v3521
        %6979 = vmatpush1.bf16.xpose.msra.mxu0 %v3520
        %6980 = vmatprep.subr.bf16.mxu0 0
        %6981 = vmatpush2.bf16.xpose.msra.mxu0 0
        %6982 = vmatprep.subr.bf16.mxu0 0
        %6983 = vmatpush2.bf16.xpose.msra.mxu0 0
        %6984 = vmatprep.subr.bf16.mxu0 0
        %6985 = vmatpush2.bf16.xpose.msra.mxu0 0
        %6986 = vmatprep.subr.bf16.mxu0 0
        %6987 = vmatpush2.bf16.xpose.msra.mxu0 0
        %6988 = vmatprep.subr.bf16.mxu0 0
        %6989 = vmatpush2.bf16.xpose.msra.mxu0 0
        %6990 = vmatprep.subr.bf16.mxu0 0
        %6991 = vmatpush2.bf16.xpose.msra.mxu0 0
        %6992 = vmatprep.subr.bf16.mxu0 0
        %6993 = vmatpush2.bf16.xpose.msra.mxu0 0
        %6994 = vmatprep.subr.bf16.mxu0 0
        %6995 = vmatpush2.bf16.xpose.msra.mxu0 0
        %6996 = vmatprep.mubr.bf16.mxu0 %v1561
        %6997 = vmatmul.mubr.bf16.gmra.mxu0 %v1560
        %v6998 = vpop.f32.mrf.mxu0
        %v6999 = vadd.f32 %v6959, %v6998
        %v7000 = vpop.f32.mrf.mxu0
        %v7001 = vpop.f32.mrf.mxu0
        %v7002 = vpop.f32.mrf.mxu0
        %7003 = vdwg.mxu0
        %7004 = vmatprep.subr.bf16.mxu0 0
        %7005 = vmatpush1.bf16.xpose.msra.mxu0 0
        %7006 = vmatprep.subr.bf16.mxu0 0
        %7007 = vmatpush1.bf16.xpose.msra.mxu0 0
        %7008 = vmatprep.subr.bf16.mxu0 0
        %7009 = vmatpush1.bf16.xpose.msra.mxu0 0
        %7010 = vmatprep.subr.bf16.mxu0 0
        %7011 = vmatpush1.bf16.xpose.msra.mxu0 0
        %7012 = vmatprep.subr.bf16.mxu0 0
        %7013 = vmatpush1.bf16.xpose.msra.mxu0 0
        %7014 = vmatprep.subr.bf16.mxu0 0
        %7015 = vmatpush1.bf16.xpose.msra.mxu0 0
        %7016 = vmatprep.subr.bf16.mxu0 0
        %7017 = vmatpush1.bf16.xpose.msra.mxu0 0
        %7018 = vmatprep.subr.bf16.mxu0 %v3523
        %7019 = vmatpush1.bf16.xpose.msra.mxu0 %v3522
        %7020 = vmatprep.subr.bf16.mxu0 0
        %7021 = vmatpush2.bf16.xpose.msra.mxu0 0
        %7022 = vmatprep.subr.bf16.mxu0 0
        %7023 = vmatpush2.bf16.xpose.msra.mxu0 0
        %7024 = vmatprep.subr.bf16.mxu0 0
        %7025 = vmatpush2.bf16.xpose.msra.mxu0 0
        %7026 = vmatprep.subr.bf16.mxu0 0
        %7027 = vmatpush2.bf16.xpose.msra.mxu0 0
        %7028 = vmatprep.subr.bf16.mxu0 0
        %7029 = vmatpush2.bf16.xpose.msra.mxu0 0
        %7030 = vmatprep.subr.bf16.mxu0 0
        %7031 = vmatpush2.bf16.xpose.msra.mxu0 0
        %7032 = vmatprep.subr.bf16.mxu0 0
        %7033 = vmatpush2.bf16.xpose.msra.mxu0 0
        %7034 = vmatprep.subr.bf16.mxu0 0
        %7035 = vmatpush2.bf16.xpose.msra.mxu0 0
        %7036 = vmatprep.mubr.bf16.mxu0 %v1563
        %7037 = vmatmul.mubr.bf16.gmra.mxu0 %v1562
        %v7038 = vpop.f32.mrf.mxu0
        %v7039 = vadd.f32 %v6999, %v7038
        %v7040 = vpop.f32.mrf.mxu0
        %v7041 = vpop.f32.mrf.mxu0
        %v7042 = vpop.f32.mrf.mxu0
        %7043 = vdwg.mxu0
        %7044 = vmatprep.subr.bf16.mxu0 0
        %7045 = vmatpush1.bf16.xpose.msra.mxu0 0
        %7046 = vmatprep.subr.bf16.mxu0 0
        %7047 = vmatpush1.bf16.xpose.msra.mxu0 0
        %7048 = vmatprep.subr.bf16.mxu0 0
        %7049 = vmatpush1.bf16.xpose.msra.mxu0 0
        %7050 = vmatprep.subr.bf16.mxu0 0
        %7051 = vmatpush1.bf16.xpose.msra.mxu0 0
        %7052 = vmatprep.subr.bf16.mxu0 0
        %7053 = vmatpush1.bf16.xpose.msra.mxu0 0
        %7054 = vmatprep.subr.bf16.mxu0 0
        %7055 = vmatpush1.bf16.xpose.msra.mxu0 0
        %7056 = vmatprep.subr.bf16.mxu0 0
        %7057 = vmatpush1.bf16.xpose.msra.mxu0 0
        %7058 = vmatprep.subr.bf16.mxu0 %v3525
        %7059 = vmatpush1.bf16.xpose.msra.mxu0 %v3524
        %7060 = vmatprep.subr.bf16.mxu0 0
        %7061 = vmatpush2.bf16.xpose.msra.mxu0 0
        %7062 = vmatprep.subr.bf16.mxu0 0
        %7063 = vmatpush2.bf16.xpose.msra.mxu0 0
        %7064 = vmatprep.subr.bf16.mxu0 0
        %7065 = vmatpush2.bf16.xpose.msra.mxu0 0
        %7066 = vmatprep.subr.bf16.mxu0 0
        %7067 = vmatpush2.bf16.xpose.msra.mxu0 0
        %7068 = vmatprep.subr.bf16.mxu0 0
        %7069 = vmatpush2.bf16.xpose.msra.mxu0 0
        %7070 = vmatprep.subr.bf16.mxu0 0
        %7071 = vmatpush2.bf16.xpose.msra.mxu0 0
        %7072 = vmatprep.subr.bf16.mxu0 0
        %7073 = vmatpush2.bf16.xpose.msra.mxu0 0
        %7074 = vmatprep.subr.bf16.mxu0 0
        %7075 = vmatpush2.bf16.xpose.msra.mxu0 0
        %7076 = vmatprep.mubr.bf16.mxu0 %v1565
        %7077 = vmatmul.mubr.bf16.gmra.mxu0 %v1564
        %v7078 = vpop.f32.mrf.mxu0
        %v7079 = vadd.f32 %v7039, %v7078
        %v7080 = vpop.f32.mrf.mxu0
        %v7081 = vpop.f32.mrf.mxu0
        %v7082 = vpop.f32.mrf.mxu0
        %7083 = vdwg.mxu0
        %7084 = vmatprep.subr.bf16.mxu0 0
        %7085 = vmatpush1.bf16.xpose.msra.mxu0 0
        %7086 = vmatprep.subr.bf16.mxu0 0
        %7087 = vmatpush1.bf16.xpose.msra.mxu0 0
        %7088 = vmatprep.subr.bf16.mxu0 0
        %7089 = vmatpush1.bf16.xpose.msra.mxu0 0
        %7090 = vmatprep.subr.bf16.mxu0 0
        %7091 = vmatpush1.bf16.xpose.msra.mxu0 0
        %7092 = vmatprep.subr.bf16.mxu0 0
        %7093 = vmatpush1.bf16.xpose.msra.mxu0 0
        %7094 = vmatprep.subr.bf16.mxu0 0
        %7095 = vmatpush1.bf16.xpose.msra.mxu0 0
        %7096 = vmatprep.subr.bf16.mxu0 0
        %7097 = vmatpush1.bf16.xpose.msra.mxu0 0
        %7098 = vmatprep.subr.bf16.mxu0 %v3527
        %7099 = vmatpush1.bf16.xpose.msra.mxu0 %v3526
        %7100 = vmatprep.subr.bf16.mxu0 0
        %7101 = vmatpush2.bf16.xpose.msra.mxu0 0
        %7102 = vmatprep.subr.bf16.mxu0 0
        %7103 = vmatpush2.bf16.xpose.msra.mxu0 0
        %7104 = vmatprep.subr.bf16.mxu0 0
        %7105 = vmatpush2.bf16.xpose.msra.mxu0 0
        %7106 = vmatprep.subr.bf16.mxu0 0
        %7107 = vmatpush2.bf16.xpose.msra.mxu0 0
        %7108 = vmatprep.subr.bf16.mxu0 0
        %7109 = vmatpush2.bf16.xpose.msra.mxu0 0
        %7110 = vmatprep.subr.bf16.mxu0 0
        %7111 = vmatpush2.bf16.xpose.msra.mxu0 0
        %7112 = vmatprep.subr.bf16.mxu0 0
        %7113 = vmatpush2.bf16.xpose.msra.mxu0 0
        %7114 = vmatprep.subr.bf16.mxu0 0
        %7115 = vmatpush2.bf16.xpose.msra.mxu0 0
        %7116 = vmatprep.mubr.bf16.mxu0 %v1567
        %7117 = vmatmul.mubr.bf16.gmra.mxu0 %v1566
        %v7118 = vpop.f32.mrf.mxu0
        %v7119 = vadd.f32 %v7079, %v7118
        %v7120 = vpop.f32.mrf.mxu0
        %v7121 = vpop.f32.mrf.mxu0
        %v7122 = vpop.f32.mrf.mxu0
        %7123 = vdwg.mxu0
        %7124 = vmatprep.subr.bf16.mxu0 0
        %7125 = vmatpush1.bf16.xpose.msra.mxu0 0
        %7126 = vmatprep.subr.bf16.mxu0 0
        %7127 = vmatpush1.bf16.xpose.msra.mxu0 0
        %7128 = vmatprep.subr.bf16.mxu0 0
        %7129 = vmatpush1.bf16.xpose.msra.mxu0 0
        %7130 = vmatprep.subr.bf16.mxu0 0
        %7131 = vmatpush1.bf16.xpose.msra.mxu0 0
        %7132 = vmatprep.subr.bf16.mxu0 0
        %7133 = vmatpush1.bf16.xpose.msra.mxu0 0
        %7134 = vmatprep.subr.bf16.mxu0 0
        %7135 = vmatpush1.bf16.xpose.msra.mxu0 0
        %7136 = vmatprep.subr.bf16.mxu0 0
        %7137 = vmatpush1.bf16.xpose.msra.mxu0 0
        %7138 = vmatprep.subr.bf16.mxu0 %v3529
        %7139 = vmatpush1.bf16.xpose.msra.mxu0 %v3528
        %7140 = vmatprep.subr.bf16.mxu0 0
        %7141 = vmatpush2.bf16.xpose.msra.mxu0 0
        %7142 = vmatprep.subr.bf16.mxu0 0
        %7143 = vmatpush2.bf16.xpose.msra.mxu0 0
        %7144 = vmatprep.subr.bf16.mxu0 0
        %7145 = vmatpush2.bf16.xpose.msra.mxu0 0
        %7146 = vmatprep.subr.bf16.mxu0 0
        %7147 = vmatpush2.bf16.xpose.msra.mxu0 0
        %7148 = vmatprep.subr.bf16.mxu0 0
        %7149 = vmatpush2.bf16.xpose.msra.mxu0 0
        %7150 = vmatprep.subr.bf16.mxu0 0
        %7151 = vmatpush2.bf16.xpose.msra.mxu0 0
        %7152 = vmatprep.subr.bf16.mxu0 0
        %7153 = vmatpush2.bf16.xpose.msra.mxu0 0
        %7154 = vmatprep.subr.bf16.mxu0 0
        %7155 = vmatpush2.bf16.xpose.msra.mxu0 0
        %7156 = vmatprep.mubr.bf16.mxu0 %v1569
        %7157 = vmatmul.mubr.bf16.gmra.mxu0 %v1568
        %v7158 = vpop.f32.mrf.mxu0
        %v7159 = vadd.f32 %v7119, %v7158
        %v7160 = vpop.f32.mrf.mxu0
        %v7161 = vpop.f32.mrf.mxu0
        %v7162 = vpop.f32.mrf.mxu0
        %7163 = vdwg.mxu0
        %7164 = vmatprep.subr.bf16.mxu0 0
        %7165 = vmatpush1.bf16.xpose.msra.mxu0 0
        %7166 = vmatprep.subr.bf16.mxu0 0
        %7167 = vmatpush1.bf16.xpose.msra.mxu0 0
        %7168 = vmatprep.subr.bf16.mxu0 0
        %7169 = vmatpush1.bf16.xpose.msra.mxu0 0
        %7170 = vmatprep.subr.bf16.mxu0 0
        %7171 = vmatpush1.bf16.xpose.msra.mxu0 0
        %7172 = vmatprep.subr.bf16.mxu0 0
        %7173 = vmatpush1.bf16.xpose.msra.mxu0 0
        %7174 = vmatprep.subr.bf16.mxu0 0
        %7175 = vmatpush1.bf16.xpose.msra.mxu0 0
        %7176 = vmatprep.subr.bf16.mxu0 0
        %7177 = vmatpush1.bf16.xpose.msra.mxu0 0
        %7178 = vmatprep.subr.bf16.mxu0 %v3531
        %7179 = vmatpush1.bf16.xpose.msra.mxu0 %v3530
        %7180 = vmatprep.subr.bf16.mxu0 0
        %7181 = vmatpush2.bf16.xpose.msra.mxu0 0
        %7182 = vmatprep.subr.bf16.mxu0 0
        %7183 = vmatpush2.bf16.xpose.msra.mxu0 0
        %7184 = vmatprep.subr.bf16.mxu0 0
        %7185 = vmatpush2.bf16.xpose.msra.mxu0 0
        %7186 = vmatprep.subr.bf16.mxu0 0
        %7187 = vmatpush2.bf16.xpose.msra.mxu0 0
        %7188 = vmatprep.subr.bf16.mxu0 0
        %7189 = vmatpush2.bf16.xpose.msra.mxu0 0
        %7190 = vmatprep.subr.bf16.mxu0 0
        %7191 = vmatpush2.bf16.xpose.msra.mxu0 0
        %7192 = vmatprep.subr.bf16.mxu0 0
        %7193 = vmatpush2.bf16.xpose.msra.mxu0 0
        %7194 = vmatprep.subr.bf16.mxu0 0
        %7195 = vmatpush2.bf16.xpose.msra.mxu0 0
        %7196 = vmatprep.mubr.bf16.mxu0 %v1571
        %7197 = vmatmul.mubr.bf16.gmra.mxu0 %v1570
        %v7198 = vpop.f32.mrf.mxu0
        %v7199 = vadd.f32 %v7159, %v7198
        %v7200 = vpop.f32.mrf.mxu0
        %v7201 = vpop.f32.mrf.mxu0
        %v7202 = vpop.f32.mrf.mxu0
        %7203 = vdwg.mxu0
        %7204 = vmatprep.subr.bf16.mxu0 0
        %7205 = vmatpush1.bf16.xpose.msra.mxu0 0
        %7206 = vmatprep.subr.bf16.mxu0 0
        %7207 = vmatpush1.bf16.xpose.msra.mxu0 0
        %7208 = vmatprep.subr.bf16.mxu0 0
        %7209 = vmatpush1.bf16.xpose.msra.mxu0 0
        %7210 = vmatprep.subr.bf16.mxu0 0
        %7211 = vmatpush1.bf16.xpose.msra.mxu0 0
        %7212 = vmatprep.subr.bf16.mxu0 0
        %7213 = vmatpush1.bf16.xpose.msra.mxu0 0
        %7214 = vmatprep.subr.bf16.mxu0 0
        %7215 = vmatpush1.bf16.xpose.msra.mxu0 0
        %7216 = vmatprep.subr.bf16.mxu0 0
        %7217 = vmatpush1.bf16.xpose.msra.mxu0 0
        %7218 = vmatprep.subr.bf16.mxu0 %v3533
        %7219 = vmatpush1.bf16.xpose.msra.mxu0 %v3532
        %7220 = vmatprep.subr.bf16.mxu0 0
        %7221 = vmatpush2.bf16.xpose.msra.mxu0 0
        %7222 = vmatprep.subr.bf16.mxu0 0
        %7223 = vmatpush2.bf16.xpose.msra.mxu0 0
        %7224 = vmatprep.subr.bf16.mxu0 0
        %7225 = vmatpush2.bf16.xpose.msra.mxu0 0
        %7226 = vmatprep.subr.bf16.mxu0 0
        %7227 = vmatpush2.bf16.xpose.msra.mxu0 0
        %7228 = vmatprep.subr.bf16.mxu0 0
        %7229 = vmatpush2.bf16.xpose.msra.mxu0 0
        %7230 = vmatprep.subr.bf16.mxu0 0
        %7231 = vmatpush2.bf16.xpose.msra.mxu0 0
        %7232 = vmatprep.subr.bf16.mxu0 0
        %7233 = vmatpush2.bf16.xpose.msra.mxu0 0
        %7234 = vmatprep.subr.bf16.mxu0 0
        %7235 = vmatpush2.bf16.xpose.msra.mxu0 0
        %7236 = vmatprep.mubr.bf16.mxu0 %v1573
        %7237 = vmatmul.mubr.bf16.gmra.mxu0 %v1572
        %v7238 = vpop.f32.mrf.mxu0
        %v7239 = vadd.f32 %v7199, %v7238
        %v7240 = vpop.f32.mrf.mxu0
        %v7241 = vpop.f32.mrf.mxu0
        %v7242 = vpop.f32.mrf.mxu0
        %7243 = vdwg.mxu0
        %7244 = vmatprep.subr.bf16.mxu0 0
        %7245 = vmatpush1.bf16.xpose.msra.mxu0 0
        %7246 = vmatprep.subr.bf16.mxu0 0
        %7247 = vmatpush1.bf16.xpose.msra.mxu0 0
        %7248 = vmatprep.subr.bf16.mxu0 0
        %7249 = vmatpush1.bf16.xpose.msra.mxu0 0
        %7250 = vmatprep.subr.bf16.mxu0 0
        %7251 = vmatpush1.bf16.xpose.msra.mxu0 0
        %7252 = vmatprep.subr.bf16.mxu0 0
        %7253 = vmatpush1.bf16.xpose.msra.mxu0 0
        %7254 = vmatprep.subr.bf16.mxu0 0
        %7255 = vmatpush1.bf16.xpose.msra.mxu0 0
        %7256 = vmatprep.subr.bf16.mxu0 0
        %7257 = vmatpush1.bf16.xpose.msra.mxu0 0
        %7258 = vmatprep.subr.bf16.mxu0 %v3535
        %7259 = vmatpush1.bf16.xpose.msra.mxu0 %v3534
        %7260 = vmatprep.subr.bf16.mxu0 0
        %7261 = vmatpush2.bf16.xpose.msra.mxu0 0
        %7262 = vmatprep.subr.bf16.mxu0 0
        %7263 = vmatpush2.bf16.xpose.msra.mxu0 0
        %7264 = vmatprep.subr.bf16.mxu0 0
        %7265 = vmatpush2.bf16.xpose.msra.mxu0 0
        %7266 = vmatprep.subr.bf16.mxu0 0
        %7267 = vmatpush2.bf16.xpose.msra.mxu0 0
        %7268 = vmatprep.subr.bf16.mxu0 0
        %7269 = vmatpush2.bf16.xpose.msra.mxu0 0
        %7270 = vmatprep.subr.bf16.mxu0 0
        %7271 = vmatpush2.bf16.xpose.msra.mxu0 0
        %7272 = vmatprep.subr.bf16.mxu0 0
        %7273 = vmatpush2.bf16.xpose.msra.mxu0 0
        %7274 = vmatprep.subr.bf16.mxu0 0
        %7275 = vmatpush2.bf16.xpose.msra.mxu0 0
        %7276 = vmatprep.mubr.bf16.mxu0 %v1575
        %7277 = vmatmul.mubr.bf16.gmra.mxu0 %v1574
        %v7278 = vpop.f32.mrf.mxu0
        %v7279 = vadd.f32 %v7239, %v7278
        %v7280 = vpop.f32.mrf.mxu0
        %v7281 = vpop.f32.mrf.mxu0
        %v7282 = vpop.f32.mrf.mxu0
        %7283 = vdwg.mxu0
        %7284 = vmatprep.subr.bf16.mxu0 0
        %7285 = vmatpush1.bf16.xpose.msra.mxu0 0
        %7286 = vmatprep.subr.bf16.mxu0 0
        %7287 = vmatpush1.bf16.xpose.msra.mxu0 0
        %7288 = vmatprep.subr.bf16.mxu0 0
        %7289 = vmatpush1.bf16.xpose.msra.mxu0 0
        %7290 = vmatprep.subr.bf16.mxu0 0
        %7291 = vmatpush1.bf16.xpose.msra.mxu0 0
        %7292 = vmatprep.subr.bf16.mxu0 0
        %7293 = vmatpush1.bf16.xpose.msra.mxu0 0
        %7294 = vmatprep.subr.bf16.mxu0 0
        %7295 = vmatpush1.bf16.xpose.msra.mxu0 0
        %7296 = vmatprep.subr.bf16.mxu0 0
        %7297 = vmatpush1.bf16.xpose.msra.mxu0 0
        %7298 = vmatprep.subr.bf16.mxu0 %v3537
        %7299 = vmatpush1.bf16.xpose.msra.mxu0 %v3536
        %7300 = vmatprep.subr.bf16.mxu0 0
        %7301 = vmatpush2.bf16.xpose.msra.mxu0 0
        %7302 = vmatprep.subr.bf16.mxu0 0
        %7303 = vmatpush2.bf16.xpose.msra.mxu0 0
        %7304 = vmatprep.subr.bf16.mxu0 0
        %7305 = vmatpush2.bf16.xpose.msra.mxu0 0
        %7306 = vmatprep.subr.bf16.mxu0 0
        %7307 = vmatpush2.bf16.xpose.msra.mxu0 0
        %7308 = vmatprep.subr.bf16.mxu0 0
        %7309 = vmatpush2.bf16.xpose.msra.mxu0 0
        %7310 = vmatprep.subr.bf16.mxu0 0
        %7311 = vmatpush2.bf16.xpose.msra.mxu0 0
        %7312 = vmatprep.subr.bf16.mxu0 0
        %7313 = vmatpush2.bf16.xpose.msra.mxu0 0
        %7314 = vmatprep.subr.bf16.mxu0 0
        %7315 = vmatpush2.bf16.xpose.msra.mxu0 0
        %7316 = vmatprep.mubr.bf16.mxu0 %v1577
        %7317 = vmatmul.mubr.bf16.gmra.mxu0 %v1576
        %v7318 = vpop.f32.mrf.mxu0
        %v7319 = vadd.f32 %v7279, %v7318
        %v7320 = vpop.f32.mrf.mxu0
        %v7321 = vpop.f32.mrf.mxu0
        %v7322 = vpop.f32.mrf.mxu0
        %7323 = vdwg.mxu0
        %7324 = vmatprep.subr.bf16.mxu0 0
        %7325 = vmatpush1.bf16.xpose.msra.mxu0 0
        %7326 = vmatprep.subr.bf16.mxu0 0
        %7327 = vmatpush1.bf16.xpose.msra.mxu0 0
        %7328 = vmatprep.subr.bf16.mxu0 0
        %7329 = vmatpush1.bf16.xpose.msra.mxu0 0
        %7330 = vmatprep.subr.bf16.mxu0 0
        %7331 = vmatpush1.bf16.xpose.msra.mxu0 0
        %7332 = vmatprep.subr.bf16.mxu0 0
        %7333 = vmatpush1.bf16.xpose.msra.mxu0 0
        %7334 = vmatprep.subr.bf16.mxu0 0
        %7335 = vmatpush1.bf16.xpose.msra.mxu0 0
        %7336 = vmatprep.subr.bf16.mxu0 0
        %7337 = vmatpush1.bf16.xpose.msra.mxu0 0
        %7338 = vmatprep.subr.bf16.mxu0 %v3539
        %7339 = vmatpush1.bf16.xpose.msra.mxu0 %v3538
        %7340 = vmatprep.subr.bf16.mxu0 0
        %7341 = vmatpush2.bf16.xpose.msra.mxu0 0
        %7342 = vmatprep.subr.bf16.mxu0 0
        %7343 = vmatpush2.bf16.xpose.msra.mxu0 0
        %7344 = vmatprep.subr.bf16.mxu0 0
        %7345 = vmatpush2.bf16.xpose.msra.mxu0 0
        %7346 = vmatprep.subr.bf16.mxu0 0
        %7347 = vmatpush2.bf16.xpose.msra.mxu0 0
        %7348 = vmatprep.subr.bf16.mxu0 0
        %7349 = vmatpush2.bf16.xpose.msra.mxu0 0
        %7350 = vmatprep.subr.bf16.mxu0 0
        %7351 = vmatpush2.bf16.xpose.msra.mxu0 0
        %7352 = vmatprep.subr.bf16.mxu0 0
        %7353 = vmatpush2.bf16.xpose.msra.mxu0 0
        %7354 = vmatprep.subr.bf16.mxu0 0
        %7355 = vmatpush2.bf16.xpose.msra.mxu0 0
        %7356 = vmatprep.mubr.bf16.mxu0 %v1579
        %7357 = vmatmul.mubr.bf16.gmra.mxu0 %v1578
        %v7358 = vpop.f32.mrf.mxu0
        %v7359 = vadd.f32 %v7319, %v7358
        %v7360 = vpop.f32.mrf.mxu0
        %v7361 = vpop.f32.mrf.mxu0
        %v7362 = vpop.f32.mrf.mxu0
        %7363 = vdwg.mxu0
        %7364 = vmatprep.subr.bf16.mxu0 0
        %7365 = vmatpush1.bf16.xpose.msra.mxu0 0
        %7366 = vmatprep.subr.bf16.mxu0 0
        %7367 = vmatpush1.bf16.xpose.msra.mxu0 0
        %7368 = vmatprep.subr.bf16.mxu0 0
        %7369 = vmatpush1.bf16.xpose.msra.mxu0 0
        %7370 = vmatprep.subr.bf16.mxu0 0
        %7371 = vmatpush1.bf16.xpose.msra.mxu0 0
        %7372 = vmatprep.subr.bf16.mxu0 0
        %7373 = vmatpush1.bf16.xpose.msra.mxu0 0
        %7374 = vmatprep.subr.bf16.mxu0 0
        %7375 = vmatpush1.bf16.xpose.msra.mxu0 0
        %7376 = vmatprep.subr.bf16.mxu0 0
        %7377 = vmatpush1.bf16.xpose.msra.mxu0 0
        %7378 = vmatprep.subr.bf16.mxu0 %v3541
        %7379 = vmatpush1.bf16.xpose.msra.mxu0 %v3540
        %7380 = vmatprep.subr.bf16.mxu0 0
        %7381 = vmatpush2.bf16.xpose.msra.mxu0 0
        %7382 = vmatprep.subr.bf16.mxu0 0
        %7383 = vmatpush2.bf16.xpose.msra.mxu0 0
        %7384 = vmatprep.subr.bf16.mxu0 0
        %7385 = vmatpush2.bf16.xpose.msra.mxu0 0
        %7386 = vmatprep.subr.bf16.mxu0 0
        %7387 = vmatpush2.bf16.xpose.msra.mxu0 0
        %7388 = vmatprep.subr.bf16.mxu0 0
        %7389 = vmatpush2.bf16.xpose.msra.mxu0 0
        %7390 = vmatprep.subr.bf16.mxu0 0
        %7391 = vmatpush2.bf16.xpose.msra.mxu0 0
        %7392 = vmatprep.subr.bf16.mxu0 0
        %7393 = vmatpush2.bf16.xpose.msra.mxu0 0
        %7394 = vmatprep.subr.bf16.mxu0 0
        %7395 = vmatpush2.bf16.xpose.msra.mxu0 0
        %7396 = vmatprep.mubr.bf16.mxu0 %v1581
        %7397 = vmatmul.mubr.bf16.gmra.mxu0 %v1580
        %v7398 = vpop.f32.mrf.mxu0
        %v7399 = vadd.f32 %v7359, %v7398
        %v7400 = vpop.f32.mrf.mxu0
        %v7401 = vpop.f32.mrf.mxu0
        %v7402 = vpop.f32.mrf.mxu0
        %7403 = vdwg.mxu0
        %7404 = vmatprep.subr.bf16.mxu0 0
        %7405 = vmatpush1.bf16.xpose.msra.mxu0 0
        %7406 = vmatprep.subr.bf16.mxu0 0
        %7407 = vmatpush1.bf16.xpose.msra.mxu0 0
        %7408 = vmatprep.subr.bf16.mxu0 0
        %7409 = vmatpush1.bf16.xpose.msra.mxu0 0
        %7410 = vmatprep.subr.bf16.mxu0 0
        %7411 = vmatpush1.bf16.xpose.msra.mxu0 0
        %7412 = vmatprep.subr.bf16.mxu0 0
        %7413 = vmatpush1.bf16.xpose.msra.mxu0 0
        %7414 = vmatprep.subr.bf16.mxu0 0
        %7415 = vmatpush1.bf16.xpose.msra.mxu0 0
        %7416 = vmatprep.subr.bf16.mxu0 0
        %7417 = vmatpush1.bf16.xpose.msra.mxu0 0
        %7418 = vmatprep.subr.bf16.mxu0 %v3543
        %7419 = vmatpush1.bf16.xpose.msra.mxu0 %v3542
        %7420 = vmatprep.subr.bf16.mxu0 0
        %7421 = vmatpush2.bf16.xpose.msra.mxu0 0
        %7422 = vmatprep.subr.bf16.mxu0 0
        %7423 = vmatpush2.bf16.xpose.msra.mxu0 0
        %7424 = vmatprep.subr.bf16.mxu0 0
        %7425 = vmatpush2.bf16.xpose.msra.mxu0 0
        %7426 = vmatprep.subr.bf16.mxu0 0
        %7427 = vmatpush2.bf16.xpose.msra.mxu0 0
        %7428 = vmatprep.subr.bf16.mxu0 0
        %7429 = vmatpush2.bf16.xpose.msra.mxu0 0
        %7430 = vmatprep.subr.bf16.mxu0 0
        %7431 = vmatpush2.bf16.xpose.msra.mxu0 0
        %7432 = vmatprep.subr.bf16.mxu0 0
        %7433 = vmatpush2.bf16.xpose.msra.mxu0 0
        %7434 = vmatprep.subr.bf16.mxu0 0
        %7435 = vmatpush2.bf16.xpose.msra.mxu0 0
        %7436 = vmatprep.mubr.bf16.mxu0 %v1583
        %7437 = vmatmul.mubr.bf16.gmra.mxu0 %v1582
        %v7438 = vpop.f32.mrf.mxu0
        %v7439 = vadd.f32 %v7399, %v7438
        %v7440 = vpop.f32.mrf.mxu0
        %v7441 = vpop.f32.mrf.mxu0
        %v7442 = vpop.f32.mrf.mxu0
        %7443 = vdwg.mxu0
        %7444 = vmatprep.subr.bf16.mxu0 0
        %7445 = vmatpush1.bf16.xpose.msra.mxu0 0
        %7446 = vmatprep.subr.bf16.mxu0 0
        %7447 = vmatpush1.bf16.xpose.msra.mxu0 0
        %7448 = vmatprep.subr.bf16.mxu0 0
        %7449 = vmatpush1.bf16.xpose.msra.mxu0 0
        %7450 = vmatprep.subr.bf16.mxu0 0
        %7451 = vmatpush1.bf16.xpose.msra.mxu0 0
        %7452 = vmatprep.subr.bf16.mxu0 0
        %7453 = vmatpush1.bf16.xpose.msra.mxu0 0
        %7454 = vmatprep.subr.bf16.mxu0 0
        %7455 = vmatpush1.bf16.xpose.msra.mxu0 0
        %7456 = vmatprep.subr.bf16.mxu0 0
        %7457 = vmatpush1.bf16.xpose.msra.mxu0 0
        %7458 = vmatprep.subr.bf16.mxu0 %v3545
        %7459 = vmatpush1.bf16.xpose.msra.mxu0 %v3544
        %7460 = vmatprep.subr.bf16.mxu0 0
        %7461 = vmatpush2.bf16.xpose.msra.mxu0 0
        %7462 = vmatprep.subr.bf16.mxu0 0
        %7463 = vmatpush2.bf16.xpose.msra.mxu0 0
        %7464 = vmatprep.subr.bf16.mxu0 0
        %7465 = vmatpush2.bf16.xpose.msra.mxu0 0
        %7466 = vmatprep.subr.bf16.mxu0 0
        %7467 = vmatpush2.bf16.xpose.msra.mxu0 0
        %7468 = vmatprep.subr.bf16.mxu0 0
        %7469 = vmatpush2.bf16.xpose.msra.mxu0 0
        %7470 = vmatprep.subr.bf16.mxu0 0
        %7471 = vmatpush2.bf16.xpose.msra.mxu0 0
        %7472 = vmatprep.subr.bf16.mxu0 0
        %7473 = vmatpush2.bf16.xpose.msra.mxu0 0
        %7474 = vmatprep.subr.bf16.mxu0 0
        %7475 = vmatpush2.bf16.xpose.msra.mxu0 0
        %7476 = vmatprep.mubr.bf16.mxu0 %v1585
        %7477 = vmatmul.mubr.bf16.gmra.mxu0 %v1584
        %v7478 = vpop.f32.mrf.mxu0
        %v7479 = vadd.f32 %v7439, %v7478
        %v7480 = vpop.f32.mrf.mxu0
        %v7481 = vpop.f32.mrf.mxu0
        %v7482 = vpop.f32.mrf.mxu0
        %7483 = vdwg.mxu0
        %7484 = vmatprep.subr.bf16.mxu0 0
        %7485 = vmatpush1.bf16.xpose.msra.mxu0 0
        %7486 = vmatprep.subr.bf16.mxu0 0
        %7487 = vmatpush1.bf16.xpose.msra.mxu0 0
        %7488 = vmatprep.subr.bf16.mxu0 0
        %7489 = vmatpush1.bf16.xpose.msra.mxu0 0
        %7490 = vmatprep.subr.bf16.mxu0 0
        %7491 = vmatpush1.bf16.xpose.msra.mxu0 0
        %7492 = vmatprep.subr.bf16.mxu0 0
        %7493 = vmatpush1.bf16.xpose.msra.mxu0 0
        %7494 = vmatprep.subr.bf16.mxu0 0
        %7495 = vmatpush1.bf16.xpose.msra.mxu0 0
        %7496 = vmatprep.subr.bf16.mxu0 0
        %7497 = vmatpush1.bf16.xpose.msra.mxu0 0
        %7498 = vmatprep.subr.bf16.mxu0 %v3547
        %7499 = vmatpush1.bf16.xpose.msra.mxu0 %v3546
        %7500 = vmatprep.subr.bf16.mxu0 0
        %7501 = vmatpush2.bf16.xpose.msra.mxu0 0
        %7502 = vmatprep.subr.bf16.mxu0 0
        %7503 = vmatpush2.bf16.xpose.msra.mxu0 0
        %7504 = vmatprep.subr.bf16.mxu0 0
        %7505 = vmatpush2.bf16.xpose.msra.mxu0 0
        %7506 = vmatprep.subr.bf16.mxu0 0
        %7507 = vmatpush2.bf16.xpose.msra.mxu0 0
        %7508 = vmatprep.subr.bf16.mxu0 0
        %7509 = vmatpush2.bf16.xpose.msra.mxu0 0
        %7510 = vmatprep.subr.bf16.mxu0 0
        %7511 = vmatpush2.bf16.xpose.msra.mxu0 0
        %7512 = vmatprep.subr.bf16.mxu0 0
        %7513 = vmatpush2.bf16.xpose.msra.mxu0 0
        %7514 = vmatprep.subr.bf16.mxu0 0
        %7515 = vmatpush2.bf16.xpose.msra.mxu0 0
        %7516 = vmatprep.mubr.bf16.mxu0 %v1587
        %7517 = vmatmul.mubr.bf16.gmra.mxu0 %v1586
        %v7518 = vpop.f32.mrf.mxu0
        %v7519 = vadd.f32 %v7479, %v7518
        %v7520 = vpop.f32.mrf.mxu0
        %v7521 = vpop.f32.mrf.mxu0
        %v7522 = vpop.f32.mrf.mxu0
        %7523 = vdwg.mxu0
        %7524 = vmatprep.subr.bf16.mxu0 0
        %7525 = vmatpush1.bf16.xpose.msra.mxu0 0
        %7526 = vmatprep.subr.bf16.mxu0 0
        %7527 = vmatpush1.bf16.xpose.msra.mxu0 0
        %7528 = vmatprep.subr.bf16.mxu0 0
        %7529 = vmatpush1.bf16.xpose.msra.mxu0 0
        %7530 = vmatprep.subr.bf16.mxu0 0
        %7531 = vmatpush1.bf16.xpose.msra.mxu0 0
        %7532 = vmatprep.subr.bf16.mxu0 0
        %7533 = vmatpush1.bf16.xpose.msra.mxu0 0
        %7534 = vmatprep.subr.bf16.mxu0 0
        %7535 = vmatpush1.bf16.xpose.msra.mxu0 0
        %7536 = vmatprep.subr.bf16.mxu0 0
        %7537 = vmatpush1.bf16.xpose.msra.mxu0 0
        %7538 = vmatprep.subr.bf16.mxu0 %v3549
        %7539 = vmatpush1.bf16.xpose.msra.mxu0 %v3548
        %7540 = vmatprep.subr.bf16.mxu0 0
        %7541 = vmatpush2.bf16.xpose.msra.mxu0 0
        %7542 = vmatprep.subr.bf16.mxu0 0
        %7543 = vmatpush2.bf16.xpose.msra.mxu0 0
        %7544 = vmatprep.subr.bf16.mxu0 0
        %7545 = vmatpush2.bf16.xpose.msra.mxu0 0
        %7546 = vmatprep.subr.bf16.mxu0 0
        %7547 = vmatpush2.bf16.xpose.msra.mxu0 0
        %7548 = vmatprep.subr.bf16.mxu0 0
        %7549 = vmatpush2.bf16.xpose.msra.mxu0 0
        %7550 = vmatprep.subr.bf16.mxu0 0
        %7551 = vmatpush2.bf16.xpose.msra.mxu0 0
        %7552 = vmatprep.subr.bf16.mxu0 0
        %7553 = vmatpush2.bf16.xpose.msra.mxu0 0
        %7554 = vmatprep.subr.bf16.mxu0 0
        %7555 = vmatpush2.bf16.xpose.msra.mxu0 0
        %7556 = vmatprep.mubr.bf16.mxu0 %v1589
        %7557 = vmatmul.mubr.bf16.gmra.mxu0 %v1588
        %v7558 = vpop.f32.mrf.mxu0
        %v7559 = vadd.f32 %v7519, %v7558
        %v7560 = vpop.f32.mrf.mxu0
        %v7561 = vpop.f32.mrf.mxu0
        %v7562 = vpop.f32.mrf.mxu0
        %7563 = vdwg.mxu0
        %7564 = vmatprep.subr.bf16.mxu0 0
        %7565 = vmatpush1.bf16.xpose.msra.mxu0 0
        %7566 = vmatprep.subr.bf16.mxu0 0
        %7567 = vmatpush1.bf16.xpose.msra.mxu0 0
        %7568 = vmatprep.subr.bf16.mxu0 0
        %7569 = vmatpush1.bf16.xpose.msra.mxu0 0
        %7570 = vmatprep.subr.bf16.mxu0 0
        %7571 = vmatpush1.bf16.xpose.msra.mxu0 0
        %7572 = vmatprep.subr.bf16.mxu0 0
        %7573 = vmatpush1.bf16.xpose.msra.mxu0 0
        %7574 = vmatprep.subr.bf16.mxu0 0
        %7575 = vmatpush1.bf16.xpose.msra.mxu0 0
        %7576 = vmatprep.subr.bf16.mxu0 0
        %7577 = vmatpush1.bf16.xpose.msra.mxu0 0
        %7578 = vmatprep.subr.bf16.mxu0 %v3551
        %7579 = vmatpush1.bf16.xpose.msra.mxu0 %v3550
        %7580 = vmatprep.subr.bf16.mxu0 0
        %7581 = vmatpush2.bf16.xpose.msra.mxu0 0
        %7582 = vmatprep.subr.bf16.mxu0 0
        %7583 = vmatpush2.bf16.xpose.msra.mxu0 0
        %7584 = vmatprep.subr.bf16.mxu0 0
        %7585 = vmatpush2.bf16.xpose.msra.mxu0 0
        %7586 = vmatprep.subr.bf16.mxu0 0
        %7587 = vmatpush2.bf16.xpose.msra.mxu0 0
        %7588 = vmatprep.subr.bf16.mxu0 0
        %7589 = vmatpush2.bf16.xpose.msra.mxu0 0
        %7590 = vmatprep.subr.bf16.mxu0 0
        %7591 = vmatpush2.bf16.xpose.msra.mxu0 0
        %7592 = vmatprep.subr.bf16.mxu0 0
        %7593 = vmatpush2.bf16.xpose.msra.mxu0 0
        %7594 = vmatprep.subr.bf16.mxu0 0
        %7595 = vmatpush2.bf16.xpose.msra.mxu0 0
        %7596 = vmatprep.mubr.bf16.mxu0 %v1591
        %7597 = vmatmul.mubr.bf16.gmra.mxu0 %v1590
        %v7598 = vpop.f32.mrf.mxu0
        %v7599 = vadd.f32 %v7559, %v7598
        %v7600 = vpop.f32.mrf.mxu0
        %v7601 = vpop.f32.mrf.mxu0
        %v7602 = vpop.f32.mrf.mxu0
        %7603 = vdwg.mxu0
        %7604 = vmatprep.subr.bf16.mxu0 0
        %7605 = vmatpush1.bf16.xpose.msra.mxu0 0
        %7606 = vmatprep.subr.bf16.mxu0 0
        %7607 = vmatpush1.bf16.xpose.msra.mxu0 0
        %7608 = vmatprep.subr.bf16.mxu0 0
        %7609 = vmatpush1.bf16.xpose.msra.mxu0 0
        %7610 = vmatprep.subr.bf16.mxu0 0
        %7611 = vmatpush1.bf16.xpose.msra.mxu0 0
        %7612 = vmatprep.subr.bf16.mxu0 0
        %7613 = vmatpush1.bf16.xpose.msra.mxu0 0
        %7614 = vmatprep.subr.bf16.mxu0 0
        %7615 = vmatpush1.bf16.xpose.msra.mxu0 0
        %7616 = vmatprep.subr.bf16.mxu0 0
        %7617 = vmatpush1.bf16.xpose.msra.mxu0 0
        %7618 = vmatprep.subr.bf16.mxu0 %v3553
        %7619 = vmatpush1.bf16.xpose.msra.mxu0 %v3552
        %7620 = vmatprep.subr.bf16.mxu0 0
        %7621 = vmatpush2.bf16.xpose.msra.mxu0 0
        %7622 = vmatprep.subr.bf16.mxu0 0
        %7623 = vmatpush2.bf16.xpose.msra.mxu0 0
        %7624 = vmatprep.subr.bf16.mxu0 0
        %7625 = vmatpush2.bf16.xpose.msra.mxu0 0
        %7626 = vmatprep.subr.bf16.mxu0 0
        %7627 = vmatpush2.bf16.xpose.msra.mxu0 0
        %7628 = vmatprep.subr.bf16.mxu0 0
        %7629 = vmatpush2.bf16.xpose.msra.mxu0 0
        %7630 = vmatprep.subr.bf16.mxu0 0
        %7631 = vmatpush2.bf16.xpose.msra.mxu0 0
        %7632 = vmatprep.subr.bf16.mxu0 0
        %7633 = vmatpush2.bf16.xpose.msra.mxu0 0
        %7634 = vmatprep.subr.bf16.mxu0 0
        %7635 = vmatpush2.bf16.xpose.msra.mxu0 0
        %7636 = vmatprep.mubr.bf16.mxu0 %v1593
        %7637 = vmatmul.mubr.bf16.gmra.mxu0 %v1592
        %v7638 = vpop.f32.mrf.mxu0
        %v7639 = vadd.f32 %v7599, %v7638
        %v7640 = vpop.f32.mrf.mxu0
        %v7641 = vpop.f32.mrf.mxu0
        %v7642 = vpop.f32.mrf.mxu0
        %7643 = vdwg.mxu0
        %7644 = vmatprep.subr.bf16.mxu0 0
        %7645 = vmatpush1.bf16.xpose.msra.mxu0 0
        %7646 = vmatprep.subr.bf16.mxu0 0
        %7647 = vmatpush1.bf16.xpose.msra.mxu0 0
        %7648 = vmatprep.subr.bf16.mxu0 0
        %7649 = vmatpush1.bf16.xpose.msra.mxu0 0
        %7650 = vmatprep.subr.bf16.mxu0 0
        %7651 = vmatpush1.bf16.xpose.msra.mxu0 0
        %7652 = vmatprep.subr.bf16.mxu0 0
        %7653 = vmatpush1.bf16.xpose.msra.mxu0 0
        %7654 = vmatprep.subr.bf16.mxu0 0
        %7655 = vmatpush1.bf16.xpose.msra.mxu0 0
        %7656 = vmatprep.subr.bf16.mxu0 0
        %7657 = vmatpush1.bf16.xpose.msra.mxu0 0
        %7658 = vmatprep.subr.bf16.mxu0 %v3555
        %7659 = vmatpush1.bf16.xpose.msra.mxu0 %v3554
        %7660 = vmatprep.subr.bf16.mxu0 0
        %7661 = vmatpush2.bf16.xpose.msra.mxu0 0
        %7662 = vmatprep.subr.bf16.mxu0 0
        %7663 = vmatpush2.bf16.xpose.msra.mxu0 0
        %7664 = vmatprep.subr.bf16.mxu0 0
        %7665 = vmatpush2.bf16.xpose.msra.mxu0 0
        %7666 = vmatprep.subr.bf16.mxu0 0
        %7667 = vmatpush2.bf16.xpose.msra.mxu0 0
        %7668 = vmatprep.subr.bf16.mxu0 0
        %7669 = vmatpush2.bf16.xpose.msra.mxu0 0
        %7670 = vmatprep.subr.bf16.mxu0 0
        %7671 = vmatpush2.bf16.xpose.msra.mxu0 0
        %7672 = vmatprep.subr.bf16.mxu0 0
        %7673 = vmatpush2.bf16.xpose.msra.mxu0 0
        %7674 = vmatprep.subr.bf16.mxu0 0
        %7675 = vmatpush2.bf16.xpose.msra.mxu0 0
        %7676 = vmatprep.mubr.bf16.mxu0 %v1595
        %7677 = vmatmul.mubr.bf16.gmra.mxu0 %v1594
        %v7678 = vpop.f32.mrf.mxu0
        %v7679 = vadd.f32 %v7639, %v7678
        %v7680 = vpop.f32.mrf.mxu0
        %v7681 = vpop.f32.mrf.mxu0
        %v7682 = vpop.f32.mrf.mxu0
        %7683 = vdwg.mxu0
        %7684 = vmatprep.subr.bf16.mxu0 0
        %7685 = vmatpush1.bf16.xpose.msra.mxu0 0
        %7686 = vmatprep.subr.bf16.mxu0 0
        %7687 = vmatpush1.bf16.xpose.msra.mxu0 0
        %7688 = vmatprep.subr.bf16.mxu0 0
        %7689 = vmatpush1.bf16.xpose.msra.mxu0 0
        %7690 = vmatprep.subr.bf16.mxu0 0
        %7691 = vmatpush1.bf16.xpose.msra.mxu0 0
        %7692 = vmatprep.subr.bf16.mxu0 0
        %7693 = vmatpush1.bf16.xpose.msra.mxu0 0
        %7694 = vmatprep.subr.bf16.mxu0 0
        %7695 = vmatpush1.bf16.xpose.msra.mxu0 0
        %7696 = vmatprep.subr.bf16.mxu0 0
        %7697 = vmatpush1.bf16.xpose.msra.mxu0 0
        %7698 = vmatprep.subr.bf16.mxu0 %v3557
        %7699 = vmatpush1.bf16.xpose.msra.mxu0 %v3556
        %7700 = vmatprep.subr.bf16.mxu0 0
        %7701 = vmatpush2.bf16.xpose.msra.mxu0 0
        %7702 = vmatprep.subr.bf16.mxu0 0
        %7703 = vmatpush2.bf16.xpose.msra.mxu0 0
        %7704 = vmatprep.subr.bf16.mxu0 0
        %7705 = vmatpush2.bf16.xpose.msra.mxu0 0
        %7706 = vmatprep.subr.bf16.mxu0 0
        %7707 = vmatpush2.bf16.xpose.msra.mxu0 0
        %7708 = vmatprep.subr.bf16.mxu0 0
        %7709 = vmatpush2.bf16.xpose.msra.mxu0 0
        %7710 = vmatprep.subr.bf16.mxu0 0
        %7711 = vmatpush2.bf16.xpose.msra.mxu0 0
        %7712 = vmatprep.subr.bf16.mxu0 0
        %7713 = vmatpush2.bf16.xpose.msra.mxu0 0
        %7714 = vmatprep.subr.bf16.mxu0 0
        %7715 = vmatpush2.bf16.xpose.msra.mxu0 0
        %7716 = vmatprep.mubr.bf16.mxu0 %v1597
        %7717 = vmatmul.mubr.bf16.gmra.mxu0 %v1596
        %v7718 = vpop.f32.mrf.mxu0
        %v7719 = vadd.f32 %v7679, %v7718
        %v7720 = vpop.f32.mrf.mxu0
        %v7721 = vpop.f32.mrf.mxu0
        %v7722 = vpop.f32.mrf.mxu0
        %7723 = vdwg.mxu0
        %7724 = vmatprep.subr.bf16.mxu0 0
        %7725 = vmatpush1.bf16.xpose.msra.mxu0 0
        %7726 = vmatprep.subr.bf16.mxu0 0
        %7727 = vmatpush1.bf16.xpose.msra.mxu0 0
        %7728 = vmatprep.subr.bf16.mxu0 0
        %7729 = vmatpush1.bf16.xpose.msra.mxu0 0
        %7730 = vmatprep.subr.bf16.mxu0 0
        %7731 = vmatpush1.bf16.xpose.msra.mxu0 0
        %7732 = vmatprep.subr.bf16.mxu0 0
        %7733 = vmatpush1.bf16.xpose.msra.mxu0 0
        %7734 = vmatprep.subr.bf16.mxu0 0
        %7735 = vmatpush1.bf16.xpose.msra.mxu0 0
        %7736 = vmatprep.subr.bf16.mxu0 0
        %7737 = vmatpush1.bf16.xpose.msra.mxu0 0
        %7738 = vmatprep.subr.bf16.mxu0 %v3559
        %7739 = vmatpush1.bf16.xpose.msra.mxu0 %v3558
        %7740 = vmatprep.subr.bf16.mxu0 0
        %7741 = vmatpush2.bf16.xpose.msra.mxu0 0
        %7742 = vmatprep.subr.bf16.mxu0 0
        %7743 = vmatpush2.bf16.xpose.msra.mxu0 0
        %7744 = vmatprep.subr.bf16.mxu0 0
        %7745 = vmatpush2.bf16.xpose.msra.mxu0 0
        %7746 = vmatprep.subr.bf16.mxu0 0
        %7747 = vmatpush2.bf16.xpose.msra.mxu0 0
        %7748 = vmatprep.subr.bf16.mxu0 0
        %7749 = vmatpush2.bf16.xpose.msra.mxu0 0
        %7750 = vmatprep.subr.bf16.mxu0 0
        %7751 = vmatpush2.bf16.xpose.msra.mxu0 0
        %7752 = vmatprep.subr.bf16.mxu0 0
        %7753 = vmatpush2.bf16.xpose.msra.mxu0 0
        %7754 = vmatprep.subr.bf16.mxu0 0
        %7755 = vmatpush2.bf16.xpose.msra.mxu0 0
        %7756 = vmatprep.mubr.bf16.mxu0 %v1599
        %7757 = vmatmul.mubr.bf16.gmra.mxu0 %v1598
        %v7758 = vpop.f32.mrf.mxu0
        %v7759 = vadd.f32 %v7719, %v7758
        %v7760 = vpop.f32.mrf.mxu0
        %v7761 = vpop.f32.mrf.mxu0
        %v7762 = vpop.f32.mrf.mxu0
        %7763 = vdwg.mxu0
        %7764 = vmatprep.subr.bf16.mxu0 0
        %7765 = vmatpush1.bf16.xpose.msra.mxu0 0
        %7766 = vmatprep.subr.bf16.mxu0 0
        %7767 = vmatpush1.bf16.xpose.msra.mxu0 0
        %7768 = vmatprep.subr.bf16.mxu0 0
        %7769 = vmatpush1.bf16.xpose.msra.mxu0 0
        %7770 = vmatprep.subr.bf16.mxu0 0
        %7771 = vmatpush1.bf16.xpose.msra.mxu0 0
        %7772 = vmatprep.subr.bf16.mxu0 0
        %7773 = vmatpush1.bf16.xpose.msra.mxu0 0
        %7774 = vmatprep.subr.bf16.mxu0 0
        %7775 = vmatpush1.bf16.xpose.msra.mxu0 0
        %7776 = vmatprep.subr.bf16.mxu0 0
        %7777 = vmatpush1.bf16.xpose.msra.mxu0 0
        %7778 = vmatprep.subr.bf16.mxu0 %v3561
        %7779 = vmatpush1.bf16.xpose.msra.mxu0 %v3560
        %7780 = vmatprep.subr.bf16.mxu0 0
        %7781 = vmatpush2.bf16.xpose.msra.mxu0 0
        %7782 = vmatprep.subr.bf16.mxu0 0
        %7783 = vmatpush2.bf16.xpose.msra.mxu0 0
        %7784 = vmatprep.subr.bf16.mxu0 0
        %7785 = vmatpush2.bf16.xpose.msra.mxu0 0
        %7786 = vmatprep.subr.bf16.mxu0 0
        %7787 = vmatpush2.bf16.xpose.msra.mxu0 0
        %7788 = vmatprep.subr.bf16.mxu0 0
        %7789 = vmatpush2.bf16.xpose.msra.mxu0 0
        %7790 = vmatprep.subr.bf16.mxu0 0
        %7791 = vmatpush2.bf16.xpose.msra.mxu0 0
        %7792 = vmatprep.subr.bf16.mxu0 0
        %7793 = vmatpush2.bf16.xpose.msra.mxu0 0
        %7794 = vmatprep.subr.bf16.mxu0 0
        %7795 = vmatpush2.bf16.xpose.msra.mxu0 0
        %7796 = vmatprep.mubr.bf16.mxu0 %v1601
        %7797 = vmatmul.mubr.bf16.gmra.mxu0 %v1600
        %v7798 = vpop.f32.mrf.mxu0
        %v7799 = vadd.f32 %v7759, %v7798
        %v7800 = vpop.f32.mrf.mxu0
        %v7801 = vpop.f32.mrf.mxu0
        %v7802 = vpop.f32.mrf.mxu0
        %7803 = vdwg.mxu0
        %7804 = vmatprep.subr.bf16.mxu0 0
        %7805 = vmatpush1.bf16.xpose.msra.mxu0 0
        %7806 = vmatprep.subr.bf16.mxu0 0
        %7807 = vmatpush1.bf16.xpose.msra.mxu0 0
        %7808 = vmatprep.subr.bf16.mxu0 0
        %7809 = vmatpush1.bf16.xpose.msra.mxu0 0
        %7810 = vmatprep.subr.bf16.mxu0 0
        %7811 = vmatpush1.bf16.xpose.msra.mxu0 0
        %7812 = vmatprep.subr.bf16.mxu0 0
        %7813 = vmatpush1.bf16.xpose.msra.mxu0 0
        %7814 = vmatprep.subr.bf16.mxu0 0
        %7815 = vmatpush1.bf16.xpose.msra.mxu0 0
        %7816 = vmatprep.subr.bf16.mxu0 0
        %7817 = vmatpush1.bf16.xpose.msra.mxu0 0
        %7818 = vmatprep.subr.bf16.mxu0 %v3563
        %7819 = vmatpush1.bf16.xpose.msra.mxu0 %v3562
        %7820 = vmatprep.subr.bf16.mxu0 0
        %7821 = vmatpush2.bf16.xpose.msra.mxu0 0
        %7822 = vmatprep.subr.bf16.mxu0 0
        %7823 = vmatpush2.bf16.xpose.msra.mxu0 0
        %7824 = vmatprep.subr.bf16.mxu0 0
        %7825 = vmatpush2.bf16.xpose.msra.mxu0 0
        %7826 = vmatprep.subr.bf16.mxu0 0
        %7827 = vmatpush2.bf16.xpose.msra.mxu0 0
        %7828 = vmatprep.subr.bf16.mxu0 0
        %7829 = vmatpush2.bf16.xpose.msra.mxu0 0
        %7830 = vmatprep.subr.bf16.mxu0 0
        %7831 = vmatpush2.bf16.xpose.msra.mxu0 0
        %7832 = vmatprep.subr.bf16.mxu0 0
        %7833 = vmatpush2.bf16.xpose.msra.mxu0 0
        %7834 = vmatprep.subr.bf16.mxu0 0
        %7835 = vmatpush2.bf16.xpose.msra.mxu0 0
        %7836 = vmatprep.mubr.bf16.mxu0 %v1603
        %7837 = vmatmul.mubr.bf16.gmra.mxu0 %v1602
        %v7838 = vpop.f32.mrf.mxu0
        %v7839 = vadd.f32 %v7799, %v7838
        %v7840 = vpop.f32.mrf.mxu0
        %v7841 = vpop.f32.mrf.mxu0
        %v7842 = vpop.f32.mrf.mxu0
        %7843 = vdwg.mxu0
        %7844 = vmatprep.subr.bf16.mxu0 0
        %7845 = vmatpush1.bf16.xpose.msra.mxu0 0
        %7846 = vmatprep.subr.bf16.mxu0 0
        %7847 = vmatpush1.bf16.xpose.msra.mxu0 0
        %7848 = vmatprep.subr.bf16.mxu0 0
        %7849 = vmatpush1.bf16.xpose.msra.mxu0 0
        %7850 = vmatprep.subr.bf16.mxu0 0
        %7851 = vmatpush1.bf16.xpose.msra.mxu0 0
        %7852 = vmatprep.subr.bf16.mxu0 0
        %7853 = vmatpush1.bf16.xpose.msra.mxu0 0
        %7854 = vmatprep.subr.bf16.mxu0 0
        %7855 = vmatpush1.bf16.xpose.msra.mxu0 0
        %7856 = vmatprep.subr.bf16.mxu0 0
        %7857 = vmatpush1.bf16.xpose.msra.mxu0 0
        %7858 = vmatprep.subr.bf16.mxu0 %v3565
        %7859 = vmatpush1.bf16.xpose.msra.mxu0 %v3564
        %7860 = vmatprep.subr.bf16.mxu0 0
        %7861 = vmatpush2.bf16.xpose.msra.mxu0 0
        %7862 = vmatprep.subr.bf16.mxu0 0
        %7863 = vmatpush2.bf16.xpose.msra.mxu0 0
        %7864 = vmatprep.subr.bf16.mxu0 0
        %7865 = vmatpush2.bf16.xpose.msra.mxu0 0
        %7866 = vmatprep.subr.bf16.mxu0 0
        %7867 = vmatpush2.bf16.xpose.msra.mxu0 0
        %7868 = vmatprep.subr.bf16.mxu0 0
        %7869 = vmatpush2.bf16.xpose.msra.mxu0 0
        %7870 = vmatprep.subr.bf16.mxu0 0
        %7871 = vmatpush2.bf16.xpose.msra.mxu0 0
        %7872 = vmatprep.subr.bf16.mxu0 0
        %7873 = vmatpush2.bf16.xpose.msra.mxu0 0
        %7874 = vmatprep.subr.bf16.mxu0 0
        %7875 = vmatpush2.bf16.xpose.msra.mxu0 0
        %7876 = vmatprep.mubr.bf16.mxu0 %v1605
        %7877 = vmatmul.mubr.bf16.gmra.mxu0 %v1604
        %v7878 = vpop.f32.mrf.mxu0
        %v7879 = vadd.f32 %v7839, %v7878
        %v7880 = vpop.f32.mrf.mxu0
        %v7881 = vpop.f32.mrf.mxu0
        %v7882 = vpop.f32.mrf.mxu0
        %7883 = vdwg.mxu0
        %7884 = vmatprep.subr.bf16.mxu0 0
        %7885 = vmatpush1.bf16.xpose.msra.mxu0 0
        %7886 = vmatprep.subr.bf16.mxu0 0
        %7887 = vmatpush1.bf16.xpose.msra.mxu0 0
        %7888 = vmatprep.subr.bf16.mxu0 0
        %7889 = vmatpush1.bf16.xpose.msra.mxu0 0
        %7890 = vmatprep.subr.bf16.mxu0 0
        %7891 = vmatpush1.bf16.xpose.msra.mxu0 0
        %7892 = vmatprep.subr.bf16.mxu0 0
        %7893 = vmatpush1.bf16.xpose.msra.mxu0 0
        %7894 = vmatprep.subr.bf16.mxu0 0
        %7895 = vmatpush1.bf16.xpose.msra.mxu0 0
        %7896 = vmatprep.subr.bf16.mxu0 0
        %7897 = vmatpush1.bf16.xpose.msra.mxu0 0
        %7898 = vmatprep.subr.bf16.mxu0 %v3567
        %7899 = vmatpush1.bf16.xpose.msra.mxu0 %v3566
        %7900 = vmatprep.subr.bf16.mxu0 0
        %7901 = vmatpush2.bf16.xpose.msra.mxu0 0
        %7902 = vmatprep.subr.bf16.mxu0 0
        %7903 = vmatpush2.bf16.xpose.msra.mxu0 0
        %7904 = vmatprep.subr.bf16.mxu0 0
        %7905 = vmatpush2.bf16.xpose.msra.mxu0 0
        %7906 = vmatprep.subr.bf16.mxu0 0
        %7907 = vmatpush2.bf16.xpose.msra.mxu0 0
        %7908 = vmatprep.subr.bf16.mxu0 0
        %7909 = vmatpush2.bf16.xpose.msra.mxu0 0
        %7910 = vmatprep.subr.bf16.mxu0 0
        %7911 = vmatpush2.bf16.xpose.msra.mxu0 0
        %7912 = vmatprep.subr.bf16.mxu0 0
        %7913 = vmatpush2.bf16.xpose.msra.mxu0 0
        %7914 = vmatprep.subr.bf16.mxu0 0
        %7915 = vmatpush2.bf16.xpose.msra.mxu0 0
        %7916 = vmatprep.mubr.bf16.mxu0 %v1607
        %7917 = vmatmul.mubr.bf16.gmra.mxu0 %v1606
        %v7918 = vpop.f32.mrf.mxu0
        %v7919 = vadd.f32 %v7879, %v7918
        %v7920 = vpop.f32.mrf.mxu0
        %v7921 = vpop.f32.mrf.mxu0
        %v7922 = vpop.f32.mrf.mxu0
        %7923 = vdwg.mxu0
        %7924 = vmatprep.subr.bf16.mxu0 0
        %7925 = vmatpush1.bf16.xpose.msra.mxu0 0
        %7926 = vmatprep.subr.bf16.mxu0 0
        %7927 = vmatpush1.bf16.xpose.msra.mxu0 0
        %7928 = vmatprep.subr.bf16.mxu0 0
        %7929 = vmatpush1.bf16.xpose.msra.mxu0 0
        %7930 = vmatprep.subr.bf16.mxu0 0
        %7931 = vmatpush1.bf16.xpose.msra.mxu0 0
        %7932 = vmatprep.subr.bf16.mxu0 0
        %7933 = vmatpush1.bf16.xpose.msra.mxu0 0
        %7934 = vmatprep.subr.bf16.mxu0 0
        %7935 = vmatpush1.bf16.xpose.msra.mxu0 0
        %7936 = vmatprep.subr.bf16.mxu0 0
        %7937 = vmatpush1.bf16.xpose.msra.mxu0 0
        %7938 = vmatprep.subr.bf16.mxu0 %v3569
        %7939 = vmatpush1.bf16.xpose.msra.mxu0 %v3568
        %7940 = vmatprep.subr.bf16.mxu0 0
        %7941 = vmatpush2.bf16.xpose.msra.mxu0 0
        %7942 = vmatprep.subr.bf16.mxu0 0
        %7943 = vmatpush2.bf16.xpose.msra.mxu0 0
        %7944 = vmatprep.subr.bf16.mxu0 0
        %7945 = vmatpush2.bf16.xpose.msra.mxu0 0
        %7946 = vmatprep.subr.bf16.mxu0 0
        %7947 = vmatpush2.bf16.xpose.msra.mxu0 0
        %7948 = vmatprep.subr.bf16.mxu0 0
        %7949 = vmatpush2.bf16.xpose.msra.mxu0 0
        %7950 = vmatprep.subr.bf16.mxu0 0
        %7951 = vmatpush2.bf16.xpose.msra.mxu0 0
        %7952 = vmatprep.subr.bf16.mxu0 0
        %7953 = vmatpush2.bf16.xpose.msra.mxu0 0
        %7954 = vmatprep.subr.bf16.mxu0 0
        %7955 = vmatpush2.bf16.xpose.msra.mxu0 0
        %7956 = vmatprep.mubr.bf16.mxu0 %v1609
        %7957 = vmatmul.mubr.bf16.gmra.mxu0 %v1608
        %v7958 = vpop.f32.mrf.mxu0
        %v7959 = vadd.f32 %v7919, %v7958
        %v7960 = vpop.f32.mrf.mxu0
        %v7961 = vpop.f32.mrf.mxu0
        %v7962 = vpop.f32.mrf.mxu0
        %7963 = vdwg.mxu0
        %7964 = vmatprep.subr.bf16.mxu0 0
        %7965 = vmatpush1.bf16.xpose.msra.mxu0 0
        %7966 = vmatprep.subr.bf16.mxu0 0
        %7967 = vmatpush1.bf16.xpose.msra.mxu0 0
        %7968 = vmatprep.subr.bf16.mxu0 0
        %7969 = vmatpush1.bf16.xpose.msra.mxu0 0
        %7970 = vmatprep.subr.bf16.mxu0 0
        %7971 = vmatpush1.bf16.xpose.msra.mxu0 0
        %7972 = vmatprep.subr.bf16.mxu0 0
        %7973 = vmatpush1.bf16.xpose.msra.mxu0 0
        %7974 = vmatprep.subr.bf16.mxu0 0
        %7975 = vmatpush1.bf16.xpose.msra.mxu0 0
        %7976 = vmatprep.subr.bf16.mxu0 0
        %7977 = vmatpush1.bf16.xpose.msra.mxu0 0
        %7978 = vmatprep.subr.bf16.mxu0 %v3571
        %7979 = vmatpush1.bf16.xpose.msra.mxu0 %v3570
        %7980 = vmatprep.subr.bf16.mxu0 0
        %7981 = vmatpush2.bf16.xpose.msra.mxu0 0
        %7982 = vmatprep.subr.bf16.mxu0 0
        %7983 = vmatpush2.bf16.xpose.msra.mxu0 0
        %7984 = vmatprep.subr.bf16.mxu0 0
        %7985 = vmatpush2.bf16.xpose.msra.mxu0 0
        %7986 = vmatprep.subr.bf16.mxu0 0
        %7987 = vmatpush2.bf16.xpose.msra.mxu0 0
        %7988 = vmatprep.subr.bf16.mxu0 0
        %7989 = vmatpush2.bf16.xpose.msra.mxu0 0
        %7990 = vmatprep.subr.bf16.mxu0 0
        %7991 = vmatpush2.bf16.xpose.msra.mxu0 0
        %7992 = vmatprep.subr.bf16.mxu0 0
        %7993 = vmatpush2.bf16.xpose.msra.mxu0 0
        %7994 = vmatprep.subr.bf16.mxu0 0
        %7995 = vmatpush2.bf16.xpose.msra.mxu0 0
        %7996 = vmatprep.mubr.bf16.mxu0 %v1611
        %7997 = vmatmul.mubr.bf16.gmra.mxu0 %v1610
        %v7998 = vpop.f32.mrf.mxu0
        %v7999 = vadd.f32 %v7959, %v7998
        %v8000 = vpop.f32.mrf.mxu0
        %v8001 = vpop.f32.mrf.mxu0
        %v8002 = vpop.f32.mrf.mxu0
        %8003 = vdwg.mxu0
        %8004 = vmatprep.subr.bf16.mxu0 0
        %8005 = vmatpush1.bf16.xpose.msra.mxu0 0
        %8006 = vmatprep.subr.bf16.mxu0 0
        %8007 = vmatpush1.bf16.xpose.msra.mxu0 0
        %8008 = vmatprep.subr.bf16.mxu0 0
        %8009 = vmatpush1.bf16.xpose.msra.mxu0 0
        %8010 = vmatprep.subr.bf16.mxu0 0
        %8011 = vmatpush1.bf16.xpose.msra.mxu0 0
        %8012 = vmatprep.subr.bf16.mxu0 0
        %8013 = vmatpush1.bf16.xpose.msra.mxu0 0
        %8014 = vmatprep.subr.bf16.mxu0 0
        %8015 = vmatpush1.bf16.xpose.msra.mxu0 0
        %8016 = vmatprep.subr.bf16.mxu0 0
        %8017 = vmatpush1.bf16.xpose.msra.mxu0 0
        %8018 = vmatprep.subr.bf16.mxu0 %v3573
        %8019 = vmatpush1.bf16.xpose.msra.mxu0 %v3572
        %8020 = vmatprep.subr.bf16.mxu0 0
        %8021 = vmatpush2.bf16.xpose.msra.mxu0 0
        %8022 = vmatprep.subr.bf16.mxu0 0
        %8023 = vmatpush2.bf16.xpose.msra.mxu0 0
        %8024 = vmatprep.subr.bf16.mxu0 0
        %8025 = vmatpush2.bf16.xpose.msra.mxu0 0
        %8026 = vmatprep.subr.bf16.mxu0 0
        %8027 = vmatpush2.bf16.xpose.msra.mxu0 0
        %8028 = vmatprep.subr.bf16.mxu0 0
        %8029 = vmatpush2.bf16.xpose.msra.mxu0 0
        %8030 = vmatprep.subr.bf16.mxu0 0
        %8031 = vmatpush2.bf16.xpose.msra.mxu0 0
        %8032 = vmatprep.subr.bf16.mxu0 0
        %8033 = vmatpush2.bf16.xpose.msra.mxu0 0
        %8034 = vmatprep.subr.bf16.mxu0 0
        %8035 = vmatpush2.bf16.xpose.msra.mxu0 0
        %8036 = vmatprep.mubr.bf16.mxu0 %v1613
        %8037 = vmatmul.mubr.bf16.gmra.mxu0 %v1612
        %v8038 = vpop.f32.mrf.mxu0
        %v8039 = vadd.f32 %v7999, %v8038
        %v8040 = vpop.f32.mrf.mxu0
        %v8041 = vpop.f32.mrf.mxu0
        %v8042 = vpop.f32.mrf.mxu0
        %8043 = vdwg.mxu0
        %8044 = vmatprep.subr.bf16.mxu0 0
        %8045 = vmatpush1.bf16.xpose.msra.mxu0 0
        %8046 = vmatprep.subr.bf16.mxu0 0
        %8047 = vmatpush1.bf16.xpose.msra.mxu0 0
        %8048 = vmatprep.subr.bf16.mxu0 0
        %8049 = vmatpush1.bf16.xpose.msra.mxu0 0
        %8050 = vmatprep.subr.bf16.mxu0 0
        %8051 = vmatpush1.bf16.xpose.msra.mxu0 0
        %8052 = vmatprep.subr.bf16.mxu0 0
        %8053 = vmatpush1.bf16.xpose.msra.mxu0 0
        %8054 = vmatprep.subr.bf16.mxu0 0
        %8055 = vmatpush1.bf16.xpose.msra.mxu0 0
        %8056 = vmatprep.subr.bf16.mxu0 0
        %8057 = vmatpush1.bf16.xpose.msra.mxu0 0
        %8058 = vmatprep.subr.bf16.mxu0 %v3575
        %8059 = vmatpush1.bf16.xpose.msra.mxu0 %v3574
        %8060 = vmatprep.subr.bf16.mxu0 0
        %8061 = vmatpush2.bf16.xpose.msra.mxu0 0
        %8062 = vmatprep.subr.bf16.mxu0 0
        %8063 = vmatpush2.bf16.xpose.msra.mxu0 0
        %8064 = vmatprep.subr.bf16.mxu0 0
        %8065 = vmatpush2.bf16.xpose.msra.mxu0 0
        %8066 = vmatprep.subr.bf16.mxu0 0
        %8067 = vmatpush2.bf16.xpose.msra.mxu0 0
        %8068 = vmatprep.subr.bf16.mxu0 0
        %8069 = vmatpush2.bf16.xpose.msra.mxu0 0
        %8070 = vmatprep.subr.bf16.mxu0 0
        %8071 = vmatpush2.bf16.xpose.msra.mxu0 0
        %8072 = vmatprep.subr.bf16.mxu0 0
        %8073 = vmatpush2.bf16.xpose.msra.mxu0 0
        %8074 = vmatprep.subr.bf16.mxu0 0
        %8075 = vmatpush2.bf16.xpose.msra.mxu0 0
        %8076 = vmatprep.mubr.bf16.mxu0 %v1615
        %8077 = vmatmul.mubr.bf16.gmra.mxu0 %v1614
        %v8078 = vpop.f32.mrf.mxu0
        %v8079 = vadd.f32 %v8039, %v8078
        %v8080 = vpop.f32.mrf.mxu0
        %v8081 = vpop.f32.mrf.mxu0
        %v8082 = vpop.f32.mrf.mxu0
        %8083 = vdwg.mxu0
        %8084 = vmatprep.subr.bf16.mxu0 0
        %8085 = vmatpush1.bf16.xpose.msra.mxu0 0
        %8086 = vmatprep.subr.bf16.mxu0 0
        %8087 = vmatpush1.bf16.xpose.msra.mxu0 0
        %8088 = vmatprep.subr.bf16.mxu0 0
        %8089 = vmatpush1.bf16.xpose.msra.mxu0 0
        %8090 = vmatprep.subr.bf16.mxu0 0
        %8091 = vmatpush1.bf16.xpose.msra.mxu0 0
        %8092 = vmatprep.subr.bf16.mxu0 0
        %8093 = vmatpush1.bf16.xpose.msra.mxu0 0
        %8094 = vmatprep.subr.bf16.mxu0 0
        %8095 = vmatpush1.bf16.xpose.msra.mxu0 0
        %8096 = vmatprep.subr.bf16.mxu0 0
        %8097 = vmatpush1.bf16.xpose.msra.mxu0 0
        %8098 = vmatprep.subr.bf16.mxu0 %v3577
        %8099 = vmatpush1.bf16.xpose.msra.mxu0 %v3576
        %8100 = vmatprep.subr.bf16.mxu0 0
        %8101 = vmatpush2.bf16.xpose.msra.mxu0 0
        %8102 = vmatprep.subr.bf16.mxu0 0
        %8103 = vmatpush2.bf16.xpose.msra.mxu0 0
        %8104 = vmatprep.subr.bf16.mxu0 0
        %8105 = vmatpush2.bf16.xpose.msra.mxu0 0
        %8106 = vmatprep.subr.bf16.mxu0 0
        %8107 = vmatpush2.bf16.xpose.msra.mxu0 0
        %8108 = vmatprep.subr.bf16.mxu0 0
        %8109 = vmatpush2.bf16.xpose.msra.mxu0 0
        %8110 = vmatprep.subr.bf16.mxu0 0
        %8111 = vmatpush2.bf16.xpose.msra.mxu0 0
        %8112 = vmatprep.subr.bf16.mxu0 0
        %8113 = vmatpush2.bf16.xpose.msra.mxu0 0
        %8114 = vmatprep.subr.bf16.mxu0 0
        %8115 = vmatpush2.bf16.xpose.msra.mxu0 0
        %8116 = vmatprep.mubr.bf16.mxu0 %v1617
        %8117 = vmatmul.mubr.bf16.gmra.mxu0 %v1616
        %v8118 = vpop.f32.mrf.mxu0
        %v8119 = vadd.f32 %v8079, %v8118
        %v8120 = vpop.f32.mrf.mxu0
        %v8121 = vpop.f32.mrf.mxu0
        %v8122 = vpop.f32.mrf.mxu0
        %8123 = vdwg.mxu0
        %8124 = vmatprep.subr.bf16.mxu0 0
        %8125 = vmatpush1.bf16.xpose.msra.mxu0 0
        %8126 = vmatprep.subr.bf16.mxu0 0
        %8127 = vmatpush1.bf16.xpose.msra.mxu0 0
        %8128 = vmatprep.subr.bf16.mxu0 0
        %8129 = vmatpush1.bf16.xpose.msra.mxu0 0
        %8130 = vmatprep.subr.bf16.mxu0 0
        %8131 = vmatpush1.bf16.xpose.msra.mxu0 0
        %8132 = vmatprep.subr.bf16.mxu0 0
        %8133 = vmatpush1.bf16.xpose.msra.mxu0 0
        %8134 = vmatprep.subr.bf16.mxu0 0
        %8135 = vmatpush1.bf16.xpose.msra.mxu0 0
        %8136 = vmatprep.subr.bf16.mxu0 0
        %8137 = vmatpush1.bf16.xpose.msra.mxu0 0
        %8138 = vmatprep.subr.bf16.mxu0 %v3579
        %8139 = vmatpush1.bf16.xpose.msra.mxu0 %v3578
        %8140 = vmatprep.subr.bf16.mxu0 0
        %8141 = vmatpush2.bf16.xpose.msra.mxu0 0
        %8142 = vmatprep.subr.bf16.mxu0 0
        %8143 = vmatpush2.bf16.xpose.msra.mxu0 0
        %8144 = vmatprep.subr.bf16.mxu0 0
        %8145 = vmatpush2.bf16.xpose.msra.mxu0 0
        %8146 = vmatprep.subr.bf16.mxu0 0
        %8147 = vmatpush2.bf16.xpose.msra.mxu0 0
        %8148 = vmatprep.subr.bf16.mxu0 0
        %8149 = vmatpush2.bf16.xpose.msra.mxu0 0
        %8150 = vmatprep.subr.bf16.mxu0 0
        %8151 = vmatpush2.bf16.xpose.msra.mxu0 0
        %8152 = vmatprep.subr.bf16.mxu0 0
        %8153 = vmatpush2.bf16.xpose.msra.mxu0 0
        %8154 = vmatprep.subr.bf16.mxu0 0
        %8155 = vmatpush2.bf16.xpose.msra.mxu0 0
        %8156 = vmatprep.mubr.bf16.mxu0 %v1619
        %8157 = vmatmul.mubr.bf16.gmra.mxu0 %v1618
        %v8158 = vpop.f32.mrf.mxu0
        %v8159 = vadd.f32 %v8119, %v8158
        %v8160 = vpop.f32.mrf.mxu0
        %v8161 = vpop.f32.mrf.mxu0
        %v8162 = vpop.f32.mrf.mxu0
        %8163 = vdwg.mxu0
        %8164 = vmatprep.subr.bf16.mxu0 0
        %8165 = vmatpush1.bf16.xpose.msra.mxu0 0
        %8166 = vmatprep.subr.bf16.mxu0 0
        %8167 = vmatpush1.bf16.xpose.msra.mxu0 0
        %8168 = vmatprep.subr.bf16.mxu0 0
        %8169 = vmatpush1.bf16.xpose.msra.mxu0 0
        %8170 = vmatprep.subr.bf16.mxu0 0
        %8171 = vmatpush1.bf16.xpose.msra.mxu0 0
        %8172 = vmatprep.subr.bf16.mxu0 0
        %8173 = vmatpush1.bf16.xpose.msra.mxu0 0
        %8174 = vmatprep.subr.bf16.mxu0 0
        %8175 = vmatpush1.bf16.xpose.msra.mxu0 0
        %8176 = vmatprep.subr.bf16.mxu0 0
        %8177 = vmatpush1.bf16.xpose.msra.mxu0 0
        %8178 = vmatprep.subr.bf16.mxu0 %v3581
        %8179 = vmatpush1.bf16.xpose.msra.mxu0 %v3580
        %8180 = vmatprep.subr.bf16.mxu0 0
        %8181 = vmatpush2.bf16.xpose.msra.mxu0 0
        %8182 = vmatprep.subr.bf16.mxu0 0
        %8183 = vmatpush2.bf16.xpose.msra.mxu0 0
        %8184 = vmatprep.subr.bf16.mxu0 0
        %8185 = vmatpush2.bf16.xpose.msra.mxu0 0
        %8186 = vmatprep.subr.bf16.mxu0 0
        %8187 = vmatpush2.bf16.xpose.msra.mxu0 0
        %8188 = vmatprep.subr.bf16.mxu0 0
        %8189 = vmatpush2.bf16.xpose.msra.mxu0 0
        %8190 = vmatprep.subr.bf16.mxu0 0
        %8191 = vmatpush2.bf16.xpose.msra.mxu0 0
        %8192 = vmatprep.subr.bf16.mxu0 0
        %8193 = vmatpush2.bf16.xpose.msra.mxu0 0
        %8194 = vmatprep.subr.bf16.mxu0 0
        %8195 = vmatpush2.bf16.xpose.msra.mxu0 0
        %8196 = vmatprep.mubr.bf16.mxu0 %v1621
        %8197 = vmatmul.mubr.bf16.gmra.mxu0 %v1620
        %v8198 = vpop.f32.mrf.mxu0
        %v8199 = vadd.f32 %v8159, %v8198
        %v8200 = vpop.f32.mrf.mxu0
        %v8201 = vpop.f32.mrf.mxu0
        %v8202 = vpop.f32.mrf.mxu0
        %8203 = vdwg.mxu0
        %8204 = vmatprep.subr.bf16.mxu0 0
        %8205 = vmatpush1.bf16.xpose.msra.mxu0 0
        %8206 = vmatprep.subr.bf16.mxu0 0
        %8207 = vmatpush1.bf16.xpose.msra.mxu0 0
        %8208 = vmatprep.subr.bf16.mxu0 0
        %8209 = vmatpush1.bf16.xpose.msra.mxu0 0
        %8210 = vmatprep.subr.bf16.mxu0 0
        %8211 = vmatpush1.bf16.xpose.msra.mxu0 0
        %8212 = vmatprep.subr.bf16.mxu0 0
        %8213 = vmatpush1.bf16.xpose.msra.mxu0 0
        %8214 = vmatprep.subr.bf16.mxu0 0
        %8215 = vmatpush1.bf16.xpose.msra.mxu0 0
        %8216 = vmatprep.subr.bf16.mxu0 0
        %8217 = vmatpush1.bf16.xpose.msra.mxu0 0
        %8218 = vmatprep.subr.bf16.mxu0 %v3583
        %8219 = vmatpush1.bf16.xpose.msra.mxu0 %v3582
        %8220 = vmatprep.subr.bf16.mxu0 0
        %8221 = vmatpush2.bf16.xpose.msra.mxu0 0
        %8222 = vmatprep.subr.bf16.mxu0 0
        %8223 = vmatpush2.bf16.xpose.msra.mxu0 0
        %8224 = vmatprep.subr.bf16.mxu0 0
        %8225 = vmatpush2.bf16.xpose.msra.mxu0 0
        %8226 = vmatprep.subr.bf16.mxu0 0
        %8227 = vmatpush2.bf16.xpose.msra.mxu0 0
        %8228 = vmatprep.subr.bf16.mxu0 0
        %8229 = vmatpush2.bf16.xpose.msra.mxu0 0
        %8230 = vmatprep.subr.bf16.mxu0 0
        %8231 = vmatpush2.bf16.xpose.msra.mxu0 0
        %8232 = vmatprep.subr.bf16.mxu0 0
        %8233 = vmatpush2.bf16.xpose.msra.mxu0 0
        %8234 = vmatprep.subr.bf16.mxu0 0
        %8235 = vmatpush2.bf16.xpose.msra.mxu0 0
        %8236 = vmatprep.mubr.bf16.mxu0 %v1623
        %8237 = vmatmul.mubr.bf16.gmra.mxu0 %v1622
        %v8238 = vpop.f32.mrf.mxu0
        %v8239 = vadd.f32 %v8199, %v8238
        %v8240 = vpop.f32.mrf.mxu0
        %v8241 = vpop.f32.mrf.mxu0
        %v8242 = vpop.f32.mrf.mxu0
        %8243 = vdwg.mxu0
        %8244 = vmatprep.subr.bf16.mxu0 0
        %8245 = vmatpush1.bf16.xpose.msra.mxu0 0
        %8246 = vmatprep.subr.bf16.mxu0 0
        %8247 = vmatpush1.bf16.xpose.msra.mxu0 0
        %8248 = vmatprep.subr.bf16.mxu0 0
        %8249 = vmatpush1.bf16.xpose.msra.mxu0 0
        %8250 = vmatprep.subr.bf16.mxu0 0
        %8251 = vmatpush1.bf16.xpose.msra.mxu0 0
        %8252 = vmatprep.subr.bf16.mxu0 0
        %8253 = vmatpush1.bf16.xpose.msra.mxu0 0
        %8254 = vmatprep.subr.bf16.mxu0 0
        %8255 = vmatpush1.bf16.xpose.msra.mxu0 0
        %8256 = vmatprep.subr.bf16.mxu0 0
        %8257 = vmatpush1.bf16.xpose.msra.mxu0 0
        %8258 = vmatprep.subr.bf16.mxu0 %v3585
        %8259 = vmatpush1.bf16.xpose.msra.mxu0 %v3584
        %8260 = vmatprep.subr.bf16.mxu0 0
        %8261 = vmatpush2.bf16.xpose.msra.mxu0 0
        %8262 = vmatprep.subr.bf16.mxu0 0
        %8263 = vmatpush2.bf16.xpose.msra.mxu0 0
        %8264 = vmatprep.subr.bf16.mxu0 0
        %8265 = vmatpush2.bf16.xpose.msra.mxu0 0
        %8266 = vmatprep.subr.bf16.mxu0 0
        %8267 = vmatpush2.bf16.xpose.msra.mxu0 0
        %8268 = vmatprep.subr.bf16.mxu0 0
        %8269 = vmatpush2.bf16.xpose.msra.mxu0 0
        %8270 = vmatprep.subr.bf16.mxu0 0
        %8271 = vmatpush2.bf16.xpose.msra.mxu0 0
        %8272 = vmatprep.subr.bf16.mxu0 0
        %8273 = vmatpush2.bf16.xpose.msra.mxu0 0
        %8274 = vmatprep.subr.bf16.mxu0 0
        %8275 = vmatpush2.bf16.xpose.msra.mxu0 0
        %8276 = vmatprep.mubr.bf16.mxu0 %v1625
        %8277 = vmatmul.mubr.bf16.gmra.mxu0 %v1624
        %v8278 = vpop.f32.mrf.mxu0
        %v8279 = vadd.f32 %v8239, %v8278
        %v8280 = vpop.f32.mrf.mxu0
        %v8281 = vpop.f32.mrf.mxu0
        %v8282 = vpop.f32.mrf.mxu0
        %8283 = vdwg.mxu0
        %8284 = vmatprep.subr.bf16.mxu0 0
        %8285 = vmatpush1.bf16.xpose.msra.mxu0 0
        %8286 = vmatprep.subr.bf16.mxu0 0
        %8287 = vmatpush1.bf16.xpose.msra.mxu0 0
        %8288 = vmatprep.subr.bf16.mxu0 0
        %8289 = vmatpush1.bf16.xpose.msra.mxu0 0
        %8290 = vmatprep.subr.bf16.mxu0 0
        %8291 = vmatpush1.bf16.xpose.msra.mxu0 0
        %8292 = vmatprep.subr.bf16.mxu0 0
        %8293 = vmatpush1.bf16.xpose.msra.mxu0 0
        %8294 = vmatprep.subr.bf16.mxu0 0
        %8295 = vmatpush1.bf16.xpose.msra.mxu0 0
        %8296 = vmatprep.subr.bf16.mxu0 0
        %8297 = vmatpush1.bf16.xpose.msra.mxu0 0
        %8298 = vmatprep.subr.bf16.mxu0 %v3587
        %8299 = vmatpush1.bf16.xpose.msra.mxu0 %v3586
        %8300 = vmatprep.subr.bf16.mxu0 0
        %8301 = vmatpush2.bf16.xpose.msra.mxu0 0
        %8302 = vmatprep.subr.bf16.mxu0 0
        %8303 = vmatpush2.bf16.xpose.msra.mxu0 0
        %8304 = vmatprep.subr.bf16.mxu0 0
        %8305 = vmatpush2.bf16.xpose.msra.mxu0 0
        %8306 = vmatprep.subr.bf16.mxu0 0
        %8307 = vmatpush2.bf16.xpose.msra.mxu0 0
        %8308 = vmatprep.subr.bf16.mxu0 0
        %8309 = vmatpush2.bf16.xpose.msra.mxu0 0
        %8310 = vmatprep.subr.bf16.mxu0 0
        %8311 = vmatpush2.bf16.xpose.msra.mxu0 0
        %8312 = vmatprep.subr.bf16.mxu0 0
        %8313 = vmatpush2.bf16.xpose.msra.mxu0 0
        %8314 = vmatprep.subr.bf16.mxu0 0
        %8315 = vmatpush2.bf16.xpose.msra.mxu0 0
        %8316 = vmatprep.mubr.bf16.mxu0 %v1627
        %8317 = vmatmul.mubr.bf16.gmra.mxu0 %v1626
        %v8318 = vpop.f32.mrf.mxu0
        %v8319 = vadd.f32 %v8279, %v8318
        %v8320 = vpop.f32.mrf.mxu0
        %v8321 = vpop.f32.mrf.mxu0
        %v8322 = vpop.f32.mrf.mxu0
        %8323 = vdwg.mxu0
        %8324 = vmatprep.subr.bf16.mxu0 0
        %8325 = vmatpush1.bf16.xpose.msra.mxu0 0
        %8326 = vmatprep.subr.bf16.mxu0 0
        %8327 = vmatpush1.bf16.xpose.msra.mxu0 0
        %8328 = vmatprep.subr.bf16.mxu0 0
        %8329 = vmatpush1.bf16.xpose.msra.mxu0 0
        %8330 = vmatprep.subr.bf16.mxu0 0
        %8331 = vmatpush1.bf16.xpose.msra.mxu0 0
        %8332 = vmatprep.subr.bf16.mxu0 0
        %8333 = vmatpush1.bf16.xpose.msra.mxu0 0
        %8334 = vmatprep.subr.bf16.mxu0 0
        %8335 = vmatpush1.bf16.xpose.msra.mxu0 0
        %8336 = vmatprep.subr.bf16.mxu0 0
        %8337 = vmatpush1.bf16.xpose.msra.mxu0 0
        %8338 = vmatprep.subr.bf16.mxu0 %v3589
        %8339 = vmatpush1.bf16.xpose.msra.mxu0 %v3588
        %8340 = vmatprep.subr.bf16.mxu0 0
        %8341 = vmatpush2.bf16.xpose.msra.mxu0 0
        %8342 = vmatprep.subr.bf16.mxu0 0
        %8343 = vmatpush2.bf16.xpose.msra.mxu0 0
        %8344 = vmatprep.subr.bf16.mxu0 0
        %8345 = vmatpush2.bf16.xpose.msra.mxu0 0
        %8346 = vmatprep.subr.bf16.mxu0 0
        %8347 = vmatpush2.bf16.xpose.msra.mxu0 0
        %8348 = vmatprep.subr.bf16.mxu0 0
        %8349 = vmatpush2.bf16.xpose.msra.mxu0 0
        %8350 = vmatprep.subr.bf16.mxu0 0
        %8351 = vmatpush2.bf16.xpose.msra.mxu0 0
        %8352 = vmatprep.subr.bf16.mxu0 0
        %8353 = vmatpush2.bf16.xpose.msra.mxu0 0
        %8354 = vmatprep.subr.bf16.mxu0 0
        %8355 = vmatpush2.bf16.xpose.msra.mxu0 0
        %8356 = vmatprep.mubr.bf16.mxu0 %v1629
        %8357 = vmatmul.mubr.bf16.gmra.mxu0 %v1628
        %v8358 = vpop.f32.mrf.mxu0
        %v8359 = vadd.f32 %v8319, %v8358
        %v8360 = vpop.f32.mrf.mxu0
        %v8361 = vpop.f32.mrf.mxu0
        %v8362 = vpop.f32.mrf.mxu0
        %8363 = vdwg.mxu0
        %8364 = vmatprep.subr.bf16.mxu0 0
        %8365 = vmatpush1.bf16.xpose.msra.mxu0 0
        %8366 = vmatprep.subr.bf16.mxu0 0
        %8367 = vmatpush1.bf16.xpose.msra.mxu0 0
        %8368 = vmatprep.subr.bf16.mxu0 0
        %8369 = vmatpush1.bf16.xpose.msra.mxu0 0
        %8370 = vmatprep.subr.bf16.mxu0 0
        %8371 = vmatpush1.bf16.xpose.msra.mxu0 0
        %8372 = vmatprep.subr.bf16.mxu0 0
        %8373 = vmatpush1.bf16.xpose.msra.mxu0 0
        %8374 = vmatprep.subr.bf16.mxu0 0
        %8375 = vmatpush1.bf16.xpose.msra.mxu0 0
        %8376 = vmatprep.subr.bf16.mxu0 0
        %8377 = vmatpush1.bf16.xpose.msra.mxu0 0
        %8378 = vmatprep.subr.bf16.mxu0 %v3591
        %8379 = vmatpush1.bf16.xpose.msra.mxu0 %v3590
        %8380 = vmatprep.subr.bf16.mxu0 0
        %8381 = vmatpush2.bf16.xpose.msra.mxu0 0
        %8382 = vmatprep.subr.bf16.mxu0 0
        %8383 = vmatpush2.bf16.xpose.msra.mxu0 0
        %8384 = vmatprep.subr.bf16.mxu0 0
        %8385 = vmatpush2.bf16.xpose.msra.mxu0 0
        %8386 = vmatprep.subr.bf16.mxu0 0
        %8387 = vmatpush2.bf16.xpose.msra.mxu0 0
        %8388 = vmatprep.subr.bf16.mxu0 0
        %8389 = vmatpush2.bf16.xpose.msra.mxu0 0
        %8390 = vmatprep.subr.bf16.mxu0 0
        %8391 = vmatpush2.bf16.xpose.msra.mxu0 0
        %8392 = vmatprep.subr.bf16.mxu0 0
        %8393 = vmatpush2.bf16.xpose.msra.mxu0 0
        %8394 = vmatprep.subr.bf16.mxu0 0
        %8395 = vmatpush2.bf16.xpose.msra.mxu0 0
        %8396 = vmatprep.mubr.bf16.mxu0 %v1631
        %8397 = vmatmul.mubr.bf16.gmra.mxu0 %v1630
        %v8398 = vpop.f32.mrf.mxu0
        %v8399 = vadd.f32 %v8359, %v8398
        %v8400 = vpop.f32.mrf.mxu0
        %v8401 = vpop.f32.mrf.mxu0
        %v8402 = vpop.f32.mrf.mxu0
        %8403 = vdwg.mxu0
        %8404 = vmatprep.subr.bf16.mxu0 0
        %8405 = vmatpush1.bf16.xpose.msra.mxu0 0
        %8406 = vmatprep.subr.bf16.mxu0 0
        %8407 = vmatpush1.bf16.xpose.msra.mxu0 0
        %8408 = vmatprep.subr.bf16.mxu0 0
        %8409 = vmatpush1.bf16.xpose.msra.mxu0 0
        %8410 = vmatprep.subr.bf16.mxu0 0
        %8411 = vmatpush1.bf16.xpose.msra.mxu0 0
        %8412 = vmatprep.subr.bf16.mxu0 0
        %8413 = vmatpush1.bf16.xpose.msra.mxu0 0
        %8414 = vmatprep.subr.bf16.mxu0 0
        %8415 = vmatpush1.bf16.xpose.msra.mxu0 0
        %8416 = vmatprep.subr.bf16.mxu0 0
        %8417 = vmatpush1.bf16.xpose.msra.mxu0 0
        %8418 = vmatprep.subr.bf16.mxu0 %v3593
        %8419 = vmatpush1.bf16.xpose.msra.mxu0 %v3592
        %8420 = vmatprep.subr.bf16.mxu0 0
        %8421 = vmatpush2.bf16.xpose.msra.mxu0 0
        %8422 = vmatprep.subr.bf16.mxu0 0
        %8423 = vmatpush2.bf16.xpose.msra.mxu0 0
        %8424 = vmatprep.subr.bf16.mxu0 0
        %8425 = vmatpush2.bf16.xpose.msra.mxu0 0
        %8426 = vmatprep.subr.bf16.mxu0 0
        %8427 = vmatpush2.bf16.xpose.msra.mxu0 0
        %8428 = vmatprep.subr.bf16.mxu0 0
        %8429 = vmatpush2.bf16.xpose.msra.mxu0 0
        %8430 = vmatprep.subr.bf16.mxu0 0
        %8431 = vmatpush2.bf16.xpose.msra.mxu0 0
        %8432 = vmatprep.subr.bf16.mxu0 0
        %8433 = vmatpush2.bf16.xpose.msra.mxu0 0
        %8434 = vmatprep.subr.bf16.mxu0 0
        %8435 = vmatpush2.bf16.xpose.msra.mxu0 0
        %8436 = vmatprep.mubr.bf16.mxu0 %v1633
        %8437 = vmatmul.mubr.bf16.gmra.mxu0 %v1632
        %v8438 = vpop.f32.mrf.mxu0
        %v8439 = vadd.f32 %v8399, %v8438
        %v8440 = vpop.f32.mrf.mxu0
        %v8441 = vpop.f32.mrf.mxu0
        %v8442 = vpop.f32.mrf.mxu0
        %8443 = vdwg.mxu0
        %8444 = vmatprep.subr.bf16.mxu0 0
        %8445 = vmatpush1.bf16.xpose.msra.mxu0 0
        %8446 = vmatprep.subr.bf16.mxu0 0
        %8447 = vmatpush1.bf16.xpose.msra.mxu0 0
        %8448 = vmatprep.subr.bf16.mxu0 0
        %8449 = vmatpush1.bf16.xpose.msra.mxu0 0
        %8450 = vmatprep.subr.bf16.mxu0 0
        %8451 = vmatpush1.bf16.xpose.msra.mxu0 0
        %8452 = vmatprep.subr.bf16.mxu0 0
        %8453 = vmatpush1.bf16.xpose.msra.mxu0 0
        %8454 = vmatprep.subr.bf16.mxu0 0
        %8455 = vmatpush1.bf16.xpose.msra.mxu0 0
        %8456 = vmatprep.subr.bf16.mxu0 0
        %8457 = vmatpush1.bf16.xpose.msra.mxu0 0
        %8458 = vmatprep.subr.bf16.mxu0 %v3595
        %8459 = vmatpush1.bf16.xpose.msra.mxu0 %v3594
        %8460 = vmatprep.subr.bf16.mxu0 0
        %8461 = vmatpush2.bf16.xpose.msra.mxu0 0
        %8462 = vmatprep.subr.bf16.mxu0 0
        %8463 = vmatpush2.bf16.xpose.msra.mxu0 0
        %8464 = vmatprep.subr.bf16.mxu0 0
        %8465 = vmatpush2.bf16.xpose.msra.mxu0 0
        %8466 = vmatprep.subr.bf16.mxu0 0
        %8467 = vmatpush2.bf16.xpose.msra.mxu0 0
        %8468 = vmatprep.subr.bf16.mxu0 0
        %8469 = vmatpush2.bf16.xpose.msra.mxu0 0
        %8470 = vmatprep.subr.bf16.mxu0 0
        %8471 = vmatpush2.bf16.xpose.msra.mxu0 0
        %8472 = vmatprep.subr.bf16.mxu0 0
        %8473 = vmatpush2.bf16.xpose.msra.mxu0 0
        %8474 = vmatprep.subr.bf16.mxu0 0
        %8475 = vmatpush2.bf16.xpose.msra.mxu0 0
        %8476 = vmatprep.mubr.bf16.mxu0 %v1635
        %8477 = vmatmul.mubr.bf16.gmra.mxu0 %v1634
        %v8478 = vpop.f32.mrf.mxu0
        %v8479 = vadd.f32 %v8439, %v8478
        %v8480 = vpop.f32.mrf.mxu0
        %v8481 = vpop.f32.mrf.mxu0
        %v8482 = vpop.f32.mrf.mxu0
        %8483 = vdwg.mxu0
        %8484 = vmatprep.subr.bf16.mxu0 0
        %8485 = vmatpush1.bf16.xpose.msra.mxu0 0
        %8486 = vmatprep.subr.bf16.mxu0 0
        %8487 = vmatpush1.bf16.xpose.msra.mxu0 0
        %8488 = vmatprep.subr.bf16.mxu0 0
        %8489 = vmatpush1.bf16.xpose.msra.mxu0 0
        %8490 = vmatprep.subr.bf16.mxu0 0
        %8491 = vmatpush1.bf16.xpose.msra.mxu0 0
        %8492 = vmatprep.subr.bf16.mxu0 0
        %8493 = vmatpush1.bf16.xpose.msra.mxu0 0
        %8494 = vmatprep.subr.bf16.mxu0 0
        %8495 = vmatpush1.bf16.xpose.msra.mxu0 0
        %8496 = vmatprep.subr.bf16.mxu0 0
        %8497 = vmatpush1.bf16.xpose.msra.mxu0 0
        %8498 = vmatprep.subr.bf16.mxu0 %v3597
        %8499 = vmatpush1.bf16.xpose.msra.mxu0 %v3596
        %8500 = vmatprep.subr.bf16.mxu0 0
        %8501 = vmatpush2.bf16.xpose.msra.mxu0 0
        %8502 = vmatprep.subr.bf16.mxu0 0
        %8503 = vmatpush2.bf16.xpose.msra.mxu0 0
        %8504 = vmatprep.subr.bf16.mxu0 0
        %8505 = vmatpush2.bf16.xpose.msra.mxu0 0
        %8506 = vmatprep.subr.bf16.mxu0 0
        %8507 = vmatpush2.bf16.xpose.msra.mxu0 0
        %8508 = vmatprep.subr.bf16.mxu0 0
        %8509 = vmatpush2.bf16.xpose.msra.mxu0 0
        %8510 = vmatprep.subr.bf16.mxu0 0
        %8511 = vmatpush2.bf16.xpose.msra.mxu0 0
        %8512 = vmatprep.subr.bf16.mxu0 0
        %8513 = vmatpush2.bf16.xpose.msra.mxu0 0
        %8514 = vmatprep.subr.bf16.mxu0 0
        %8515 = vmatpush2.bf16.xpose.msra.mxu0 0
        %8516 = vmatprep.mubr.bf16.mxu0 %v1637
        %8517 = vmatmul.mubr.bf16.gmra.mxu0 %v1636
        %v8518 = vpop.f32.mrf.mxu0
        %v8519 = vadd.f32 %v8479, %v8518
        %v8520 = vpop.f32.mrf.mxu0
        %v8521 = vpop.f32.mrf.mxu0
        %v8522 = vpop.f32.mrf.mxu0
        %8523 = vdwg.mxu0
        %8524 = vmatprep.subr.bf16.mxu0 0
        %8525 = vmatpush1.bf16.xpose.msra.mxu0 0
        %8526 = vmatprep.subr.bf16.mxu0 0
        %8527 = vmatpush1.bf16.xpose.msra.mxu0 0
        %8528 = vmatprep.subr.bf16.mxu0 0
        %8529 = vmatpush1.bf16.xpose.msra.mxu0 0
        %8530 = vmatprep.subr.bf16.mxu0 0
        %8531 = vmatpush1.bf16.xpose.msra.mxu0 0
        %8532 = vmatprep.subr.bf16.mxu0 0
        %8533 = vmatpush1.bf16.xpose.msra.mxu0 0
        %8534 = vmatprep.subr.bf16.mxu0 0
        %8535 = vmatpush1.bf16.xpose.msra.mxu0 0
        %8536 = vmatprep.subr.bf16.mxu0 0
        %8537 = vmatpush1.bf16.xpose.msra.mxu0 0
        %8538 = vmatprep.subr.bf16.mxu0 %v3599
        %8539 = vmatpush1.bf16.xpose.msra.mxu0 %v3598
        %8540 = vmatprep.subr.bf16.mxu0 0
        %8541 = vmatpush2.bf16.xpose.msra.mxu0 0
        %8542 = vmatprep.subr.bf16.mxu0 0
        %8543 = vmatpush2.bf16.xpose.msra.mxu0 0
        %8544 = vmatprep.subr.bf16.mxu0 0
        %8545 = vmatpush2.bf16.xpose.msra.mxu0 0
        %8546 = vmatprep.subr.bf16.mxu0 0
        %8547 = vmatpush2.bf16.xpose.msra.mxu0 0
        %8548 = vmatprep.subr.bf16.mxu0 0
        %8549 = vmatpush2.bf16.xpose.msra.mxu0 0
        %8550 = vmatprep.subr.bf16.mxu0 0
        %8551 = vmatpush2.bf16.xpose.msra.mxu0 0
        %8552 = vmatprep.subr.bf16.mxu0 0
        %8553 = vmatpush2.bf16.xpose.msra.mxu0 0
        %8554 = vmatprep.subr.bf16.mxu0 0
        %8555 = vmatpush2.bf16.xpose.msra.mxu0 0
        %8556 = vmatprep.mubr.bf16.mxu0 %v1639
        %8557 = vmatmul.mubr.bf16.gmra.mxu0 %v1638
        %v8558 = vpop.f32.mrf.mxu0
        %v8559 = vadd.f32 %v8519, %v8558
        %v8560 = vpop.f32.mrf.mxu0
        %v8561 = vpop.f32.mrf.mxu0
        %v8562 = vpop.f32.mrf.mxu0
        %8563 = vdwg.mxu0
        %8564 = vmatprep.subr.bf16.mxu0 0
        %8565 = vmatpush1.bf16.xpose.msra.mxu0 0
        %8566 = vmatprep.subr.bf16.mxu0 0
        %8567 = vmatpush1.bf16.xpose.msra.mxu0 0
        %8568 = vmatprep.subr.bf16.mxu0 0
        %8569 = vmatpush1.bf16.xpose.msra.mxu0 0
        %8570 = vmatprep.subr.bf16.mxu0 0
        %8571 = vmatpush1.bf16.xpose.msra.mxu0 0
        %8572 = vmatprep.subr.bf16.mxu0 0
        %8573 = vmatpush1.bf16.xpose.msra.mxu0 0
        %8574 = vmatprep.subr.bf16.mxu0 0
        %8575 = vmatpush1.bf16.xpose.msra.mxu0 0
        %8576 = vmatprep.subr.bf16.mxu0 0
        %8577 = vmatpush1.bf16.xpose.msra.mxu0 0
        %8578 = vmatprep.subr.bf16.mxu0 %v3601
        %8579 = vmatpush1.bf16.xpose.msra.mxu0 %v3600
        %8580 = vmatprep.subr.bf16.mxu0 0
        %8581 = vmatpush2.bf16.xpose.msra.mxu0 0
        %8582 = vmatprep.subr.bf16.mxu0 0
        %8583 = vmatpush2.bf16.xpose.msra.mxu0 0
        %8584 = vmatprep.subr.bf16.mxu0 0
        %8585 = vmatpush2.bf16.xpose.msra.mxu0 0
        %8586 = vmatprep.subr.bf16.mxu0 0
        %8587 = vmatpush2.bf16.xpose.msra.mxu0 0
        %8588 = vmatprep.subr.bf16.mxu0 0
        %8589 = vmatpush2.bf16.xpose.msra.mxu0 0
        %8590 = vmatprep.subr.bf16.mxu0 0
        %8591 = vmatpush2.bf16.xpose.msra.mxu0 0
        %8592 = vmatprep.subr.bf16.mxu0 0
        %8593 = vmatpush2.bf16.xpose.msra.mxu0 0
        %8594 = vmatprep.subr.bf16.mxu0 0
        %8595 = vmatpush2.bf16.xpose.msra.mxu0 0
        %8596 = vmatprep.mubr.bf16.mxu0 %v1641
        %8597 = vmatmul.mubr.bf16.gmra.mxu0 %v1640
        %v8598 = vpop.f32.mrf.mxu0
        %v8599 = vadd.f32 %v8559, %v8598
        %v8600 = vpop.f32.mrf.mxu0
        %v8601 = vpop.f32.mrf.mxu0
        %v8602 = vpop.f32.mrf.mxu0
        %8603 = vdwg.mxu0
        %8604 = vmatprep.subr.bf16.mxu0 0
        %8605 = vmatpush1.bf16.xpose.msra.mxu0 0
        %8606 = vmatprep.subr.bf16.mxu0 0
        %8607 = vmatpush1.bf16.xpose.msra.mxu0 0
        %8608 = vmatprep.subr.bf16.mxu0 0
        %8609 = vmatpush1.bf16.xpose.msra.mxu0 0
        %8610 = vmatprep.subr.bf16.mxu0 0
        %8611 = vmatpush1.bf16.xpose.msra.mxu0 0
        %8612 = vmatprep.subr.bf16.mxu0 0
        %8613 = vmatpush1.bf16.xpose.msra.mxu0 0
        %8614 = vmatprep.subr.bf16.mxu0 0
        %8615 = vmatpush1.bf16.xpose.msra.mxu0 0
        %8616 = vmatprep.subr.bf16.mxu0 0
        %8617 = vmatpush1.bf16.xpose.msra.mxu0 0
        %8618 = vmatprep.subr.bf16.mxu0 %v3603
        %8619 = vmatpush1.bf16.xpose.msra.mxu0 %v3602
        %8620 = vmatprep.subr.bf16.mxu0 0
        %8621 = vmatpush2.bf16.xpose.msra.mxu0 0
        %8622 = vmatprep.subr.bf16.mxu0 0
        %8623 = vmatpush2.bf16.xpose.msra.mxu0 0
        %8624 = vmatprep.subr.bf16.mxu0 0
        %8625 = vmatpush2.bf16.xpose.msra.mxu0 0
        %8626 = vmatprep.subr.bf16.mxu0 0
        %8627 = vmatpush2.bf16.xpose.msra.mxu0 0
        %8628 = vmatprep.subr.bf16.mxu0 0
        %8629 = vmatpush2.bf16.xpose.msra.mxu0 0
        %8630 = vmatprep.subr.bf16.mxu0 0
        %8631 = vmatpush2.bf16.xpose.msra.mxu0 0
        %8632 = vmatprep.subr.bf16.mxu0 0
        %8633 = vmatpush2.bf16.xpose.msra.mxu0 0
        %8634 = vmatprep.subr.bf16.mxu0 0
        %8635 = vmatpush2.bf16.xpose.msra.mxu0 0
        %8636 = vmatprep.mubr.bf16.mxu0 %v1643
        %8637 = vmatmul.mubr.bf16.gmra.mxu0 %v1642
        %v8638 = vpop.f32.mrf.mxu0
        %v8639 = vadd.f32 %v8599, %v8638
        %v8640 = vpop.f32.mrf.mxu0
        %v8641 = vpop.f32.mrf.mxu0
        %v8642 = vpop.f32.mrf.mxu0
        %8643 = vdwg.mxu0
        %8644 = vmatprep.subr.bf16.mxu0 0
        %8645 = vmatpush1.bf16.xpose.msra.mxu0 0
        %8646 = vmatprep.subr.bf16.mxu0 0
        %8647 = vmatpush1.bf16.xpose.msra.mxu0 0
        %8648 = vmatprep.subr.bf16.mxu0 0
        %8649 = vmatpush1.bf16.xpose.msra.mxu0 0
        %8650 = vmatprep.subr.bf16.mxu0 0
        %8651 = vmatpush1.bf16.xpose.msra.mxu0 0
        %8652 = vmatprep.subr.bf16.mxu0 0
        %8653 = vmatpush1.bf16.xpose.msra.mxu0 0
        %8654 = vmatprep.subr.bf16.mxu0 0
        %8655 = vmatpush1.bf16.xpose.msra.mxu0 0
        %8656 = vmatprep.subr.bf16.mxu0 0
        %8657 = vmatpush1.bf16.xpose.msra.mxu0 0
        %8658 = vmatprep.subr.bf16.mxu0 %v3605
        %8659 = vmatpush1.bf16.xpose.msra.mxu0 %v3604
        %8660 = vmatprep.subr.bf16.mxu0 0
        %8661 = vmatpush2.bf16.xpose.msra.mxu0 0
        %8662 = vmatprep.subr.bf16.mxu0 0
        %8663 = vmatpush2.bf16.xpose.msra.mxu0 0
        %8664 = vmatprep.subr.bf16.mxu0 0
        %8665 = vmatpush2.bf16.xpose.msra.mxu0 0
        %8666 = vmatprep.subr.bf16.mxu0 0
        %8667 = vmatpush2.bf16.xpose.msra.mxu0 0
        %8668 = vmatprep.subr.bf16.mxu0 0
        %8669 = vmatpush2.bf16.xpose.msra.mxu0 0
        %8670 = vmatprep.subr.bf16.mxu0 0
        %8671 = vmatpush2.bf16.xpose.msra.mxu0 0
        %8672 = vmatprep.subr.bf16.mxu0 0
        %8673 = vmatpush2.bf16.xpose.msra.mxu0 0
        %8674 = vmatprep.subr.bf16.mxu0 0
        %8675 = vmatpush2.bf16.xpose.msra.mxu0 0
        %8676 = vmatprep.mubr.bf16.mxu0 %v1645
        %8677 = vmatmul.mubr.bf16.gmra.mxu0 %v1644
        %v8678 = vpop.f32.mrf.mxu0
        %v8679 = vadd.f32 %v8639, %v8678
        %v8680 = vpop.f32.mrf.mxu0
        %v8681 = vpop.f32.mrf.mxu0
        %v8682 = vpop.f32.mrf.mxu0
        %8683 = vdwg.mxu0
        %8684 = vmatprep.subr.bf16.mxu0 0
        %8685 = vmatpush1.bf16.xpose.msra.mxu0 0
        %8686 = vmatprep.subr.bf16.mxu0 0
        %8687 = vmatpush1.bf16.xpose.msra.mxu0 0
        %8688 = vmatprep.subr.bf16.mxu0 0
        %8689 = vmatpush1.bf16.xpose.msra.mxu0 0
        %8690 = vmatprep.subr.bf16.mxu0 0
        %8691 = vmatpush1.bf16.xpose.msra.mxu0 0
        %8692 = vmatprep.subr.bf16.mxu0 0
        %8693 = vmatpush1.bf16.xpose.msra.mxu0 0
        %8694 = vmatprep.subr.bf16.mxu0 0
        %8695 = vmatpush1.bf16.xpose.msra.mxu0 0
        %8696 = vmatprep.subr.bf16.mxu0 0
        %8697 = vmatpush1.bf16.xpose.msra.mxu0 0
        %8698 = vmatprep.subr.bf16.mxu0 %v3607
        %8699 = vmatpush1.bf16.xpose.msra.mxu0 %v3606
        %8700 = vmatprep.subr.bf16.mxu0 0
        %8701 = vmatpush2.bf16.xpose.msra.mxu0 0
        %8702 = vmatprep.subr.bf16.mxu0 0
        %8703 = vmatpush2.bf16.xpose.msra.mxu0 0
        %8704 = vmatprep.subr.bf16.mxu0 0
        %8705 = vmatpush2.bf16.xpose.msra.mxu0 0
        %8706 = vmatprep.subr.bf16.mxu0 0
        %8707 = vmatpush2.bf16.xpose.msra.mxu0 0
        %8708 = vmatprep.subr.bf16.mxu0 0
        %8709 = vmatpush2.bf16.xpose.msra.mxu0 0
        %8710 = vmatprep.subr.bf16.mxu0 0
        %8711 = vmatpush2.bf16.xpose.msra.mxu0 0
        %8712 = vmatprep.subr.bf16.mxu0 0
        %8713 = vmatpush2.bf16.xpose.msra.mxu0 0
        %8714 = vmatprep.subr.bf16.mxu0 0
        %8715 = vmatpush2.bf16.xpose.msra.mxu0 0
        %8716 = vmatprep.mubr.bf16.mxu0 %v1647
        %8717 = vmatmul.mubr.bf16.gmra.mxu0 %v1646
        %v8718 = vpop.f32.mrf.mxu0
        %v8719 = vadd.f32 %v8679, %v8718
        %v8720 = vpop.f32.mrf.mxu0
        %v8721 = vpop.f32.mrf.mxu0
        %v8722 = vpop.f32.mrf.mxu0
        %8723 = vdwg.mxu0
        %8724 = vmatprep.subr.bf16.mxu0 0
        %8725 = vmatpush1.bf16.xpose.msra.mxu0 0
        %8726 = vmatprep.subr.bf16.mxu0 0
        %8727 = vmatpush1.bf16.xpose.msra.mxu0 0
        %8728 = vmatprep.subr.bf16.mxu0 0
        %8729 = vmatpush1.bf16.xpose.msra.mxu0 0
        %8730 = vmatprep.subr.bf16.mxu0 0
        %8731 = vmatpush1.bf16.xpose.msra.mxu0 0
        %8732 = vmatprep.subr.bf16.mxu0 0
        %8733 = vmatpush1.bf16.xpose.msra.mxu0 0
        %8734 = vmatprep.subr.bf16.mxu0 0
        %8735 = vmatpush1.bf16.xpose.msra.mxu0 0
        %8736 = vmatprep.subr.bf16.mxu0 0
        %8737 = vmatpush1.bf16.xpose.msra.mxu0 0
        %8738 = vmatprep.subr.bf16.mxu0 %v3609
        %8739 = vmatpush1.bf16.xpose.msra.mxu0 %v3608
        %8740 = vmatprep.subr.bf16.mxu0 0
        %8741 = vmatpush2.bf16.xpose.msra.mxu0 0
        %8742 = vmatprep.subr.bf16.mxu0 0
        %8743 = vmatpush2.bf16.xpose.msra.mxu0 0
        %8744 = vmatprep.subr.bf16.mxu0 0
        %8745 = vmatpush2.bf16.xpose.msra.mxu0 0
        %8746 = vmatprep.subr.bf16.mxu0 0
        %8747 = vmatpush2.bf16.xpose.msra.mxu0 0
        %8748 = vmatprep.subr.bf16.mxu0 0
        %8749 = vmatpush2.bf16.xpose.msra.mxu0 0
        %8750 = vmatprep.subr.bf16.mxu0 0
        %8751 = vmatpush2.bf16.xpose.msra.mxu0 0
        %8752 = vmatprep.subr.bf16.mxu0 0
        %8753 = vmatpush2.bf16.xpose.msra.mxu0 0
        %8754 = vmatprep.subr.bf16.mxu0 0
        %8755 = vmatpush2.bf16.xpose.msra.mxu0 0
        %8756 = vmatprep.mubr.bf16.mxu0 %v1649
        %8757 = vmatmul.mubr.bf16.gmra.mxu0 %v1648
        %v8758 = vpop.f32.mrf.mxu0
        %v8759 = vadd.f32 %v8719, %v8758
        %v8760 = vpop.f32.mrf.mxu0
        %v8761 = vpop.f32.mrf.mxu0
        %v8762 = vpop.f32.mrf.mxu0
        %8763 = vdwg.mxu0
        %8764 = vmatprep.subr.bf16.mxu0 0
        %8765 = vmatpush1.bf16.xpose.msra.mxu0 0
        %8766 = vmatprep.subr.bf16.mxu0 0
        %8767 = vmatpush1.bf16.xpose.msra.mxu0 0
        %8768 = vmatprep.subr.bf16.mxu0 0
        %8769 = vmatpush1.bf16.xpose.msra.mxu0 0
        %8770 = vmatprep.subr.bf16.mxu0 0
        %8771 = vmatpush1.bf16.xpose.msra.mxu0 0
        %8772 = vmatprep.subr.bf16.mxu0 0
        %8773 = vmatpush1.bf16.xpose.msra.mxu0 0
        %8774 = vmatprep.subr.bf16.mxu0 0
        %8775 = vmatpush1.bf16.xpose.msra.mxu0 0
        %8776 = vmatprep.subr.bf16.mxu0 0
        %8777 = vmatpush1.bf16.xpose.msra.mxu0 0
        %8778 = vmatprep.subr.bf16.mxu0 %v3611
        %8779 = vmatpush1.bf16.xpose.msra.mxu0 %v3610
        %8780 = vmatprep.subr.bf16.mxu0 0
        %8781 = vmatpush2.bf16.xpose.msra.mxu0 0
        %8782 = vmatprep.subr.bf16.mxu0 0
        %8783 = vmatpush2.bf16.xpose.msra.mxu0 0
        %8784 = vmatprep.subr.bf16.mxu0 0
        %8785 = vmatpush2.bf16.xpose.msra.mxu0 0
        %8786 = vmatprep.subr.bf16.mxu0 0
        %8787 = vmatpush2.bf16.xpose.msra.mxu0 0
        %8788 = vmatprep.subr.bf16.mxu0 0
        %8789 = vmatpush2.bf16.xpose.msra.mxu0 0
        %8790 = vmatprep.subr.bf16.mxu0 0
        %8791 = vmatpush2.bf16.xpose.msra.mxu0 0
        %8792 = vmatprep.subr.bf16.mxu0 0
        %8793 = vmatpush2.bf16.xpose.msra.mxu0 0
        %8794 = vmatprep.subr.bf16.mxu0 0
        %8795 = vmatpush2.bf16.xpose.msra.mxu0 0
        %8796 = vmatprep.mubr.bf16.mxu0 %v1651
        %8797 = vmatmul.mubr.bf16.gmra.mxu0 %v1650
        %v8798 = vpop.f32.mrf.mxu0
        %v8799 = vadd.f32 %v8759, %v8798
        %v8800 = vpop.f32.mrf.mxu0
        %v8801 = vpop.f32.mrf.mxu0
        %v8802 = vpop.f32.mrf.mxu0
        %8803 = vdwg.mxu0
        %8804 = vmatprep.subr.bf16.mxu0 0
        %8805 = vmatpush1.bf16.xpose.msra.mxu0 0
        %8806 = vmatprep.subr.bf16.mxu0 0
        %8807 = vmatpush1.bf16.xpose.msra.mxu0 0
        %8808 = vmatprep.subr.bf16.mxu0 0
        %8809 = vmatpush1.bf16.xpose.msra.mxu0 0
        %8810 = vmatprep.subr.bf16.mxu0 0
        %8811 = vmatpush1.bf16.xpose.msra.mxu0 0
        %8812 = vmatprep.subr.bf16.mxu0 0
        %8813 = vmatpush1.bf16.xpose.msra.mxu0 0
        %8814 = vmatprep.subr.bf16.mxu0 0
        %8815 = vmatpush1.bf16.xpose.msra.mxu0 0
        %8816 = vmatprep.subr.bf16.mxu0 0
        %8817 = vmatpush1.bf16.xpose.msra.mxu0 0
        %8818 = vmatprep.subr.bf16.mxu0 %v3613
        %8819 = vmatpush1.bf16.xpose.msra.mxu0 %v3612
        %8820 = vmatprep.subr.bf16.mxu0 0
        %8821 = vmatpush2.bf16.xpose.msra.mxu0 0
        %8822 = vmatprep.subr.bf16.mxu0 0
        %8823 = vmatpush2.bf16.xpose.msra.mxu0 0
        %8824 = vmatprep.subr.bf16.mxu0 0
        %8825 = vmatpush2.bf16.xpose.msra.mxu0 0
        %8826 = vmatprep.subr.bf16.mxu0 0
        %8827 = vmatpush2.bf16.xpose.msra.mxu0 0
        %8828 = vmatprep.subr.bf16.mxu0 0
        %8829 = vmatpush2.bf16.xpose.msra.mxu0 0
        %8830 = vmatprep.subr.bf16.mxu0 0
        %8831 = vmatpush2.bf16.xpose.msra.mxu0 0
        %8832 = vmatprep.subr.bf16.mxu0 0
        %8833 = vmatpush2.bf16.xpose.msra.mxu0 0
        %8834 = vmatprep.subr.bf16.mxu0 0
        %8835 = vmatpush2.bf16.xpose.msra.mxu0 0
        %8836 = vmatprep.mubr.bf16.mxu0 %v1653
        %8837 = vmatmul.mubr.bf16.gmra.mxu0 %v1652
        %v8838 = vpop.f32.mrf.mxu0
        %v8839 = vadd.f32 %v8799, %v8838
        %v8840 = vpop.f32.mrf.mxu0
        %v8841 = vpop.f32.mrf.mxu0
        %v8842 = vpop.f32.mrf.mxu0
        %8843 = vdwg.mxu0
        %8844 = vmatprep.subr.bf16.mxu0 0
        %8845 = vmatpush1.bf16.xpose.msra.mxu0 0
        %8846 = vmatprep.subr.bf16.mxu0 0
        %8847 = vmatpush1.bf16.xpose.msra.mxu0 0
        %8848 = vmatprep.subr.bf16.mxu0 0
        %8849 = vmatpush1.bf16.xpose.msra.mxu0 0
        %8850 = vmatprep.subr.bf16.mxu0 0
        %8851 = vmatpush1.bf16.xpose.msra.mxu0 0
        %8852 = vmatprep.subr.bf16.mxu0 0
        %8853 = vmatpush1.bf16.xpose.msra.mxu0 0
        %8854 = vmatprep.subr.bf16.mxu0 0
        %8855 = vmatpush1.bf16.xpose.msra.mxu0 0
        %8856 = vmatprep.subr.bf16.mxu0 0
        %8857 = vmatpush1.bf16.xpose.msra.mxu0 0
        %8858 = vmatprep.subr.bf16.mxu0 %v3615
        %8859 = vmatpush1.bf16.xpose.msra.mxu0 %v3614
        %8860 = vmatprep.subr.bf16.mxu0 0
        %8861 = vmatpush2.bf16.xpose.msra.mxu0 0
        %8862 = vmatprep.subr.bf16.mxu0 0
        %8863 = vmatpush2.bf16.xpose.msra.mxu0 0
        %8864 = vmatprep.subr.bf16.mxu0 0
        %8865 = vmatpush2.bf16.xpose.msra.mxu0 0
        %8866 = vmatprep.subr.bf16.mxu0 0
        %8867 = vmatpush2.bf16.xpose.msra.mxu0 0
        %8868 = vmatprep.subr.bf16.mxu0 0
        %8869 = vmatpush2.bf16.xpose.msra.mxu0 0
        %8870 = vmatprep.subr.bf16.mxu0 0
        %8871 = vmatpush2.bf16.xpose.msra.mxu0 0
        %8872 = vmatprep.subr.bf16.mxu0 0
        %8873 = vmatpush2.bf16.xpose.msra.mxu0 0
        %8874 = vmatprep.subr.bf16.mxu0 0
        %8875 = vmatpush2.bf16.xpose.msra.mxu0 0
        %8876 = vmatprep.mubr.bf16.mxu0 %v1655
        %8877 = vmatmul.mubr.bf16.gmra.mxu0 %v1654
        %v8878 = vpop.f32.mrf.mxu0
        %v8879 = vadd.f32 %v8839, %v8878
        %v8880 = vpop.f32.mrf.mxu0
        %v8881 = vpop.f32.mrf.mxu0
        %v8882 = vpop.f32.mrf.mxu0
        %8883 = vdwg.mxu0
        %8884 = vmatprep.subr.bf16.mxu0 0
        %8885 = vmatpush1.bf16.xpose.msra.mxu0 0
        %8886 = vmatprep.subr.bf16.mxu0 0
        %8887 = vmatpush1.bf16.xpose.msra.mxu0 0
        %8888 = vmatprep.subr.bf16.mxu0 0
        %8889 = vmatpush1.bf16.xpose.msra.mxu0 0
        %8890 = vmatprep.subr.bf16.mxu0 0
        %8891 = vmatpush1.bf16.xpose.msra.mxu0 0
        %8892 = vmatprep.subr.bf16.mxu0 0
        %8893 = vmatpush1.bf16.xpose.msra.mxu0 0
        %8894 = vmatprep.subr.bf16.mxu0 0
        %8895 = vmatpush1.bf16.xpose.msra.mxu0 0
        %8896 = vmatprep.subr.bf16.mxu0 0
        %8897 = vmatpush1.bf16.xpose.msra.mxu0 0
        %8898 = vmatprep.subr.bf16.mxu0 %v3617
        %8899 = vmatpush1.bf16.xpose.msra.mxu0 %v3616
        %8900 = vmatprep.subr.bf16.mxu0 0
        %8901 = vmatpush2.bf16.xpose.msra.mxu0 0
        %8902 = vmatprep.subr.bf16.mxu0 0
        %8903 = vmatpush2.bf16.xpose.msra.mxu0 0
        %8904 = vmatprep.subr.bf16.mxu0 0
        %8905 = vmatpush2.bf16.xpose.msra.mxu0 0
        %8906 = vmatprep.subr.bf16.mxu0 0
        %8907 = vmatpush2.bf16.xpose.msra.mxu0 0
        %8908 = vmatprep.subr.bf16.mxu0 0
        %8909 = vmatpush2.bf16.xpose.msra.mxu0 0
        %8910 = vmatprep.subr.bf16.mxu0 0
        %8911 = vmatpush2.bf16.xpose.msra.mxu0 0
        %8912 = vmatprep.subr.bf16.mxu0 0
        %8913 = vmatpush2.bf16.xpose.msra.mxu0 0
        %8914 = vmatprep.subr.bf16.mxu0 0
        %8915 = vmatpush2.bf16.xpose.msra.mxu0 0
        %8916 = vmatprep.mubr.bf16.mxu0 %v1657
        %8917 = vmatmul.mubr.bf16.gmra.mxu0 %v1656
        %v8918 = vpop.f32.mrf.mxu0
        %v8919 = vadd.f32 %v8879, %v8918
        %v8920 = vpop.f32.mrf.mxu0
        %v8921 = vpop.f32.mrf.mxu0
        %v8922 = vpop.f32.mrf.mxu0
        %8923 = vdwg.mxu0
        %8924 = vmatprep.subr.bf16.mxu0 0
        %8925 = vmatpush1.bf16.xpose.msra.mxu0 0
        %8926 = vmatprep.subr.bf16.mxu0 0
        %8927 = vmatpush1.bf16.xpose.msra.mxu0 0
        %8928 = vmatprep.subr.bf16.mxu0 0
        %8929 = vmatpush1.bf16.xpose.msra.mxu0 0
        %8930 = vmatprep.subr.bf16.mxu0 0
        %8931 = vmatpush1.bf16.xpose.msra.mxu0 0
        %8932 = vmatprep.subr.bf16.mxu0 0
        %8933 = vmatpush1.bf16.xpose.msra.mxu0 0
        %8934 = vmatprep.subr.bf16.mxu0 0
        %8935 = vmatpush1.bf16.xpose.msra.mxu0 0
        %8936 = vmatprep.subr.bf16.mxu0 0
        %8937 = vmatpush1.bf16.xpose.msra.mxu0 0
        %8938 = vmatprep.subr.bf16.mxu0 %v3619
        %8939 = vmatpush1.bf16.xpose.msra.mxu0 %v3618
        %8940 = vmatprep.subr.bf16.mxu0 0
        %8941 = vmatpush2.bf16.xpose.msra.mxu0 0
        %8942 = vmatprep.subr.bf16.mxu0 0
        %8943 = vmatpush2.bf16.xpose.msra.mxu0 0
        %8944 = vmatprep.subr.bf16.mxu0 0
        %8945 = vmatpush2.bf16.xpose.msra.mxu0 0
        %8946 = vmatprep.subr.bf16.mxu0 0
        %8947 = vmatpush2.bf16.xpose.msra.mxu0 0
        %8948 = vmatprep.subr.bf16.mxu0 0
        %8949 = vmatpush2.bf16.xpose.msra.mxu0 0
        %8950 = vmatprep.subr.bf16.mxu0 0
        %8951 = vmatpush2.bf16.xpose.msra.mxu0 0
        %8952 = vmatprep.subr.bf16.mxu0 0
        %8953 = vmatpush2.bf16.xpose.msra.mxu0 0
        %8954 = vmatprep.subr.bf16.mxu0 0
        %8955 = vmatpush2.bf16.xpose.msra.mxu0 0
        %8956 = vmatprep.mubr.bf16.mxu0 %v1659
        %8957 = vmatmul.mubr.bf16.gmra.mxu0 %v1658
        %v8958 = vpop.f32.mrf.mxu0
        %v8959 = vadd.f32 %v8919, %v8958
        %v8960 = vpop.f32.mrf.mxu0
        %v8961 = vpop.f32.mrf.mxu0
        %v8962 = vpop.f32.mrf.mxu0
        %8963 = vdwg.mxu0
        %8964 = vmatprep.subr.bf16.mxu0 0
        %8965 = vmatpush1.bf16.xpose.msra.mxu0 0
        %8966 = vmatprep.subr.bf16.mxu0 0
        %8967 = vmatpush1.bf16.xpose.msra.mxu0 0
        %8968 = vmatprep.subr.bf16.mxu0 0
        %8969 = vmatpush1.bf16.xpose.msra.mxu0 0
        %8970 = vmatprep.subr.bf16.mxu0 0
        %8971 = vmatpush1.bf16.xpose.msra.mxu0 0
        %8972 = vmatprep.subr.bf16.mxu0 0
        %8973 = vmatpush1.bf16.xpose.msra.mxu0 0
        %8974 = vmatprep.subr.bf16.mxu0 0
        %8975 = vmatpush1.bf16.xpose.msra.mxu0 0
        %8976 = vmatprep.subr.bf16.mxu0 0
        %8977 = vmatpush1.bf16.xpose.msra.mxu0 0
        %8978 = vmatprep.subr.bf16.mxu0 %v3621
        %8979 = vmatpush1.bf16.xpose.msra.mxu0 %v3620
        %8980 = vmatprep.subr.bf16.mxu0 0
        %8981 = vmatpush2.bf16.xpose.msra.mxu0 0
        %8982 = vmatprep.subr.bf16.mxu0 0
        %8983 = vmatpush2.bf16.xpose.msra.mxu0 0
        %8984 = vmatprep.subr.bf16.mxu0 0
        %8985 = vmatpush2.bf16.xpose.msra.mxu0 0
        %8986 = vmatprep.subr.bf16.mxu0 0
        %8987 = vmatpush2.bf16.xpose.msra.mxu0 0
        %8988 = vmatprep.subr.bf16.mxu0 0
        %8989 = vmatpush2.bf16.xpose.msra.mxu0 0
        %8990 = vmatprep.subr.bf16.mxu0 0
        %8991 = vmatpush2.bf16.xpose.msra.mxu0 0
        %8992 = vmatprep.subr.bf16.mxu0 0
        %8993 = vmatpush2.bf16.xpose.msra.mxu0 0
        %8994 = vmatprep.subr.bf16.mxu0 0
        %8995 = vmatpush2.bf16.xpose.msra.mxu0 0
        %8996 = vmatprep.mubr.bf16.mxu0 %v1661
        %8997 = vmatmul.mubr.bf16.gmra.mxu0 %v1660
        %v8998 = vpop.f32.mrf.mxu0
        %v8999 = vadd.f32 %v8959, %v8998
        %v9000 = vpop.f32.mrf.mxu0
        %v9001 = vpop.f32.mrf.mxu0
        %v9002 = vpop.f32.mrf.mxu0
        %9003 = vdwg.mxu0
        %9004 = vmatprep.subr.bf16.mxu0 0
        %9005 = vmatpush1.bf16.xpose.msra.mxu0 0
        %9006 = vmatprep.subr.bf16.mxu0 0
        %9007 = vmatpush1.bf16.xpose.msra.mxu0 0
        %9008 = vmatprep.subr.bf16.mxu0 0
        %9009 = vmatpush1.bf16.xpose.msra.mxu0 0
        %9010 = vmatprep.subr.bf16.mxu0 0
        %9011 = vmatpush1.bf16.xpose.msra.mxu0 0
        %9012 = vmatprep.subr.bf16.mxu0 0
        %9013 = vmatpush1.bf16.xpose.msra.mxu0 0
        %9014 = vmatprep.subr.bf16.mxu0 0
        %9015 = vmatpush1.bf16.xpose.msra.mxu0 0
        %9016 = vmatprep.subr.bf16.mxu0 0
        %9017 = vmatpush1.bf16.xpose.msra.mxu0 0
        %9018 = vmatprep.subr.bf16.mxu0 %v3623
        %9019 = vmatpush1.bf16.xpose.msra.mxu0 %v3622
        %9020 = vmatprep.subr.bf16.mxu0 0
        %9021 = vmatpush2.bf16.xpose.msra.mxu0 0
        %9022 = vmatprep.subr.bf16.mxu0 0
        %9023 = vmatpush2.bf16.xpose.msra.mxu0 0
        %9024 = vmatprep.subr.bf16.mxu0 0
        %9025 = vmatpush2.bf16.xpose.msra.mxu0 0
        %9026 = vmatprep.subr.bf16.mxu0 0
        %9027 = vmatpush2.bf16.xpose.msra.mxu0 0
        %9028 = vmatprep.subr.bf16.mxu0 0
        %9029 = vmatpush2.bf16.xpose.msra.mxu0 0
        %9030 = vmatprep.subr.bf16.mxu0 0
        %9031 = vmatpush2.bf16.xpose.msra.mxu0 0
        %9032 = vmatprep.subr.bf16.mxu0 0
        %9033 = vmatpush2.bf16.xpose.msra.mxu0 0
        %9034 = vmatprep.subr.bf16.mxu0 0
        %9035 = vmatpush2.bf16.xpose.msra.mxu0 0
        %9036 = vmatprep.mubr.bf16.mxu0 %v1663
        %9037 = vmatmul.mubr.bf16.gmra.mxu0 %v1662
        %v9038 = vpop.f32.mrf.mxu0
        %v9039 = vadd.f32 %v8999, %v9038
        %v9040 = vpop.f32.mrf.mxu0
        %v9041 = vpop.f32.mrf.mxu0
        %v9042 = vpop.f32.mrf.mxu0
        %9043 = vdwg.mxu0
        %9044 = vmatprep.subr.bf16.mxu0 0
        %9045 = vmatpush1.bf16.xpose.msra.mxu0 0
        %9046 = vmatprep.subr.bf16.mxu0 0
        %9047 = vmatpush1.bf16.xpose.msra.mxu0 0
        %9048 = vmatprep.subr.bf16.mxu0 0
        %9049 = vmatpush1.bf16.xpose.msra.mxu0 0
        %9050 = vmatprep.subr.bf16.mxu0 0
        %9051 = vmatpush1.bf16.xpose.msra.mxu0 0
        %9052 = vmatprep.subr.bf16.mxu0 0
        %9053 = vmatpush1.bf16.xpose.msra.mxu0 0
        %9054 = vmatprep.subr.bf16.mxu0 0
        %9055 = vmatpush1.bf16.xpose.msra.mxu0 0
        %9056 = vmatprep.subr.bf16.mxu0 0
        %9057 = vmatpush1.bf16.xpose.msra.mxu0 0
        %9058 = vmatprep.subr.bf16.mxu0 %v3625
        %9059 = vmatpush1.bf16.xpose.msra.mxu0 %v3624
        %9060 = vmatprep.subr.bf16.mxu0 0
        %9061 = vmatpush2.bf16.xpose.msra.mxu0 0
        %9062 = vmatprep.subr.bf16.mxu0 0
        %9063 = vmatpush2.bf16.xpose.msra.mxu0 0
        %9064 = vmatprep.subr.bf16.mxu0 0
        %9065 = vmatpush2.bf16.xpose.msra.mxu0 0
        %9066 = vmatprep.subr.bf16.mxu0 0
        %9067 = vmatpush2.bf16.xpose.msra.mxu0 0
        %9068 = vmatprep.subr.bf16.mxu0 0
        %9069 = vmatpush2.bf16.xpose.msra.mxu0 0
        %9070 = vmatprep.subr.bf16.mxu0 0
        %9071 = vmatpush2.bf16.xpose.msra.mxu0 0
        %9072 = vmatprep.subr.bf16.mxu0 0
        %9073 = vmatpush2.bf16.xpose.msra.mxu0 0
        %9074 = vmatprep.subr.bf16.mxu0 0
        %9075 = vmatpush2.bf16.xpose.msra.mxu0 0
        %9076 = vmatprep.mubr.bf16.mxu0 %v1665
        %9077 = vmatmul.mubr.bf16.gmra.mxu0 %v1664
        %v9078 = vpop.f32.mrf.mxu0
        %v9079 = vadd.f32 %v9039, %v9078
        %v9080 = vpop.f32.mrf.mxu0
        %v9081 = vpop.f32.mrf.mxu0
        %v9082 = vpop.f32.mrf.mxu0
        %9083 = vdwg.mxu0
        %9084 = vmatprep.subr.bf16.mxu0 0
        %9085 = vmatpush1.bf16.xpose.msra.mxu0 0
        %9086 = vmatprep.subr.bf16.mxu0 0
        %9087 = vmatpush1.bf16.xpose.msra.mxu0 0
        %9088 = vmatprep.subr.bf16.mxu0 0
        %9089 = vmatpush1.bf16.xpose.msra.mxu0 0
        %9090 = vmatprep.subr.bf16.mxu0 0
        %9091 = vmatpush1.bf16.xpose.msra.mxu0 0
        %9092 = vmatprep.subr.bf16.mxu0 0
        %9093 = vmatpush1.bf16.xpose.msra.mxu0 0
        %9094 = vmatprep.subr.bf16.mxu0 0
        %9095 = vmatpush1.bf16.xpose.msra.mxu0 0
        %9096 = vmatprep.subr.bf16.mxu0 0
        %9097 = vmatpush1.bf16.xpose.msra.mxu0 0
        %9098 = vmatprep.subr.bf16.mxu0 %v3627
        %9099 = vmatpush1.bf16.xpose.msra.mxu0 %v3626
        %9100 = vmatprep.subr.bf16.mxu0 0
        %9101 = vmatpush2.bf16.xpose.msra.mxu0 0
        %9102 = vmatprep.subr.bf16.mxu0 0
        %9103 = vmatpush2.bf16.xpose.msra.mxu0 0
        %9104 = vmatprep.subr.bf16.mxu0 0
        %9105 = vmatpush2.bf16.xpose.msra.mxu0 0
        %9106 = vmatprep.subr.bf16.mxu0 0
        %9107 = vmatpush2.bf16.xpose.msra.mxu0 0
        %9108 = vmatprep.subr.bf16.mxu0 0
        %9109 = vmatpush2.bf16.xpose.msra.mxu0 0
        %9110 = vmatprep.subr.bf16.mxu0 0
        %9111 = vmatpush2.bf16.xpose.msra.mxu0 0
        %9112 = vmatprep.subr.bf16.mxu0 0
        %9113 = vmatpush2.bf16.xpose.msra.mxu0 0
        %9114 = vmatprep.subr.bf16.mxu0 0
        %9115 = vmatpush2.bf16.xpose.msra.mxu0 0
        %9116 = vmatprep.mubr.bf16.mxu0 %v1667
        %9117 = vmatmul.mubr.bf16.gmra.mxu0 %v1666
        %v9118 = vpop.f32.mrf.mxu0
        %v9119 = vadd.f32 %v9079, %v9118
        %v9120 = vpop.f32.mrf.mxu0
        %v9121 = vpop.f32.mrf.mxu0
        %v9122 = vpop.f32.mrf.mxu0
        %9123 = vdwg.mxu0
        %9124 = vmatprep.subr.bf16.mxu0 0
        %9125 = vmatpush1.bf16.xpose.msra.mxu0 0
        %9126 = vmatprep.subr.bf16.mxu0 0
        %9127 = vmatpush1.bf16.xpose.msra.mxu0 0
        %9128 = vmatprep.subr.bf16.mxu0 0
        %9129 = vmatpush1.bf16.xpose.msra.mxu0 0
        %9130 = vmatprep.subr.bf16.mxu0 0
        %9131 = vmatpush1.bf16.xpose.msra.mxu0 0
        %9132 = vmatprep.subr.bf16.mxu0 0
        %9133 = vmatpush1.bf16.xpose.msra.mxu0 0
        %9134 = vmatprep.subr.bf16.mxu0 0
        %9135 = vmatpush1.bf16.xpose.msra.mxu0 0
        %9136 = vmatprep.subr.bf16.mxu0 0
        %9137 = vmatpush1.bf16.xpose.msra.mxu0 0
        %9138 = vmatprep.subr.bf16.mxu0 %v3629
        %9139 = vmatpush1.bf16.xpose.msra.mxu0 %v3628
        %9140 = vmatprep.subr.bf16.mxu0 0
        %9141 = vmatpush2.bf16.xpose.msra.mxu0 0
        %9142 = vmatprep.subr.bf16.mxu0 0
        %9143 = vmatpush2.bf16.xpose.msra.mxu0 0
        %9144 = vmatprep.subr.bf16.mxu0 0
        %9145 = vmatpush2.bf16.xpose.msra.mxu0 0
        %9146 = vmatprep.subr.bf16.mxu0 0
        %9147 = vmatpush2.bf16.xpose.msra.mxu0 0
        %9148 = vmatprep.subr.bf16.mxu0 0
        %9149 = vmatpush2.bf16.xpose.msra.mxu0 0
        %9150 = vmatprep.subr.bf16.mxu0 0
        %9151 = vmatpush2.bf16.xpose.msra.mxu0 0
        %9152 = vmatprep.subr.bf16.mxu0 0
        %9153 = vmatpush2.bf16.xpose.msra.mxu0 0
        %9154 = vmatprep.subr.bf16.mxu0 0
        %9155 = vmatpush2.bf16.xpose.msra.mxu0 0
        %9156 = vmatprep.mubr.bf16.mxu0 %v1669
        %9157 = vmatmul.mubr.bf16.gmra.mxu0 %v1668
        %v9158 = vpop.f32.mrf.mxu0
        %v9159 = vadd.f32 %v9119, %v9158
        %v9160 = vpop.f32.mrf.mxu0
        %v9161 = vpop.f32.mrf.mxu0
        %v9162 = vpop.f32.mrf.mxu0
        %9163 = vdwg.mxu0
        %9164 = vmatprep.subr.bf16.mxu0 0
        %9165 = vmatpush1.bf16.xpose.msra.mxu0 0
        %9166 = vmatprep.subr.bf16.mxu0 0
        %9167 = vmatpush1.bf16.xpose.msra.mxu0 0
        %9168 = vmatprep.subr.bf16.mxu0 0
        %9169 = vmatpush1.bf16.xpose.msra.mxu0 0
        %9170 = vmatprep.subr.bf16.mxu0 0
        %9171 = vmatpush1.bf16.xpose.msra.mxu0 0
        %9172 = vmatprep.subr.bf16.mxu0 0
        %9173 = vmatpush1.bf16.xpose.msra.mxu0 0
        %9174 = vmatprep.subr.bf16.mxu0 0
        %9175 = vmatpush1.bf16.xpose.msra.mxu0 0
        %9176 = vmatprep.subr.bf16.mxu0 0
        %9177 = vmatpush1.bf16.xpose.msra.mxu0 0
        %9178 = vmatprep.subr.bf16.mxu0 %v3631
        %9179 = vmatpush1.bf16.xpose.msra.mxu0 %v3630
        %9180 = vmatprep.subr.bf16.mxu0 0
        %9181 = vmatpush2.bf16.xpose.msra.mxu0 0
        %9182 = vmatprep.subr.bf16.mxu0 0
        %9183 = vmatpush2.bf16.xpose.msra.mxu0 0
        %9184 = vmatprep.subr.bf16.mxu0 0
        %9185 = vmatpush2.bf16.xpose.msra.mxu0 0
        %9186 = vmatprep.subr.bf16.mxu0 0
        %9187 = vmatpush2.bf16.xpose.msra.mxu0 0
        %9188 = vmatprep.subr.bf16.mxu0 0
        %9189 = vmatpush2.bf16.xpose.msra.mxu0 0
        %9190 = vmatprep.subr.bf16.mxu0 0
        %9191 = vmatpush2.bf16.xpose.msra.mxu0 0
        %9192 = vmatprep.subr.bf16.mxu0 0
        %9193 = vmatpush2.bf16.xpose.msra.mxu0 0
        %9194 = vmatprep.subr.bf16.mxu0 0
        %9195 = vmatpush2.bf16.xpose.msra.mxu0 0
        %9196 = vmatprep.mubr.bf16.mxu0 %v1671
        %9197 = vmatmul.mubr.bf16.gmra.mxu0 %v1670
        %v9198 = vpop.f32.mrf.mxu0
        %v9199 = vadd.f32 %v9159, %v9198
        %v9200 = vpop.f32.mrf.mxu0
        %v9201 = vpop.f32.mrf.mxu0
        %v9202 = vpop.f32.mrf.mxu0
        %9203 = vdwg.mxu0
        %9204 = vmatprep.subr.bf16.mxu0 0
        %9205 = vmatpush1.bf16.xpose.msra.mxu0 0
        %9206 = vmatprep.subr.bf16.mxu0 0
        %9207 = vmatpush1.bf16.xpose.msra.mxu0 0
        %9208 = vmatprep.subr.bf16.mxu0 0
        %9209 = vmatpush1.bf16.xpose.msra.mxu0 0
        %9210 = vmatprep.subr.bf16.mxu0 0
        %9211 = vmatpush1.bf16.xpose.msra.mxu0 0
        %9212 = vmatprep.subr.bf16.mxu0 0
        %9213 = vmatpush1.bf16.xpose.msra.mxu0 0
        %9214 = vmatprep.subr.bf16.mxu0 0
        %9215 = vmatpush1.bf16.xpose.msra.mxu0 0
        %9216 = vmatprep.subr.bf16.mxu0 0
        %9217 = vmatpush1.bf16.xpose.msra.mxu0 0
        %9218 = vmatprep.subr.bf16.mxu0 %v3633
        %9219 = vmatpush1.bf16.xpose.msra.mxu0 %v3632
        %9220 = vmatprep.subr.bf16.mxu0 0
        %9221 = vmatpush2.bf16.xpose.msra.mxu0 0
        %9222 = vmatprep.subr.bf16.mxu0 0
        %9223 = vmatpush2.bf16.xpose.msra.mxu0 0
        %9224 = vmatprep.subr.bf16.mxu0 0
        %9225 = vmatpush2.bf16.xpose.msra.mxu0 0
        %9226 = vmatprep.subr.bf16.mxu0 0
        %9227 = vmatpush2.bf16.xpose.msra.mxu0 0
        %9228 = vmatprep.subr.bf16.mxu0 0
        %9229 = vmatpush2.bf16.xpose.msra.mxu0 0
        %9230 = vmatprep.subr.bf16.mxu0 0
        %9231 = vmatpush2.bf16.xpose.msra.mxu0 0
        %9232 = vmatprep.subr.bf16.mxu0 0
        %9233 = vmatpush2.bf16.xpose.msra.mxu0 0
        %9234 = vmatprep.subr.bf16.mxu0 0
        %9235 = vmatpush2.bf16.xpose.msra.mxu0 0
        %9236 = vmatprep.mubr.bf16.mxu0 %v1673
        %9237 = vmatmul.mubr.bf16.gmra.mxu0 %v1672
        %v9238 = vpop.f32.mrf.mxu0
        %v9239 = vadd.f32 %v9199, %v9238
        %v9240 = vpop.f32.mrf.mxu0
        %v9241 = vpop.f32.mrf.mxu0
        %v9242 = vpop.f32.mrf.mxu0
        %9243 = vdwg.mxu0
        %9244 = vmatprep.subr.bf16.mxu0 0
        %9245 = vmatpush1.bf16.xpose.msra.mxu0 0
        %9246 = vmatprep.subr.bf16.mxu0 0
        %9247 = vmatpush1.bf16.xpose.msra.mxu0 0
        %9248 = vmatprep.subr.bf16.mxu0 0
        %9249 = vmatpush1.bf16.xpose.msra.mxu0 0
        %9250 = vmatprep.subr.bf16.mxu0 0
        %9251 = vmatpush1.bf16.xpose.msra.mxu0 0
        %9252 = vmatprep.subr.bf16.mxu0 0
        %9253 = vmatpush1.bf16.xpose.msra.mxu0 0
        %9254 = vmatprep.subr.bf16.mxu0 0
        %9255 = vmatpush1.bf16.xpose.msra.mxu0 0
        %9256 = vmatprep.subr.bf16.mxu0 0
        %9257 = vmatpush1.bf16.xpose.msra.mxu0 0
        %9258 = vmatprep.subr.bf16.mxu0 %v3635
        %9259 = vmatpush1.bf16.xpose.msra.mxu0 %v3634
        %9260 = vmatprep.subr.bf16.mxu0 0
        %9261 = vmatpush2.bf16.xpose.msra.mxu0 0
        %9262 = vmatprep.subr.bf16.mxu0 0
        %9263 = vmatpush2.bf16.xpose.msra.mxu0 0
        %9264 = vmatprep.subr.bf16.mxu0 0
        %9265 = vmatpush2.bf16.xpose.msra.mxu0 0
        %9266 = vmatprep.subr.bf16.mxu0 0
        %9267 = vmatpush2.bf16.xpose.msra.mxu0 0
        %9268 = vmatprep.subr.bf16.mxu0 0
        %9269 = vmatpush2.bf16.xpose.msra.mxu0 0
        %9270 = vmatprep.subr.bf16.mxu0 0
        %9271 = vmatpush2.bf16.xpose.msra.mxu0 0
        %9272 = vmatprep.subr.bf16.mxu0 0
        %9273 = vmatpush2.bf16.xpose.msra.mxu0 0
        %9274 = vmatprep.subr.bf16.mxu0 0
        %9275 = vmatpush2.bf16.xpose.msra.mxu0 0
        %9276 = vmatprep.mubr.bf16.mxu0 %v1675
        %9277 = vmatmul.mubr.bf16.gmra.mxu0 %v1674
        %v9278 = vpop.f32.mrf.mxu0
        %v9279 = vadd.f32 %v9239, %v9278
        %v9280 = vpop.f32.mrf.mxu0
        %v9281 = vpop.f32.mrf.mxu0
        %v9282 = vpop.f32.mrf.mxu0
        %9283 = vdwg.mxu0
        %9284 = vmatprep.subr.bf16.mxu0 0
        %9285 = vmatpush1.bf16.xpose.msra.mxu0 0
        %9286 = vmatprep.subr.bf16.mxu0 0
        %9287 = vmatpush1.bf16.xpose.msra.mxu0 0
        %9288 = vmatprep.subr.bf16.mxu0 0
        %9289 = vmatpush1.bf16.xpose.msra.mxu0 0
        %9290 = vmatprep.subr.bf16.mxu0 0
        %9291 = vmatpush1.bf16.xpose.msra.mxu0 0
        %9292 = vmatprep.subr.bf16.mxu0 0
        %9293 = vmatpush1.bf16.xpose.msra.mxu0 0
        %9294 = vmatprep.subr.bf16.mxu0 0
        %9295 = vmatpush1.bf16.xpose.msra.mxu0 0
        %9296 = vmatprep.subr.bf16.mxu0 0
        %9297 = vmatpush1.bf16.xpose.msra.mxu0 0
        %9298 = vmatprep.subr.bf16.mxu0 %v3637
        %9299 = vmatpush1.bf16.xpose.msra.mxu0 %v3636
        %9300 = vmatprep.subr.bf16.mxu0 0
        %9301 = vmatpush2.bf16.xpose.msra.mxu0 0
        %9302 = vmatprep.subr.bf16.mxu0 0
        %9303 = vmatpush2.bf16.xpose.msra.mxu0 0
        %9304 = vmatprep.subr.bf16.mxu0 0
        %9305 = vmatpush2.bf16.xpose.msra.mxu0 0
        %9306 = vmatprep.subr.bf16.mxu0 0
        %9307 = vmatpush2.bf16.xpose.msra.mxu0 0
        %9308 = vmatprep.subr.bf16.mxu0 0
        %9309 = vmatpush2.bf16.xpose.msra.mxu0 0
        %9310 = vmatprep.subr.bf16.mxu0 0
        %9311 = vmatpush2.bf16.xpose.msra.mxu0 0
        %9312 = vmatprep.subr.bf16.mxu0 0
        %9313 = vmatpush2.bf16.xpose.msra.mxu0 0
        %9314 = vmatprep.subr.bf16.mxu0 0
        %9315 = vmatpush2.bf16.xpose.msra.mxu0 0
        %9316 = vmatprep.mubr.bf16.mxu0 %v1677
        %9317 = vmatmul.mubr.bf16.gmra.mxu0 %v1676
        %v9318 = vpop.f32.mrf.mxu0
        %v9319 = vadd.f32 %v9279, %v9318
        %v9320 = vpop.f32.mrf.mxu0
        %v9321 = vpop.f32.mrf.mxu0
        %v9322 = vpop.f32.mrf.mxu0
        %9323 = vdwg.mxu0
        %9324 = vmatprep.subr.bf16.mxu0 0
        %9325 = vmatpush1.bf16.xpose.msra.mxu0 0
        %9326 = vmatprep.subr.bf16.mxu0 0
        %9327 = vmatpush1.bf16.xpose.msra.mxu0 0
        %9328 = vmatprep.subr.bf16.mxu0 0
        %9329 = vmatpush1.bf16.xpose.msra.mxu0 0
        %9330 = vmatprep.subr.bf16.mxu0 0
        %9331 = vmatpush1.bf16.xpose.msra.mxu0 0
        %9332 = vmatprep.subr.bf16.mxu0 0
        %9333 = vmatpush1.bf16.xpose.msra.mxu0 0
        %9334 = vmatprep.subr.bf16.mxu0 0
        %9335 = vmatpush1.bf16.xpose.msra.mxu0 0
        %9336 = vmatprep.subr.bf16.mxu0 0
        %9337 = vmatpush1.bf16.xpose.msra.mxu0 0
        %9338 = vmatprep.subr.bf16.mxu0 %v3639
        %9339 = vmatpush1.bf16.xpose.msra.mxu0 %v3638
        %9340 = vmatprep.subr.bf16.mxu0 0
        %9341 = vmatpush2.bf16.xpose.msra.mxu0 0
        %9342 = vmatprep.subr.bf16.mxu0 0
        %9343 = vmatpush2.bf16.xpose.msra.mxu0 0
        %9344 = vmatprep.subr.bf16.mxu0 0
        %9345 = vmatpush2.bf16.xpose.msra.mxu0 0
        %9346 = vmatprep.subr.bf16.mxu0 0
        %9347 = vmatpush2.bf16.xpose.msra.mxu0 0
        %9348 = vmatprep.subr.bf16.mxu0 0
        %9349 = vmatpush2.bf16.xpose.msra.mxu0 0
        %9350 = vmatprep.subr.bf16.mxu0 0
        %9351 = vmatpush2.bf16.xpose.msra.mxu0 0
        %9352 = vmatprep.subr.bf16.mxu0 0
        %9353 = vmatpush2.bf16.xpose.msra.mxu0 0
        %9354 = vmatprep.subr.bf16.mxu0 0
        %9355 = vmatpush2.bf16.xpose.msra.mxu0 0
        %9356 = vmatprep.mubr.bf16.mxu0 %v1679
        %9357 = vmatmul.mubr.bf16.gmra.mxu0 %v1678
        %v9358 = vpop.f32.mrf.mxu0
        %v9359 = vadd.f32 %v9319, %v9358
        %v9360 = vpop.f32.mrf.mxu0
        %v9361 = vpop.f32.mrf.mxu0
        %v9362 = vpop.f32.mrf.mxu0
        %9363 = vdwg.mxu0
        %9364 = vmatprep.subr.bf16.mxu0 0
        %9365 = vmatpush1.bf16.xpose.msra.mxu0 0
        %9366 = vmatprep.subr.bf16.mxu0 0
        %9367 = vmatpush1.bf16.xpose.msra.mxu0 0
        %9368 = vmatprep.subr.bf16.mxu0 0
        %9369 = vmatpush1.bf16.xpose.msra.mxu0 0
        %9370 = vmatprep.subr.bf16.mxu0 0
        %9371 = vmatpush1.bf16.xpose.msra.mxu0 0
        %9372 = vmatprep.subr.bf16.mxu0 0
        %9373 = vmatpush1.bf16.xpose.msra.mxu0 0
        %9374 = vmatprep.subr.bf16.mxu0 0
        %9375 = vmatpush1.bf16.xpose.msra.mxu0 0
        %9376 = vmatprep.subr.bf16.mxu0 0
        %9377 = vmatpush1.bf16.xpose.msra.mxu0 0
        %9378 = vmatprep.subr.bf16.mxu0 %v3641
        %9379 = vmatpush1.bf16.xpose.msra.mxu0 %v3640
        %9380 = vmatprep.subr.bf16.mxu0 0
        %9381 = vmatpush2.bf16.xpose.msra.mxu0 0
        %9382 = vmatprep.subr.bf16.mxu0 0
        %9383 = vmatpush2.bf16.xpose.msra.mxu0 0
        %9384 = vmatprep.subr.bf16.mxu0 0
        %9385 = vmatpush2.bf16.xpose.msra.mxu0 0
        %9386 = vmatprep.subr.bf16.mxu0 0
        %9387 = vmatpush2.bf16.xpose.msra.mxu0 0
        %9388 = vmatprep.subr.bf16.mxu0 0
        %9389 = vmatpush2.bf16.xpose.msra.mxu0 0
        %9390 = vmatprep.subr.bf16.mxu0 0
        %9391 = vmatpush2.bf16.xpose.msra.mxu0 0
        %9392 = vmatprep.subr.bf16.mxu0 0
        %9393 = vmatpush2.bf16.xpose.msra.mxu0 0
        %9394 = vmatprep.subr.bf16.mxu0 0
        %9395 = vmatpush2.bf16.xpose.msra.mxu0 0
        %9396 = vmatprep.mubr.bf16.mxu0 %v1681
        %9397 = vmatmul.mubr.bf16.gmra.mxu0 %v1680
        %v9398 = vpop.f32.mrf.mxu0
        %v9399 = vadd.f32 %v9359, %v9398
        %v9400 = vpop.f32.mrf.mxu0
        %v9401 = vpop.f32.mrf.mxu0
        %v9402 = vpop.f32.mrf.mxu0
        %9403 = vdwg.mxu0
        %9404 = vmatprep.subr.bf16.mxu0 0
        %9405 = vmatpush1.bf16.xpose.msra.mxu0 0
        %9406 = vmatprep.subr.bf16.mxu0 0
        %9407 = vmatpush1.bf16.xpose.msra.mxu0 0
        %9408 = vmatprep.subr.bf16.mxu0 0
        %9409 = vmatpush1.bf16.xpose.msra.mxu0 0
        %9410 = vmatprep.subr.bf16.mxu0 0
        %9411 = vmatpush1.bf16.xpose.msra.mxu0 0
        %9412 = vmatprep.subr.bf16.mxu0 0
        %9413 = vmatpush1.bf16.xpose.msra.mxu0 0
        %9414 = vmatprep.subr.bf16.mxu0 0
        %9415 = vmatpush1.bf16.xpose.msra.mxu0 0
        %9416 = vmatprep.subr.bf16.mxu0 0
        %9417 = vmatpush1.bf16.xpose.msra.mxu0 0
        %9418 = vmatprep.subr.bf16.mxu0 %v3643
        %9419 = vmatpush1.bf16.xpose.msra.mxu0 %v3642
        %9420 = vmatprep.subr.bf16.mxu0 0
        %9421 = vmatpush2.bf16.xpose.msra.mxu0 0
        %9422 = vmatprep.subr.bf16.mxu0 0
        %9423 = vmatpush2.bf16.xpose.msra.mxu0 0
        %9424 = vmatprep.subr.bf16.mxu0 0
        %9425 = vmatpush2.bf16.xpose.msra.mxu0 0
        %9426 = vmatprep.subr.bf16.mxu0 0
        %9427 = vmatpush2.bf16.xpose.msra.mxu0 0
        %9428 = vmatprep.subr.bf16.mxu0 0
        %9429 = vmatpush2.bf16.xpose.msra.mxu0 0
        %9430 = vmatprep.subr.bf16.mxu0 0
        %9431 = vmatpush2.bf16.xpose.msra.mxu0 0
        %9432 = vmatprep.subr.bf16.mxu0 0
        %9433 = vmatpush2.bf16.xpose.msra.mxu0 0
        %9434 = vmatprep.subr.bf16.mxu0 0
        %9435 = vmatpush2.bf16.xpose.msra.mxu0 0
        %9436 = vmatprep.mubr.bf16.mxu0 %v1683
        %9437 = vmatmul.mubr.bf16.gmra.mxu0 %v1682
        %v9438 = vpop.f32.mrf.mxu0
        %v9439 = vadd.f32 %v9399, %v9438
        %v9440 = vpop.f32.mrf.mxu0
        %v9441 = vpop.f32.mrf.mxu0
        %v9442 = vpop.f32.mrf.mxu0
        %9443 = vdwg.mxu0
        %9444 = vmatprep.subr.bf16.mxu0 0
        %9445 = vmatpush1.bf16.xpose.msra.mxu0 0
        %9446 = vmatprep.subr.bf16.mxu0 0
        %9447 = vmatpush1.bf16.xpose.msra.mxu0 0
        %9448 = vmatprep.subr.bf16.mxu0 0
        %9449 = vmatpush1.bf16.xpose.msra.mxu0 0
        %9450 = vmatprep.subr.bf16.mxu0 0
        %9451 = vmatpush1.bf16.xpose.msra.mxu0 0
        %9452 = vmatprep.subr.bf16.mxu0 0
        %9453 = vmatpush1.bf16.xpose.msra.mxu0 0
        %9454 = vmatprep.subr.bf16.mxu0 0
        %9455 = vmatpush1.bf16.xpose.msra.mxu0 0
        %9456 = vmatprep.subr.bf16.mxu0 0
        %9457 = vmatpush1.bf16.xpose.msra.mxu0 0
        %9458 = vmatprep.subr.bf16.mxu0 %v3645
        %9459 = vmatpush1.bf16.xpose.msra.mxu0 %v3644
        %9460 = vmatprep.subr.bf16.mxu0 0
        %9461 = vmatpush2.bf16.xpose.msra.mxu0 0
        %9462 = vmatprep.subr.bf16.mxu0 0
        %9463 = vmatpush2.bf16.xpose.msra.mxu0 0
        %9464 = vmatprep.subr.bf16.mxu0 0
        %9465 = vmatpush2.bf16.xpose.msra.mxu0 0
        %9466 = vmatprep.subr.bf16.mxu0 0
        %9467 = vmatpush2.bf16.xpose.msra.mxu0 0
        %9468 = vmatprep.subr.bf16.mxu0 0
        %9469 = vmatpush2.bf16.xpose.msra.mxu0 0
        %9470 = vmatprep.subr.bf16.mxu0 0
        %9471 = vmatpush2.bf16.xpose.msra.mxu0 0
        %9472 = vmatprep.subr.bf16.mxu0 0
        %9473 = vmatpush2.bf16.xpose.msra.mxu0 0
        %9474 = vmatprep.subr.bf16.mxu0 0
        %9475 = vmatpush2.bf16.xpose.msra.mxu0 0
        %9476 = vmatprep.mubr.bf16.mxu0 %v1685
        %9477 = vmatmul.mubr.bf16.gmra.mxu0 %v1684
        %v9478 = vpop.f32.mrf.mxu0
        %v9479 = vadd.f32 %v9439, %v9478
        %v9480 = vpop.f32.mrf.mxu0
        %v9481 = vpop.f32.mrf.mxu0
        %v9482 = vpop.f32.mrf.mxu0
        %9483 = vdwg.mxu0
        %9484 = vmatprep.subr.bf16.mxu0 0
        %9485 = vmatpush1.bf16.xpose.msra.mxu0 0
        %9486 = vmatprep.subr.bf16.mxu0 0
        %9487 = vmatpush1.bf16.xpose.msra.mxu0 0
        %9488 = vmatprep.subr.bf16.mxu0 0
        %9489 = vmatpush1.bf16.xpose.msra.mxu0 0
        %9490 = vmatprep.subr.bf16.mxu0 0
        %9491 = vmatpush1.bf16.xpose.msra.mxu0 0
        %9492 = vmatprep.subr.bf16.mxu0 0
        %9493 = vmatpush1.bf16.xpose.msra.mxu0 0
        %9494 = vmatprep.subr.bf16.mxu0 0
        %9495 = vmatpush1.bf16.xpose.msra.mxu0 0
        %9496 = vmatprep.subr.bf16.mxu0 0
        %9497 = vmatpush1.bf16.xpose.msra.mxu0 0
        %9498 = vmatprep.subr.bf16.mxu0 %v3647
        %9499 = vmatpush1.bf16.xpose.msra.mxu0 %v3646
        %9500 = vmatprep.subr.bf16.mxu0 0
        %9501 = vmatpush2.bf16.xpose.msra.mxu0 0
        %9502 = vmatprep.subr.bf16.mxu0 0
        %9503 = vmatpush2.bf16.xpose.msra.mxu0 0
        %9504 = vmatprep.subr.bf16.mxu0 0
        %9505 = vmatpush2.bf16.xpose.msra.mxu0 0
        %9506 = vmatprep.subr.bf16.mxu0 0
        %9507 = vmatpush2.bf16.xpose.msra.mxu0 0
        %9508 = vmatprep.subr.bf16.mxu0 0
        %9509 = vmatpush2.bf16.xpose.msra.mxu0 0
        %9510 = vmatprep.subr.bf16.mxu0 0
        %9511 = vmatpush2.bf16.xpose.msra.mxu0 0
        %9512 = vmatprep.subr.bf16.mxu0 0
        %9513 = vmatpush2.bf16.xpose.msra.mxu0 0
        %9514 = vmatprep.subr.bf16.mxu0 0
        %9515 = vmatpush2.bf16.xpose.msra.mxu0 0
        %9516 = vmatprep.mubr.bf16.mxu0 %v1687
        %9517 = vmatmul.mubr.bf16.gmra.mxu0 %v1686
        %v9518 = vpop.f32.mrf.mxu0
        %v9519 = vadd.f32 %v9479, %v9518
        %v9520 = vpop.f32.mrf.mxu0
        %v9521 = vpop.f32.mrf.mxu0
        %v9522 = vpop.f32.mrf.mxu0
        %9523 = vdwg.mxu0
        %9524 = vmatprep.subr.bf16.mxu0 0
        %9525 = vmatpush1.bf16.xpose.msra.mxu0 0
        %9526 = vmatprep.subr.bf16.mxu0 0
        %9527 = vmatpush1.bf16.xpose.msra.mxu0 0
        %9528 = vmatprep.subr.bf16.mxu0 0
        %9529 = vmatpush1.bf16.xpose.msra.mxu0 0
        %9530 = vmatprep.subr.bf16.mxu0 0
        %9531 = vmatpush1.bf16.xpose.msra.mxu0 0
        %9532 = vmatprep.subr.bf16.mxu0 0
        %9533 = vmatpush1.bf16.xpose.msra.mxu0 0
        %9534 = vmatprep.subr.bf16.mxu0 0
        %9535 = vmatpush1.bf16.xpose.msra.mxu0 0
        %9536 = vmatprep.subr.bf16.mxu0 0
        %9537 = vmatpush1.bf16.xpose.msra.mxu0 0
        %9538 = vmatprep.subr.bf16.mxu0 %v3649
        %9539 = vmatpush1.bf16.xpose.msra.mxu0 %v3648
        %9540 = vmatprep.subr.bf16.mxu0 0
        %9541 = vmatpush2.bf16.xpose.msra.mxu0 0
        %9542 = vmatprep.subr.bf16.mxu0 0
        %9543 = vmatpush2.bf16.xpose.msra.mxu0 0
        %9544 = vmatprep.subr.bf16.mxu0 0
        %9545 = vmatpush2.bf16.xpose.msra.mxu0 0
        %9546 = vmatprep.subr.bf16.mxu0 0
        %9547 = vmatpush2.bf16.xpose.msra.mxu0 0
        %9548 = vmatprep.subr.bf16.mxu0 0
        %9549 = vmatpush2.bf16.xpose.msra.mxu0 0
        %9550 = vmatprep.subr.bf16.mxu0 0
        %9551 = vmatpush2.bf16.xpose.msra.mxu0 0
        %9552 = vmatprep.subr.bf16.mxu0 0
        %9553 = vmatpush2.bf16.xpose.msra.mxu0 0
        %9554 = vmatprep.subr.bf16.mxu0 0
        %9555 = vmatpush2.bf16.xpose.msra.mxu0 0
        %9556 = vmatprep.mubr.bf16.mxu0 %v1689
        %9557 = vmatmul.mubr.bf16.gmra.mxu0 %v1688
        %v9558 = vpop.f32.mrf.mxu0
        %v9559 = vadd.f32 %v9519, %v9558
        %v9560 = vpop.f32.mrf.mxu0
        %v9561 = vpop.f32.mrf.mxu0
        %v9562 = vpop.f32.mrf.mxu0
        %9563 = vdwg.mxu0
        %9564 = vmatprep.subr.bf16.mxu0 0
        %9565 = vmatpush1.bf16.xpose.msra.mxu0 0
        %9566 = vmatprep.subr.bf16.mxu0 0
        %9567 = vmatpush1.bf16.xpose.msra.mxu0 0
        %9568 = vmatprep.subr.bf16.mxu0 0
        %9569 = vmatpush1.bf16.xpose.msra.mxu0 0
        %9570 = vmatprep.subr.bf16.mxu0 0
        %9571 = vmatpush1.bf16.xpose.msra.mxu0 0
        %9572 = vmatprep.subr.bf16.mxu0 0
        %9573 = vmatpush1.bf16.xpose.msra.mxu0 0
        %9574 = vmatprep.subr.bf16.mxu0 0
        %9575 = vmatpush1.bf16.xpose.msra.mxu0 0
        %9576 = vmatprep.subr.bf16.mxu0 0
        %9577 = vmatpush1.bf16.xpose.msra.mxu0 0
        %9578 = vmatprep.subr.bf16.mxu0 %v3651
        %9579 = vmatpush1.bf16.xpose.msra.mxu0 %v3650
        %9580 = vmatprep.subr.bf16.mxu0 0
        %9581 = vmatpush2.bf16.xpose.msra.mxu0 0
        %9582 = vmatprep.subr.bf16.mxu0 0
        %9583 = vmatpush2.bf16.xpose.msra.mxu0 0
        %9584 = vmatprep.subr.bf16.mxu0 0
        %9585 = vmatpush2.bf16.xpose.msra.mxu0 0
        %9586 = vmatprep.subr.bf16.mxu0 0
        %9587 = vmatpush2.bf16.xpose.msra.mxu0 0
        %9588 = vmatprep.subr.bf16.mxu0 0
        %9589 = vmatpush2.bf16.xpose.msra.mxu0 0
        %9590 = vmatprep.subr.bf16.mxu0 0
        %9591 = vmatpush2.bf16.xpose.msra.mxu0 0
        %9592 = vmatprep.subr.bf16.mxu0 0
        %9593 = vmatpush2.bf16.xpose.msra.mxu0 0
        %9594 = vmatprep.subr.bf16.mxu0 0
        %9595 = vmatpush2.bf16.xpose.msra.mxu0 0
        %9596 = vmatprep.mubr.bf16.mxu0 %v1691
        %9597 = vmatmul.mubr.bf16.gmra.mxu0 %v1690
        %v9598 = vpop.f32.mrf.mxu0
        %v9599 = vadd.f32 %v9559, %v9598
        %v9600 = vpop.f32.mrf.mxu0
        %v9601 = vpop.f32.mrf.mxu0
        %v9602 = vpop.f32.mrf.mxu0
        %9603 = vdwg.mxu0
        %9604 = vmatprep.subr.bf16.mxu0 0
        %9605 = vmatpush1.bf16.xpose.msra.mxu0 0
        %9606 = vmatprep.subr.bf16.mxu0 0
        %9607 = vmatpush1.bf16.xpose.msra.mxu0 0
        %9608 = vmatprep.subr.bf16.mxu0 0
        %9609 = vmatpush1.bf16.xpose.msra.mxu0 0
        %9610 = vmatprep.subr.bf16.mxu0 0
        %9611 = vmatpush1.bf16.xpose.msra.mxu0 0
        %9612 = vmatprep.subr.bf16.mxu0 0
        %9613 = vmatpush1.bf16.xpose.msra.mxu0 0
        %9614 = vmatprep.subr.bf16.mxu0 0
        %9615 = vmatpush1.bf16.xpose.msra.mxu0 0
        %9616 = vmatprep.subr.bf16.mxu0 0
        %9617 = vmatpush1.bf16.xpose.msra.mxu0 0
        %9618 = vmatprep.subr.bf16.mxu0 %v3653
        %9619 = vmatpush1.bf16.xpose.msra.mxu0 %v3652
        %9620 = vmatprep.subr.bf16.mxu0 0
        %9621 = vmatpush2.bf16.xpose.msra.mxu0 0
        %9622 = vmatprep.subr.bf16.mxu0 0
        %9623 = vmatpush2.bf16.xpose.msra.mxu0 0
        %9624 = vmatprep.subr.bf16.mxu0 0
        %9625 = vmatpush2.bf16.xpose.msra.mxu0 0
        %9626 = vmatprep.subr.bf16.mxu0 0
        %9627 = vmatpush2.bf16.xpose.msra.mxu0 0
        %9628 = vmatprep.subr.bf16.mxu0 0
        %9629 = vmatpush2.bf16.xpose.msra.mxu0 0
        %9630 = vmatprep.subr.bf16.mxu0 0
        %9631 = vmatpush2.bf16.xpose.msra.mxu0 0
        %9632 = vmatprep.subr.bf16.mxu0 0
        %9633 = vmatpush2.bf16.xpose.msra.mxu0 0
        %9634 = vmatprep.subr.bf16.mxu0 0
        %9635 = vmatpush2.bf16.xpose.msra.mxu0 0
        %9636 = vmatprep.mubr.bf16.mxu0 %v1693
        %9637 = vmatmul.mubr.bf16.gmra.mxu0 %v1692
        %v9638 = vpop.f32.mrf.mxu0
        %v9639 = vadd.f32 %v9599, %v9638
        %v9640 = vpop.f32.mrf.mxu0
        %v9641 = vpop.f32.mrf.mxu0
        %v9642 = vpop.f32.mrf.mxu0
        %9643 = vdwg.mxu0
        %9644 = vmatprep.subr.bf16.mxu0 0
        %9645 = vmatpush1.bf16.xpose.msra.mxu0 0
        %9646 = vmatprep.subr.bf16.mxu0 0
        %9647 = vmatpush1.bf16.xpose.msra.mxu0 0
        %9648 = vmatprep.subr.bf16.mxu0 0
        %9649 = vmatpush1.bf16.xpose.msra.mxu0 0
        %9650 = vmatprep.subr.bf16.mxu0 0
        %9651 = vmatpush1.bf16.xpose.msra.mxu0 0
        %9652 = vmatprep.subr.bf16.mxu0 0
        %9653 = vmatpush1.bf16.xpose.msra.mxu0 0
        %9654 = vmatprep.subr.bf16.mxu0 0
        %9655 = vmatpush1.bf16.xpose.msra.mxu0 0
        %9656 = vmatprep.subr.bf16.mxu0 0
        %9657 = vmatpush1.bf16.xpose.msra.mxu0 0
        %9658 = vmatprep.subr.bf16.mxu0 %v3655
        %9659 = vmatpush1.bf16.xpose.msra.mxu0 %v3654
        %9660 = vmatprep.subr.bf16.mxu0 0
        %9661 = vmatpush2.bf16.xpose.msra.mxu0 0
        %9662 = vmatprep.subr.bf16.mxu0 0
        %9663 = vmatpush2.bf16.xpose.msra.mxu0 0
        %9664 = vmatprep.subr.bf16.mxu0 0
        %9665 = vmatpush2.bf16.xpose.msra.mxu0 0
        %9666 = vmatprep.subr.bf16.mxu0 0
        %9667 = vmatpush2.bf16.xpose.msra.mxu0 0
        %9668 = vmatprep.subr.bf16.mxu0 0
        %9669 = vmatpush2.bf16.xpose.msra.mxu0 0
        %9670 = vmatprep.subr.bf16.mxu0 0
        %9671 = vmatpush2.bf16.xpose.msra.mxu0 0
        %9672 = vmatprep.subr.bf16.mxu0 0
        %9673 = vmatpush2.bf16.xpose.msra.mxu0 0
        %9674 = vmatprep.subr.bf16.mxu0 0
        %9675 = vmatpush2.bf16.xpose.msra.mxu0 0
        %9676 = vmatprep.mubr.bf16.mxu0 %v1695
        %9677 = vmatmul.mubr.bf16.gmra.mxu0 %v1694
        %v9678 = vpop.f32.mrf.mxu0
        %v9679 = vadd.f32 %v9639, %v9678
        %v9680 = vpop.f32.mrf.mxu0
        %v9681 = vpop.f32.mrf.mxu0
        %v9682 = vpop.f32.mrf.mxu0
        %9683 = vdwg.mxu0
        %9684 = vmatprep.subr.bf16.mxu0 0
        %9685 = vmatpush1.bf16.xpose.msra.mxu0 0
        %9686 = vmatprep.subr.bf16.mxu0 0
        %9687 = vmatpush1.bf16.xpose.msra.mxu0 0
        %9688 = vmatprep.subr.bf16.mxu0 0
        %9689 = vmatpush1.bf16.xpose.msra.mxu0 0
        %9690 = vmatprep.subr.bf16.mxu0 0
        %9691 = vmatpush1.bf16.xpose.msra.mxu0 0
        %9692 = vmatprep.subr.bf16.mxu0 0
        %9693 = vmatpush1.bf16.xpose.msra.mxu0 0
        %9694 = vmatprep.subr.bf16.mxu0 0
        %9695 = vmatpush1.bf16.xpose.msra.mxu0 0
        %9696 = vmatprep.subr.bf16.mxu0 0
        %9697 = vmatpush1.bf16.xpose.msra.mxu0 0
        %9698 = vmatprep.subr.bf16.mxu0 %v3657
        %9699 = vmatpush1.bf16.xpose.msra.mxu0 %v3656
        %9700 = vmatprep.subr.bf16.mxu0 0
        %9701 = vmatpush2.bf16.xpose.msra.mxu0 0
        %9702 = vmatprep.subr.bf16.mxu0 0
        %9703 = vmatpush2.bf16.xpose.msra.mxu0 0
        %9704 = vmatprep.subr.bf16.mxu0 0
        %9705 = vmatpush2.bf16.xpose.msra.mxu0 0
        %9706 = vmatprep.subr.bf16.mxu0 0
        %9707 = vmatpush2.bf16.xpose.msra.mxu0 0
        %9708 = vmatprep.subr.bf16.mxu0 0
        %9709 = vmatpush2.bf16.xpose.msra.mxu0 0
        %9710 = vmatprep.subr.bf16.mxu0 0
        %9711 = vmatpush2.bf16.xpose.msra.mxu0 0
        %9712 = vmatprep.subr.bf16.mxu0 0
        %9713 = vmatpush2.bf16.xpose.msra.mxu0 0
        %9714 = vmatprep.subr.bf16.mxu0 0
        %9715 = vmatpush2.bf16.xpose.msra.mxu0 0
        %9716 = vmatprep.mubr.bf16.mxu0 %v1697
        %9717 = vmatmul.mubr.bf16.gmra.mxu0 %v1696
        %v9718 = vpop.f32.mrf.mxu0
        %v9719 = vadd.f32 %v9679, %v9718
        %v9720 = vpop.f32.mrf.mxu0
        %v9721 = vpop.f32.mrf.mxu0
        %v9722 = vpop.f32.mrf.mxu0
        %9723 = vdwg.mxu0
        %9724 = vmatprep.subr.bf16.mxu0 0
        %9725 = vmatpush1.bf16.xpose.msra.mxu0 0
        %9726 = vmatprep.subr.bf16.mxu0 0
        %9727 = vmatpush1.bf16.xpose.msra.mxu0 0
        %9728 = vmatprep.subr.bf16.mxu0 0
        %9729 = vmatpush1.bf16.xpose.msra.mxu0 0
        %9730 = vmatprep.subr.bf16.mxu0 0
        %9731 = vmatpush1.bf16.xpose.msra.mxu0 0
        %9732 = vmatprep.subr.bf16.mxu0 0
        %9733 = vmatpush1.bf16.xpose.msra.mxu0 0
        %9734 = vmatprep.subr.bf16.mxu0 0
        %9735 = vmatpush1.bf16.xpose.msra.mxu0 0
        %9736 = vmatprep.subr.bf16.mxu0 0
        %9737 = vmatpush1.bf16.xpose.msra.mxu0 0
        %9738 = vmatprep.subr.bf16.mxu0 %v3659
        %9739 = vmatpush1.bf16.xpose.msra.mxu0 %v3658
        %9740 = vmatprep.subr.bf16.mxu0 0
        %9741 = vmatpush2.bf16.xpose.msra.mxu0 0
        %9742 = vmatprep.subr.bf16.mxu0 0
        %9743 = vmatpush2.bf16.xpose.msra.mxu0 0
        %9744 = vmatprep.subr.bf16.mxu0 0
        %9745 = vmatpush2.bf16.xpose.msra.mxu0 0
        %9746 = vmatprep.subr.bf16.mxu0 0
        %9747 = vmatpush2.bf16.xpose.msra.mxu0 0
        %9748 = vmatprep.subr.bf16.mxu0 0
        %9749 = vmatpush2.bf16.xpose.msra.mxu0 0
        %9750 = vmatprep.subr.bf16.mxu0 0
        %9751 = vmatpush2.bf16.xpose.msra.mxu0 0
        %9752 = vmatprep.subr.bf16.mxu0 0
        %9753 = vmatpush2.bf16.xpose.msra.mxu0 0
        %9754 = vmatprep.subr.bf16.mxu0 0
        %9755 = vmatpush2.bf16.xpose.msra.mxu0 0
        %9756 = vmatprep.mubr.bf16.mxu0 %v1699
        %9757 = vmatmul.mubr.bf16.gmra.mxu0 %v1698
        %v9758 = vpop.f32.mrf.mxu0
        %v9759 = vadd.f32 %v9719, %v9758
        %v9760 = vpop.f32.mrf.mxu0
        %v9761 = vpop.f32.mrf.mxu0
        %v9762 = vpop.f32.mrf.mxu0
        %9763 = vdwg.mxu0
        %9764 = vmatprep.subr.bf16.mxu0 0
        %9765 = vmatpush1.bf16.xpose.msra.mxu0 0
        %9766 = vmatprep.subr.bf16.mxu0 0
        %9767 = vmatpush1.bf16.xpose.msra.mxu0 0
        %9768 = vmatprep.subr.bf16.mxu0 0
        %9769 = vmatpush1.bf16.xpose.msra.mxu0 0
        %9770 = vmatprep.subr.bf16.mxu0 0
        %9771 = vmatpush1.bf16.xpose.msra.mxu0 0
        %9772 = vmatprep.subr.bf16.mxu0 0
        %9773 = vmatpush1.bf16.xpose.msra.mxu0 0
        %9774 = vmatprep.subr.bf16.mxu0 0
        %9775 = vmatpush1.bf16.xpose.msra.mxu0 0
        %9776 = vmatprep.subr.bf16.mxu0 0
        %9777 = vmatpush1.bf16.xpose.msra.mxu0 0
        %9778 = vmatprep.subr.bf16.mxu0 %v3661
        %9779 = vmatpush1.bf16.xpose.msra.mxu0 %v3660
        %9780 = vmatprep.subr.bf16.mxu0 0
        %9781 = vmatpush2.bf16.xpose.msra.mxu0 0
        %9782 = vmatprep.subr.bf16.mxu0 0
        %9783 = vmatpush2.bf16.xpose.msra.mxu0 0
        %9784 = vmatprep.subr.bf16.mxu0 0
        %9785 = vmatpush2.bf16.xpose.msra.mxu0 0
        %9786 = vmatprep.subr.bf16.mxu0 0
        %9787 = vmatpush2.bf16.xpose.msra.mxu0 0
        %9788 = vmatprep.subr.bf16.mxu0 0
        %9789 = vmatpush2.bf16.xpose.msra.mxu0 0
        %9790 = vmatprep.subr.bf16.mxu0 0
        %9791 = vmatpush2.bf16.xpose.msra.mxu0 0
        %9792 = vmatprep.subr.bf16.mxu0 0
        %9793 = vmatpush2.bf16.xpose.msra.mxu0 0
        %9794 = vmatprep.subr.bf16.mxu0 0
        %9795 = vmatpush2.bf16.xpose.msra.mxu0 0
        %9796 = vmatprep.mubr.bf16.mxu0 %v1701
        %9797 = vmatmul.mubr.bf16.gmra.mxu0 %v1700
        %v9798 = vpop.f32.mrf.mxu0
        %v9799 = vadd.f32 %v9759, %v9798
        %v9800 = vpop.f32.mrf.mxu0
        %v9801 = vpop.f32.mrf.mxu0
        %v9802 = vpop.f32.mrf.mxu0
        %9803 = vdwg.mxu0
        %9804 = vmatprep.subr.bf16.mxu0 0
        %9805 = vmatpush1.bf16.xpose.msra.mxu0 0
        %9806 = vmatprep.subr.bf16.mxu0 0
        %9807 = vmatpush1.bf16.xpose.msra.mxu0 0
        %9808 = vmatprep.subr.bf16.mxu0 0
        %9809 = vmatpush1.bf16.xpose.msra.mxu0 0
        %9810 = vmatprep.subr.bf16.mxu0 0
        %9811 = vmatpush1.bf16.xpose.msra.mxu0 0
        %9812 = vmatprep.subr.bf16.mxu0 0
        %9813 = vmatpush1.bf16.xpose.msra.mxu0 0
        %9814 = vmatprep.subr.bf16.mxu0 0
        %9815 = vmatpush1.bf16.xpose.msra.mxu0 0
        %9816 = vmatprep.subr.bf16.mxu0 0
        %9817 = vmatpush1.bf16.xpose.msra.mxu0 0
        %9818 = vmatprep.subr.bf16.mxu0 %v3663
        %9819 = vmatpush1.bf16.xpose.msra.mxu0 %v3662
        %9820 = vmatprep.subr.bf16.mxu0 0
        %9821 = vmatpush2.bf16.xpose.msra.mxu0 0
        %9822 = vmatprep.subr.bf16.mxu0 0
        %9823 = vmatpush2.bf16.xpose.msra.mxu0 0
        %9824 = vmatprep.subr.bf16.mxu0 0
        %9825 = vmatpush2.bf16.xpose.msra.mxu0 0
        %9826 = vmatprep.subr.bf16.mxu0 0
        %9827 = vmatpush2.bf16.xpose.msra.mxu0 0
        %9828 = vmatprep.subr.bf16.mxu0 0
        %9829 = vmatpush2.bf16.xpose.msra.mxu0 0
        %9830 = vmatprep.subr.bf16.mxu0 0
        %9831 = vmatpush2.bf16.xpose.msra.mxu0 0
        %9832 = vmatprep.subr.bf16.mxu0 0
        %9833 = vmatpush2.bf16.xpose.msra.mxu0 0
        %9834 = vmatprep.subr.bf16.mxu0 0
        %9835 = vmatpush2.bf16.xpose.msra.mxu0 0
        %9836 = vmatprep.mubr.bf16.mxu0 %v1703
        %9837 = vmatmul.mubr.bf16.gmra.mxu0 %v1702
        %v9838 = vpop.f32.mrf.mxu0
        %v9839 = vadd.f32 %v9799, %v9838
        %v9840 = vpop.f32.mrf.mxu0
        %v9841 = vpop.f32.mrf.mxu0
        %v9842 = vpop.f32.mrf.mxu0
        %9843 = vdwg.mxu0
        %9844 = vmatprep.subr.bf16.mxu0 0
        %9845 = vmatpush1.bf16.xpose.msra.mxu0 0
        %9846 = vmatprep.subr.bf16.mxu0 0
        %9847 = vmatpush1.bf16.xpose.msra.mxu0 0
        %9848 = vmatprep.subr.bf16.mxu0 0
        %9849 = vmatpush1.bf16.xpose.msra.mxu0 0
        %9850 = vmatprep.subr.bf16.mxu0 0
        %9851 = vmatpush1.bf16.xpose.msra.mxu0 0
        %9852 = vmatprep.subr.bf16.mxu0 0
        %9853 = vmatpush1.bf16.xpose.msra.mxu0 0
        %9854 = vmatprep.subr.bf16.mxu0 0
        %9855 = vmatpush1.bf16.xpose.msra.mxu0 0
        %9856 = vmatprep.subr.bf16.mxu0 0
        %9857 = vmatpush1.bf16.xpose.msra.mxu0 0
        %9858 = vmatprep.subr.bf16.mxu0 %v3665
        %9859 = vmatpush1.bf16.xpose.msra.mxu0 %v3664
        %9860 = vmatprep.subr.bf16.mxu0 0
        %9861 = vmatpush2.bf16.xpose.msra.mxu0 0
        %9862 = vmatprep.subr.bf16.mxu0 0
        %9863 = vmatpush2.bf16.xpose.msra.mxu0 0
        %9864 = vmatprep.subr.bf16.mxu0 0
        %9865 = vmatpush2.bf16.xpose.msra.mxu0 0
        %9866 = vmatprep.subr.bf16.mxu0 0
        %9867 = vmatpush2.bf16.xpose.msra.mxu0 0
        %9868 = vmatprep.subr.bf16.mxu0 0
        %9869 = vmatpush2.bf16.xpose.msra.mxu0 0
        %9870 = vmatprep.subr.bf16.mxu0 0
        %9871 = vmatpush2.bf16.xpose.msra.mxu0 0
        %9872 = vmatprep.subr.bf16.mxu0 0
        %9873 = vmatpush2.bf16.xpose.msra.mxu0 0
        %9874 = vmatprep.subr.bf16.mxu0 0
        %9875 = vmatpush2.bf16.xpose.msra.mxu0 0
        %9876 = vmatprep.mubr.bf16.mxu0 %v1705
        %9877 = vmatmul.mubr.bf16.gmra.mxu0 %v1704
        %v9878 = vpop.f32.mrf.mxu0
        %v9879 = vadd.f32 %v9839, %v9878
        %v9880 = vpop.f32.mrf.mxu0
        %v9881 = vpop.f32.mrf.mxu0
        %v9882 = vpop.f32.mrf.mxu0
        %9883 = vdwg.mxu0
        %9884 = vmatprep.subr.bf16.mxu0 0
        %9885 = vmatpush1.bf16.xpose.msra.mxu0 0
        %9886 = vmatprep.subr.bf16.mxu0 0
        %9887 = vmatpush1.bf16.xpose.msra.mxu0 0
        %9888 = vmatprep.subr.bf16.mxu0 0
        %9889 = vmatpush1.bf16.xpose.msra.mxu0 0
        %9890 = vmatprep.subr.bf16.mxu0 0
        %9891 = vmatpush1.bf16.xpose.msra.mxu0 0
        %9892 = vmatprep.subr.bf16.mxu0 0
        %9893 = vmatpush1.bf16.xpose.msra.mxu0 0
        %9894 = vmatprep.subr.bf16.mxu0 0
        %9895 = vmatpush1.bf16.xpose.msra.mxu0 0
        %9896 = vmatprep.subr.bf16.mxu0 0
        %9897 = vmatpush1.bf16.xpose.msra.mxu0 0
        %9898 = vmatprep.subr.bf16.mxu0 %v3667
        %9899 = vmatpush1.bf16.xpose.msra.mxu0 %v3666
        %9900 = vmatprep.subr.bf16.mxu0 0
        %9901 = vmatpush2.bf16.xpose.msra.mxu0 0
        %9902 = vmatprep.subr.bf16.mxu0 0
        %9903 = vmatpush2.bf16.xpose.msra.mxu0 0
        %9904 = vmatprep.subr.bf16.mxu0 0
        %9905 = vmatpush2.bf16.xpose.msra.mxu0 0
        %9906 = vmatprep.subr.bf16.mxu0 0
        %9907 = vmatpush2.bf16.xpose.msra.mxu0 0
        %9908 = vmatprep.subr.bf16.mxu0 0
        %9909 = vmatpush2.bf16.xpose.msra.mxu0 0
        %9910 = vmatprep.subr.bf16.mxu0 0
        %9911 = vmatpush2.bf16.xpose.msra.mxu0 0
        %9912 = vmatprep.subr.bf16.mxu0 0
        %9913 = vmatpush2.bf16.xpose.msra.mxu0 0
        %9914 = vmatprep.subr.bf16.mxu0 0
        %9915 = vmatpush2.bf16.xpose.msra.mxu0 0
        %9916 = vmatprep.mubr.bf16.mxu0 %v1707
        %9917 = vmatmul.mubr.bf16.gmra.mxu0 %v1706
        %v9918 = vpop.f32.mrf.mxu0
        %v9919 = vadd.f32 %v9879, %v9918
        %v9920 = vpop.f32.mrf.mxu0
        %v9921 = vpop.f32.mrf.mxu0
        %v9922 = vpop.f32.mrf.mxu0
        %9923 = vdwg.mxu0
        %9924 = vmatprep.subr.bf16.mxu0 0
        %9925 = vmatpush1.bf16.xpose.msra.mxu0 0
        %9926 = vmatprep.subr.bf16.mxu0 0
        %9927 = vmatpush1.bf16.xpose.msra.mxu0 0
        %9928 = vmatprep.subr.bf16.mxu0 0
        %9929 = vmatpush1.bf16.xpose.msra.mxu0 0
        %9930 = vmatprep.subr.bf16.mxu0 0
        %9931 = vmatpush1.bf16.xpose.msra.mxu0 0
        %9932 = vmatprep.subr.bf16.mxu0 0
        %9933 = vmatpush1.bf16.xpose.msra.mxu0 0
        %9934 = vmatprep.subr.bf16.mxu0 0
        %9935 = vmatpush1.bf16.xpose.msra.mxu0 0
        %9936 = vmatprep.subr.bf16.mxu0 0
        %9937 = vmatpush1.bf16.xpose.msra.mxu0 0
        %9938 = vmatprep.subr.bf16.mxu0 %v3669
        %9939 = vmatpush1.bf16.xpose.msra.mxu0 %v3668
        %9940 = vmatprep.subr.bf16.mxu0 0
        %9941 = vmatpush2.bf16.xpose.msra.mxu0 0
        %9942 = vmatprep.subr.bf16.mxu0 0
        %9943 = vmatpush2.bf16.xpose.msra.mxu0 0
        %9944 = vmatprep.subr.bf16.mxu0 0
        %9945 = vmatpush2.bf16.xpose.msra.mxu0 0
        %9946 = vmatprep.subr.bf16.mxu0 0
        %9947 = vmatpush2.bf16.xpose.msra.mxu0 0
        %9948 = vmatprep.subr.bf16.mxu0 0
        %9949 = vmatpush2.bf16.xpose.msra.mxu0 0
        %9950 = vmatprep.subr.bf16.mxu0 0
        %9951 = vmatpush2.bf16.xpose.msra.mxu0 0
        %9952 = vmatprep.subr.bf16.mxu0 0
        %9953 = vmatpush2.bf16.xpose.msra.mxu0 0
        %9954 = vmatprep.subr.bf16.mxu0 0
        %9955 = vmatpush2.bf16.xpose.msra.mxu0 0
        %9956 = vmatprep.mubr.bf16.mxu0 %v1709
        %9957 = vmatmul.mubr.bf16.gmra.mxu0 %v1708
        %v9958 = vpop.f32.mrf.mxu0
        %v9959 = vadd.f32 %v9919, %v9958
        %v9960 = vpop.f32.mrf.mxu0
        %v9961 = vpop.f32.mrf.mxu0
        %v9962 = vpop.f32.mrf.mxu0
        %9963 = vdwg.mxu0
        %9964 = vmatprep.subr.bf16.mxu0 0
        %9965 = vmatpush1.bf16.xpose.msra.mxu0 0
        %9966 = vmatprep.subr.bf16.mxu0 0
        %9967 = vmatpush1.bf16.xpose.msra.mxu0 0
        %9968 = vmatprep.subr.bf16.mxu0 0
        %9969 = vmatpush1.bf16.xpose.msra.mxu0 0
        %9970 = vmatprep.subr.bf16.mxu0 0
        %9971 = vmatpush1.bf16.xpose.msra.mxu0 0
        %9972 = vmatprep.subr.bf16.mxu0 0
        %9973 = vmatpush1.bf16.xpose.msra.mxu0 0
        %9974 = vmatprep.subr.bf16.mxu0 0
        %9975 = vmatpush1.bf16.xpose.msra.mxu0 0
        %9976 = vmatprep.subr.bf16.mxu0 0
        %9977 = vmatpush1.bf16.xpose.msra.mxu0 0
        %9978 = vmatprep.subr.bf16.mxu0 %v3671
        %9979 = vmatpush1.bf16.xpose.msra.mxu0 %v3670
        %9980 = vmatprep.subr.bf16.mxu0 0
        %9981 = vmatpush2.bf16.xpose.msra.mxu0 0
        %9982 = vmatprep.subr.bf16.mxu0 0
        %9983 = vmatpush2.bf16.xpose.msra.mxu0 0
        %9984 = vmatprep.subr.bf16.mxu0 0
        %9985 = vmatpush2.bf16.xpose.msra.mxu0 0
        %9986 = vmatprep.subr.bf16.mxu0 0
        %9987 = vmatpush2.bf16.xpose.msra.mxu0 0
        %9988 = vmatprep.subr.bf16.mxu0 0
        %9989 = vmatpush2.bf16.xpose.msra.mxu0 0
        %9990 = vmatprep.subr.bf16.mxu0 0
        %9991 = vmatpush2.bf16.xpose.msra.mxu0 0
        %9992 = vmatprep.subr.bf16.mxu0 0
        %9993 = vmatpush2.bf16.xpose.msra.mxu0 0
        %9994 = vmatprep.subr.bf16.mxu0 0
        %9995 = vmatpush2.bf16.xpose.msra.mxu0 0
        %9996 = vmatprep.mubr.bf16.mxu0 %v1711
        %9997 = vmatmul.mubr.bf16.gmra.mxu0 %v1710
        %v9998 = vpop.f32.mrf.mxu0
        %v9999 = vadd.f32 %v9959, %v9998
        %v10000 = vpop.f32.mrf.mxu0
        %v10001 = vpop.f32.mrf.mxu0
        %v10002 = vpop.f32.mrf.mxu0
        %10003 = vdwg.mxu0
        %10004 = vmatprep.subr.bf16.mxu0 0
        %10005 = vmatpush1.bf16.xpose.msra.mxu0 0
        %10006 = vmatprep.subr.bf16.mxu0 0
        %10007 = vmatpush1.bf16.xpose.msra.mxu0 0
        %10008 = vmatprep.subr.bf16.mxu0 0
        %10009 = vmatpush1.bf16.xpose.msra.mxu0 0
        %10010 = vmatprep.subr.bf16.mxu0 0
        %10011 = vmatpush1.bf16.xpose.msra.mxu0 0
        %10012 = vmatprep.subr.bf16.mxu0 0
        %10013 = vmatpush1.bf16.xpose.msra.mxu0 0
        %10014 = vmatprep.subr.bf16.mxu0 0
        %10015 = vmatpush1.bf16.xpose.msra.mxu0 0
        %10016 = vmatprep.subr.bf16.mxu0 0
        %10017 = vmatpush1.bf16.xpose.msra.mxu0 0
        %10018 = vmatprep.subr.bf16.mxu0 %v3673
        %10019 = vmatpush1.bf16.xpose.msra.mxu0 %v3672
        %10020 = vmatprep.subr.bf16.mxu0 0
        %10021 = vmatpush2.bf16.xpose.msra.mxu0 0
        %10022 = vmatprep.subr.bf16.mxu0 0
        %10023 = vmatpush2.bf16.xpose.msra.mxu0 0
        %10024 = vmatprep.subr.bf16.mxu0 0
        %10025 = vmatpush2.bf16.xpose.msra.mxu0 0
        %10026 = vmatprep.subr.bf16.mxu0 0
        %10027 = vmatpush2.bf16.xpose.msra.mxu0 0
        %10028 = vmatprep.subr.bf16.mxu0 0
        %10029 = vmatpush2.bf16.xpose.msra.mxu0 0
        %10030 = vmatprep.subr.bf16.mxu0 0
        %10031 = vmatpush2.bf16.xpose.msra.mxu0 0
        %10032 = vmatprep.subr.bf16.mxu0 0
        %10033 = vmatpush2.bf16.xpose.msra.mxu0 0
        %10034 = vmatprep.subr.bf16.mxu0 0
        %10035 = vmatpush2.bf16.xpose.msra.mxu0 0
        %10036 = vmatprep.mubr.bf16.mxu0 %v1713
        %10037 = vmatmul.mubr.bf16.gmra.mxu0 %v1712
        %v10038 = vpop.f32.mrf.mxu0
        %v10039 = vadd.f32 %v9999, %v10038
        %v10040 = vpop.f32.mrf.mxu0
        %v10041 = vpop.f32.mrf.mxu0
        %v10042 = vpop.f32.mrf.mxu0
        %10043 = vdwg.mxu0
        %10044 = vmatprep.subr.bf16.mxu0 0
        %10045 = vmatpush1.bf16.xpose.msra.mxu0 0
        %10046 = vmatprep.subr.bf16.mxu0 0
        %10047 = vmatpush1.bf16.xpose.msra.mxu0 0
        %10048 = vmatprep.subr.bf16.mxu0 0
        %10049 = vmatpush1.bf16.xpose.msra.mxu0 0
        %10050 = vmatprep.subr.bf16.mxu0 0
        %10051 = vmatpush1.bf16.xpose.msra.mxu0 0
        %10052 = vmatprep.subr.bf16.mxu0 0
        %10053 = vmatpush1.bf16.xpose.msra.mxu0 0
        %10054 = vmatprep.subr.bf16.mxu0 0
        %10055 = vmatpush1.bf16.xpose.msra.mxu0 0
        %10056 = vmatprep.subr.bf16.mxu0 0
        %10057 = vmatpush1.bf16.xpose.msra.mxu0 0
        %10058 = vmatprep.subr.bf16.mxu0 %v3675
        %10059 = vmatpush1.bf16.xpose.msra.mxu0 %v3674
        %10060 = vmatprep.subr.bf16.mxu0 0
        %10061 = vmatpush2.bf16.xpose.msra.mxu0 0
        %10062 = vmatprep.subr.bf16.mxu0 0
        %10063 = vmatpush2.bf16.xpose.msra.mxu0 0
        %10064 = vmatprep.subr.bf16.mxu0 0
        %10065 = vmatpush2.bf16.xpose.msra.mxu0 0
        %10066 = vmatprep.subr.bf16.mxu0 0
        %10067 = vmatpush2.bf16.xpose.msra.mxu0 0
        %10068 = vmatprep.subr.bf16.mxu0 0
        %10069 = vmatpush2.bf16.xpose.msra.mxu0 0
        %10070 = vmatprep.subr.bf16.mxu0 0
        %10071 = vmatpush2.bf16.xpose.msra.mxu0 0
        %10072 = vmatprep.subr.bf16.mxu0 0
        %10073 = vmatpush2.bf16.xpose.msra.mxu0 0
        %10074 = vmatprep.subr.bf16.mxu0 0
        %10075 = vmatpush2.bf16.xpose.msra.mxu0 0
        %10076 = vmatprep.mubr.bf16.mxu0 %v1715
        %10077 = vmatmul.mubr.bf16.gmra.mxu0 %v1714
        %v10078 = vpop.f32.mrf.mxu0
        %v10079 = vadd.f32 %v10039, %v10078
        %v10080 = vpop.f32.mrf.mxu0
        %v10081 = vpop.f32.mrf.mxu0
        %v10082 = vpop.f32.mrf.mxu0
        %10083 = vdwg.mxu0
        %10084 = vmatprep.subr.bf16.mxu0 0
        %10085 = vmatpush1.bf16.xpose.msra.mxu0 0
        %10086 = vmatprep.subr.bf16.mxu0 0
        %10087 = vmatpush1.bf16.xpose.msra.mxu0 0
        %10088 = vmatprep.subr.bf16.mxu0 0
        %10089 = vmatpush1.bf16.xpose.msra.mxu0 0
        %10090 = vmatprep.subr.bf16.mxu0 0
        %10091 = vmatpush1.bf16.xpose.msra.mxu0 0
        %10092 = vmatprep.subr.bf16.mxu0 0
        %10093 = vmatpush1.bf16.xpose.msra.mxu0 0
        %10094 = vmatprep.subr.bf16.mxu0 0
        %10095 = vmatpush1.bf16.xpose.msra.mxu0 0
        %10096 = vmatprep.subr.bf16.mxu0 0
        %10097 = vmatpush1.bf16.xpose.msra.mxu0 0
        %10098 = vmatprep.subr.bf16.mxu0 %v3677
        %10099 = vmatpush1.bf16.xpose.msra.mxu0 %v3676
        %10100 = vmatprep.subr.bf16.mxu0 0
        %10101 = vmatpush2.bf16.xpose.msra.mxu0 0
        %10102 = vmatprep.subr.bf16.mxu0 0
        %10103 = vmatpush2.bf16.xpose.msra.mxu0 0
        %10104 = vmatprep.subr.bf16.mxu0 0
        %10105 = vmatpush2.bf16.xpose.msra.mxu0 0
        %10106 = vmatprep.subr.bf16.mxu0 0
        %10107 = vmatpush2.bf16.xpose.msra.mxu0 0
        %10108 = vmatprep.subr.bf16.mxu0 0
        %10109 = vmatpush2.bf16.xpose.msra.mxu0 0
        %10110 = vmatprep.subr.bf16.mxu0 0
        %10111 = vmatpush2.bf16.xpose.msra.mxu0 0
        %10112 = vmatprep.subr.bf16.mxu0 0
        %10113 = vmatpush2.bf16.xpose.msra.mxu0 0
        %10114 = vmatprep.subr.bf16.mxu0 0
        %10115 = vmatpush2.bf16.xpose.msra.mxu0 0
        %10116 = vmatprep.mubr.bf16.mxu0 %v1717
        %10117 = vmatmul.mubr.bf16.gmra.mxu0 %v1716
        %v10118 = vpop.f32.mrf.mxu0
        %v10119 = vadd.f32 %v10079, %v10118
        %v10120 = vpop.f32.mrf.mxu0
        %v10121 = vpop.f32.mrf.mxu0
        %v10122 = vpop.f32.mrf.mxu0
        %10123 = vdwg.mxu0
        %10124 = vmatprep.subr.bf16.mxu0 0
        %10125 = vmatpush1.bf16.xpose.msra.mxu0 0
        %10126 = vmatprep.subr.bf16.mxu0 0
        %10127 = vmatpush1.bf16.xpose.msra.mxu0 0
        %10128 = vmatprep.subr.bf16.mxu0 0
        %10129 = vmatpush1.bf16.xpose.msra.mxu0 0
        %10130 = vmatprep.subr.bf16.mxu0 0
        %10131 = vmatpush1.bf16.xpose.msra.mxu0 0
        %10132 = vmatprep.subr.bf16.mxu0 0
        %10133 = vmatpush1.bf16.xpose.msra.mxu0 0
        %10134 = vmatprep.subr.bf16.mxu0 0
        %10135 = vmatpush1.bf16.xpose.msra.mxu0 0
        %10136 = vmatprep.subr.bf16.mxu0 0
        %10137 = vmatpush1.bf16.xpose.msra.mxu0 0
        %10138 = vmatprep.subr.bf16.mxu0 %v3679
        %10139 = vmatpush1.bf16.xpose.msra.mxu0 %v3678
        %10140 = vmatprep.subr.bf16.mxu0 0
        %10141 = vmatpush2.bf16.xpose.msra.mxu0 0
        %10142 = vmatprep.subr.bf16.mxu0 0
        %10143 = vmatpush2.bf16.xpose.msra.mxu0 0
        %10144 = vmatprep.subr.bf16.mxu0 0
        %10145 = vmatpush2.bf16.xpose.msra.mxu0 0
        %10146 = vmatprep.subr.bf16.mxu0 0
        %10147 = vmatpush2.bf16.xpose.msra.mxu0 0
        %10148 = vmatprep.subr.bf16.mxu0 0
        %10149 = vmatpush2.bf16.xpose.msra.mxu0 0
        %10150 = vmatprep.subr.bf16.mxu0 0
        %10151 = vmatpush2.bf16.xpose.msra.mxu0 0
        %10152 = vmatprep.subr.bf16.mxu0 0
        %10153 = vmatpush2.bf16.xpose.msra.mxu0 0
        %10154 = vmatprep.subr.bf16.mxu0 0
        %10155 = vmatpush2.bf16.xpose.msra.mxu0 0
        %10156 = vmatprep.mubr.bf16.mxu0 %v1719
        %10157 = vmatmul.mubr.bf16.gmra.mxu0 %v1718
        %v10158 = vpop.f32.mrf.mxu0
        %v10159 = vadd.f32 %v10119, %v10158
        %v10160 = vpop.f32.mrf.mxu0
        %v10161 = vpop.f32.mrf.mxu0
        %v10162 = vpop.f32.mrf.mxu0
        %10163 = vdwg.mxu0
        %10164 = vmatprep.subr.bf16.mxu0 0
        %10165 = vmatpush1.bf16.xpose.msra.mxu0 0
        %10166 = vmatprep.subr.bf16.mxu0 0
        %10167 = vmatpush1.bf16.xpose.msra.mxu0 0
        %10168 = vmatprep.subr.bf16.mxu0 0
        %10169 = vmatpush1.bf16.xpose.msra.mxu0 0
        %10170 = vmatprep.subr.bf16.mxu0 0
        %10171 = vmatpush1.bf16.xpose.msra.mxu0 0
        %10172 = vmatprep.subr.bf16.mxu0 0
        %10173 = vmatpush1.bf16.xpose.msra.mxu0 0
        %10174 = vmatprep.subr.bf16.mxu0 0
        %10175 = vmatpush1.bf16.xpose.msra.mxu0 0
        %10176 = vmatprep.subr.bf16.mxu0 0
        %10177 = vmatpush1.bf16.xpose.msra.mxu0 0
        %10178 = vmatprep.subr.bf16.mxu0 %v3681
        %10179 = vmatpush1.bf16.xpose.msra.mxu0 %v3680
        %10180 = vmatprep.subr.bf16.mxu0 0
        %10181 = vmatpush2.bf16.xpose.msra.mxu0 0
        %10182 = vmatprep.subr.bf16.mxu0 0
        %10183 = vmatpush2.bf16.xpose.msra.mxu0 0
        %10184 = vmatprep.subr.bf16.mxu0 0
        %10185 = vmatpush2.bf16.xpose.msra.mxu0 0
        %10186 = vmatprep.subr.bf16.mxu0 0
        %10187 = vmatpush2.bf16.xpose.msra.mxu0 0
        %10188 = vmatprep.subr.bf16.mxu0 0
        %10189 = vmatpush2.bf16.xpose.msra.mxu0 0
        %10190 = vmatprep.subr.bf16.mxu0 0
        %10191 = vmatpush2.bf16.xpose.msra.mxu0 0
        %10192 = vmatprep.subr.bf16.mxu0 0
        %10193 = vmatpush2.bf16.xpose.msra.mxu0 0
        %10194 = vmatprep.subr.bf16.mxu0 0
        %10195 = vmatpush2.bf16.xpose.msra.mxu0 0
        %10196 = vmatprep.mubr.bf16.mxu0 %v1721
        %10197 = vmatmul.mubr.bf16.gmra.mxu0 %v1720
        %v10198 = vpop.f32.mrf.mxu0
        %v10199 = vadd.f32 %v10159, %v10198
        %v10200 = vpop.f32.mrf.mxu0
        %v10201 = vpop.f32.mrf.mxu0
        %v10202 = vpop.f32.mrf.mxu0
        %10203 = vdwg.mxu0
        %10204 = vmatprep.subr.bf16.mxu0 0
        %10205 = vmatpush1.bf16.xpose.msra.mxu0 0
        %10206 = vmatprep.subr.bf16.mxu0 0
        %10207 = vmatpush1.bf16.xpose.msra.mxu0 0
        %10208 = vmatprep.subr.bf16.mxu0 0
        %10209 = vmatpush1.bf16.xpose.msra.mxu0 0
        %10210 = vmatprep.subr.bf16.mxu0 0
        %10211 = vmatpush1.bf16.xpose.msra.mxu0 0
        %10212 = vmatprep.subr.bf16.mxu0 0
        %10213 = vmatpush1.bf16.xpose.msra.mxu0 0
        %10214 = vmatprep.subr.bf16.mxu0 0
        %10215 = vmatpush1.bf16.xpose.msra.mxu0 0
        %10216 = vmatprep.subr.bf16.mxu0 0
        %10217 = vmatpush1.bf16.xpose.msra.mxu0 0
        %10218 = vmatprep.subr.bf16.mxu0 %v3683
        %10219 = vmatpush1.bf16.xpose.msra.mxu0 %v3682
        %10220 = vmatprep.subr.bf16.mxu0 0
        %10221 = vmatpush2.bf16.xpose.msra.mxu0 0
        %10222 = vmatprep.subr.bf16.mxu0 0
        %10223 = vmatpush2.bf16.xpose.msra.mxu0 0
        %10224 = vmatprep.subr.bf16.mxu0 0
        %10225 = vmatpush2.bf16.xpose.msra.mxu0 0
        %10226 = vmatprep.subr.bf16.mxu0 0
        %10227 = vmatpush2.bf16.xpose.msra.mxu0 0
        %10228 = vmatprep.subr.bf16.mxu0 0
        %10229 = vmatpush2.bf16.xpose.msra.mxu0 0
        %10230 = vmatprep.subr.bf16.mxu0 0
        %10231 = vmatpush2.bf16.xpose.msra.mxu0 0
        %10232 = vmatprep.subr.bf16.mxu0 0
        %10233 = vmatpush2.bf16.xpose.msra.mxu0 0
        %10234 = vmatprep.subr.bf16.mxu0 0
        %10235 = vmatpush2.bf16.xpose.msra.mxu0 0
        %10236 = vmatprep.mubr.bf16.mxu0 %v1723
        %10237 = vmatmul.mubr.bf16.gmra.mxu0 %v1722
        %v10238 = vpop.f32.mrf.mxu0
        %v10239 = vadd.f32 %v10199, %v10238
        %v10240 = vpop.f32.mrf.mxu0
        %v10241 = vpop.f32.mrf.mxu0
        %v10242 = vpop.f32.mrf.mxu0
        %10243 = vdwg.mxu0
        %10244 = vmatprep.subr.bf16.mxu0 0
        %10245 = vmatpush1.bf16.xpose.msra.mxu0 0
        %10246 = vmatprep.subr.bf16.mxu0 0
        %10247 = vmatpush1.bf16.xpose.msra.mxu0 0
        %10248 = vmatprep.subr.bf16.mxu0 0
        %10249 = vmatpush1.bf16.xpose.msra.mxu0 0
        %10250 = vmatprep.subr.bf16.mxu0 0
        %10251 = vmatpush1.bf16.xpose.msra.mxu0 0
        %10252 = vmatprep.subr.bf16.mxu0 0
        %10253 = vmatpush1.bf16.xpose.msra.mxu0 0
        %10254 = vmatprep.subr.bf16.mxu0 0
        %10255 = vmatpush1.bf16.xpose.msra.mxu0 0
        %10256 = vmatprep.subr.bf16.mxu0 0
        %10257 = vmatpush1.bf16.xpose.msra.mxu0 0
        %10258 = vmatprep.subr.bf16.mxu0 %v3685
        %10259 = vmatpush1.bf16.xpose.msra.mxu0 %v3684
        %10260 = vmatprep.subr.bf16.mxu0 0
        %10261 = vmatpush2.bf16.xpose.msra.mxu0 0
        %10262 = vmatprep.subr.bf16.mxu0 0
        %10263 = vmatpush2.bf16.xpose.msra.mxu0 0
        %10264 = vmatprep.subr.bf16.mxu0 0
        %10265 = vmatpush2.bf16.xpose.msra.mxu0 0
        %10266 = vmatprep.subr.bf16.mxu0 0
        %10267 = vmatpush2.bf16.xpose.msra.mxu0 0
        %10268 = vmatprep.subr.bf16.mxu0 0
        %10269 = vmatpush2.bf16.xpose.msra.mxu0 0
        %10270 = vmatprep.subr.bf16.mxu0 0
        %10271 = vmatpush2.bf16.xpose.msra.mxu0 0
        %10272 = vmatprep.subr.bf16.mxu0 0
        %10273 = vmatpush2.bf16.xpose.msra.mxu0 0
        %10274 = vmatprep.subr.bf16.mxu0 0
        %10275 = vmatpush2.bf16.xpose.msra.mxu0 0
        %10276 = vmatprep.mubr.bf16.mxu0 %v1725
        %10277 = vmatmul.mubr.bf16.gmra.mxu0 %v1724
        %v10278 = vpop.f32.mrf.mxu0
        %v10279 = vadd.f32 %v10239, %v10278
        %v10280 = vpop.f32.mrf.mxu0
        %v10281 = vpop.f32.mrf.mxu0
        %v10282 = vpop.f32.mrf.mxu0
        %10283 = vdwg.mxu0
        %10284 = vmatprep.subr.bf16.mxu0 0
        %10285 = vmatpush1.bf16.xpose.msra.mxu0 0
        %10286 = vmatprep.subr.bf16.mxu0 0
        %10287 = vmatpush1.bf16.xpose.msra.mxu0 0
        %10288 = vmatprep.subr.bf16.mxu0 0
        %10289 = vmatpush1.bf16.xpose.msra.mxu0 0
        %10290 = vmatprep.subr.bf16.mxu0 0
        %10291 = vmatpush1.bf16.xpose.msra.mxu0 0
        %10292 = vmatprep.subr.bf16.mxu0 0
        %10293 = vmatpush1.bf16.xpose.msra.mxu0 0
        %10294 = vmatprep.subr.bf16.mxu0 0
        %10295 = vmatpush1.bf16.xpose.msra.mxu0 0
        %10296 = vmatprep.subr.bf16.mxu0 0
        %10297 = vmatpush1.bf16.xpose.msra.mxu0 0
        %10298 = vmatprep.subr.bf16.mxu0 %v3687
        %10299 = vmatpush1.bf16.xpose.msra.mxu0 %v3686
        %10300 = vmatprep.subr.bf16.mxu0 0
        %10301 = vmatpush2.bf16.xpose.msra.mxu0 0
        %10302 = vmatprep.subr.bf16.mxu0 0
        %10303 = vmatpush2.bf16.xpose.msra.mxu0 0
        %10304 = vmatprep.subr.bf16.mxu0 0
        %10305 = vmatpush2.bf16.xpose.msra.mxu0 0
        %10306 = vmatprep.subr.bf16.mxu0 0
        %10307 = vmatpush2.bf16.xpose.msra.mxu0 0
        %10308 = vmatprep.subr.bf16.mxu0 0
        %10309 = vmatpush2.bf16.xpose.msra.mxu0 0
        %10310 = vmatprep.subr.bf16.mxu0 0
        %10311 = vmatpush2.bf16.xpose.msra.mxu0 0
        %10312 = vmatprep.subr.bf16.mxu0 0
        %10313 = vmatpush2.bf16.xpose.msra.mxu0 0
        %10314 = vmatprep.subr.bf16.mxu0 0
        %10315 = vmatpush2.bf16.xpose.msra.mxu0 0
        %10316 = vmatprep.mubr.bf16.mxu0 %v1727
        %10317 = vmatmul.mubr.bf16.gmra.mxu0 %v1726
        %v10318 = vpop.f32.mrf.mxu0
        %v10319 = vadd.f32 %v10279, %v10318
        %v10320 = vpop.f32.mrf.mxu0
        %v10321 = vpop.f32.mrf.mxu0
        %v10322 = vpop.f32.mrf.mxu0
        %10323 = vdwg.mxu0
        %10324 = vmatprep.subr.bf16.mxu0 0
        %10325 = vmatpush1.bf16.xpose.msra.mxu0 0
        %10326 = vmatprep.subr.bf16.mxu0 0
        %10327 = vmatpush1.bf16.xpose.msra.mxu0 0
        %10328 = vmatprep.subr.bf16.mxu0 0
        %10329 = vmatpush1.bf16.xpose.msra.mxu0 0
        %10330 = vmatprep.subr.bf16.mxu0 0
        %10331 = vmatpush1.bf16.xpose.msra.mxu0 0
        %10332 = vmatprep.subr.bf16.mxu0 0
        %10333 = vmatpush1.bf16.xpose.msra.mxu0 0
        %10334 = vmatprep.subr.bf16.mxu0 0
        %10335 = vmatpush1.bf16.xpose.msra.mxu0 0
        %10336 = vmatprep.subr.bf16.mxu0 0
        %10337 = vmatpush1.bf16.xpose.msra.mxu0 0
        %10338 = vmatprep.subr.bf16.mxu0 %v3689
        %10339 = vmatpush1.bf16.xpose.msra.mxu0 %v3688
        %10340 = vmatprep.subr.bf16.mxu0 0
        %10341 = vmatpush2.bf16.xpose.msra.mxu0 0
        %10342 = vmatprep.subr.bf16.mxu0 0
        %10343 = vmatpush2.bf16.xpose.msra.mxu0 0
        %10344 = vmatprep.subr.bf16.mxu0 0
        %10345 = vmatpush2.bf16.xpose.msra.mxu0 0
        %10346 = vmatprep.subr.bf16.mxu0 0
        %10347 = vmatpush2.bf16.xpose.msra.mxu0 0
        %10348 = vmatprep.subr.bf16.mxu0 0
        %10349 = vmatpush2.bf16.xpose.msra.mxu0 0
        %10350 = vmatprep.subr.bf16.mxu0 0
        %10351 = vmatpush2.bf16.xpose.msra.mxu0 0
        %10352 = vmatprep.subr.bf16.mxu0 0
        %10353 = vmatpush2.bf16.xpose.msra.mxu0 0
        %10354 = vmatprep.subr.bf16.mxu0 0
        %10355 = vmatpush2.bf16.xpose.msra.mxu0 0
        %10356 = vmatprep.mubr.bf16.mxu0 %v1729
        %10357 = vmatmul.mubr.bf16.gmra.mxu0 %v1728
        %v10358 = vpop.f32.mrf.mxu0
        %v10359 = vadd.f32 %v10319, %v10358
        %v10360 = vpop.f32.mrf.mxu0
        %v10361 = vpop.f32.mrf.mxu0
        %v10362 = vpop.f32.mrf.mxu0
        %10363 = vdwg.mxu0
        %10364 = vmatprep.subr.bf16.mxu0 0
        %10365 = vmatpush1.bf16.xpose.msra.mxu0 0
        %10366 = vmatprep.subr.bf16.mxu0 0
        %10367 = vmatpush1.bf16.xpose.msra.mxu0 0
        %10368 = vmatprep.subr.bf16.mxu0 0
        %10369 = vmatpush1.bf16.xpose.msra.mxu0 0
        %10370 = vmatprep.subr.bf16.mxu0 0
        %10371 = vmatpush1.bf16.xpose.msra.mxu0 0
        %10372 = vmatprep.subr.bf16.mxu0 0
        %10373 = vmatpush1.bf16.xpose.msra.mxu0 0
        %10374 = vmatprep.subr.bf16.mxu0 0
        %10375 = vmatpush1.bf16.xpose.msra.mxu0 0
        %10376 = vmatprep.subr.bf16.mxu0 0
        %10377 = vmatpush1.bf16.xpose.msra.mxu0 0
        %10378 = vmatprep.subr.bf16.mxu0 %v3691
        %10379 = vmatpush1.bf16.xpose.msra.mxu0 %v3690
        %10380 = vmatprep.subr.bf16.mxu0 0
        %10381 = vmatpush2.bf16.xpose.msra.mxu0 0
        %10382 = vmatprep.subr.bf16.mxu0 0
        %10383 = vmatpush2.bf16.xpose.msra.mxu0 0
        %10384 = vmatprep.subr.bf16.mxu0 0
        %10385 = vmatpush2.bf16.xpose.msra.mxu0 0
        %10386 = vmatprep.subr.bf16.mxu0 0
        %10387 = vmatpush2.bf16.xpose.msra.mxu0 0
        %10388 = vmatprep.subr.bf16.mxu0 0
        %10389 = vmatpush2.bf16.xpose.msra.mxu0 0
        %10390 = vmatprep.subr.bf16.mxu0 0
        %10391 = vmatpush2.bf16.xpose.msra.mxu0 0
        %10392 = vmatprep.subr.bf16.mxu0 0
        %10393 = vmatpush2.bf16.xpose.msra.mxu0 0
        %10394 = vmatprep.subr.bf16.mxu0 0
        %10395 = vmatpush2.bf16.xpose.msra.mxu0 0
        %10396 = vmatprep.mubr.bf16.mxu0 %v1731
        %10397 = vmatmul.mubr.bf16.gmra.mxu0 %v1730
        %v10398 = vpop.f32.mrf.mxu0
        %v10399 = vadd.f32 %v10359, %v10398
        %v10400 = vpop.f32.mrf.mxu0
        %v10401 = vpop.f32.mrf.mxu0
        %v10402 = vpop.f32.mrf.mxu0
        %10403 = vdwg.mxu0
        %10404 = vmatprep.subr.bf16.mxu0 0
        %10405 = vmatpush1.bf16.xpose.msra.mxu0 0
        %10406 = vmatprep.subr.bf16.mxu0 0
        %10407 = vmatpush1.bf16.xpose.msra.mxu0 0
        %10408 = vmatprep.subr.bf16.mxu0 0
        %10409 = vmatpush1.bf16.xpose.msra.mxu0 0
        %10410 = vmatprep.subr.bf16.mxu0 0
        %10411 = vmatpush1.bf16.xpose.msra.mxu0 0
        %10412 = vmatprep.subr.bf16.mxu0 0
        %10413 = vmatpush1.bf16.xpose.msra.mxu0 0
        %10414 = vmatprep.subr.bf16.mxu0 0
        %10415 = vmatpush1.bf16.xpose.msra.mxu0 0
        %10416 = vmatprep.subr.bf16.mxu0 0
        %10417 = vmatpush1.bf16.xpose.msra.mxu0 0
        %10418 = vmatprep.subr.bf16.mxu0 %v3693
        %10419 = vmatpush1.bf16.xpose.msra.mxu0 %v3692
        %10420 = vmatprep.subr.bf16.mxu0 0
        %10421 = vmatpush2.bf16.xpose.msra.mxu0 0
        %10422 = vmatprep.subr.bf16.mxu0 0
        %10423 = vmatpush2.bf16.xpose.msra.mxu0 0
        %10424 = vmatprep.subr.bf16.mxu0 0
        %10425 = vmatpush2.bf16.xpose.msra.mxu0 0
        %10426 = vmatprep.subr.bf16.mxu0 0
        %10427 = vmatpush2.bf16.xpose.msra.mxu0 0
        %10428 = vmatprep.subr.bf16.mxu0 0
        %10429 = vmatpush2.bf16.xpose.msra.mxu0 0
        %10430 = vmatprep.subr.bf16.mxu0 0
        %10431 = vmatpush2.bf16.xpose.msra.mxu0 0
        %10432 = vmatprep.subr.bf16.mxu0 0
        %10433 = vmatpush2.bf16.xpose.msra.mxu0 0
        %10434 = vmatprep.subr.bf16.mxu0 0
        %10435 = vmatpush2.bf16.xpose.msra.mxu0 0
        %10436 = vmatprep.mubr.bf16.mxu0 %v1733
        %10437 = vmatmul.mubr.bf16.gmra.mxu0 %v1732
        %v10438 = vpop.f32.mrf.mxu0
        %v10439 = vadd.f32 %v10399, %v10438
        %v10440 = vpop.f32.mrf.mxu0
        %v10441 = vpop.f32.mrf.mxu0
        %v10442 = vpop.f32.mrf.mxu0
        %10443 = vdwg.mxu0
        %10444 = vmatprep.subr.bf16.mxu0 0
        %10445 = vmatpush1.bf16.xpose.msra.mxu0 0
        %10446 = vmatprep.subr.bf16.mxu0 0
        %10447 = vmatpush1.bf16.xpose.msra.mxu0 0
        %10448 = vmatprep.subr.bf16.mxu0 0
        %10449 = vmatpush1.bf16.xpose.msra.mxu0 0
        %10450 = vmatprep.subr.bf16.mxu0 0
        %10451 = vmatpush1.bf16.xpose.msra.mxu0 0
        %10452 = vmatprep.subr.bf16.mxu0 0
        %10453 = vmatpush1.bf16.xpose.msra.mxu0 0
        %10454 = vmatprep.subr.bf16.mxu0 0
        %10455 = vmatpush1.bf16.xpose.msra.mxu0 0
        %10456 = vmatprep.subr.bf16.mxu0 0
        %10457 = vmatpush1.bf16.xpose.msra.mxu0 0
        %10458 = vmatprep.subr.bf16.mxu0 %v3695
        %10459 = vmatpush1.bf16.xpose.msra.mxu0 %v3694
        %10460 = vmatprep.subr.bf16.mxu0 0
        %10461 = vmatpush2.bf16.xpose.msra.mxu0 0
        %10462 = vmatprep.subr.bf16.mxu0 0
        %10463 = vmatpush2.bf16.xpose.msra.mxu0 0
        %10464 = vmatprep.subr.bf16.mxu0 0
        %10465 = vmatpush2.bf16.xpose.msra.mxu0 0
        %10466 = vmatprep.subr.bf16.mxu0 0
        %10467 = vmatpush2.bf16.xpose.msra.mxu0 0
        %10468 = vmatprep.subr.bf16.mxu0 0
        %10469 = vmatpush2.bf16.xpose.msra.mxu0 0
        %10470 = vmatprep.subr.bf16.mxu0 0
        %10471 = vmatpush2.bf16.xpose.msra.mxu0 0
        %10472 = vmatprep.subr.bf16.mxu0 0
        %10473 = vmatpush2.bf16.xpose.msra.mxu0 0
        %10474 = vmatprep.subr.bf16.mxu0 0
        %10475 = vmatpush2.bf16.xpose.msra.mxu0 0
        %10476 = vmatprep.mubr.bf16.mxu0 %v1735
        %10477 = vmatmul.mubr.bf16.gmra.mxu0 %v1734
        %v10478 = vpop.f32.mrf.mxu0
        %v10479 = vadd.f32 %v10439, %v10478
        %v10480 = vpop.f32.mrf.mxu0
        %v10481 = vpop.f32.mrf.mxu0
        %v10482 = vpop.f32.mrf.mxu0
        %10483 = vdwg.mxu0
        %10484 = vmatprep.subr.bf16.mxu0 0
        %10485 = vmatpush1.bf16.xpose.msra.mxu0 0
        %10486 = vmatprep.subr.bf16.mxu0 0
        %10487 = vmatpush1.bf16.xpose.msra.mxu0 0
        %10488 = vmatprep.subr.bf16.mxu0 0
        %10489 = vmatpush1.bf16.xpose.msra.mxu0 0
        %10490 = vmatprep.subr.bf16.mxu0 0
        %10491 = vmatpush1.bf16.xpose.msra.mxu0 0
        %10492 = vmatprep.subr.bf16.mxu0 0
        %10493 = vmatpush1.bf16.xpose.msra.mxu0 0
        %10494 = vmatprep.subr.bf16.mxu0 0
        %10495 = vmatpush1.bf16.xpose.msra.mxu0 0
        %10496 = vmatprep.subr.bf16.mxu0 0
        %10497 = vmatpush1.bf16.xpose.msra.mxu0 0
        %10498 = vmatprep.subr.bf16.mxu0 %v3697
        %10499 = vmatpush1.bf16.xpose.msra.mxu0 %v3696
        %10500 = vmatprep.subr.bf16.mxu0 0
        %10501 = vmatpush2.bf16.xpose.msra.mxu0 0
        %10502 = vmatprep.subr.bf16.mxu0 0
        %10503 = vmatpush2.bf16.xpose.msra.mxu0 0
        %10504 = vmatprep.subr.bf16.mxu0 0
        %10505 = vmatpush2.bf16.xpose.msra.mxu0 0
        %10506 = vmatprep.subr.bf16.mxu0 0
        %10507 = vmatpush2.bf16.xpose.msra.mxu0 0
        %10508 = vmatprep.subr.bf16.mxu0 0
        %10509 = vmatpush2.bf16.xpose.msra.mxu0 0
        %10510 = vmatprep.subr.bf16.mxu0 0
        %10511 = vmatpush2.bf16.xpose.msra.mxu0 0
        %10512 = vmatprep.subr.bf16.mxu0 0
        %10513 = vmatpush2.bf16.xpose.msra.mxu0 0
        %10514 = vmatprep.subr.bf16.mxu0 0
        %10515 = vmatpush2.bf16.xpose.msra.mxu0 0
        %10516 = vmatprep.mubr.bf16.mxu0 %v1737
        %10517 = vmatmul.mubr.bf16.gmra.mxu0 %v1736
        %v10518 = vpop.f32.mrf.mxu0
        %v10519 = vadd.f32 %v10479, %v10518
        %v10520 = vpop.f32.mrf.mxu0
        %v10521 = vpop.f32.mrf.mxu0
        %v10522 = vpop.f32.mrf.mxu0
        %10523 = vdwg.mxu0
        %10524 = vmatprep.subr.bf16.mxu0 0
        %10525 = vmatpush1.bf16.xpose.msra.mxu0 0
        %10526 = vmatprep.subr.bf16.mxu0 0
        %10527 = vmatpush1.bf16.xpose.msra.mxu0 0
        %10528 = vmatprep.subr.bf16.mxu0 0
        %10529 = vmatpush1.bf16.xpose.msra.mxu0 0
        %10530 = vmatprep.subr.bf16.mxu0 0
        %10531 = vmatpush1.bf16.xpose.msra.mxu0 0
        %10532 = vmatprep.subr.bf16.mxu0 0
        %10533 = vmatpush1.bf16.xpose.msra.mxu0 0
        %10534 = vmatprep.subr.bf16.mxu0 0
        %10535 = vmatpush1.bf16.xpose.msra.mxu0 0
        %10536 = vmatprep.subr.bf16.mxu0 0
        %10537 = vmatpush1.bf16.xpose.msra.mxu0 0
        %10538 = vmatprep.subr.bf16.mxu0 %v3699
        %10539 = vmatpush1.bf16.xpose.msra.mxu0 %v3698
        %10540 = vmatprep.subr.bf16.mxu0 0
        %10541 = vmatpush2.bf16.xpose.msra.mxu0 0
        %10542 = vmatprep.subr.bf16.mxu0 0
        %10543 = vmatpush2.bf16.xpose.msra.mxu0 0
        %10544 = vmatprep.subr.bf16.mxu0 0
        %10545 = vmatpush2.bf16.xpose.msra.mxu0 0
        %10546 = vmatprep.subr.bf16.mxu0 0
        %10547 = vmatpush2.bf16.xpose.msra.mxu0 0
        %10548 = vmatprep.subr.bf16.mxu0 0
        %10549 = vmatpush2.bf16.xpose.msra.mxu0 0
        %10550 = vmatprep.subr.bf16.mxu0 0
        %10551 = vmatpush2.bf16.xpose.msra.mxu0 0
        %10552 = vmatprep.subr.bf16.mxu0 0
        %10553 = vmatpush2.bf16.xpose.msra.mxu0 0
        %10554 = vmatprep.subr.bf16.mxu0 0
        %10555 = vmatpush2.bf16.xpose.msra.mxu0 0
        %10556 = vmatprep.mubr.bf16.mxu0 %v1739
        %10557 = vmatmul.mubr.bf16.gmra.mxu0 %v1738
        %v10558 = vpop.f32.mrf.mxu0
        %v10559 = vadd.f32 %v10519, %v10558
        %v10560 = vpop.f32.mrf.mxu0
        %v10561 = vpop.f32.mrf.mxu0
        %v10562 = vpop.f32.mrf.mxu0
        %10563 = vdwg.mxu0
        %10564 = vmatprep.subr.bf16.mxu0 0
        %10565 = vmatpush1.bf16.xpose.msra.mxu0 0
        %10566 = vmatprep.subr.bf16.mxu0 0
        %10567 = vmatpush1.bf16.xpose.msra.mxu0 0
        %10568 = vmatprep.subr.bf16.mxu0 0
        %10569 = vmatpush1.bf16.xpose.msra.mxu0 0
        %10570 = vmatprep.subr.bf16.mxu0 0
        %10571 = vmatpush1.bf16.xpose.msra.mxu0 0
        %10572 = vmatprep.subr.bf16.mxu0 0
        %10573 = vmatpush1.bf16.xpose.msra.mxu0 0
        %10574 = vmatprep.subr.bf16.mxu0 0
        %10575 = vmatpush1.bf16.xpose.msra.mxu0 0
        %10576 = vmatprep.subr.bf16.mxu0 0
        %10577 = vmatpush1.bf16.xpose.msra.mxu0 0
        %10578 = vmatprep.subr.bf16.mxu0 %v3701
        %10579 = vmatpush1.bf16.xpose.msra.mxu0 %v3700
        %10580 = vmatprep.subr.bf16.mxu0 0
        %10581 = vmatpush2.bf16.xpose.msra.mxu0 0
        %10582 = vmatprep.subr.bf16.mxu0 0
        %10583 = vmatpush2.bf16.xpose.msra.mxu0 0
        %10584 = vmatprep.subr.bf16.mxu0 0
        %10585 = vmatpush2.bf16.xpose.msra.mxu0 0
        %10586 = vmatprep.subr.bf16.mxu0 0
        %10587 = vmatpush2.bf16.xpose.msra.mxu0 0
        %10588 = vmatprep.subr.bf16.mxu0 0
        %10589 = vmatpush2.bf16.xpose.msra.mxu0 0
        %10590 = vmatprep.subr.bf16.mxu0 0
        %10591 = vmatpush2.bf16.xpose.msra.mxu0 0
        %10592 = vmatprep.subr.bf16.mxu0 0
        %10593 = vmatpush2.bf16.xpose.msra.mxu0 0
        %10594 = vmatprep.subr.bf16.mxu0 0
        %10595 = vmatpush2.bf16.xpose.msra.mxu0 0
        %10596 = vmatprep.mubr.bf16.mxu0 %v1741
        %10597 = vmatmul.mubr.bf16.gmra.mxu0 %v1740
        %v10598 = vpop.f32.mrf.mxu0
        %v10599 = vadd.f32 %v10559, %v10598
        %v10600 = vpop.f32.mrf.mxu0
        %v10601 = vpop.f32.mrf.mxu0
        %v10602 = vpop.f32.mrf.mxu0
        %10603 = vdwg.mxu0
        %10604 = vmatprep.subr.bf16.mxu0 0
        %10605 = vmatpush1.bf16.xpose.msra.mxu0 0
        %10606 = vmatprep.subr.bf16.mxu0 0
        %10607 = vmatpush1.bf16.xpose.msra.mxu0 0
        %10608 = vmatprep.subr.bf16.mxu0 0
        %10609 = vmatpush1.bf16.xpose.msra.mxu0 0
        %10610 = vmatprep.subr.bf16.mxu0 0
        %10611 = vmatpush1.bf16.xpose.msra.mxu0 0
        %10612 = vmatprep.subr.bf16.mxu0 0
        %10613 = vmatpush1.bf16.xpose.msra.mxu0 0
        %10614 = vmatprep.subr.bf16.mxu0 0
        %10615 = vmatpush1.bf16.xpose.msra.mxu0 0
        %10616 = vmatprep.subr.bf16.mxu0 0
        %10617 = vmatpush1.bf16.xpose.msra.mxu0 0
        %10618 = vmatprep.subr.bf16.mxu0 %v3703
        %10619 = vmatpush1.bf16.xpose.msra.mxu0 %v3702
        %10620 = vmatprep.subr.bf16.mxu0 0
        %10621 = vmatpush2.bf16.xpose.msra.mxu0 0
        %10622 = vmatprep.subr.bf16.mxu0 0
        %10623 = vmatpush2.bf16.xpose.msra.mxu0 0
        %10624 = vmatprep.subr.bf16.mxu0 0
        %10625 = vmatpush2.bf16.xpose.msra.mxu0 0
        %10626 = vmatprep.subr.bf16.mxu0 0
        %10627 = vmatpush2.bf16.xpose.msra.mxu0 0
        %10628 = vmatprep.subr.bf16.mxu0 0
        %10629 = vmatpush2.bf16.xpose.msra.mxu0 0
        %10630 = vmatprep.subr.bf16.mxu0 0
        %10631 = vmatpush2.bf16.xpose.msra.mxu0 0
        %10632 = vmatprep.subr.bf16.mxu0 0
        %10633 = vmatpush2.bf16.xpose.msra.mxu0 0
        %10634 = vmatprep.subr.bf16.mxu0 0
        %10635 = vmatpush2.bf16.xpose.msra.mxu0 0
        %10636 = vmatprep.mubr.bf16.mxu0 %v1743
        %10637 = vmatmul.mubr.bf16.gmra.mxu0 %v1742
        %v10638 = vpop.f32.mrf.mxu0
        %v10639 = vadd.f32 %v10599, %v10638
        %v10640 = vpop.f32.mrf.mxu0
        %v10641 = vpop.f32.mrf.mxu0
        %v10642 = vpop.f32.mrf.mxu0
        %10643 = vdwg.mxu0
        %10644 = vmatprep.subr.bf16.mxu0 0
        %10645 = vmatpush1.bf16.xpose.msra.mxu0 0
        %10646 = vmatprep.subr.bf16.mxu0 0
        %10647 = vmatpush1.bf16.xpose.msra.mxu0 0
        %10648 = vmatprep.subr.bf16.mxu0 0
        %10649 = vmatpush1.bf16.xpose.msra.mxu0 0
        %10650 = vmatprep.subr.bf16.mxu0 0
        %10651 = vmatpush1.bf16.xpose.msra.mxu0 0
        %10652 = vmatprep.subr.bf16.mxu0 0
        %10653 = vmatpush1.bf16.xpose.msra.mxu0 0
        %10654 = vmatprep.subr.bf16.mxu0 0
        %10655 = vmatpush1.bf16.xpose.msra.mxu0 0
        %10656 = vmatprep.subr.bf16.mxu0 0
        %10657 = vmatpush1.bf16.xpose.msra.mxu0 0
        %10658 = vmatprep.subr.bf16.mxu0 %v3705
        %10659 = vmatpush1.bf16.xpose.msra.mxu0 %v3704
        %10660 = vmatprep.subr.bf16.mxu0 0
        %10661 = vmatpush2.bf16.xpose.msra.mxu0 0
        %10662 = vmatprep.subr.bf16.mxu0 0
        %10663 = vmatpush2.bf16.xpose.msra.mxu0 0
        %10664 = vmatprep.subr.bf16.mxu0 0
        %10665 = vmatpush2.bf16.xpose.msra.mxu0 0
        %10666 = vmatprep.subr.bf16.mxu0 0
        %10667 = vmatpush2.bf16.xpose.msra.mxu0 0
        %10668 = vmatprep.subr.bf16.mxu0 0
        %10669 = vmatpush2.bf16.xpose.msra.mxu0 0
        %10670 = vmatprep.subr.bf16.mxu0 0
        %10671 = vmatpush2.bf16.xpose.msra.mxu0 0
        %10672 = vmatprep.subr.bf16.mxu0 0
        %10673 = vmatpush2.bf16.xpose.msra.mxu0 0
        %10674 = vmatprep.subr.bf16.mxu0 0
        %10675 = vmatpush2.bf16.xpose.msra.mxu0 0
        %10676 = vmatprep.mubr.bf16.mxu0 %v1745
        %10677 = vmatmul.mubr.bf16.gmra.mxu0 %v1744
        %v10678 = vpop.f32.mrf.mxu0
        %v10679 = vadd.f32 %v10639, %v10678
        %v10680 = vpop.f32.mrf.mxu0
        %v10681 = vpop.f32.mrf.mxu0
        %v10682 = vpop.f32.mrf.mxu0
        %10683 = vdwg.mxu0
        %10684 = vmatprep.subr.bf16.mxu0 0
        %10685 = vmatpush1.bf16.xpose.msra.mxu0 0
        %10686 = vmatprep.subr.bf16.mxu0 0
        %10687 = vmatpush1.bf16.xpose.msra.mxu0 0
        %10688 = vmatprep.subr.bf16.mxu0 0
        %10689 = vmatpush1.bf16.xpose.msra.mxu0 0
        %10690 = vmatprep.subr.bf16.mxu0 0
        %10691 = vmatpush1.bf16.xpose.msra.mxu0 0
        %10692 = vmatprep.subr.bf16.mxu0 0
        %10693 = vmatpush1.bf16.xpose.msra.mxu0 0
        %10694 = vmatprep.subr.bf16.mxu0 0
        %10695 = vmatpush1.bf16.xpose.msra.mxu0 0
        %10696 = vmatprep.subr.bf16.mxu0 0
        %10697 = vmatpush1.bf16.xpose.msra.mxu0 0
        %10698 = vmatprep.subr.bf16.mxu0 %v3707
        %10699 = vmatpush1.bf16.xpose.msra.mxu0 %v3706
        %10700 = vmatprep.subr.bf16.mxu0 0
        %10701 = vmatpush2.bf16.xpose.msra.mxu0 0
        %10702 = vmatprep.subr.bf16.mxu0 0
        %10703 = vmatpush2.bf16.xpose.msra.mxu0 0
        %10704 = vmatprep.subr.bf16.mxu0 0
        %10705 = vmatpush2.bf16.xpose.msra.mxu0 0
        %10706 = vmatprep.subr.bf16.mxu0 0
        %10707 = vmatpush2.bf16.xpose.msra.mxu0 0
        %10708 = vmatprep.subr.bf16.mxu0 0
        %10709 = vmatpush2.bf16.xpose.msra.mxu0 0
        %10710 = vmatprep.subr.bf16.mxu0 0
        %10711 = vmatpush2.bf16.xpose.msra.mxu0 0
        %10712 = vmatprep.subr.bf16.mxu0 0
        %10713 = vmatpush2.bf16.xpose.msra.mxu0 0
        %10714 = vmatprep.subr.bf16.mxu0 0
        %10715 = vmatpush2.bf16.xpose.msra.mxu0 0
        %10716 = vmatprep.mubr.bf16.mxu0 %v1747
        %10717 = vmatmul.mubr.bf16.gmra.mxu0 %v1746
        %v10718 = vpop.f32.mrf.mxu0
        %v10719 = vadd.f32 %v10679, %v10718
        %v10720 = vpop.f32.mrf.mxu0
        %v10721 = vpop.f32.mrf.mxu0
        %v10722 = vpop.f32.mrf.mxu0
        %10723 = vdwg.mxu0
        %10724 = vmatprep.subr.bf16.mxu0 0
        %10725 = vmatpush1.bf16.xpose.msra.mxu0 0
        %10726 = vmatprep.subr.bf16.mxu0 0
        %10727 = vmatpush1.bf16.xpose.msra.mxu0 0
        %10728 = vmatprep.subr.bf16.mxu0 0
        %10729 = vmatpush1.bf16.xpose.msra.mxu0 0
        %10730 = vmatprep.subr.bf16.mxu0 0
        %10731 = vmatpush1.bf16.xpose.msra.mxu0 0
        %10732 = vmatprep.subr.bf16.mxu0 0
        %10733 = vmatpush1.bf16.xpose.msra.mxu0 0
        %10734 = vmatprep.subr.bf16.mxu0 0
        %10735 = vmatpush1.bf16.xpose.msra.mxu0 0
        %10736 = vmatprep.subr.bf16.mxu0 0
        %10737 = vmatpush1.bf16.xpose.msra.mxu0 0
        %10738 = vmatprep.subr.bf16.mxu0 %v3709
        %10739 = vmatpush1.bf16.xpose.msra.mxu0 %v3708
        %10740 = vmatprep.subr.bf16.mxu0 0
        %10741 = vmatpush2.bf16.xpose.msra.mxu0 0
        %10742 = vmatprep.subr.bf16.mxu0 0
        %10743 = vmatpush2.bf16.xpose.msra.mxu0 0
        %10744 = vmatprep.subr.bf16.mxu0 0
        %10745 = vmatpush2.bf16.xpose.msra.mxu0 0
        %10746 = vmatprep.subr.bf16.mxu0 0
        %10747 = vmatpush2.bf16.xpose.msra.mxu0 0
        %10748 = vmatprep.subr.bf16.mxu0 0
        %10749 = vmatpush2.bf16.xpose.msra.mxu0 0
        %10750 = vmatprep.subr.bf16.mxu0 0
        %10751 = vmatpush2.bf16.xpose.msra.mxu0 0
        %10752 = vmatprep.subr.bf16.mxu0 0
        %10753 = vmatpush2.bf16.xpose.msra.mxu0 0
        %10754 = vmatprep.subr.bf16.mxu0 0
        %10755 = vmatpush2.bf16.xpose.msra.mxu0 0
        %10756 = vmatprep.mubr.bf16.mxu0 %v1749
        %10757 = vmatmul.mubr.bf16.gmra.mxu0 %v1748
        %v10758 = vpop.f32.mrf.mxu0
        %v10759 = vadd.f32 %v10719, %v10758
        %v10760 = vpop.f32.mrf.mxu0
        %v10761 = vpop.f32.mrf.mxu0
        %v10762 = vpop.f32.mrf.mxu0
        %10763 = vdwg.mxu0
        %10764 = vmatprep.subr.bf16.mxu0 0
        %10765 = vmatpush1.bf16.xpose.msra.mxu0 0
        %10766 = vmatprep.subr.bf16.mxu0 0
        %10767 = vmatpush1.bf16.xpose.msra.mxu0 0
        %10768 = vmatprep.subr.bf16.mxu0 0
        %10769 = vmatpush1.bf16.xpose.msra.mxu0 0
        %10770 = vmatprep.subr.bf16.mxu0 0
        %10771 = vmatpush1.bf16.xpose.msra.mxu0 0
        %10772 = vmatprep.subr.bf16.mxu0 0
        %10773 = vmatpush1.bf16.xpose.msra.mxu0 0
        %10774 = vmatprep.subr.bf16.mxu0 0
        %10775 = vmatpush1.bf16.xpose.msra.mxu0 0
        %10776 = vmatprep.subr.bf16.mxu0 0
        %10777 = vmatpush1.bf16.xpose.msra.mxu0 0
        %10778 = vmatprep.subr.bf16.mxu0 %v3711
        %10779 = vmatpush1.bf16.xpose.msra.mxu0 %v3710
        %10780 = vmatprep.subr.bf16.mxu0 0
        %10781 = vmatpush2.bf16.xpose.msra.mxu0 0
        %10782 = vmatprep.subr.bf16.mxu0 0
        %10783 = vmatpush2.bf16.xpose.msra.mxu0 0
        %10784 = vmatprep.subr.bf16.mxu0 0
        %10785 = vmatpush2.bf16.xpose.msra.mxu0 0
        %10786 = vmatprep.subr.bf16.mxu0 0
        %10787 = vmatpush2.bf16.xpose.msra.mxu0 0
        %10788 = vmatprep.subr.bf16.mxu0 0
        %10789 = vmatpush2.bf16.xpose.msra.mxu0 0
        %10790 = vmatprep.subr.bf16.mxu0 0
        %10791 = vmatpush2.bf16.xpose.msra.mxu0 0
        %10792 = vmatprep.subr.bf16.mxu0 0
        %10793 = vmatpush2.bf16.xpose.msra.mxu0 0
        %10794 = vmatprep.subr.bf16.mxu0 0
        %10795 = vmatpush2.bf16.xpose.msra.mxu0 0
        %10796 = vmatprep.mubr.bf16.mxu0 %v1751
        %10797 = vmatmul.mubr.bf16.gmra.mxu0 %v1750
        %v10798 = vpop.f32.mrf.mxu0
        %v10799 = vadd.f32 %v10759, %v10798
        %v10800 = vpop.f32.mrf.mxu0
        %v10801 = vpop.f32.mrf.mxu0
        %v10802 = vpop.f32.mrf.mxu0
        %10803 = vdwg.mxu0
        %10804 = vmatprep.subr.bf16.mxu0 0
        %10805 = vmatpush1.bf16.xpose.msra.mxu0 0
        %10806 = vmatprep.subr.bf16.mxu0 0
        %10807 = vmatpush1.bf16.xpose.msra.mxu0 0
        %10808 = vmatprep.subr.bf16.mxu0 0
        %10809 = vmatpush1.bf16.xpose.msra.mxu0 0
        %10810 = vmatprep.subr.bf16.mxu0 0
        %10811 = vmatpush1.bf16.xpose.msra.mxu0 0
        %10812 = vmatprep.subr.bf16.mxu0 0
        %10813 = vmatpush1.bf16.xpose.msra.mxu0 0
        %10814 = vmatprep.subr.bf16.mxu0 0
        %10815 = vmatpush1.bf16.xpose.msra.mxu0 0
        %10816 = vmatprep.subr.bf16.mxu0 0
        %10817 = vmatpush1.bf16.xpose.msra.mxu0 0
        %10818 = vmatprep.subr.bf16.mxu0 %v3713
        %10819 = vmatpush1.bf16.xpose.msra.mxu0 %v3712
        %10820 = vmatprep.subr.bf16.mxu0 0
        %10821 = vmatpush2.bf16.xpose.msra.mxu0 0
        %10822 = vmatprep.subr.bf16.mxu0 0
        %10823 = vmatpush2.bf16.xpose.msra.mxu0 0
        %10824 = vmatprep.subr.bf16.mxu0 0
        %10825 = vmatpush2.bf16.xpose.msra.mxu0 0
        %10826 = vmatprep.subr.bf16.mxu0 0
        %10827 = vmatpush2.bf16.xpose.msra.mxu0 0
        %10828 = vmatprep.subr.bf16.mxu0 0
        %10829 = vmatpush2.bf16.xpose.msra.mxu0 0
        %10830 = vmatprep.subr.bf16.mxu0 0
        %10831 = vmatpush2.bf16.xpose.msra.mxu0 0
        %10832 = vmatprep.subr.bf16.mxu0 0
        %10833 = vmatpush2.bf16.xpose.msra.mxu0 0
        %10834 = vmatprep.subr.bf16.mxu0 0
        %10835 = vmatpush2.bf16.xpose.msra.mxu0 0
        %10836 = vmatprep.mubr.bf16.mxu0 %v1753
        %10837 = vmatmul.mubr.bf16.gmra.mxu0 %v1752
        %v10838 = vpop.f32.mrf.mxu0
        %v10839 = vadd.f32 %v10799, %v10838
        %v10840 = vpop.f32.mrf.mxu0
        %v10841 = vpop.f32.mrf.mxu0
        %v10842 = vpop.f32.mrf.mxu0
        %10843 = vdwg.mxu0
        %10844 = vmatprep.subr.bf16.mxu0 0
        %10845 = vmatpush1.bf16.xpose.msra.mxu0 0
        %10846 = vmatprep.subr.bf16.mxu0 0
        %10847 = vmatpush1.bf16.xpose.msra.mxu0 0
        %10848 = vmatprep.subr.bf16.mxu0 0
        %10849 = vmatpush1.bf16.xpose.msra.mxu0 0
        %10850 = vmatprep.subr.bf16.mxu0 0
        %10851 = vmatpush1.bf16.xpose.msra.mxu0 0
        %10852 = vmatprep.subr.bf16.mxu0 0
        %10853 = vmatpush1.bf16.xpose.msra.mxu0 0
        %10854 = vmatprep.subr.bf16.mxu0 0
        %10855 = vmatpush1.bf16.xpose.msra.mxu0 0
        %10856 = vmatprep.subr.bf16.mxu0 0
        %10857 = vmatpush1.bf16.xpose.msra.mxu0 0
        %10858 = vmatprep.subr.bf16.mxu0 %v3715
        %10859 = vmatpush1.bf16.xpose.msra.mxu0 %v3714
        %10860 = vmatprep.subr.bf16.mxu0 0
        %10861 = vmatpush2.bf16.xpose.msra.mxu0 0
        %10862 = vmatprep.subr.bf16.mxu0 0
        %10863 = vmatpush2.bf16.xpose.msra.mxu0 0
        %10864 = vmatprep.subr.bf16.mxu0 0
        %10865 = vmatpush2.bf16.xpose.msra.mxu0 0
        %10866 = vmatprep.subr.bf16.mxu0 0
        %10867 = vmatpush2.bf16.xpose.msra.mxu0 0
        %10868 = vmatprep.subr.bf16.mxu0 0
        %10869 = vmatpush2.bf16.xpose.msra.mxu0 0
        %10870 = vmatprep.subr.bf16.mxu0 0
        %10871 = vmatpush2.bf16.xpose.msra.mxu0 0
        %10872 = vmatprep.subr.bf16.mxu0 0
        %10873 = vmatpush2.bf16.xpose.msra.mxu0 0
        %10874 = vmatprep.subr.bf16.mxu0 0
        %10875 = vmatpush2.bf16.xpose.msra.mxu0 0
        %10876 = vmatprep.mubr.bf16.mxu0 %v1755
        %10877 = vmatmul.mubr.bf16.gmra.mxu0 %v1754
        %v10878 = vpop.f32.mrf.mxu0
        %v10879 = vadd.f32 %v10839, %v10878
        %v10880 = vpop.f32.mrf.mxu0
        %v10881 = vpop.f32.mrf.mxu0
        %v10882 = vpop.f32.mrf.mxu0
        %10883 = vdwg.mxu0
        %10884 = vmatprep.subr.bf16.mxu0 0
        %10885 = vmatpush1.bf16.xpose.msra.mxu0 0
        %10886 = vmatprep.subr.bf16.mxu0 0
        %10887 = vmatpush1.bf16.xpose.msra.mxu0 0
        %10888 = vmatprep.subr.bf16.mxu0 0
        %10889 = vmatpush1.bf16.xpose.msra.mxu0 0
        %10890 = vmatprep.subr.bf16.mxu0 0
        %10891 = vmatpush1.bf16.xpose.msra.mxu0 0
        %10892 = vmatprep.subr.bf16.mxu0 0
        %10893 = vmatpush1.bf16.xpose.msra.mxu0 0
        %10894 = vmatprep.subr.bf16.mxu0 0
        %10895 = vmatpush1.bf16.xpose.msra.mxu0 0
        %10896 = vmatprep.subr.bf16.mxu0 0
        %10897 = vmatpush1.bf16.xpose.msra.mxu0 0
        %10898 = vmatprep.subr.bf16.mxu0 %v3717
        %10899 = vmatpush1.bf16.xpose.msra.mxu0 %v3716
        %10900 = vmatprep.subr.bf16.mxu0 0
        %10901 = vmatpush2.bf16.xpose.msra.mxu0 0
        %10902 = vmatprep.subr.bf16.mxu0 0
        %10903 = vmatpush2.bf16.xpose.msra.mxu0 0
        %10904 = vmatprep.subr.bf16.mxu0 0
        %10905 = vmatpush2.bf16.xpose.msra.mxu0 0
        %10906 = vmatprep.subr.bf16.mxu0 0
        %10907 = vmatpush2.bf16.xpose.msra.mxu0 0
        %10908 = vmatprep.subr.bf16.mxu0 0
        %10909 = vmatpush2.bf16.xpose.msra.mxu0 0
        %10910 = vmatprep.subr.bf16.mxu0 0
        %10911 = vmatpush2.bf16.xpose.msra.mxu0 0
        %10912 = vmatprep.subr.bf16.mxu0 0
        %10913 = vmatpush2.bf16.xpose.msra.mxu0 0
        %10914 = vmatprep.subr.bf16.mxu0 0
        %10915 = vmatpush2.bf16.xpose.msra.mxu0 0
        %10916 = vmatprep.mubr.bf16.mxu0 %v1757
        %10917 = vmatmul.mubr.bf16.gmra.mxu0 %v1756
        %v10918 = vpop.f32.mrf.mxu0
        %v10919 = vadd.f32 %v10879, %v10918
        %v10920 = vpop.f32.mrf.mxu0
        %v10921 = vpop.f32.mrf.mxu0
        %v10922 = vpop.f32.mrf.mxu0
        %10923 = vdwg.mxu0
        %10924 = vmatprep.subr.bf16.mxu0 0
        %10925 = vmatpush1.bf16.xpose.msra.mxu0 0
        %10926 = vmatprep.subr.bf16.mxu0 0
        %10927 = vmatpush1.bf16.xpose.msra.mxu0 0
        %10928 = vmatprep.subr.bf16.mxu0 0
        %10929 = vmatpush1.bf16.xpose.msra.mxu0 0
        %10930 = vmatprep.subr.bf16.mxu0 0
        %10931 = vmatpush1.bf16.xpose.msra.mxu0 0
        %10932 = vmatprep.subr.bf16.mxu0 0
        %10933 = vmatpush1.bf16.xpose.msra.mxu0 0
        %10934 = vmatprep.subr.bf16.mxu0 0
        %10935 = vmatpush1.bf16.xpose.msra.mxu0 0
        %10936 = vmatprep.subr.bf16.mxu0 0
        %10937 = vmatpush1.bf16.xpose.msra.mxu0 0
        %10938 = vmatprep.subr.bf16.mxu0 %v3719
        %10939 = vmatpush1.bf16.xpose.msra.mxu0 %v3718
        %10940 = vmatprep.subr.bf16.mxu0 0
        %10941 = vmatpush2.bf16.xpose.msra.mxu0 0
        %10942 = vmatprep.subr.bf16.mxu0 0
        %10943 = vmatpush2.bf16.xpose.msra.mxu0 0
        %10944 = vmatprep.subr.bf16.mxu0 0
        %10945 = vmatpush2.bf16.xpose.msra.mxu0 0
        %10946 = vmatprep.subr.bf16.mxu0 0
        %10947 = vmatpush2.bf16.xpose.msra.mxu0 0
        %10948 = vmatprep.subr.bf16.mxu0 0
        %10949 = vmatpush2.bf16.xpose.msra.mxu0 0
        %10950 = vmatprep.subr.bf16.mxu0 0
        %10951 = vmatpush2.bf16.xpose.msra.mxu0 0
        %10952 = vmatprep.subr.bf16.mxu0 0
        %10953 = vmatpush2.bf16.xpose.msra.mxu0 0
        %10954 = vmatprep.subr.bf16.mxu0 0
        %10955 = vmatpush2.bf16.xpose.msra.mxu0 0
        %10956 = vmatprep.mubr.bf16.mxu0 %v1759
        %10957 = vmatmul.mubr.bf16.gmra.mxu0 %v1758
        %v10958 = vpop.f32.mrf.mxu0
        %v10959 = vadd.f32 %v10919, %v10958
        %v10960 = vpop.f32.mrf.mxu0
        %v10961 = vpop.f32.mrf.mxu0
        %v10962 = vpop.f32.mrf.mxu0
        %10963 = vdwg.mxu0
        %10964 = vmatprep.subr.bf16.mxu0 0
        %10965 = vmatpush1.bf16.xpose.msra.mxu0 0
        %10966 = vmatprep.subr.bf16.mxu0 0
        %10967 = vmatpush1.bf16.xpose.msra.mxu0 0
        %10968 = vmatprep.subr.bf16.mxu0 0
        %10969 = vmatpush1.bf16.xpose.msra.mxu0 0
        %10970 = vmatprep.subr.bf16.mxu0 0
        %10971 = vmatpush1.bf16.xpose.msra.mxu0 0
        %10972 = vmatprep.subr.bf16.mxu0 0
        %10973 = vmatpush1.bf16.xpose.msra.mxu0 0
        %10974 = vmatprep.subr.bf16.mxu0 0
        %10975 = vmatpush1.bf16.xpose.msra.mxu0 0
        %10976 = vmatprep.subr.bf16.mxu0 0
        %10977 = vmatpush1.bf16.xpose.msra.mxu0 0
        %10978 = vmatprep.subr.bf16.mxu0 %v3721
        %10979 = vmatpush1.bf16.xpose.msra.mxu0 %v3720
        %10980 = vmatprep.subr.bf16.mxu0 0
        %10981 = vmatpush2.bf16.xpose.msra.mxu0 0
        %10982 = vmatprep.subr.bf16.mxu0 0
        %10983 = vmatpush2.bf16.xpose.msra.mxu0 0
        %10984 = vmatprep.subr.bf16.mxu0 0
        %10985 = vmatpush2.bf16.xpose.msra.mxu0 0
        %10986 = vmatprep.subr.bf16.mxu0 0
        %10987 = vmatpush2.bf16.xpose.msra.mxu0 0
        %10988 = vmatprep.subr.bf16.mxu0 0
        %10989 = vmatpush2.bf16.xpose.msra.mxu0 0
        %10990 = vmatprep.subr.bf16.mxu0 0
        %10991 = vmatpush2.bf16.xpose.msra.mxu0 0
        %10992 = vmatprep.subr.bf16.mxu0 0
        %10993 = vmatpush2.bf16.xpose.msra.mxu0 0
        %10994 = vmatprep.subr.bf16.mxu0 0
        %10995 = vmatpush2.bf16.xpose.msra.mxu0 0
        %10996 = vmatprep.mubr.bf16.mxu0 %v1761
        %10997 = vmatmul.mubr.bf16.gmra.mxu0 %v1760
        %v10998 = vpop.f32.mrf.mxu0
        %v10999 = vadd.f32 %v10959, %v10998
        %v11000 = vpop.f32.mrf.mxu0
        %v11001 = vpop.f32.mrf.mxu0
        %v11002 = vpop.f32.mrf.mxu0
        %11003 = vdwg.mxu0
        %11004 = vmatprep.subr.bf16.mxu0 0
        %11005 = vmatpush1.bf16.xpose.msra.mxu0 0
        %11006 = vmatprep.subr.bf16.mxu0 0
        %11007 = vmatpush1.bf16.xpose.msra.mxu0 0
        %11008 = vmatprep.subr.bf16.mxu0 0
        %11009 = vmatpush1.bf16.xpose.msra.mxu0 0
        %11010 = vmatprep.subr.bf16.mxu0 0
        %11011 = vmatpush1.bf16.xpose.msra.mxu0 0
        %11012 = vmatprep.subr.bf16.mxu0 0
        %11013 = vmatpush1.bf16.xpose.msra.mxu0 0
        %11014 = vmatprep.subr.bf16.mxu0 0
        %11015 = vmatpush1.bf16.xpose.msra.mxu0 0
        %11016 = vmatprep.subr.bf16.mxu0 0
        %11017 = vmatpush1.bf16.xpose.msra.mxu0 0
        %11018 = vmatprep.subr.bf16.mxu0 %v3723
        %11019 = vmatpush1.bf16.xpose.msra.mxu0 %v3722
        %11020 = vmatprep.subr.bf16.mxu0 0
        %11021 = vmatpush2.bf16.xpose.msra.mxu0 0
        %11022 = vmatprep.subr.bf16.mxu0 0
        %11023 = vmatpush2.bf16.xpose.msra.mxu0 0
        %11024 = vmatprep.subr.bf16.mxu0 0
        %11025 = vmatpush2.bf16.xpose.msra.mxu0 0
        %11026 = vmatprep.subr.bf16.mxu0 0
        %11027 = vmatpush2.bf16.xpose.msra.mxu0 0
        %11028 = vmatprep.subr.bf16.mxu0 0
        %11029 = vmatpush2.bf16.xpose.msra.mxu0 0
        %11030 = vmatprep.subr.bf16.mxu0 0
        %11031 = vmatpush2.bf16.xpose.msra.mxu0 0
        %11032 = vmatprep.subr.bf16.mxu0 0
        %11033 = vmatpush2.bf16.xpose.msra.mxu0 0
        %11034 = vmatprep.subr.bf16.mxu0 0
        %11035 = vmatpush2.bf16.xpose.msra.mxu0 0
        %11036 = vmatprep.mubr.bf16.mxu0 %v1763
        %11037 = vmatmul.mubr.bf16.gmra.mxu0 %v1762
        %v11038 = vpop.f32.mrf.mxu0
        %v11039 = vadd.f32 %v10999, %v11038
        %v11040 = vpop.f32.mrf.mxu0
        %v11041 = vpop.f32.mrf.mxu0
        %v11042 = vpop.f32.mrf.mxu0
        %11043 = vdwg.mxu0
        %11044 = vmatprep.subr.bf16.mxu0 0
        %11045 = vmatpush1.bf16.xpose.msra.mxu0 0
        %11046 = vmatprep.subr.bf16.mxu0 0
        %11047 = vmatpush1.bf16.xpose.msra.mxu0 0
        %11048 = vmatprep.subr.bf16.mxu0 0
        %11049 = vmatpush1.bf16.xpose.msra.mxu0 0
        %11050 = vmatprep.subr.bf16.mxu0 0
        %11051 = vmatpush1.bf16.xpose.msra.mxu0 0
        %11052 = vmatprep.subr.bf16.mxu0 0
        %11053 = vmatpush1.bf16.xpose.msra.mxu0 0
        %11054 = vmatprep.subr.bf16.mxu0 0
        %11055 = vmatpush1.bf16.xpose.msra.mxu0 0
        %11056 = vmatprep.subr.bf16.mxu0 0
        %11057 = vmatpush1.bf16.xpose.msra.mxu0 0
        %11058 = vmatprep.subr.bf16.mxu0 %v3725
        %11059 = vmatpush1.bf16.xpose.msra.mxu0 %v3724
        %11060 = vmatprep.subr.bf16.mxu0 0
        %11061 = vmatpush2.bf16.xpose.msra.mxu0 0
        %11062 = vmatprep.subr.bf16.mxu0 0
        %11063 = vmatpush2.bf16.xpose.msra.mxu0 0
        %11064 = vmatprep.subr.bf16.mxu0 0
        %11065 = vmatpush2.bf16.xpose.msra.mxu0 0
        %11066 = vmatprep.subr.bf16.mxu0 0
        %11067 = vmatpush2.bf16.xpose.msra.mxu0 0
        %11068 = vmatprep.subr.bf16.mxu0 0
        %11069 = vmatpush2.bf16.xpose.msra.mxu0 0
        %11070 = vmatprep.subr.bf16.mxu0 0
        %11071 = vmatpush2.bf16.xpose.msra.mxu0 0
        %11072 = vmatprep.subr.bf16.mxu0 0
        %11073 = vmatpush2.bf16.xpose.msra.mxu0 0
        %11074 = vmatprep.subr.bf16.mxu0 0
        %11075 = vmatpush2.bf16.xpose.msra.mxu0 0
        %11076 = vmatprep.mubr.bf16.mxu0 %v1765
        %11077 = vmatmul.mubr.bf16.gmra.mxu0 %v1764
        %v11078 = vpop.f32.mrf.mxu0
        %v11079 = vadd.f32 %v11039, %v11078
        %v11080 = vpop.f32.mrf.mxu0
        %v11081 = vpop.f32.mrf.mxu0
        %v11082 = vpop.f32.mrf.mxu0
        %11083 = vdwg.mxu0
        %11084 = vmatprep.subr.bf16.mxu0 0
        %11085 = vmatpush1.bf16.xpose.msra.mxu0 0
        %11086 = vmatprep.subr.bf16.mxu0 0
        %11087 = vmatpush1.bf16.xpose.msra.mxu0 0
        %11088 = vmatprep.subr.bf16.mxu0 0
        %11089 = vmatpush1.bf16.xpose.msra.mxu0 0
        %11090 = vmatprep.subr.bf16.mxu0 0
        %11091 = vmatpush1.bf16.xpose.msra.mxu0 0
        %11092 = vmatprep.subr.bf16.mxu0 0
        %11093 = vmatpush1.bf16.xpose.msra.mxu0 0
        %11094 = vmatprep.subr.bf16.mxu0 0
        %11095 = vmatpush1.bf16.xpose.msra.mxu0 0
        %11096 = vmatprep.subr.bf16.mxu0 0
        %11097 = vmatpush1.bf16.xpose.msra.mxu0 0
        %11098 = vmatprep.subr.bf16.mxu0 %v3727
        %11099 = vmatpush1.bf16.xpose.msra.mxu0 %v3726
        %11100 = vmatprep.subr.bf16.mxu0 0
        %11101 = vmatpush2.bf16.xpose.msra.mxu0 0
        %11102 = vmatprep.subr.bf16.mxu0 0
        %11103 = vmatpush2.bf16.xpose.msra.mxu0 0
        %11104 = vmatprep.subr.bf16.mxu0 0
        %11105 = vmatpush2.bf16.xpose.msra.mxu0 0
        %11106 = vmatprep.subr.bf16.mxu0 0
        %11107 = vmatpush2.bf16.xpose.msra.mxu0 0
        %11108 = vmatprep.subr.bf16.mxu0 0
        %11109 = vmatpush2.bf16.xpose.msra.mxu0 0
        %11110 = vmatprep.subr.bf16.mxu0 0
        %11111 = vmatpush2.bf16.xpose.msra.mxu0 0
        %11112 = vmatprep.subr.bf16.mxu0 0
        %11113 = vmatpush2.bf16.xpose.msra.mxu0 0
        %11114 = vmatprep.subr.bf16.mxu0 0
        %11115 = vmatpush2.bf16.xpose.msra.mxu0 0
        %11116 = vmatprep.mubr.bf16.mxu0 %v1767
        %11117 = vmatmul.mubr.bf16.gmra.mxu0 %v1766
        %v11118 = vpop.f32.mrf.mxu0
        %v11119 = vadd.f32 %v11079, %v11118
        %v11120 = vpop.f32.mrf.mxu0
        %v11121 = vpop.f32.mrf.mxu0
        %v11122 = vpop.f32.mrf.mxu0
        %11123 = vdwg.mxu0
        %11124 = vmatprep.subr.bf16.mxu0 0
        %11125 = vmatpush1.bf16.xpose.msra.mxu0 0
        %11126 = vmatprep.subr.bf16.mxu0 0
        %11127 = vmatpush1.bf16.xpose.msra.mxu0 0
        %11128 = vmatprep.subr.bf16.mxu0 0
        %11129 = vmatpush1.bf16.xpose.msra.mxu0 0
        %11130 = vmatprep.subr.bf16.mxu0 0
        %11131 = vmatpush1.bf16.xpose.msra.mxu0 0
        %11132 = vmatprep.subr.bf16.mxu0 0
        %11133 = vmatpush1.bf16.xpose.msra.mxu0 0
        %11134 = vmatprep.subr.bf16.mxu0 0
        %11135 = vmatpush1.bf16.xpose.msra.mxu0 0
        %11136 = vmatprep.subr.bf16.mxu0 0
        %11137 = vmatpush1.bf16.xpose.msra.mxu0 0
        %11138 = vmatprep.subr.bf16.mxu0 %v3729
        %11139 = vmatpush1.bf16.xpose.msra.mxu0 %v3728
        %11140 = vmatprep.subr.bf16.mxu0 0
        %11141 = vmatpush2.bf16.xpose.msra.mxu0 0
        %11142 = vmatprep.subr.bf16.mxu0 0
        %11143 = vmatpush2.bf16.xpose.msra.mxu0 0
        %11144 = vmatprep.subr.bf16.mxu0 0
        %11145 = vmatpush2.bf16.xpose.msra.mxu0 0
        %11146 = vmatprep.subr.bf16.mxu0 0
        %11147 = vmatpush2.bf16.xpose.msra.mxu0 0
        %11148 = vmatprep.subr.bf16.mxu0 0
        %11149 = vmatpush2.bf16.xpose.msra.mxu0 0
        %11150 = vmatprep.subr.bf16.mxu0 0
        %11151 = vmatpush2.bf16.xpose.msra.mxu0 0
        %11152 = vmatprep.subr.bf16.mxu0 0
        %11153 = vmatpush2.bf16.xpose.msra.mxu0 0
        %11154 = vmatprep.subr.bf16.mxu0 0
        %11155 = vmatpush2.bf16.xpose.msra.mxu0 0
        %11156 = vmatprep.mubr.bf16.mxu0 %v1769
        %11157 = vmatmul.mubr.bf16.gmra.mxu0 %v1768
        %v11158 = vpop.f32.mrf.mxu0
        %v11159 = vadd.f32 %v11119, %v11158
        %v11160 = vpop.f32.mrf.mxu0
        %v11161 = vpop.f32.mrf.mxu0
        %v11162 = vpop.f32.mrf.mxu0
        %11163 = vdwg.mxu0
        %11164 = vmatprep.subr.bf16.mxu0 0
        %11165 = vmatpush1.bf16.xpose.msra.mxu0 0
        %11166 = vmatprep.subr.bf16.mxu0 0
        %11167 = vmatpush1.bf16.xpose.msra.mxu0 0
        %11168 = vmatprep.subr.bf16.mxu0 0
        %11169 = vmatpush1.bf16.xpose.msra.mxu0 0
        %11170 = vmatprep.subr.bf16.mxu0 0
        %11171 = vmatpush1.bf16.xpose.msra.mxu0 0
        %11172 = vmatprep.subr.bf16.mxu0 0
        %11173 = vmatpush1.bf16.xpose.msra.mxu0 0
        %11174 = vmatprep.subr.bf16.mxu0 0
        %11175 = vmatpush1.bf16.xpose.msra.mxu0 0
        %11176 = vmatprep.subr.bf16.mxu0 0
        %11177 = vmatpush1.bf16.xpose.msra.mxu0 0
        %11178 = vmatprep.subr.bf16.mxu0 %v3731
        %11179 = vmatpush1.bf16.xpose.msra.mxu0 %v3730
        %11180 = vmatprep.subr.bf16.mxu0 0
        %11181 = vmatpush2.bf16.xpose.msra.mxu0 0
        %11182 = vmatprep.subr.bf16.mxu0 0
        %11183 = vmatpush2.bf16.xpose.msra.mxu0 0
        %11184 = vmatprep.subr.bf16.mxu0 0
        %11185 = vmatpush2.bf16.xpose.msra.mxu0 0
        %11186 = vmatprep.subr.bf16.mxu0 0
        %11187 = vmatpush2.bf16.xpose.msra.mxu0 0
        %11188 = vmatprep.subr.bf16.mxu0 0
        %11189 = vmatpush2.bf16.xpose.msra.mxu0 0
        %11190 = vmatprep.subr.bf16.mxu0 0
        %11191 = vmatpush2.bf16.xpose.msra.mxu0 0
        %11192 = vmatprep.subr.bf16.mxu0 0
        %11193 = vmatpush2.bf16.xpose.msra.mxu0 0
        %11194 = vmatprep.subr.bf16.mxu0 0
        %11195 = vmatpush2.bf16.xpose.msra.mxu0 0
        %11196 = vmatprep.mubr.bf16.mxu0 %v1771
        %11197 = vmatmul.mubr.bf16.gmra.mxu0 %v1770
        %v11198 = vpop.f32.mrf.mxu0
        %v11199 = vadd.f32 %v11159, %v11198
        %v11200 = vpop.f32.mrf.mxu0
        %v11201 = vpop.f32.mrf.mxu0
        %v11202 = vpop.f32.mrf.mxu0
        %11203 = vdwg.mxu0
        %11204 = vmatprep.subr.bf16.mxu0 0
        %11205 = vmatpush1.bf16.xpose.msra.mxu0 0
        %11206 = vmatprep.subr.bf16.mxu0 0
        %11207 = vmatpush1.bf16.xpose.msra.mxu0 0
        %11208 = vmatprep.subr.bf16.mxu0 0
        %11209 = vmatpush1.bf16.xpose.msra.mxu0 0
        %11210 = vmatprep.subr.bf16.mxu0 0
        %11211 = vmatpush1.bf16.xpose.msra.mxu0 0
        %11212 = vmatprep.subr.bf16.mxu0 0
        %11213 = vmatpush1.bf16.xpose.msra.mxu0 0
        %11214 = vmatprep.subr.bf16.mxu0 0
        %11215 = vmatpush1.bf16.xpose.msra.mxu0 0
        %11216 = vmatprep.subr.bf16.mxu0 0
        %11217 = vmatpush1.bf16.xpose.msra.mxu0 0
        %11218 = vmatprep.subr.bf16.mxu0 %v3733
        %11219 = vmatpush1.bf16.xpose.msra.mxu0 %v3732
        %11220 = vmatprep.subr.bf16.mxu0 0
        %11221 = vmatpush2.bf16.xpose.msra.mxu0 0
        %11222 = vmatprep.subr.bf16.mxu0 0
        %11223 = vmatpush2.bf16.xpose.msra.mxu0 0
        %11224 = vmatprep.subr.bf16.mxu0 0
        %11225 = vmatpush2.bf16.xpose.msra.mxu0 0
        %11226 = vmatprep.subr.bf16.mxu0 0
        %11227 = vmatpush2.bf16.xpose.msra.mxu0 0
        %11228 = vmatprep.subr.bf16.mxu0 0
        %11229 = vmatpush2.bf16.xpose.msra.mxu0 0
        %11230 = vmatprep.subr.bf16.mxu0 0
        %11231 = vmatpush2.bf16.xpose.msra.mxu0 0
        %11232 = vmatprep.subr.bf16.mxu0 0
        %11233 = vmatpush2.bf16.xpose.msra.mxu0 0
        %11234 = vmatprep.subr.bf16.mxu0 0
        %11235 = vmatpush2.bf16.xpose.msra.mxu0 0
        %11236 = vmatprep.mubr.bf16.mxu0 %v1773
        %11237 = vmatmul.mubr.bf16.gmra.mxu0 %v1772
        %v11238 = vpop.f32.mrf.mxu0
        %v11239 = vadd.f32 %v11199, %v11238
        %v11240 = vpop.f32.mrf.mxu0
        %v11241 = vpop.f32.mrf.mxu0
        %v11242 = vpop.f32.mrf.mxu0
        %11243 = vdwg.mxu0
        %11244 = vmatprep.subr.bf16.mxu0 0
        %11245 = vmatpush1.bf16.xpose.msra.mxu0 0
        %11246 = vmatprep.subr.bf16.mxu0 0
        %11247 = vmatpush1.bf16.xpose.msra.mxu0 0
        %11248 = vmatprep.subr.bf16.mxu0 0
        %11249 = vmatpush1.bf16.xpose.msra.mxu0 0
        %11250 = vmatprep.subr.bf16.mxu0 0
        %11251 = vmatpush1.bf16.xpose.msra.mxu0 0
        %11252 = vmatprep.subr.bf16.mxu0 0
        %11253 = vmatpush1.bf16.xpose.msra.mxu0 0
        %11254 = vmatprep.subr.bf16.mxu0 0
        %11255 = vmatpush1.bf16.xpose.msra.mxu0 0
        %11256 = vmatprep.subr.bf16.mxu0 0
        %11257 = vmatpush1.bf16.xpose.msra.mxu0 0
        %11258 = vmatprep.subr.bf16.mxu0 %v3735
        %11259 = vmatpush1.bf16.xpose.msra.mxu0 %v3734
        %11260 = vmatprep.subr.bf16.mxu0 0
        %11261 = vmatpush2.bf16.xpose.msra.mxu0 0
        %11262 = vmatprep.subr.bf16.mxu0 0
        %11263 = vmatpush2.bf16.xpose.msra.mxu0 0
        %11264 = vmatprep.subr.bf16.mxu0 0
        %11265 = vmatpush2.bf16.xpose.msra.mxu0 0
        %11266 = vmatprep.subr.bf16.mxu0 0
        %11267 = vmatpush2.bf16.xpose.msra.mxu0 0
        %11268 = vmatprep.subr.bf16.mxu0 0
        %11269 = vmatpush2.bf16.xpose.msra.mxu0 0
        %11270 = vmatprep.subr.bf16.mxu0 0
        %11271 = vmatpush2.bf16.xpose.msra.mxu0 0
        %11272 = vmatprep.subr.bf16.mxu0 0
        %11273 = vmatpush2.bf16.xpose.msra.mxu0 0
        %11274 = vmatprep.subr.bf16.mxu0 0
        %11275 = vmatpush2.bf16.xpose.msra.mxu0 0
        %11276 = vmatprep.mubr.bf16.mxu0 %v1775
        %11277 = vmatmul.mubr.bf16.gmra.mxu0 %v1774
        %v11278 = vpop.f32.mrf.mxu0
        %v11279 = vadd.f32 %v11239, %v11278
        %v11280 = vpop.f32.mrf.mxu0
        %v11281 = vpop.f32.mrf.mxu0
        %v11282 = vpop.f32.mrf.mxu0
        %11283 = vdwg.mxu0
        %11284 = vmatprep.subr.bf16.mxu0 0
        %11285 = vmatpush1.bf16.xpose.msra.mxu0 0
        %11286 = vmatprep.subr.bf16.mxu0 0
        %11287 = vmatpush1.bf16.xpose.msra.mxu0 0
        %11288 = vmatprep.subr.bf16.mxu0 0
        %11289 = vmatpush1.bf16.xpose.msra.mxu0 0
        %11290 = vmatprep.subr.bf16.mxu0 0
        %11291 = vmatpush1.bf16.xpose.msra.mxu0 0
        %11292 = vmatprep.subr.bf16.mxu0 0
        %11293 = vmatpush1.bf16.xpose.msra.mxu0 0
        %11294 = vmatprep.subr.bf16.mxu0 0
        %11295 = vmatpush1.bf16.xpose.msra.mxu0 0
        %11296 = vmatprep.subr.bf16.mxu0 0
        %11297 = vmatpush1.bf16.xpose.msra.mxu0 0
        %11298 = vmatprep.subr.bf16.mxu0 %v3737
        %11299 = vmatpush1.bf16.xpose.msra.mxu0 %v3736
        %11300 = vmatprep.subr.bf16.mxu0 0
        %11301 = vmatpush2.bf16.xpose.msra.mxu0 0
        %11302 = vmatprep.subr.bf16.mxu0 0
        %11303 = vmatpush2.bf16.xpose.msra.mxu0 0
        %11304 = vmatprep.subr.bf16.mxu0 0
        %11305 = vmatpush2.bf16.xpose.msra.mxu0 0
        %11306 = vmatprep.subr.bf16.mxu0 0
        %11307 = vmatpush2.bf16.xpose.msra.mxu0 0
        %11308 = vmatprep.subr.bf16.mxu0 0
        %11309 = vmatpush2.bf16.xpose.msra.mxu0 0
        %11310 = vmatprep.subr.bf16.mxu0 0
        %11311 = vmatpush2.bf16.xpose.msra.mxu0 0
        %11312 = vmatprep.subr.bf16.mxu0 0
        %11313 = vmatpush2.bf16.xpose.msra.mxu0 0
        %11314 = vmatprep.subr.bf16.mxu0 0
        %11315 = vmatpush2.bf16.xpose.msra.mxu0 0
        %11316 = vmatprep.mubr.bf16.mxu0 %v1777
        %11317 = vmatmul.mubr.bf16.gmra.mxu0 %v1776
        %v11318 = vpop.f32.mrf.mxu0
        %v11319 = vadd.f32 %v11279, %v11318
        %v11320 = vpop.f32.mrf.mxu0
        %v11321 = vpop.f32.mrf.mxu0
        %v11322 = vpop.f32.mrf.mxu0
        %11323 = vdwg.mxu0
        %11324 = vmatprep.subr.bf16.mxu0 0
        %11325 = vmatpush1.bf16.xpose.msra.mxu0 0
        %11326 = vmatprep.subr.bf16.mxu0 0
        %11327 = vmatpush1.bf16.xpose.msra.mxu0 0
        %11328 = vmatprep.subr.bf16.mxu0 0
        %11329 = vmatpush1.bf16.xpose.msra.mxu0 0
        %11330 = vmatprep.subr.bf16.mxu0 0
        %11331 = vmatpush1.bf16.xpose.msra.mxu0 0
        %11332 = vmatprep.subr.bf16.mxu0 0
        %11333 = vmatpush1.bf16.xpose.msra.mxu0 0
        %11334 = vmatprep.subr.bf16.mxu0 0
        %11335 = vmatpush1.bf16.xpose.msra.mxu0 0
        %11336 = vmatprep.subr.bf16.mxu0 0
        %11337 = vmatpush1.bf16.xpose.msra.mxu0 0
        %11338 = vmatprep.subr.bf16.mxu0 %v3739
        %11339 = vmatpush1.bf16.xpose.msra.mxu0 %v3738
        %11340 = vmatprep.subr.bf16.mxu0 0
        %11341 = vmatpush2.bf16.xpose.msra.mxu0 0
        %11342 = vmatprep.subr.bf16.mxu0 0
        %11343 = vmatpush2.bf16.xpose.msra.mxu0 0
        %11344 = vmatprep.subr.bf16.mxu0 0
        %11345 = vmatpush2.bf16.xpose.msra.mxu0 0
        %11346 = vmatprep.subr.bf16.mxu0 0
        %11347 = vmatpush2.bf16.xpose.msra.mxu0 0
        %11348 = vmatprep.subr.bf16.mxu0 0
        %11349 = vmatpush2.bf16.xpose.msra.mxu0 0
        %11350 = vmatprep.subr.bf16.mxu0 0
        %11351 = vmatpush2.bf16.xpose.msra.mxu0 0
        %11352 = vmatprep.subr.bf16.mxu0 0
        %11353 = vmatpush2.bf16.xpose.msra.mxu0 0
        %11354 = vmatprep.subr.bf16.mxu0 0
        %11355 = vmatpush2.bf16.xpose.msra.mxu0 0
        %11356 = vmatprep.mubr.bf16.mxu0 %v1779
        %11357 = vmatmul.mubr.bf16.gmra.mxu0 %v1778
        %v11358 = vpop.f32.mrf.mxu0
        %v11359 = vadd.f32 %v11319, %v11358
        %v11360 = vpop.f32.mrf.mxu0
        %v11361 = vpop.f32.mrf.mxu0
        %v11362 = vpop.f32.mrf.mxu0
        %11363 = vdwg.mxu0
        %11364 = vmatprep.subr.bf16.mxu0 0
        %11365 = vmatpush1.bf16.xpose.msra.mxu0 0
        %11366 = vmatprep.subr.bf16.mxu0 0
        %11367 = vmatpush1.bf16.xpose.msra.mxu0 0
        %11368 = vmatprep.subr.bf16.mxu0 0
        %11369 = vmatpush1.bf16.xpose.msra.mxu0 0
        %11370 = vmatprep.subr.bf16.mxu0 0
        %11371 = vmatpush1.bf16.xpose.msra.mxu0 0
        %11372 = vmatprep.subr.bf16.mxu0 0
        %11373 = vmatpush1.bf16.xpose.msra.mxu0 0
        %11374 = vmatprep.subr.bf16.mxu0 0
        %11375 = vmatpush1.bf16.xpose.msra.mxu0 0
        %11376 = vmatprep.subr.bf16.mxu0 0
        %11377 = vmatpush1.bf16.xpose.msra.mxu0 0
        %11378 = vmatprep.subr.bf16.mxu0 %v3741
        %11379 = vmatpush1.bf16.xpose.msra.mxu0 %v3740
        %11380 = vmatprep.subr.bf16.mxu0 0
        %11381 = vmatpush2.bf16.xpose.msra.mxu0 0
        %11382 = vmatprep.subr.bf16.mxu0 0
        %11383 = vmatpush2.bf16.xpose.msra.mxu0 0
        %11384 = vmatprep.subr.bf16.mxu0 0
        %11385 = vmatpush2.bf16.xpose.msra.mxu0 0
        %11386 = vmatprep.subr.bf16.mxu0 0
        %11387 = vmatpush2.bf16.xpose.msra.mxu0 0
        %11388 = vmatprep.subr.bf16.mxu0 0
        %11389 = vmatpush2.bf16.xpose.msra.mxu0 0
        %11390 = vmatprep.subr.bf16.mxu0 0
        %11391 = vmatpush2.bf16.xpose.msra.mxu0 0
        %11392 = vmatprep.subr.bf16.mxu0 0
        %11393 = vmatpush2.bf16.xpose.msra.mxu0 0
        %11394 = vmatprep.subr.bf16.mxu0 0
        %11395 = vmatpush2.bf16.xpose.msra.mxu0 0
        %11396 = vmatprep.mubr.bf16.mxu0 %v1781
        %11397 = vmatmul.mubr.bf16.gmra.mxu0 %v1780
        %v11398 = vpop.f32.mrf.mxu0
        %v11399 = vadd.f32 %v11359, %v11398
        %v11400 = vpop.f32.mrf.mxu0
        %v11401 = vpop.f32.mrf.mxu0
        %v11402 = vpop.f32.mrf.mxu0
        %11403 = vdwg.mxu0
        %11404 = vmatprep.subr.bf16.mxu0 0
        %11405 = vmatpush1.bf16.xpose.msra.mxu0 0
        %11406 = vmatprep.subr.bf16.mxu0 0
        %11407 = vmatpush1.bf16.xpose.msra.mxu0 0
        %11408 = vmatprep.subr.bf16.mxu0 0
        %11409 = vmatpush1.bf16.xpose.msra.mxu0 0
        %11410 = vmatprep.subr.bf16.mxu0 0
        %11411 = vmatpush1.bf16.xpose.msra.mxu0 0
        %11412 = vmatprep.subr.bf16.mxu0 0
        %11413 = vmatpush1.bf16.xpose.msra.mxu0 0
        %11414 = vmatprep.subr.bf16.mxu0 0
        %11415 = vmatpush1.bf16.xpose.msra.mxu0 0
        %11416 = vmatprep.subr.bf16.mxu0 0
        %11417 = vmatpush1.bf16.xpose.msra.mxu0 0
        %11418 = vmatprep.subr.bf16.mxu0 %v3743
        %11419 = vmatpush1.bf16.xpose.msra.mxu0 %v3742
        %11420 = vmatprep.subr.bf16.mxu0 0
        %11421 = vmatpush2.bf16.xpose.msra.mxu0 0
        %11422 = vmatprep.subr.bf16.mxu0 0
        %11423 = vmatpush2.bf16.xpose.msra.mxu0 0
        %11424 = vmatprep.subr.bf16.mxu0 0
        %11425 = vmatpush2.bf16.xpose.msra.mxu0 0
        %11426 = vmatprep.subr.bf16.mxu0 0
        %11427 = vmatpush2.bf16.xpose.msra.mxu0 0
        %11428 = vmatprep.subr.bf16.mxu0 0
        %11429 = vmatpush2.bf16.xpose.msra.mxu0 0
        %11430 = vmatprep.subr.bf16.mxu0 0
        %11431 = vmatpush2.bf16.xpose.msra.mxu0 0
        %11432 = vmatprep.subr.bf16.mxu0 0
        %11433 = vmatpush2.bf16.xpose.msra.mxu0 0
        %11434 = vmatprep.subr.bf16.mxu0 0
        %11435 = vmatpush2.bf16.xpose.msra.mxu0 0
        %11436 = vmatprep.mubr.bf16.mxu0 %v1783
        %11437 = vmatmul.mubr.bf16.gmra.mxu0 %v1782
        %v11438 = vpop.f32.mrf.mxu0
        %v11439 = vadd.f32 %v11399, %v11438
        %v11440 = vpop.f32.mrf.mxu0
        %v11441 = vpop.f32.mrf.mxu0
        %v11442 = vpop.f32.mrf.mxu0
        %11443 = vdwg.mxu0
        %11444 = vmatprep.subr.bf16.mxu0 0
        %11445 = vmatpush1.bf16.xpose.msra.mxu0 0
        %11446 = vmatprep.subr.bf16.mxu0 0
        %11447 = vmatpush1.bf16.xpose.msra.mxu0 0
        %11448 = vmatprep.subr.bf16.mxu0 0
        %11449 = vmatpush1.bf16.xpose.msra.mxu0 0
        %11450 = vmatprep.subr.bf16.mxu0 0
        %11451 = vmatpush1.bf16.xpose.msra.mxu0 0
        %11452 = vmatprep.subr.bf16.mxu0 0
        %11453 = vmatpush1.bf16.xpose.msra.mxu0 0
        %11454 = vmatprep.subr.bf16.mxu0 0
        %11455 = vmatpush1.bf16.xpose.msra.mxu0 0
        %11456 = vmatprep.subr.bf16.mxu0 0
        %11457 = vmatpush1.bf16.xpose.msra.mxu0 0
        %11458 = vmatprep.subr.bf16.mxu0 %v3745
        %11459 = vmatpush1.bf16.xpose.msra.mxu0 %v3744
        %11460 = vmatprep.subr.bf16.mxu0 0
        %11461 = vmatpush2.bf16.xpose.msra.mxu0 0
        %11462 = vmatprep.subr.bf16.mxu0 0
        %11463 = vmatpush2.bf16.xpose.msra.mxu0 0
        %11464 = vmatprep.subr.bf16.mxu0 0
        %11465 = vmatpush2.bf16.xpose.msra.mxu0 0
        %11466 = vmatprep.subr.bf16.mxu0 0
        %11467 = vmatpush2.bf16.xpose.msra.mxu0 0
        %11468 = vmatprep.subr.bf16.mxu0 0
        %11469 = vmatpush2.bf16.xpose.msra.mxu0 0
        %11470 = vmatprep.subr.bf16.mxu0 0
        %11471 = vmatpush2.bf16.xpose.msra.mxu0 0
        %11472 = vmatprep.subr.bf16.mxu0 0
        %11473 = vmatpush2.bf16.xpose.msra.mxu0 0
        %11474 = vmatprep.subr.bf16.mxu0 0
        %11475 = vmatpush2.bf16.xpose.msra.mxu0 0
        %11476 = vmatprep.mubr.bf16.mxu0 %v1785
        %11477 = vmatmul.mubr.bf16.gmra.mxu0 %v1784
        %v11478 = vpop.f32.mrf.mxu0
        %v11479 = vadd.f32 %v11439, %v11478
        %v11480 = vpop.f32.mrf.mxu0
        %v11481 = vpop.f32.mrf.mxu0
        %v11482 = vpop.f32.mrf.mxu0
        %11483 = vdwg.mxu0
        %11484 = vmatprep.subr.bf16.mxu0 0
        %11485 = vmatpush1.bf16.xpose.msra.mxu0 0
        %11486 = vmatprep.subr.bf16.mxu0 0
        %11487 = vmatpush1.bf16.xpose.msra.mxu0 0
        %11488 = vmatprep.subr.bf16.mxu0 0
        %11489 = vmatpush1.bf16.xpose.msra.mxu0 0
        %11490 = vmatprep.subr.bf16.mxu0 0
        %11491 = vmatpush1.bf16.xpose.msra.mxu0 0
        %11492 = vmatprep.subr.bf16.mxu0 0
        %11493 = vmatpush1.bf16.xpose.msra.mxu0 0
        %11494 = vmatprep.subr.bf16.mxu0 0
        %11495 = vmatpush1.bf16.xpose.msra.mxu0 0
        %11496 = vmatprep.subr.bf16.mxu0 0
        %11497 = vmatpush1.bf16.xpose.msra.mxu0 0
        %11498 = vmatprep.subr.bf16.mxu0 %v3747
        %11499 = vmatpush1.bf16.xpose.msra.mxu0 %v3746
        %11500 = vmatprep.subr.bf16.mxu0 0
        %11501 = vmatpush2.bf16.xpose.msra.mxu0 0
        %11502 = vmatprep.subr.bf16.mxu0 0
        %11503 = vmatpush2.bf16.xpose.msra.mxu0 0
        %11504 = vmatprep.subr.bf16.mxu0 0
        %11505 = vmatpush2.bf16.xpose.msra.mxu0 0
        %11506 = vmatprep.subr.bf16.mxu0 0
        %11507 = vmatpush2.bf16.xpose.msra.mxu0 0
        %11508 = vmatprep.subr.bf16.mxu0 0
        %11509 = vmatpush2.bf16.xpose.msra.mxu0 0
        %11510 = vmatprep.subr.bf16.mxu0 0
        %11511 = vmatpush2.bf16.xpose.msra.mxu0 0
        %11512 = vmatprep.subr.bf16.mxu0 0
        %11513 = vmatpush2.bf16.xpose.msra.mxu0 0
        %11514 = vmatprep.subr.bf16.mxu0 0
        %11515 = vmatpush2.bf16.xpose.msra.mxu0 0
        %11516 = vmatprep.mubr.bf16.mxu0 %v1787
        %11517 = vmatmul.mubr.bf16.gmra.mxu0 %v1786
        %v11518 = vpop.f32.mrf.mxu0
        %v11519 = vadd.f32 %v11479, %v11518
        %v11520 = vpop.f32.mrf.mxu0
        %v11521 = vpop.f32.mrf.mxu0
        %v11522 = vpop.f32.mrf.mxu0
        %11523 = vdwg.mxu0
        %11524 = vmatprep.subr.bf16.mxu0 0
        %11525 = vmatpush1.bf16.xpose.msra.mxu0 0
        %11526 = vmatprep.subr.bf16.mxu0 0
        %11527 = vmatpush1.bf16.xpose.msra.mxu0 0
        %11528 = vmatprep.subr.bf16.mxu0 0
        %11529 = vmatpush1.bf16.xpose.msra.mxu0 0
        %11530 = vmatprep.subr.bf16.mxu0 0
        %11531 = vmatpush1.bf16.xpose.msra.mxu0 0
        %11532 = vmatprep.subr.bf16.mxu0 0
        %11533 = vmatpush1.bf16.xpose.msra.mxu0 0
        %11534 = vmatprep.subr.bf16.mxu0 0
        %11535 = vmatpush1.bf16.xpose.msra.mxu0 0
        %11536 = vmatprep.subr.bf16.mxu0 0
        %11537 = vmatpush1.bf16.xpose.msra.mxu0 0
        %11538 = vmatprep.subr.bf16.mxu0 %v3749
        %11539 = vmatpush1.bf16.xpose.msra.mxu0 %v3748
        %11540 = vmatprep.subr.bf16.mxu0 0
        %11541 = vmatpush2.bf16.xpose.msra.mxu0 0
        %11542 = vmatprep.subr.bf16.mxu0 0
        %11543 = vmatpush2.bf16.xpose.msra.mxu0 0
        %11544 = vmatprep.subr.bf16.mxu0 0
        %11545 = vmatpush2.bf16.xpose.msra.mxu0 0
        %11546 = vmatprep.subr.bf16.mxu0 0
        %11547 = vmatpush2.bf16.xpose.msra.mxu0 0
        %11548 = vmatprep.subr.bf16.mxu0 0
        %11549 = vmatpush2.bf16.xpose.msra.mxu0 0
        %11550 = vmatprep.subr.bf16.mxu0 0
        %11551 = vmatpush2.bf16.xpose.msra.mxu0 0
        %11552 = vmatprep.subr.bf16.mxu0 0
        %11553 = vmatpush2.bf16.xpose.msra.mxu0 0
        %11554 = vmatprep.subr.bf16.mxu0 0
        %11555 = vmatpush2.bf16.xpose.msra.mxu0 0
        %11556 = vmatprep.mubr.bf16.mxu0 %v1789
        %11557 = vmatmul.mubr.bf16.gmra.mxu0 %v1788
        %v11558 = vpop.f32.mrf.mxu0
        %v11559 = vadd.f32 %v11519, %v11558
        %v11560 = vpop.f32.mrf.mxu0
        %v11561 = vpop.f32.mrf.mxu0
        %v11562 = vpop.f32.mrf.mxu0
        %11563 = vdwg.mxu0
        %11564 = vmatprep.subr.bf16.mxu0 0
        %11565 = vmatpush1.bf16.xpose.msra.mxu0 0
        %11566 = vmatprep.subr.bf16.mxu0 0
        %11567 = vmatpush1.bf16.xpose.msra.mxu0 0
        %11568 = vmatprep.subr.bf16.mxu0 0
        %11569 = vmatpush1.bf16.xpose.msra.mxu0 0
        %11570 = vmatprep.subr.bf16.mxu0 0
        %11571 = vmatpush1.bf16.xpose.msra.mxu0 0
        %11572 = vmatprep.subr.bf16.mxu0 0
        %11573 = vmatpush1.bf16.xpose.msra.mxu0 0
        %11574 = vmatprep.subr.bf16.mxu0 0
        %11575 = vmatpush1.bf16.xpose.msra.mxu0 0
        %11576 = vmatprep.subr.bf16.mxu0 0
        %11577 = vmatpush1.bf16.xpose.msra.mxu0 0
        %11578 = vmatprep.subr.bf16.mxu0 %v3751
        %11579 = vmatpush1.bf16.xpose.msra.mxu0 %v3750
        %11580 = vmatprep.subr.bf16.mxu0 0
        %11581 = vmatpush2.bf16.xpose.msra.mxu0 0
        %11582 = vmatprep.subr.bf16.mxu0 0
        %11583 = vmatpush2.bf16.xpose.msra.mxu0 0
        %11584 = vmatprep.subr.bf16.mxu0 0
        %11585 = vmatpush2.bf16.xpose.msra.mxu0 0
        %11586 = vmatprep.subr.bf16.mxu0 0
        %11587 = vmatpush2.bf16.xpose.msra.mxu0 0
        %11588 = vmatprep.subr.bf16.mxu0 0
        %11589 = vmatpush2.bf16.xpose.msra.mxu0 0
        %11590 = vmatprep.subr.bf16.mxu0 0
        %11591 = vmatpush2.bf16.xpose.msra.mxu0 0
        %11592 = vmatprep.subr.bf16.mxu0 0
        %11593 = vmatpush2.bf16.xpose.msra.mxu0 0
        %11594 = vmatprep.subr.bf16.mxu0 0
        %11595 = vmatpush2.bf16.xpose.msra.mxu0 0
        %11596 = vmatprep.mubr.bf16.mxu0 %v1791
        %11597 = vmatmul.mubr.bf16.gmra.mxu0 %v1790
        %v11598 = vpop.f32.mrf.mxu0
        %v11599 = vadd.f32 %v11559, %v11598
        %v11600 = vpop.f32.mrf.mxu0
        %v11601 = vpop.f32.mrf.mxu0
        %v11602 = vpop.f32.mrf.mxu0
        %11603 = vdwg.mxu0
        %11604 = vmatprep.subr.bf16.mxu0 0
        %11605 = vmatpush1.bf16.xpose.msra.mxu0 0
        %11606 = vmatprep.subr.bf16.mxu0 0
        %11607 = vmatpush1.bf16.xpose.msra.mxu0 0
        %11608 = vmatprep.subr.bf16.mxu0 0
        %11609 = vmatpush1.bf16.xpose.msra.mxu0 0
        %11610 = vmatprep.subr.bf16.mxu0 0
        %11611 = vmatpush1.bf16.xpose.msra.mxu0 0
        %11612 = vmatprep.subr.bf16.mxu0 0
        %11613 = vmatpush1.bf16.xpose.msra.mxu0 0
        %11614 = vmatprep.subr.bf16.mxu0 0
        %11615 = vmatpush1.bf16.xpose.msra.mxu0 0
        %11616 = vmatprep.subr.bf16.mxu0 0
        %11617 = vmatpush1.bf16.xpose.msra.mxu0 0
        %11618 = vmatprep.subr.bf16.mxu0 %v3753
        %11619 = vmatpush1.bf16.xpose.msra.mxu0 %v3752
        %11620 = vmatprep.subr.bf16.mxu0 0
        %11621 = vmatpush2.bf16.xpose.msra.mxu0 0
        %11622 = vmatprep.subr.bf16.mxu0 0
        %11623 = vmatpush2.bf16.xpose.msra.mxu0 0
        %11624 = vmatprep.subr.bf16.mxu0 0
        %11625 = vmatpush2.bf16.xpose.msra.mxu0 0
        %11626 = vmatprep.subr.bf16.mxu0 0
        %11627 = vmatpush2.bf16.xpose.msra.mxu0 0
        %11628 = vmatprep.subr.bf16.mxu0 0
        %11629 = vmatpush2.bf16.xpose.msra.mxu0 0
        %11630 = vmatprep.subr.bf16.mxu0 0
        %11631 = vmatpush2.bf16.xpose.msra.mxu0 0
        %11632 = vmatprep.subr.bf16.mxu0 0
        %11633 = vmatpush2.bf16.xpose.msra.mxu0 0
        %11634 = vmatprep.subr.bf16.mxu0 0
        %11635 = vmatpush2.bf16.xpose.msra.mxu0 0
        %11636 = vmatprep.mubr.bf16.mxu0 %v1793
        %11637 = vmatmul.mubr.bf16.gmra.mxu0 %v1792
        %v11638 = vpop.f32.mrf.mxu0
        %v11639 = vadd.f32 %v11599, %v11638
        %v11640 = vpop.f32.mrf.mxu0
        %v11641 = vpop.f32.mrf.mxu0
        %v11642 = vpop.f32.mrf.mxu0
        %11643 = vdwg.mxu0
        %11644 = vmatprep.subr.bf16.mxu0 0
        %11645 = vmatpush1.bf16.xpose.msra.mxu0 0
        %11646 = vmatprep.subr.bf16.mxu0 0
        %11647 = vmatpush1.bf16.xpose.msra.mxu0 0
        %11648 = vmatprep.subr.bf16.mxu0 0
        %11649 = vmatpush1.bf16.xpose.msra.mxu0 0
        %11650 = vmatprep.subr.bf16.mxu0 0
        %11651 = vmatpush1.bf16.xpose.msra.mxu0 0
        %11652 = vmatprep.subr.bf16.mxu0 0
        %11653 = vmatpush1.bf16.xpose.msra.mxu0 0
        %11654 = vmatprep.subr.bf16.mxu0 0
        %11655 = vmatpush1.bf16.xpose.msra.mxu0 0
        %11656 = vmatprep.subr.bf16.mxu0 0
        %11657 = vmatpush1.bf16.xpose.msra.mxu0 0
        %11658 = vmatprep.subr.bf16.mxu0 %v3755
        %11659 = vmatpush1.bf16.xpose.msra.mxu0 %v3754
        %11660 = vmatprep.subr.bf16.mxu0 0
        %11661 = vmatpush2.bf16.xpose.msra.mxu0 0
        %11662 = vmatprep.subr.bf16.mxu0 0
        %11663 = vmatpush2.bf16.xpose.msra.mxu0 0
        %11664 = vmatprep.subr.bf16.mxu0 0
        %11665 = vmatpush2.bf16.xpose.msra.mxu0 0
        %11666 = vmatprep.subr.bf16.mxu0 0
        %11667 = vmatpush2.bf16.xpose.msra.mxu0 0
        %11668 = vmatprep.subr.bf16.mxu0 0
        %11669 = vmatpush2.bf16.xpose.msra.mxu0 0
        %11670 = vmatprep.subr.bf16.mxu0 0
        %11671 = vmatpush2.bf16.xpose.msra.mxu0 0
        %11672 = vmatprep.subr.bf16.mxu0 0
        %11673 = vmatpush2.bf16.xpose.msra.mxu0 0
        %11674 = vmatprep.subr.bf16.mxu0 0
        %11675 = vmatpush2.bf16.xpose.msra.mxu0 0
        %11676 = vmatprep.mubr.bf16.mxu0 %v1795
        %11677 = vmatmul.mubr.bf16.gmra.mxu0 %v1794
        %v11678 = vpop.f32.mrf.mxu0
        %v11679 = vadd.f32 %v11639, %v11678
        %v11680 = vpop.f32.mrf.mxu0
        %v11681 = vpop.f32.mrf.mxu0
        %v11682 = vpop.f32.mrf.mxu0
        %11683 = vdwg.mxu0
        %11684 = vmatprep.subr.bf16.mxu0 0
        %11685 = vmatpush1.bf16.xpose.msra.mxu0 0
        %11686 = vmatprep.subr.bf16.mxu0 0
        %11687 = vmatpush1.bf16.xpose.msra.mxu0 0
        %11688 = vmatprep.subr.bf16.mxu0 0
        %11689 = vmatpush1.bf16.xpose.msra.mxu0 0
        %11690 = vmatprep.subr.bf16.mxu0 0
        %11691 = vmatpush1.bf16.xpose.msra.mxu0 0
        %11692 = vmatprep.subr.bf16.mxu0 0
        %11693 = vmatpush1.bf16.xpose.msra.mxu0 0
        %11694 = vmatprep.subr.bf16.mxu0 0
        %11695 = vmatpush1.bf16.xpose.msra.mxu0 0
        %11696 = vmatprep.subr.bf16.mxu0 0
        %11697 = vmatpush1.bf16.xpose.msra.mxu0 0
        %11698 = vmatprep.subr.bf16.mxu0 %v3757
        %11699 = vmatpush1.bf16.xpose.msra.mxu0 %v3756
        %11700 = vmatprep.subr.bf16.mxu0 0
        %11701 = vmatpush2.bf16.xpose.msra.mxu0 0
        %11702 = vmatprep.subr.bf16.mxu0 0
        %11703 = vmatpush2.bf16.xpose.msra.mxu0 0
        %11704 = vmatprep.subr.bf16.mxu0 0
        %11705 = vmatpush2.bf16.xpose.msra.mxu0 0
        %11706 = vmatprep.subr.bf16.mxu0 0
        %11707 = vmatpush2.bf16.xpose.msra.mxu0 0
        %11708 = vmatprep.subr.bf16.mxu0 0
        %11709 = vmatpush2.bf16.xpose.msra.mxu0 0
        %11710 = vmatprep.subr.bf16.mxu0 0
        %11711 = vmatpush2.bf16.xpose.msra.mxu0 0
        %11712 = vmatprep.subr.bf16.mxu0 0
        %11713 = vmatpush2.bf16.xpose.msra.mxu0 0
        %11714 = vmatprep.subr.bf16.mxu0 0
        %11715 = vmatpush2.bf16.xpose.msra.mxu0 0
        %11716 = vmatprep.mubr.bf16.mxu0 %v1797
        %11717 = vmatmul.mubr.bf16.gmra.mxu0 %v1796
        %v11718 = vpop.f32.mrf.mxu0
        %v11719 = vadd.f32 %v11679, %v11718
        %v11720 = vpop.f32.mrf.mxu0
        %v11721 = vpop.f32.mrf.mxu0
        %v11722 = vpop.f32.mrf.mxu0
        %11723 = vdwg.mxu0
        %11724 = vmatprep.subr.bf16.mxu0 0
        %11725 = vmatpush1.bf16.xpose.msra.mxu0 0
        %11726 = vmatprep.subr.bf16.mxu0 0
        %11727 = vmatpush1.bf16.xpose.msra.mxu0 0
        %11728 = vmatprep.subr.bf16.mxu0 0
        %11729 = vmatpush1.bf16.xpose.msra.mxu0 0
        %11730 = vmatprep.subr.bf16.mxu0 0
        %11731 = vmatpush1.bf16.xpose.msra.mxu0 0
        %11732 = vmatprep.subr.bf16.mxu0 0
        %11733 = vmatpush1.bf16.xpose.msra.mxu0 0
        %11734 = vmatprep.subr.bf16.mxu0 0
        %11735 = vmatpush1.bf16.xpose.msra.mxu0 0
        %11736 = vmatprep.subr.bf16.mxu0 0
        %11737 = vmatpush1.bf16.xpose.msra.mxu0 0
        %11738 = vmatprep.subr.bf16.mxu0 %v3759
        %11739 = vmatpush1.bf16.xpose.msra.mxu0 %v3758
        %11740 = vmatprep.subr.bf16.mxu0 0
        %11741 = vmatpush2.bf16.xpose.msra.mxu0 0
        %11742 = vmatprep.subr.bf16.mxu0 0
        %11743 = vmatpush2.bf16.xpose.msra.mxu0 0
        %11744 = vmatprep.subr.bf16.mxu0 0
        %11745 = vmatpush2.bf16.xpose.msra.mxu0 0
        %11746 = vmatprep.subr.bf16.mxu0 0
        %11747 = vmatpush2.bf16.xpose.msra.mxu0 0
        %11748 = vmatprep.subr.bf16.mxu0 0
        %11749 = vmatpush2.bf16.xpose.msra.mxu0 0
        %11750 = vmatprep.subr.bf16.mxu0 0
        %11751 = vmatpush2.bf16.xpose.msra.mxu0 0
        %11752 = vmatprep.subr.bf16.mxu0 0
        %11753 = vmatpush2.bf16.xpose.msra.mxu0 0
        %11754 = vmatprep.subr.bf16.mxu0 0
        %11755 = vmatpush2.bf16.xpose.msra.mxu0 0
        %11756 = vmatprep.mubr.bf16.mxu0 %v1799
        %11757 = vmatmul.mubr.bf16.gmra.mxu0 %v1798
        %v11758 = vpop.f32.mrf.mxu0
        %v11759 = vadd.f32 %v11719, %v11758
        %v11760 = vpop.f32.mrf.mxu0
        %v11761 = vpop.f32.mrf.mxu0
        %v11762 = vpop.f32.mrf.mxu0
        %11763 = vdwg.mxu0
        %11764 = vmatprep.subr.bf16.mxu0 0
        %11765 = vmatpush1.bf16.xpose.msra.mxu0 0
        %11766 = vmatprep.subr.bf16.mxu0 0
        %11767 = vmatpush1.bf16.xpose.msra.mxu0 0
        %11768 = vmatprep.subr.bf16.mxu0 0
        %11769 = vmatpush1.bf16.xpose.msra.mxu0 0
        %11770 = vmatprep.subr.bf16.mxu0 0
        %11771 = vmatpush1.bf16.xpose.msra.mxu0 0
        %11772 = vmatprep.subr.bf16.mxu0 0
        %11773 = vmatpush1.bf16.xpose.msra.mxu0 0
        %11774 = vmatprep.subr.bf16.mxu0 0
        %11775 = vmatpush1.bf16.xpose.msra.mxu0 0
        %11776 = vmatprep.subr.bf16.mxu0 0
        %11777 = vmatpush1.bf16.xpose.msra.mxu0 0
        %11778 = vmatprep.subr.bf16.mxu0 %v3761
        %11779 = vmatpush1.bf16.xpose.msra.mxu0 %v3760
        %11780 = vmatprep.subr.bf16.mxu0 0
        %11781 = vmatpush2.bf16.xpose.msra.mxu0 0
        %11782 = vmatprep.subr.bf16.mxu0 0
        %11783 = vmatpush2.bf16.xpose.msra.mxu0 0
        %11784 = vmatprep.subr.bf16.mxu0 0
        %11785 = vmatpush2.bf16.xpose.msra.mxu0 0
        %11786 = vmatprep.subr.bf16.mxu0 0
        %11787 = vmatpush2.bf16.xpose.msra.mxu0 0
        %11788 = vmatprep.subr.bf16.mxu0 0
        %11789 = vmatpush2.bf16.xpose.msra.mxu0 0
        %11790 = vmatprep.subr.bf16.mxu0 0
        %11791 = vmatpush2.bf16.xpose.msra.mxu0 0
        %11792 = vmatprep.subr.bf16.mxu0 0
        %11793 = vmatpush2.bf16.xpose.msra.mxu0 0
        %11794 = vmatprep.subr.bf16.mxu0 0
        %11795 = vmatpush2.bf16.xpose.msra.mxu0 0
        %11796 = vmatprep.mubr.bf16.mxu0 %v1801
        %11797 = vmatmul.mubr.bf16.gmra.mxu0 %v1800
        %v11798 = vpop.f32.mrf.mxu0
        %v11799 = vadd.f32 %v11759, %v11798
        %v11800 = vpop.f32.mrf.mxu0
        %v11801 = vpop.f32.mrf.mxu0
        %v11802 = vpop.f32.mrf.mxu0
        %11803 = vdwg.mxu0
        %11804 = vmatprep.subr.bf16.mxu0 0
        %11805 = vmatpush1.bf16.xpose.msra.mxu0 0
        %11806 = vmatprep.subr.bf16.mxu0 0
        %11807 = vmatpush1.bf16.xpose.msra.mxu0 0
        %11808 = vmatprep.subr.bf16.mxu0 0
        %11809 = vmatpush1.bf16.xpose.msra.mxu0 0
        %11810 = vmatprep.subr.bf16.mxu0 0
        %11811 = vmatpush1.bf16.xpose.msra.mxu0 0
        %11812 = vmatprep.subr.bf16.mxu0 0
        %11813 = vmatpush1.bf16.xpose.msra.mxu0 0
        %11814 = vmatprep.subr.bf16.mxu0 0
        %11815 = vmatpush1.bf16.xpose.msra.mxu0 0
        %11816 = vmatprep.subr.bf16.mxu0 0
        %11817 = vmatpush1.bf16.xpose.msra.mxu0 0
        %11818 = vmatprep.subr.bf16.mxu0 %v3763
        %11819 = vmatpush1.bf16.xpose.msra.mxu0 %v3762
        %11820 = vmatprep.subr.bf16.mxu0 0
        %11821 = vmatpush2.bf16.xpose.msra.mxu0 0
        %11822 = vmatprep.subr.bf16.mxu0 0
        %11823 = vmatpush2.bf16.xpose.msra.mxu0 0
        %11824 = vmatprep.subr.bf16.mxu0 0
        %11825 = vmatpush2.bf16.xpose.msra.mxu0 0
        %11826 = vmatprep.subr.bf16.mxu0 0
        %11827 = vmatpush2.bf16.xpose.msra.mxu0 0
        %11828 = vmatprep.subr.bf16.mxu0 0
        %11829 = vmatpush2.bf16.xpose.msra.mxu0 0
        %11830 = vmatprep.subr.bf16.mxu0 0
        %11831 = vmatpush2.bf16.xpose.msra.mxu0 0
        %11832 = vmatprep.subr.bf16.mxu0 0
        %11833 = vmatpush2.bf16.xpose.msra.mxu0 0
        %11834 = vmatprep.subr.bf16.mxu0 0
        %11835 = vmatpush2.bf16.xpose.msra.mxu0 0
        %11836 = vmatprep.mubr.bf16.mxu0 %v1803
        %11837 = vmatmul.mubr.bf16.gmra.mxu0 %v1802
        %v11838 = vpop.f32.mrf.mxu0
        %v11839 = vadd.f32 %v11799, %v11838
        %v11840 = vpop.f32.mrf.mxu0
        %v11841 = vpop.f32.mrf.mxu0
        %v11842 = vpop.f32.mrf.mxu0
        %11843 = vdwg.mxu0
        %11844 = vmatprep.subr.bf16.mxu0 0
        %11845 = vmatpush1.bf16.xpose.msra.mxu0 0
        %11846 = vmatprep.subr.bf16.mxu0 0
        %11847 = vmatpush1.bf16.xpose.msra.mxu0 0
        %11848 = vmatprep.subr.bf16.mxu0 0
        %11849 = vmatpush1.bf16.xpose.msra.mxu0 0
        %11850 = vmatprep.subr.bf16.mxu0 0
        %11851 = vmatpush1.bf16.xpose.msra.mxu0 0
        %11852 = vmatprep.subr.bf16.mxu0 0
        %11853 = vmatpush1.bf16.xpose.msra.mxu0 0
        %11854 = vmatprep.subr.bf16.mxu0 0
        %11855 = vmatpush1.bf16.xpose.msra.mxu0 0
        %11856 = vmatprep.subr.bf16.mxu0 0
        %11857 = vmatpush1.bf16.xpose.msra.mxu0 0
        %11858 = vmatprep.subr.bf16.mxu0 %v3765
        %11859 = vmatpush1.bf16.xpose.msra.mxu0 %v3764
        %11860 = vmatprep.subr.bf16.mxu0 0
        %11861 = vmatpush2.bf16.xpose.msra.mxu0 0
        %11862 = vmatprep.subr.bf16.mxu0 0
        %11863 = vmatpush2.bf16.xpose.msra.mxu0 0
        %11864 = vmatprep.subr.bf16.mxu0 0
        %11865 = vmatpush2.bf16.xpose.msra.mxu0 0
        %11866 = vmatprep.subr.bf16.mxu0 0
        %11867 = vmatpush2.bf16.xpose.msra.mxu0 0
        %11868 = vmatprep.subr.bf16.mxu0 0
        %11869 = vmatpush2.bf16.xpose.msra.mxu0 0
        %11870 = vmatprep.subr.bf16.mxu0 0
        %11871 = vmatpush2.bf16.xpose.msra.mxu0 0
        %11872 = vmatprep.subr.bf16.mxu0 0
        %11873 = vmatpush2.bf16.xpose.msra.mxu0 0
        %11874 = vmatprep.subr.bf16.mxu0 0
        %11875 = vmatpush2.bf16.xpose.msra.mxu0 0
        %11876 = vmatprep.mubr.bf16.mxu0 %v1805
        %11877 = vmatmul.mubr.bf16.gmra.mxu0 %v1804
        %v11878 = vpop.f32.mrf.mxu0
        %v11879 = vadd.f32 %v11839, %v11878
        %v11880 = vpop.f32.mrf.mxu0
        %v11881 = vpop.f32.mrf.mxu0
        %v11882 = vpop.f32.mrf.mxu0
        %11883 = vdwg.mxu0
        %11884 = vmatprep.subr.bf16.mxu0 0
        %11885 = vmatpush1.bf16.xpose.msra.mxu0 0
        %11886 = vmatprep.subr.bf16.mxu0 0
        %11887 = vmatpush1.bf16.xpose.msra.mxu0 0
        %11888 = vmatprep.subr.bf16.mxu0 0
        %11889 = vmatpush1.bf16.xpose.msra.mxu0 0
        %11890 = vmatprep.subr.bf16.mxu0 0
        %11891 = vmatpush1.bf16.xpose.msra.mxu0 0
        %11892 = vmatprep.subr.bf16.mxu0 0
        %11893 = vmatpush1.bf16.xpose.msra.mxu0 0
        %11894 = vmatprep.subr.bf16.mxu0 0
        %11895 = vmatpush1.bf16.xpose.msra.mxu0 0
        %11896 = vmatprep.subr.bf16.mxu0 0
        %11897 = vmatpush1.bf16.xpose.msra.mxu0 0
        %11898 = vmatprep.subr.bf16.mxu0 %v3767
        %11899 = vmatpush1.bf16.xpose.msra.mxu0 %v3766
        %11900 = vmatprep.subr.bf16.mxu0 0
        %11901 = vmatpush2.bf16.xpose.msra.mxu0 0
        %11902 = vmatprep.subr.bf16.mxu0 0
        %11903 = vmatpush2.bf16.xpose.msra.mxu0 0
        %11904 = vmatprep.subr.bf16.mxu0 0
        %11905 = vmatpush2.bf16.xpose.msra.mxu0 0
        %11906 = vmatprep.subr.bf16.mxu0 0
        %11907 = vmatpush2.bf16.xpose.msra.mxu0 0
        %11908 = vmatprep.subr.bf16.mxu0 0
        %11909 = vmatpush2.bf16.xpose.msra.mxu0 0
        %11910 = vmatprep.subr.bf16.mxu0 0
        %11911 = vmatpush2.bf16.xpose.msra.mxu0 0
        %11912 = vmatprep.subr.bf16.mxu0 0
        %11913 = vmatpush2.bf16.xpose.msra.mxu0 0
        %11914 = vmatprep.subr.bf16.mxu0 0
        %11915 = vmatpush2.bf16.xpose.msra.mxu0 0
        %11916 = vmatprep.mubr.bf16.mxu0 %v1807
        %11917 = vmatmul.mubr.bf16.gmra.mxu0 %v1806
        %v11918 = vpop.f32.mrf.mxu0
        %v11919 = vadd.f32 %v11879, %v11918
        %v11920 = vpop.f32.mrf.mxu0
        %v11921 = vpop.f32.mrf.mxu0
        %v11922 = vpop.f32.mrf.mxu0
        %11923 = vdwg.mxu0
        %11924 = vmatprep.subr.bf16.mxu0 0
        %11925 = vmatpush1.bf16.xpose.msra.mxu0 0
        %11926 = vmatprep.subr.bf16.mxu0 0
        %11927 = vmatpush1.bf16.xpose.msra.mxu0 0
        %11928 = vmatprep.subr.bf16.mxu0 0
        %11929 = vmatpush1.bf16.xpose.msra.mxu0 0
        %11930 = vmatprep.subr.bf16.mxu0 0
        %11931 = vmatpush1.bf16.xpose.msra.mxu0 0
        %11932 = vmatprep.subr.bf16.mxu0 0
        %11933 = vmatpush1.bf16.xpose.msra.mxu0 0
        %11934 = vmatprep.subr.bf16.mxu0 0
        %11935 = vmatpush1.bf16.xpose.msra.mxu0 0
        %11936 = vmatprep.subr.bf16.mxu0 0
        %11937 = vmatpush1.bf16.xpose.msra.mxu0 0
        %11938 = vmatprep.subr.bf16.mxu0 %v3769
        %11939 = vmatpush1.bf16.xpose.msra.mxu0 %v3768
        %11940 = vmatprep.subr.bf16.mxu0 0
        %11941 = vmatpush2.bf16.xpose.msra.mxu0 0
        %11942 = vmatprep.subr.bf16.mxu0 0
        %11943 = vmatpush2.bf16.xpose.msra.mxu0 0
        %11944 = vmatprep.subr.bf16.mxu0 0
        %11945 = vmatpush2.bf16.xpose.msra.mxu0 0
        %11946 = vmatprep.subr.bf16.mxu0 0
        %11947 = vmatpush2.bf16.xpose.msra.mxu0 0
        %11948 = vmatprep.subr.bf16.mxu0 0
        %11949 = vmatpush2.bf16.xpose.msra.mxu0 0
        %11950 = vmatprep.subr.bf16.mxu0 0
        %11951 = vmatpush2.bf16.xpose.msra.mxu0 0
        %11952 = vmatprep.subr.bf16.mxu0 0
        %11953 = vmatpush2.bf16.xpose.msra.mxu0 0
        %11954 = vmatprep.subr.bf16.mxu0 0
        %11955 = vmatpush2.bf16.xpose.msra.mxu0 0
        %11956 = vmatprep.mubr.bf16.mxu0 %v1809
        %11957 = vmatmul.mubr.bf16.gmra.mxu0 %v1808
        %v11958 = vpop.f32.mrf.mxu0
        %v11959 = vadd.f32 %v11919, %v11958
        %v11960 = vpop.f32.mrf.mxu0
        %v11961 = vpop.f32.mrf.mxu0
        %v11962 = vpop.f32.mrf.mxu0
        %11963 = vdwg.mxu0
        %11964 = vmatprep.subr.bf16.mxu0 0
        %11965 = vmatpush1.bf16.xpose.msra.mxu0 0
        %11966 = vmatprep.subr.bf16.mxu0 0
        %11967 = vmatpush1.bf16.xpose.msra.mxu0 0
        %11968 = vmatprep.subr.bf16.mxu0 0
        %11969 = vmatpush1.bf16.xpose.msra.mxu0 0
        %11970 = vmatprep.subr.bf16.mxu0 0
        %11971 = vmatpush1.bf16.xpose.msra.mxu0 0
        %11972 = vmatprep.subr.bf16.mxu0 0
        %11973 = vmatpush1.bf16.xpose.msra.mxu0 0
        %11974 = vmatprep.subr.bf16.mxu0 0
        %11975 = vmatpush1.bf16.xpose.msra.mxu0 0
        %11976 = vmatprep.subr.bf16.mxu0 0
        %11977 = vmatpush1.bf16.xpose.msra.mxu0 0
        %11978 = vmatprep.subr.bf16.mxu0 %v3771
        %11979 = vmatpush1.bf16.xpose.msra.mxu0 %v3770
        %11980 = vmatprep.subr.bf16.mxu0 0
        %11981 = vmatpush2.bf16.xpose.msra.mxu0 0
        %11982 = vmatprep.subr.bf16.mxu0 0
        %11983 = vmatpush2.bf16.xpose.msra.mxu0 0
        %11984 = vmatprep.subr.bf16.mxu0 0
        %11985 = vmatpush2.bf16.xpose.msra.mxu0 0
        %11986 = vmatprep.subr.bf16.mxu0 0
        %11987 = vmatpush2.bf16.xpose.msra.mxu0 0
        %11988 = vmatprep.subr.bf16.mxu0 0
        %11989 = vmatpush2.bf16.xpose.msra.mxu0 0
        %11990 = vmatprep.subr.bf16.mxu0 0
        %11991 = vmatpush2.bf16.xpose.msra.mxu0 0
        %11992 = vmatprep.subr.bf16.mxu0 0
        %11993 = vmatpush2.bf16.xpose.msra.mxu0 0
        %11994 = vmatprep.subr.bf16.mxu0 0
        %11995 = vmatpush2.bf16.xpose.msra.mxu0 0
        %11996 = vmatprep.mubr.bf16.mxu0 %v1811
        %11997 = vmatmul.mubr.bf16.gmra.mxu0 %v1810
        %v11998 = vpop.f32.mrf.mxu0
        %v11999 = vadd.f32 %v11959, %v11998
        %v12000 = vpop.f32.mrf.mxu0
        %v12001 = vpop.f32.mrf.mxu0
        %v12002 = vpop.f32.mrf.mxu0
        %12003 = vdwg.mxu0
        %v12004 = vadd.f32 %v243, %v11999
        %vm12005 = vcmask 80896
        %12006 = vst.msk [vmem:[#allocation2] sm:$0xff] %vm12005, %v12004
        %p12007 = scmp.eq.s32.totalorder %s21, 2
        // Predicated region
        $region49: #{_pallas_classify.1} parent=31 // pred_check
          %p12008 = pneg %p12007
        $region50: #{_pallas_classify.1} parent=31 // pred_check_branch
          %12010 = sbr.rel (%p12008) target = $region52
        $region51: #{_pallas_classify.1} parent=31 // pred_region
          %v12011 = vld [vmem:[#allocation2] sm:$0xff]
          %v12012 = vsel %vm12005, %v12011, -inf
          %12013 = vmax.xlane.f32.xlu0 %v12012
          %v12014 = vpop.xlane.xlu0 %12013
          %v12015 = vsub.f32 %v12011, %v12014
          %v12016 = vmul.f32 %v12015, 1.442695
          %v12017 = vpow.pop %v12016
          %v12018 = vsel %vm12005, %v12017, 0.0
          %12019 = vadd.xlane.f32.xlu0 %v12018
          %v12020 = vpop.xlane.xlu0 %12019
          %v12021 = vrcp.pop %v12020
          %v12022 = vmul.f32 %v12017, %v12021
          %12023 = vst.msk [vmem:[#allocation9] sm:$0xff] %vm12005, %v12022
        $region52: #{_pallas_classify.1} parent=31 // pred_fallthru
          _
        // Predicated region
        $region53: #{_pallas_classify.1} parent=31 // pred_check
          %p12024 = pneg %p107
        $region54: #{_pallas_classify.1} parent=31 // pred_check_branch
          %12026 = sbr.rel (%p12024) target = $region56
        $region55: #{_pallas_classify.1} parent=31 // pred_region
          %s12028 = ssub.s32 128, 128
          %12029 = vsyncadd [#allocation5], %s12028
          %s12031 = sshll.u32 [#allocation9], 4
          %s12032 = int_to_ptr.vmem [resolvable:$true] %s12031
          %12034 = dma.vmem_to_hbm [thread:$0]  %s12032, 128, %s3, [#allocation5]
        $region56: #{_pallas_classify.1} parent=31 // pred_fallthru
          _
        // Predicated region
        $region57: #{_pallas_classify.1} parent=31 // pred_check
          %p12035 = pneg %p107
        $region58: #{_pallas_classify.1} parent=31 // pred_check_branch
          %12037 = sbr.rel (%p12035) target = $region60
        $region59: #{_pallas_classify.1} parent=31 // pred_region
          %12038 = dma.done [#allocation5], 128
        $region60: #{_pallas_classify.1} parent=31 // pred_fallthru
          _
      $region32: #{_pallas_classify.1} parent=5 // pred_fallthru
        _
      %p12039 = scmp.le.s32.totalorder 2, %s16
      // Predicated region
      $region61: #{_pallas_classify.1} parent=5 // pred_check
        %p12040 = pneg %p12039
      $region62: #{_pallas_classify.1} parent=5 // pred_check_branch
        %12042 = sbr.rel (%p12040) target = $region64
      $region63: #{_pallas_classify.1} parent=5 // pred_region
        %s12043 = ssub.s32 %s16, 2
      $region64: #{_pallas_classify.1} parent=5 // pred_fallthru
        _
    $region6: #{_pallas_classify.1} parent=1 // loop_footer
      %s20 = sadd.s32 1, %s16
    $region7: #{_pallas_classify.1} parent=1 // loop_footer_branch
      %15 = sbr.rel target = $region3
    $region8: #{_pallas_classify.1} parent=1 // loop_exit
      _
    %12044 = vsyncpa [#allocation4], 1
    %s12045 = scalar_lea.sflag [#allocation4], 1
    %12046 = vsyncpa %s12045, 1
    %12047 = vsyncpa [#allocation7], 1
    %s12048 = scalar_lea.sflag [#allocation7], 1
    %12049 = vsyncpa %s12048, 1
    %12050 = vsyncpa [#allocation5], 1
    %s12051 = scalar_lea.sflag [#allocation5], 1
    %12052 = vsyncpa %s12051, 1

</llo_original>
